<compile_context>
chip_gen: v7x
topology: tpu7x:2x2x1
jax: 0.10.0
libtpu: 0.0.40
codegen_flags: <defaults>
</compile_context>

<pallas_src>
import functools

import jax
import jax.numpy as jnp
from jax.experimental import pallas as pl
from jax.experimental.pallas import tpu as pltpu

EPS = 1e-5                            # BatchNorm2d default eps
MATMUL_DTYPE = jnp.bfloat16           # MXU input dtype (accumulation stays f32)
VMEM_LIMIT_BYTES = 48 * 1024 * 1024   # within v7x's 64 MiB; plenty on v5e/v6e


def _pick_band_h(H, W, N, row_target=4096):
    """Largest divisor of H giving <= row_target output slab rows per band,
    while keeping at least 2 bands total (v7x megacore balance) if possible."""
    target = max(1, row_target // (W + 2))
    divs = [d for d in range(1, H + 1) if H % d == 0]
    band_h = max([d for d in divs if d <= target], default=1)
    if N * (H // band_h) < 2:
        smaller = [d for d in divs if d < band_h]
        if smaller:
            band_h = max(smaller)
    return band_h


# ----------------------------- Pallas kernels ------------------------------

def _conv_band_kernel(xb_ref, w_ref, m_ref, *rest,
                      slab_out, width, shortcut_kind):
    """3x3 conv on one spatial row band.

    The band is a zero-padded input flattened to a 2-D slab (rows = padded
    spatial positions, lanes = channels).  Each of the nine taps is a statically
    shifted slice of the slab fed to the MXU (bf16 in, f32 accumulation) and
    summed into a LOCAL f32 accumulator.  The optional residual branch is fused
    (exact f32 add for identity, bf16 1x1 matmul for change_shape).  The output
    block is stored exactly once; per-band BN partial statistics (sum / sumsq
    over valid columns only) are emitted alongside."""
    if shortcut_kind == "conv":
        sx_ref, sw_ref, out_ref, st_ref = rest
    elif shortcut_kind == "identity":
        sx_ref, out_ref, st_ref = rest
    else:
        out_ref, st_ref = rest

    wp = width + 2
    xb = xb_ref[0]                                    # (slab_in, cin) bf16
    acc = None
    for kh in range(3):
        for kw in range(3):
            off = kh * wp + kw
            part = jnp.dot(xb[off:off + slab_out, :], w_ref[3 * kh + kw],
                           preferred_element_type=jnp.float32)
            acc = part if acc is None else acc + part

    if shortcut_kind == "conv":                       # fused 1x1 residual conv
        acc = acc + jnp.dot(sx_ref[0], sw_ref[...],
                            preferred_element_type=jnp.float32)
    elif shortcut_kind == "identity":                 # exact f32 residual add
        acc = acc + sx_ref[0]

    out_ref[0] = acc                                  # single store of the block

    # BN partial statistics over VALID columns only (mask zeroes the junk
    # W-padding columns); the output block itself is left unmasked because the
    # junk columns are dropped by the slab->NHWC reshape anyway.
    masked = acc * m_ref[...]
    st_ref[0, 0:1, :] = jnp.sum(masked, axis=0, keepdims=True)
    st_ref[0, 1:2, :] = jnp.sum(masked * masked, axis=0, keepdims=True)


def _bn_relu_kernel(x_ref, scale_ref, shift_ref, o_ref):
    # y = relu(x * scale + shift); per-channel scale/shift rows, f32 VPU math.
    y = jnp.maximum(x_ref[0] * scale_ref[...] + shift_ref[...], 0.0)
    o_ref[0] = y.astype(o_ref.dtype)


# ----------------------------- kernel wrappers ------------------------------

def conv3x3_band(bands, w9, mask, *, band_h, width,
                 shortcut=None, shortcut_kind="none"):
    B, slab_in, cin = bands.shape
    nf = w9.shape[-1]
    slab_out = band_h * (width + 2)

    kernel = functools.partial(_conv_band_kernel, slab_out=slab_out,
                               width=width, shortcut_kind=shortcut_kind)

    in_specs = [
        pl.BlockSpec((1, slab_in, cin), lambda b: (b, 0, 0)),   # band slab
        pl.BlockSpec((9, cin, nf), lambda b: (0, 0, 0)),        # tap weights
        pl.BlockSpec((slab_out, 1), lambda b: (0, 0)),          # stats mask
    ]
    args = [bands, w9, mask]
    if shortcut_kind == "conv":
        sx, sw = shortcut
        in_specs += [pl.BlockSpec((1, slab_out, sx.shape[-1]), lambda b: (b, 0, 0)),
                     pl.BlockSpec((sw.shape[0], nf), lambda b: (0, 0))]
        args += [sx, sw]
    elif shortcut_kind == "identity":
        in_specs += [pl.BlockSpec((1, slab_out, nf), lambda b: (b, 0, 0))]
        args += [shortcut]

    out_shape = (jax.ShapeDtypeStruct((B, slab_out, nf), jnp.float32),
                 jax.ShapeDtypeStruct((B, 2, nf), jnp.float32))
    out_specs = (pl.BlockSpec((1, slab_out, nf), lambda b: (b, 0, 0)),
                 pl.BlockSpec((1, 2, nf), lambda b: (b, 0, 0)))

    return pl.pallas_call(
        kernel,
        grid=(B,),
        in_specs=in_specs,
        out_specs=out_specs,
        out_shape=out_shape,
        compiler_params=pltpu.CompilerParams(
            dimension_semantics=("parallel",),
            vmem_limit_bytes=VMEM_LIMIT_BYTES),
    )(*args)


def bn_relu_apply(x, scale, shift, out_dtype):
    B, slab_out, nf = x.shape
    return pl.pallas_call(
        _bn_relu_kernel,
        grid=(B,),
        in_specs=[pl.BlockSpec((1, slab_out, nf), lambda b: (b, 0, 0)),
                  pl.BlockSpec((1, nf), lambda b: (0, 0)),
                  pl.BlockSpec((1, nf), lambda b: (0, 0))],
        out_specs=pl.BlockSpec((1, slab_out, nf), lambda b: (b, 0, 0)),
        out_shape=jax.ShapeDtypeStruct((B, slab_out, nf), out_dtype),
        compiler_params=pltpu.CompilerParams(
            dimension_semantics=("parallel",),
            vmem_limit_bytes=VMEM_LIMIT_BYTES),
    )(x, scale, shift)


# ------------------------------- JAX glue -----------------------------------

def _make_bands(h_nhwc, band_h):
    """(N,H,W,C) -> (N*H/band_h, (band_h+2)*(W+2)+2, C): zero-padded overlapping
    row bands flattened to the slab layout consumed by the conv kernel.  Two
    trailing zero rows keep the largest tap offset in bounds."""
    N, H, W, C = h_nhwc.shape
    xp = jnp.pad(h_nhwc, ((0, 0), (1, 1), (1, 1), (0, 0)))
    nb = H // band_h
    bands = jnp.stack([xp[:, b * band_h:b * band_h + band_h + 2]
                       for b in range(nb)], axis=1)
    bands = bands.reshape(N * nb, (band_h + 2) * (W + 2), C)
    return jnp.pad(bands, ((0, 0), (0, 2), (0, 0)))


def _make_shortcut_slab(x_nhwc, band_h):
    """(N,H,W,C) -> (N*H/band_h, band_h*(W+2), C), row-aligned with the conv
    output slab (the two extra W columns are junk and excluded from BN stats)."""
    N, H, W, C = x_nhwc.shape
    xw = jnp.pad(x_nhwc, ((0, 0), (0, 0), (0, 2), (0, 0)))
    nb = H // band_h
    return xw.reshape(N * nb, band_h * (W + 2), C)


def _make_row_mask(band_h, W):
    m = jnp.broadcast_to(jnp.arange(W + 2) < W, (band_h, W + 2))
    return m.astype(jnp.float32).reshape(band_h * (W + 2), 1)


def _slab_to_nhwc(slab, N, H, W, band_h):
    nb = H // band_h
    c = slab.shape[-1]
    y = slab.reshape(N, nb, band_h, W + 2, c)[:, :, :, :W, :]
    return y.reshape(N, H, W, c)


def _prep_w3x3(w_oihw):
    """PyTorch (Cout,Cin,3,3) -> bf16 (9, Cin, Cout), tap index = 3*kh+kw."""
    return jnp.transpose(w_oihw, (2, 3, 1, 0)).reshape(
        9, w_oihw.shape[1], w_oihw.shape[0]).astype(MATMUL_DTYPE)


def _prep_w1x1(w_oi11):
    """PyTorch (Cout,Cin,1,1) -> bf16 (Cin, Cout)."""
    return jnp.transpose(w_oi11[:, :, 0, 0], (1, 0)).astype(MATMUL_DTYPE)


def _bn_scale_shift(st, gamma, beta, n_valid):
    """Per-channel train-mode BN scale/shift from per-band (sum, sumsq) partials.
    Conv/shortcut biases are per-channel constants added before the batch-mean
    subtraction, so they cancel exactly and are never applied anywhere."""
    tot = jnp.sum(st, axis=0)                                # (2, nf)
    mean = tot[0] / n_valid
    var = jnp.maximum(tot[1] / n_valid - mean * mean, 0.0)
    scale = gamma.astype(jnp.float32) * jax.lax.rsqrt(var + EPS)
    shift = beta.astype(jnp.float32) - mean * scale
    return scale.reshape(1, -1), shift.reshape(1, -1)


def resblock_forward(x_nchw, params, no_layers):
    """Pallas-backed ResBlock forward.  Input/output layout: NCHW (PyTorch)."""
    N, C0, H, W = map(int, x_nchw.shape)
    nf = int(params["res_gamma"].shape[0])
    band_h = _pick_band_h(H, W, N)
    n_valid = float(N * H * W)
    mask = _make_row_mask(band_h, W)

    x_nhwc = jnp.transpose(x_nchw, (0, 2, 3, 1)).astype(jnp.float32)
    h = x_nhwc.astype(MATMUL_DTYPE)      # activations live in bf16 between layers

    # conv_layers: (Conv3x3 -> BN(train batch stats) -> ReLU) x (no_layers-1)
    for i in range(no_layers - 1):
        layer = params["conv_bn"][i]
        bands = _make_bands(h, band_h)
        w9 = _prep_w3x3(layer["w"])
        out, st = conv3x3_band(bands, w9, mask, band_h=band_h, width=W)
        scale, shift = _bn_scale_shift(st, layer["gamma"], layer["beta"], n_valid)
        slab = bn_relu_apply(out, scale, shift, MATMUL_DTYPE)
        h = _slab_to_nhwc(slab, N, H, W, band_h)

    # last Conv3x3 with the residual branch fused in, then res_layers BN + ReLU.
    bands = _make_bands(h, band_h)
    w9 = _prep_w3x3(params["last_w"])
    if "cs_w" in params:                              # change_shape: 1x1 conv
        sw = _prep_w1x1(params["cs_w"])
        sx = _make_shortcut_slab(x_nhwc, band_h).astype(MATMUL_DTYPE)
        out, st = conv3x3_band(bands, w9, mask, band_h=band_h, width=W,
                               shortcut=(sx, sw), shortcut_kind="conv")
    else:                                             # identity: exact f32 add
        sx = _make_shortcut_slab(x_nhwc, band_h)      # stays f32
        out, st = conv3x3_band(bands, w9, mask, band_h=band_h, width=W,
                               shortcut=sx, shortcut_kind="identity")
    scale, shift = _bn_scale_shift(st, params["res_gamma"], params["res_beta"],
                                   n_valid)
    y = _slab_to_nhwc(bn_relu_apply(out, scale, shift, jnp.float32),
                      N, H, W, band_h)
    return jnp.transpose(y, (0, 3, 1, 2))


# ---------------------------- pure-JAX reference -----------------------------

def _ref_conv(x, w, b, pad):
    y = jax.lax.conv_general_dilated(
        x, w, window_strides=(1, 1), padding=[(pad, pad), (pad, pad)],
        dimension_numbers=("NCHW", "OIHW", "NCHW"))
    return y + b.reshape(1, -1, 1, 1)


def _ref_bn_relu(x, g, b):
    mean = jnp.mean(x, axis=(0, 2, 3), keepdims=True)
    var = jnp.mean((x - mean) ** 2, axis=(0, 2, 3), keepdims=True)
    y = (x - mean) * jax.lax.rsqrt(var + EPS)
    y = y * g.reshape(1, -1, 1, 1) + b.reshape(1, -1, 1, 1)
    return jnp.maximum(y, 0.0)


def ref_forward(x, params, no_layers):
    h = x
    for i in range(no_layers - 1):
        layer = params["conv_bn"][i]
        h = _ref_bn_relu(_ref_conv(h, layer["w"], layer["b"], 1),
                         layer["gamma"], layer["beta"])
    out = _ref_conv(h, params["last_w"], params["last_b"], 1)
    if "cs_w" in params:
        res = _ref_conv(x, params["cs_w"], params["cs_b"], 0)
    else:
        res = x
    return _ref_bn_relu(out + res, params["res_gamma"], params["res_beta"])


# -------------------------------- main ---------------------------------------

def _init_conv(key, cout, cin, k):
    kw, kb = jax.random.split(key)
    fan_in = cin * k * k
    bound = 1.0 / (fan_in ** 0.5)
    w = jax.random.uniform(kw, (cout, cin, k, k), jnp.float32, -bound, bound)
    b = jax.random.uniform(kb, (cout,), jnp.float32, -bound, bound)
    return w, b


def make_params(key, in_dim, no_layers, no_filters):
    params = {"conv_bn": []}
    cur = in_dim
    for _ in range(no_layers - 1):
        key, k1, k2, k3 = jax.random.split(key, 4)
        w, b = _init_conv(k1, no_filters, cur, 3)
        gamma = 1.0 + 0.1 * jax.random.normal(k2, (no_filters,), jnp.float32)
        beta = 0.1 * jax.random.normal(k3, (no_filters,), jnp.float32)
        params["conv_bn"].append({"w": w, "b": b, "gamma": gamma, "beta": beta})
        cur = no_filters
    key, k1, k2, k3, k4 = jax.random.split(key, 5)
    params["last_w"], params["last_b"] = _init_conv(k1, no_filters, cur, 3)
    if in_dim != no_filters:
        params["cs_w"], params["cs_b"] = _init_conv(k2, no_filters, in_dim, 1)
    params["res_gamma"] = 1.0 + 0.1 * jax.random.normal(k3, (no_filters,), jnp.float32)
    params["res_beta"] = 0.1 * jax.random.normal(k4, (no_filters,), jnp.float32)
    return params


if __name__ == "__main__":
    def run_case(key, N, in_dim, H, W, no_layers, no_filters):
        kp, kx = jax.random.split(key)
        params = make_params(kp, in_dim, no_layers, no_filters)
        x = jax.random.normal(kx, (N, in_dim, H, W), jnp.float32)
        fwd = jax.jit(functools.partial(resblock_forward, no_layers=no_layers))
        y = jax.block_until_ready(fwd(x, params))
        assert y.shape == (N, no_filters, H, W), y.shape
        y_ref = ref_forward(x, params, no_layers)
        max_err = float(jnp.max(jnp.abs(y - y_ref)))
        # Tolerance covers bf16 MXU inputs / bf16 intermediate activations
        # (f32 accumulation and f32 BN statistics) vs the full-f32 reference.
        if not bool(jnp.all(jnp.isfinite(y))) or max_err > 5e-2:
            raise RuntimeError(f"mismatch vs reference: max abs err = {max_err}")

    key = jax.random.PRNGKey(0)
    k1, k2 = jax.random.split(key)
    run_case(k1, 2, 4, 16, 16, 2, 8)   # change_shape (1x1 conv) shortcut path
    run_case(k2, 2, 8, 16, 16, 3, 8)   # identity shortcut path, 2 hidden layers

    print("KERNEL_OK")
</pallas_src>

<mosaic_0001>
module attributes {stable_mosaic.version = 11 : i64} {
  func.func @_conv_band_kernel(%arg0: i32, %arg1: memref<1x326x4xbf16, #tpu.memory_space<vmem>>, %arg2: memref<9x4x8xbf16, #tpu.memory_space<vmem>>, %arg3: memref<288x1xf32, #tpu.memory_space<vmem>>, %arg4: memref<1x288x8xf32, #tpu.memory_space<vmem>>, %arg5: memref<1x2x8xf32, #tpu.memory_space<vmem>>) attributes {dimension_semantics = [#tpu.dimension_semantics<parallel>], iteration_bounds = array<i64: 2>, scalar_prefetch = 0 : i64, scratch_operands = 0 : i64, tpu.core_type = #tpu.core_type<tc>, window_params = [{transform_indices = @transform_0, window_bounds = array<i64: 1, 326, 4>}, {pipeline_mode = #tpu.pipeline_mode<synchronous>, transform_indices = @transform_1, window_bounds = array<i64: 9, 4, 8>}, {pipeline_mode = #tpu.pipeline_mode<synchronous>, transform_indices = @transform_2, window_bounds = array<i64: 288, 1>}, {transform_indices = @transform_3, window_bounds = array<i64: 1, 288, 8>}, {transform_indices = @transform_4, window_bounds = array<i64: 1, 2, 8>}]} {
    %c0 = arith.constant 0 : index
    %c0_0 = arith.constant 0 : index
    %c0_1 = arith.constant 0 : index
    %0 = vector.load %arg1[%c0, %c0_0, %c0_1] : memref<1x326x4xbf16, #tpu.memory_space<vmem>>, vector<1x326x4xbf16>
    %1 = vector.shape_cast %0 : vector<1x326x4xbf16> to vector<326x4xbf16>
    %2 = vector.extract_strided_slice %1 {offsets = [0, 0], sizes = [288, 4], strides = [1, 1]} : vector<326x4xbf16> to vector<288x4xbf16>
    %c0_2 = arith.constant 0 : index
    %c0_3 = arith.constant 0 : index
    %c0_4 = arith.constant 0 : index
    %3 = vector.load %arg2[%c0_2, %c0_3, %c0_4] : memref<9x4x8xbf16, #tpu.memory_space<vmem>>, vector<1x4x8xbf16>
    %4 = vector.shape_cast %3 : vector<1x4x8xbf16> to vector<4x8xbf16>
    %cst = arith.constant dense<0.000000e+00> : vector<288x8xf32>
    %5 = tpu.matmul %2, %4, %cst {dimension_numbers = #tpu.dot_dimension_numbers<[1], [0], [0], [1], [0, 0, 1, 1], [], []>} : vector<288x4xbf16>, vector<4x8xbf16>, vector<288x8xf32> -> vector<288x8xf32>
    %6 = vector.extract_strided_slice %1 {offsets = [1, 0], sizes = [288, 4], strides = [1, 1]} : vector<326x4xbf16> to vector<288x4xbf16>
    %c1 = arith.constant 1 : index
    %c0_5 = arith.constant 0 : index
    %c0_6 = arith.constant 0 : index
    %7 = vector.load %arg2[%c1, %c0_5, %c0_6] : memref<9x4x8xbf16, #tpu.memory_space<vmem>>, vector<1x4x8xbf16>
    %8 = vector.shape_cast %7 : vector<1x4x8xbf16> to vector<4x8xbf16>
    %cst_7 = arith.constant dense<0.000000e+00> : vector<288x8xf32>
    %9 = tpu.matmul %6, %8, %cst_7 {dimension_numbers = #tpu.dot_dimension_numbers<[1], [0], [0], [1], [0, 0, 1, 1], [], []>} : vector<288x4xbf16>, vector<4x8xbf16>, vector<288x8xf32> -> vector<288x8xf32>
    %10 = arith.addf %5, %9 : vector<288x8xf32>
    %11 = vector.extract_strided_slice %1 {offsets = [2, 0], sizes = [288, 4], strides = [1, 1]} : vector<326x4xbf16> to vector<288x4xbf16>
    %c2 = arith.constant 2 : index
    %c0_8 = arith.constant 0 : index
    %c0_9 = arith.constant 0 : index
    %12 = vector.load %arg2[%c2, %c0_8, %c0_9] : memref<9x4x8xbf16, #tpu.memory_space<vmem>>, vector<1x4x8xbf16>
    %13 = vector.shape_cast %12 : vector<1x4x8xbf16> to vector<4x8xbf16>
    %cst_10 = arith.constant dense<0.000000e+00> : vector<288x8xf32>
    %14 = tpu.matmul %11, %13, %cst_10 {dimension_numbers = #tpu.dot_dimension_numbers<[1], [0], [0], [1], [0, 0, 1, 1], [], []>} : vector<288x4xbf16>, vector<4x8xbf16>, vector<288x8xf32> -> vector<288x8xf32>
    %15 = arith.addf %10, %14 : vector<288x8xf32>
    %16 = vector.extract_strided_slice %1 {offsets = [18, 0], sizes = [288, 4], strides = [1, 1]} : vector<326x4xbf16> to vector<288x4xbf16>
    %c3 = arith.constant 3 : index
    %c0_11 = arith.constant 0 : index
    %c0_12 = arith.constant 0 : index
    %17 = vector.load %arg2[%c3, %c0_11, %c0_12] : memref<9x4x8xbf16, #tpu.memory_space<vmem>>, vector<1x4x8xbf16>
    %18 = vector.shape_cast %17 : vector<1x4x8xbf16> to vector<4x8xbf16>
    %cst_13 = arith.constant dense<0.000000e+00> : vector<288x8xf32>
    %19 = tpu.matmul %16, %18, %cst_13 {dimension_numbers = #tpu.dot_dimension_numbers<[1], [0], [0], [1], [0, 0, 1, 1], [], []>} : vector<288x4xbf16>, vector<4x8xbf16>, vector<288x8xf32> -> vector<288x8xf32>
    %20 = arith.addf %15, %19 : vector<288x8xf32>
    %21 = vector.extract_strided_slice %1 {offsets = [19, 0], sizes = [288, 4], strides = [1, 1]} : vector<326x4xbf16> to vector<288x4xbf16>
    %c4 = arith.constant 4 : index
    %c0_14 = arith.constant 0 : index
    %c0_15 = arith.constant 0 : index
    %22 = vector.load %arg2[%c4, %c0_14, %c0_15] : memref<9x4x8xbf16, #tpu.memory_space<vmem>>, vector<1x4x8xbf16>
    %23 = vector.shape_cast %22 : vector<1x4x8xbf16> to vector<4x8xbf16>
    %cst_16 = arith.constant dense<0.000000e+00> : vector<288x8xf32>
    %24 = tpu.matmul %21, %23, %cst_16 {dimension_numbers = #tpu.dot_dimension_numbers<[1], [0], [0], [1], [0, 0, 1, 1], [], []>} : vector<288x4xbf16>, vector<4x8xbf16>, vector<288x8xf32> -> vector<288x8xf32>
    %25 = arith.addf %20, %24 : vector<288x8xf32>
    %26 = vector.extract_strided_slice %1 {offsets = [20, 0], sizes = [288, 4], strides = [1, 1]} : vector<326x4xbf16> to vector<288x4xbf16>
    %c5 = arith.constant 5 : index
    %c0_17 = arith.constant 0 : index
    %c0_18 = arith.constant 0 : index
    %27 = vector.load %arg2[%c5, %c0_17, %c0_18] : memref<9x4x8xbf16, #tpu.memory_space<vmem>>, vector<1x4x8xbf16>
    %28 = vector.shape_cast %27 : vector<1x4x8xbf16> to vector<4x8xbf16>
    %cst_19 = arith.constant dense<0.000000e+00> : vector<288x8xf32>
    %29 = tpu.matmul %26, %28, %cst_19 {dimension_numbers = #tpu.dot_dimension_numbers<[1], [0], [0], [1], [0, 0, 1, 1], [], []>} : vector<288x4xbf16>, vector<4x8xbf16>, vector<288x8xf32> -> vector<288x8xf32>
    %30 = arith.addf %25, %29 : vector<288x8xf32>
    %31 = vector.extract_strided_slice %1 {offsets = [36, 0], sizes = [288, 4], strides = [1, 1]} : vector<326x4xbf16> to vector<288x4xbf16>
    %c6 = arith.constant 6 : index
    %c0_20 = arith.constant 0 : index
    %c0_21 = arith.constant 0 : index
    %32 = vector.load %arg2[%c6, %c0_20, %c0_21] : memref<9x4x8xbf16, #tpu.memory_space<vmem>>, vector<1x4x8xbf16>
    %33 = vector.shape_cast %32 : vector<1x4x8xbf16> to vector<4x8xbf16>
    %cst_22 = arith.constant dense<0.000000e+00> : vector<288x8xf32>
    %34 = tpu.matmul %31, %33, %cst_22 {dimension_numbers = #tpu.dot_dimension_numbers<[1], [0], [0], [1], [0, 0, 1, 1], [], []>} : vector<288x4xbf16>, vector<4x8xbf16>, vector<288x8xf32> -> vector<288x8xf32>
    %35 = arith.addf %30, %34 : vector<288x8xf32>
    %36 = vector.extract_strided_slice %1 {offsets = [37, 0], sizes = [288, 4], strides = [1, 1]} : vector<326x4xbf16> to vector<288x4xbf16>
    %c7 = arith.constant 7 : index
    %c0_23 = arith.constant 0 : index
    %c0_24 = arith.constant 0 : index
    %37 = vector.load %arg2[%c7, %c0_23, %c0_24] : memref<9x4x8xbf16, #tpu.memory_space<vmem>>, vector<1x4x8xbf16>
    %38 = vector.shape_cast %37 : vector<1x4x8xbf16> to vector<4x8xbf16>
    %cst_25 = arith.constant dense<0.000000e+00> : vector<288x8xf32>
    %39 = tpu.matmul %36, %38, %cst_25 {dimension_numbers = #tpu.dot_dimension_numbers<[1], [0], [0], [1], [0, 0, 1, 1], [], []>} : vector<288x4xbf16>, vector<4x8xbf16>, vector<288x8xf32> -> vector<288x8xf32>
    %40 = arith.addf %35, %39 : vector<288x8xf32>
    %41 = vector.extract_strided_slice %1 {offsets = [38, 0], sizes = [288, 4], strides = [1, 1]} : vector<326x4xbf16> to vector<288x4xbf16>
    %c8 = arith.constant 8 : index
    %c0_26 = arith.constant 0 : index
    %c0_27 = arith.constant 0 : index
    %42 = vector.load %arg2[%c8, %c0_26, %c0_27] : memref<9x4x8xbf16, #tpu.memory_space<vmem>>, vector<1x4x8xbf16>
    %43 = vector.shape_cast %42 : vector<1x4x8xbf16> to vector<4x8xbf16>
    %cst_28 = arith.constant dense<0.000000e+00> : vector<288x8xf32>
    %44 = tpu.matmul %41, %43, %cst_28 {dimension_numbers = #tpu.dot_dimension_numbers<[1], [0], [0], [1], [0, 0, 1, 1], [], []>} : vector<288x4xbf16>, vector<4x8xbf16>, vector<288x8xf32> -> vector<288x8xf32>
    %45 = arith.addf %40, %44 : vector<288x8xf32>
    %c0_29 = arith.constant 0 : index
    %c0_30 = arith.constant 0 : index
    %c0_31 = arith.constant 0 : index
    %46 = vector.load %arg4[%c0_29, %c0_30, %c0_31] : memref<1x288x8xf32, #tpu.memory_space<vmem>>, vector<1x288x8xf32>
    %47 = vector.shape_cast %46 : vector<1x288x8xf32> to vector<288x8xf32>
    %48 = vector.shape_cast %45 : vector<288x8xf32> to vector<1x288x8xf32>
    tpu.vector_store %arg4[%c0_29, %c0_30, %c0_31], %48 {strides = array<i32>} : memref<1x288x8xf32, #tpu.memory_space<vmem>>, vector<1x288x8xf32>,
    %c0_32 = arith.constant 0 : index
    %c0_33 = arith.constant 0 : index
    %49 = vector.load %arg3[%c0_32, %c0_33] : memref<288x1xf32, #tpu.memory_space<vmem>>, vector<288x1xf32>
    %50 = vector.broadcast %49 : vector<288x1xf32> to vector<288x8xf32>
    %51 = arith.mulf %45, %50 : vector<288x8xf32>
    %cst_34 = arith.constant dense<0.000000e+00> : vector<8xf32>
    %52 = vector.multi_reduction <add>, %51, %cst_34 [0] : vector<288x8xf32> to vector<8xf32>
    %53 = vector.shape_cast %52 : vector<8xf32> to vector<1x8xf32>
    %c0_35 = arith.constant 0 : index
    %c0_36 = arith.constant 0 : index
    %c0_37 = arith.constant 0 : index
    %54 = vector.load %arg5[%c0_35, %c0_36, %c0_37] : memref<1x2x8xf32, #tpu.memory_space<vmem>>, vector<1x1x8xf32>
    %55 = vector.shape_cast %54 : vector<1x1x8xf32> to vector<1x8xf32>
    %56 = vector.shape_cast %53 : vector<1x8xf32> to vector<1x1x8xf32>
    tpu.vector_store %arg5[%c0_35, %c0_36, %c0_37], %56 {strides = array<i32>} : memref<1x2x8xf32, #tpu.memory_space<vmem>>, vector<1x1x8xf32>,
    %57 = arith.mulf %51, %51 : vector<288x8xf32>
    %cst_38 = arith.constant dense<0.000000e+00> : vector<8xf32>
    %58 = vector.multi_reduction <add>, %57, %cst_38 [0] : vector<288x8xf32> to vector<8xf32>
    %59 = vector.shape_cast %58 : vector<8xf32> to vector<1x8xf32>
    %c0_39 = arith.constant 0 : index
    %c1_40 = arith.constant 1 : index
    %c0_41 = arith.constant 0 : index
    %60 = vector.load %arg5[%c0_39, %c1_40, %c0_41] : memref<1x2x8xf32, #tpu.memory_space<vmem>>, vector<1x1x8xf32>
    %61 = vector.shape_cast %60 : vector<1x1x8xf32> to vector<1x8xf32>
    %62 = vector.shape_cast %59 : vector<1x8xf32> to vector<1x1x8xf32>
    tpu.vector_store %arg5[%c0_39, %c1_40, %c0_41], %62 {strides = array<i32>} : memref<1x2x8xf32, #tpu.memory_space<vmem>>, vector<1x1x8xf32>,
    return
  }
  func.func @transform_0(%arg0: i32) -> (i32, i32, i32) {
    %c0_i32 = arith.constant 0 : i32
    %c0_i32_0 = arith.constant 0 : i32
    %c0_i32_1 = arith.constant 0 : i32
    return %arg0, %c0_i32, %c0_i32_0 : i32, i32, i32
  }
  func.func @transform_1(%arg0: i32) -> (i32, i32, i32) {
    %c0_i32 = arith.constant 0 : i32
    %c0_i32_0 = arith.constant 0 : i32
    %c0_i32_1 = arith.constant 0 : i32
    %c0_i32_2 = arith.constant 0 : i32
    return %c0_i32, %c0_i32_0, %c0_i32_1 : i32, i32, i32
  }
  func.func @transform_2(%arg0: i32) -> (i32, i32) {
    %c0_i32 = arith.constant 0 : i32
    %c0_i32_0 = arith.constant 0 : i32
    %c0_i32_1 = arith.constant 0 : i32
    return %c0_i32, %c0_i32_0 : i32, i32
  }
  func.func @transform_3(%arg0: i32) -> (i32, i32, i32) {
    %c0_i32 = arith.constant 0 : i32
    %c0_i32_0 = arith.constant 0 : i32
    %c0_i32_1 = arith.constant 0 : i32
    return %arg0, %c0_i32, %c0_i32_0 : i32, i32, i32
  }
  func.func @transform_4(%arg0: i32) -> (i32, i32, i32) {
    %c0_i32 = arith.constant 0 : i32
    %c0_i32_0 = arith.constant 0 : i32
    %c0_i32_1 = arith.constant 0 : i32
    return %arg0, %c0_i32, %c0_i32_0 : i32, i32, i32
  }
}

module attributes {stable_mosaic.version = 11 : i64} {
  func.func @_bn_relu_kernel(%arg0: i32, %arg1: memref<1x288x8xf32, #tpu.memory_space<vmem>>, %arg2: memref<1x8xf32, #tpu.memory_space<vmem>>, %arg3: memref<1x8xf32, #tpu.memory_space<vmem>>, %arg4: memref<1x288x8xbf16, #tpu.memory_space<vmem>>) attributes {dimension_semantics = [#tpu.dimension_semantics<parallel>], iteration_bounds = array<i64: 2>, scalar_prefetch = 0 : i64, scratch_operands = 0 : i64, tpu.core_type = #tpu.core_type<tc>, window_params = [{transform_indices = @transform_0, window_bounds = array<i64: 1, 288, 8>}, {pipeline_mode = #tpu.pipeline_mode<synchronous>, transform_indices = @transform_1, window_bounds = array<i64: 1, 8>}, {pipeline_mode = #tpu.pipeline_mode<synchronous>, transform_indices = @transform_2, window_bounds = array<i64: 1, 8>}, {transform_indices = @transform_3, window_bounds = array<i64: 1, 288, 8>}]} {
    %c0 = arith.constant 0 : index
    %c0_0 = arith.constant 0 : index
    %c0_1 = arith.constant 0 : index
    %0 = vector.load %arg1[%c0, %c0_0, %c0_1] : memref<1x288x8xf32, #tpu.memory_space<vmem>>, vector<1x288x8xf32>
    %1 = vector.shape_cast %0 : vector<1x288x8xf32> to vector<288x8xf32>
    %c0_2 = arith.constant 0 : index
    %c0_3 = arith.constant 0 : index
    %2 = vector.load %arg2[%c0_2, %c0_3] : memref<1x8xf32, #tpu.memory_space<vmem>>, vector<1x8xf32>
    %3 = vector.broadcast %2 : vector<1x8xf32> to vector<288x8xf32>
    %4 = arith.mulf %1, %3 : vector<288x8xf32>
    %c0_4 = arith.constant 0 : index
    %c0_5 = arith.constant 0 : index
    %5 = vector.load %arg3[%c0_4, %c0_5] : memref<1x8xf32, #tpu.memory_space<vmem>>, vector<1x8xf32>
    %6 = vector.broadcast %5 : vector<1x8xf32> to vector<288x8xf32>
    %7 = arith.addf %4, %6 : vector<288x8xf32>
    %cst = arith.constant 0.000000e+00 : f32
    %8 = vector.broadcast %cst : f32 to vector<288x8xf32>
    %9 = arith.maximumf %7, %8 : vector<288x8xf32>
    %10 = arith.truncf %9 : vector<288x8xf32> to vector<288x8xbf16>
    %c0_6 = arith.constant 0 : index
    %c0_7 = arith.constant 0 : index
    %c0_8 = arith.constant 0 : index
    %11 = vector.load %arg4[%c0_6, %c0_7, %c0_8] : memref<1x288x8xbf16, #tpu.memory_space<vmem>>, vector<1x288x8xbf16>
    %12 = vector.shape_cast %11 : vector<1x288x8xbf16> to vector<288x8xbf16>
    %13 = vector.shape_cast %10 : vector<288x8xbf16> to vector<1x288x8xbf16>
    tpu.vector_store %arg4[%c0_6, %c0_7, %c0_8], %13 {strides = array<i32>} : memref<1x288x8xbf16, #tpu.memory_space<vmem>>, vector<1x288x8xbf16>,
    return
  }
  func.func @transform_0(%arg0: i32) -> (i32, i32, i32) {
    %c0_i32 = arith.constant 0 : i32
    %c0_i32_0 = arith.constant 0 : i32
    %c0_i32_1 = arith.constant 0 : i32
    return %arg0, %c0_i32, %c0_i32_0 : i32, i32, i32
  }
  func.func @transform_1(%arg0: i32) -> (i32, i32) {
    %c0_i32 = arith.constant 0 : i32
    %c0_i32_0 = arith.constant 0 : i32
    %c0_i32_1 = arith.constant 0 : i32
    return %c0_i32, %c0_i32_0 : i32, i32
  }
  func.func @transform_2(%arg0: i32) -> (i32, i32) {
    %c0_i32 = arith.constant 0 : i32
    %c0_i32_0 = arith.constant 0 : i32
    %c0_i32_1 = arith.constant 0 : i32
    return %c0_i32, %c0_i32_0 : i32, i32
  }
  func.func @transform_3(%arg0: i32) -> (i32, i32, i32) {
    %c0_i32 = arith.constant 0 : i32
    %c0_i32_0 = arith.constant 0 : i32
    %c0_i32_1 = arith.constant 0 : i32
    return %arg0, %c0_i32, %c0_i32_0 : i32, i32, i32
  }
}

module attributes {stable_mosaic.version = 11 : i64} {
  func.func @_conv_band_kernel(%arg0: i32, %arg1: memref<1x326x8xbf16, #tpu.memory_space<vmem>>, %arg2: memref<9x8x8xbf16, #tpu.memory_space<vmem>>, %arg3: memref<288x1xf32, #tpu.memory_space<vmem>>, %arg4: memref<1x288x4xbf16, #tpu.memory_space<vmem>>, %arg5: memref<4x8xbf16, #tpu.memory_space<vmem>>, %arg6: memref<1x288x8xf32, #tpu.memory_space<vmem>>, %arg7: memref<1x2x8xf32, #tpu.memory_space<vmem>>) attributes {dimension_semantics = [#tpu.dimension_semantics<parallel>], iteration_bounds = array<i64: 2>, scalar_prefetch = 0 : i64, scratch_operands = 0 : i64, tpu.core_type = #tpu.core_type<tc>, window_params = [{transform_indices = @transform_0, window_bounds = array<i64: 1, 326, 8>}, {pipeline_mode = #tpu.pipeline_mode<synchronous>, transform_indices = @transform_1, window_bounds = array<i64: 9, 8, 8>}, {pipeline_mode = #tpu.pipeline_mode<synchronous>, transform_indices = @transform_2, window_bounds = array<i64: 288, 1>}, {transform_indices = @transform_3, window_bounds = array<i64: 1, 288, 4>}, {pipeline_mode = #tpu.pipeline_mode<synchronous>, transform_indices = @transform_4, window_bounds = array<i64: 4, 8>}, {transform_indices = @transform_5, window_bounds = array<i64: 1, 288, 8>}, {transform_indices = @transform_6, window_bounds = array<i64: 1, 2, 8>}]} {
    %c0 = arith.constant 0 : index
    %c0_0 = arith.constant 0 : index
    %c0_1 = arith.constant 0 : index
    %0 = vector.load %arg1[%c0, %c0_0, %c0_1] : memref<1x326x8xbf16, #tpu.memory_space<vmem>>, vector<1x326x8xbf16>
    %1 = vector.shape_cast %0 : vector<1x326x8xbf16> to vector<326x8xbf16>
    %2 = vector.extract_strided_slice %1 {offsets = [0, 0], sizes = [288, 8], strides = [1, 1]} : vector<326x8xbf16> to vector<288x8xbf16>
    %c0_2 = arith.constant 0 : index
    %c0_3 = arith.constant 0 : index
    %c0_4 = arith.constant 0 : index
    %3 = vector.load %arg2[%c0_2, %c0_3, %c0_4] : memref<9x8x8xbf16, #tpu.memory_space<vmem>>, vector<1x8x8xbf16>
    %4 = vector.shape_cast %3 : vector<1x8x8xbf16> to vector<8x8xbf16>
    %cst = arith.constant dense<0.000000e+00> : vector<288x8xf32>
    %5 = tpu.matmul %2, %4, %cst {dimension_numbers = #tpu.dot_dimension_numbers<[1], [0], [0], [1], [0, 0, 1, 1], [], []>} : vector<288x8xbf16>, vector<8x8xbf16>, vector<288x8xf32> -> vector<288x8xf32>
    %6 = vector.extract_strided_slice %1 {offsets = [1, 0], sizes = [288, 8], strides = [1, 1]} : vector<326x8xbf16> to vector<288x8xbf16>
    %c1 = arith.constant 1 : index
    %c0_5 = arith.constant 0 : index
    %c0_6 = arith.constant 0 : index
    %7 = vector.load %arg2[%c1, %c0_5, %c0_6] : memref<9x8x8xbf16, #tpu.memory_space<vmem>>, vector<1x8x8xbf16>
    %8 = vector.shape_cast %7 : vector<1x8x8xbf16> to vector<8x8xbf16>
    %cst_7 = arith.constant dense<0.000000e+00> : vector<288x8xf32>
    %9 = tpu.matmul %6, %8, %cst_7 {dimension_numbers = #tpu.dot_dimension_numbers<[1], [0], [0], [1], [0, 0, 1, 1], [], []>} : vector<288x8xbf16>, vector<8x8xbf16>, vector<288x8xf32> -> vector<288x8xf32>
    %10 = arith.addf %5, %9 : vector<288x8xf32>
    %11 = vector.extract_strided_slice %1 {offsets = [2, 0], sizes = [288, 8], strides = [1, 1]} : vector<326x8xbf16> to vector<288x8xbf16>
    %c2 = arith.constant 2 : index
    %c0_8 = arith.constant 0 : index
    %c0_9 = arith.constant 0 : index
    %12 = vector.load %arg2[%c2, %c0_8, %c0_9] : memref<9x8x8xbf16, #tpu.memory_space<vmem>>, vector<1x8x8xbf16>
    %13 = vector.shape_cast %12 : vector<1x8x8xbf16> to vector<8x8xbf16>
    %cst_10 = arith.constant dense<0.000000e+00> : vector<288x8xf32>
    %14 = tpu.matmul %11, %13, %cst_10 {dimension_numbers = #tpu.dot_dimension_numbers<[1], [0], [0], [1], [0, 0, 1, 1], [], []>} : vector<288x8xbf16>, vector<8x8xbf16>, vector<288x8xf32> -> vector<288x8xf32>
    %15 = arith.addf %10, %14 : vector<288x8xf32>
    %16 = vector.extract_strided_slice %1 {offsets = [18, 0], sizes = [288, 8], strides = [1, 1]} : vector<326x8xbf16> to vector<288x8xbf16>
    %c3 = arith.constant 3 : index
    %c0_11 = arith.constant 0 : index
    %c0_12 = arith.constant 0 : index
    %17 = vector.load %arg2[%c3, %c0_11, %c0_12] : memref<9x8x8xbf16, #tpu.memory_space<vmem>>, vector<1x8x8xbf16>
    %18 = vector.shape_cast %17 : vector<1x8x8xbf16> to vector<8x8xbf16>
    %cst_13 = arith.constant dense<0.000000e+00> : vector<288x8xf32>
    %19 = tpu.matmul %16, %18, %cst_13 {dimension_numbers = #tpu.dot_dimension_numbers<[1], [0], [0], [1], [0, 0, 1, 1], [], []>} : vector<288x8xbf16>, vector<8x8xbf16>, vector<288x8xf32> -> vector<288x8xf32>
    %20 = arith.addf %15, %19 : vector<288x8xf32>
    %21 = vector.extract_strided_slice %1 {offsets = [19, 0], sizes = [288, 8], strides = [1, 1]} : vector<326x8xbf16> to vector<288x8xbf16>
    %c4 = arith.constant 4 : index
    %c0_14 = arith.constant 0 : index
    %c0_15 = arith.constant 0 : index
    %22 = vector.load %arg2[%c4, %c0_14, %c0_15] : memref<9x8x8xbf16, #tpu.memory_space<vmem>>, vector<1x8x8xbf16>
    %23 = vector.shape_cast %22 : vector<1x8x8xbf16> to vector<8x8xbf16>
    %cst_16 = arith.constant dense<0.000000e+00> : vector<288x8xf32>
    %24 = tpu.matmul %21, %23, %cst_16 {dimension_numbers = #tpu.dot_dimension_numbers<[1], [0], [0], [1], [0, 0, 1, 1], [], []>} : vector<288x8xbf16>, vector<8x8xbf16>, vector<288x8xf32> -> vector<288x8xf32>
    %25 = arith.addf %20, %24 : vector<288x8xf32>
    %26 = vector.extract_strided_slice %1 {offsets = [20, 0], sizes = [288, 8], strides = [1, 1]} : vector<326x8xbf16> to vector<288x8xbf16>
    %c5 = arith.constant 5 : index
    %c0_17 = arith.constant 0 : index
    %c0_18 = arith.constant 0 : index
    %27 = vector.load %arg2[%c5, %c0_17, %c0_18] : memref<9x8x8xbf16, #tpu.memory_space<vmem>>, vector<1x8x8xbf16>
    %28 = vector.shape_cast %27 : vector<1x8x8xbf16> to vector<8x8xbf16>
    %cst_19 = arith.constant dense<0.000000e+00> : vector<288x8xf32>
    %29 = tpu.matmul %26, %28, %cst_19 {dimension_numbers = #tpu.dot_dimension_numbers<[1], [0], [0], [1], [0, 0, 1, 1], [], []>} : vector<288x8xbf16>, vector<8x8xbf16>, vector<288x8xf32> -> vector<288x8xf32>
    %30 = arith.addf %25, %29 : vector<288x8xf32>
    %31 = vector.extract_strided_slice %1 {offsets = [36, 0], sizes = [288, 8], strides = [1, 1]} : vector<326x8xbf16> to vector<288x8xbf16>
    %c6 = arith.constant 6 : index
    %c0_20 = arith.constant 0 : index
    %c0_21 = arith.constant 0 : index
    %32 = vector.load %arg2[%c6, %c0_20, %c0_21] : memref<9x8x8xbf16, #tpu.memory_space<vmem>>, vector<1x8x8xbf16>
    %33 = vector.shape_cast %32 : vector<1x8x8xbf16> to vector<8x8xbf16>
    %cst_22 = arith.constant dense<0.000000e+00> : vector<288x8xf32>
    %34 = tpu.matmul %31, %33, %cst_22 {dimension_numbers = #tpu.dot_dimension_numbers<[1], [0], [0], [1], [0, 0, 1, 1], [], []>} : vector<288x8xbf16>, vector<8x8xbf16>, vector<288x8xf32> -> vector<288x8xf32>
    %35 = arith.addf %30, %34 : vector<288x8xf32>
    %36 = vector.extract_strided_slice %1 {offsets = [37, 0], sizes = [288, 8], strides = [1, 1]} : vector<326x8xbf16> to vector<288x8xbf16>
    %c7 = arith.constant 7 : index
    %c0_23 = arith.constant 0 : index
    %c0_24 = arith.constant 0 : index
    %37 = vector.load %arg2[%c7, %c0_23, %c0_24] : memref<9x8x8xbf16, #tpu.memory_space<vmem>>, vector<1x8x8xbf16>
    %38 = vector.shape_cast %37 : vector<1x8x8xbf16> to vector<8x8xbf16>
    %cst_25 = arith.constant dense<0.000000e+00> : vector<288x8xf32>
    %39 = tpu.matmul %36, %38, %cst_25 {dimension_numbers = #tpu.dot_dimension_numbers<[1], [0], [0], [1], [0, 0, 1, 1], [], []>} : vector<288x8xbf16>, vector<8x8xbf16>, vector<288x8xf32> -> vector<288x8xf32>
    %40 = arith.addf %35, %39 : vector<288x8xf32>
    %41 = vector.extract_strided_slice %1 {offsets = [38, 0], sizes = [288, 8], strides = [1, 1]} : vector<326x8xbf16> to vector<288x8xbf16>
    %c8 = arith.constant 8 : index
    %c0_26 = arith.constant 0 : index
    %c0_27 = arith.constant 0 : index
    %42 = vector.load %arg2[%c8, %c0_26, %c0_27] : memref<9x8x8xbf16, #tpu.memory_space<vmem>>, vector<1x8x8xbf16>
    %43 = vector.shape_cast %42 : vector<1x8x8xbf16> to vector<8x8xbf16>
    %cst_28 = arith.constant dense<0.000000e+00> : vector<288x8xf32>
    %44 = tpu.matmul %41, %43, %cst_28 {dimension_numbers = #tpu.dot_dimension_numbers<[1], [0], [0], [1], [0, 0, 1, 1], [], []>} : vector<288x8xbf16>, vector<8x8xbf16>, vector<288x8xf32> -> vector<288x8xf32>
    %45 = arith.addf %40, %44 : vector<288x8xf32>
    %c0_29 = arith.constant 0 : index
    %c0_30 = arith.constant 0 : index
    %c0_31 = arith.constant 0 : index
    %46 = vector.load %arg4[%c0_29, %c0_30, %c0_31] : memref<1x288x4xbf16, #tpu.memory_space<vmem>>, vector<1x288x4xbf16>
    %47 = vector.shape_cast %46 : vector<1x288x4xbf16> to vector<288x4xbf16>
    %c0_32 = arith.constant 0 : index
    %c0_33 = arith.constant 0 : index
    %48 = vector.load %arg5[%c0_32, %c0_33] : memref<4x8xbf16, #tpu.memory_space<vmem>>, vector<4x8xbf16>
    %cst_34 = arith.constant dense<0.000000e+00> : vector<288x8xf32>
    %49 = tpu.matmul %47, %48, %cst_34 {dimension_numbers = #tpu.dot_dimension_numbers<[1], [0], [0], [1], [0, 0, 1, 1], [], []>} : vector<288x4xbf16>, vector<4x8xbf16>, vector<288x8xf32> -> vector<288x8xf32>
    %50 = arith.addf %45, %49 : vector<288x8xf32>
    %c0_35 = arith.constant 0 : index
    %c0_36 = arith.constant 0 : index
    %c0_37 = arith.constant 0 : index
    %51 = vector.load %arg6[%c0_35, %c0_36, %c0_37] : memref<1x288x8xf32, #tpu.memory_space<vmem>>, vector<1x288x8xf32>
    %52 = vector.shape_cast %51 : vector<1x288x8xf32> to vector<288x8xf32>
    %53 = vector.shape_cast %50 : vector<288x8xf32> to vector<1x288x8xf32>
    tpu.vector_store %arg6[%c0_35, %c0_36, %c0_37], %53 {strides = array<i32>} : memref<1x288x8xf32, #tpu.memory_space<vmem>>, vector<1x288x8xf32>,
    %c0_38 = arith.constant 0 : index
    %c0_39 = arith.constant 0 : index
    %54 = vector.load %arg3[%c0_38, %c0_39] : memref<288x1xf32, #tpu.memory_space<vmem>>, vector<288x1xf32>
    %55 = vector.broadcast %54 : vector<288x1xf32> to vector<288x8xf32>
    %56 = arith.mulf %50, %55 : vector<288x8xf32>
    %cst_40 = arith.constant dense<0.000000e+00> : vector<8xf32>
    %57 = vector.multi_reduction <add>, %56, %cst_40 [0] : vector<288x8xf32> to vector<8xf32>
    %58 = vector.shape_cast %57 : vector<8xf32> to vector<1x8xf32>
    %c0_41 = arith.constant 0 : index
    %c0_42 = arith.constant 0 : index
    %c0_43 = arith.constant 0 : index
    %59 = vector.load %arg7[%c0_41, %c0_42, %c0_43] : memref<1x2x8xf32, #tpu.memory_space<vmem>>, vector<1x1x8xf32>
    %60 = vector.shape_cast %59 : vector<1x1x8xf32> to vector<1x8xf32>
    %61 = vector.shape_cast %58 : vector<1x8xf32> to vector<1x1x8xf32>
    tpu.vector_store %arg7[%c0_41, %c0_42, %c0_43], %61 {strides = array<i32>} : memref<1x2x8xf32, #tpu.memory_space<vmem>>, vector<1x1x8xf32>,
    %62 = arith.mulf %56, %56 : vector<288x8xf32>
    %cst_44 = arith.constant dense<0.000000e+00> : vector<8xf32>
    %63 = vector.multi_reduction <add>, %62, %cst_44 [0] : vector<288x8xf32> to vector<8xf32>
    %64 = vector.shape_cast %63 : vector<8xf32> to vector<1x8xf32>
    %c0_45 = arith.constant 0 : index
    %c1_46 = arith.constant 1 : index
    %c0_47 = arith.constant 0 : index
    %65 = vector.load %arg7[%c0_45, %c1_46, %c0_47] : memref<1x2x8xf32, #tpu.memory_space<vmem>>, vector<1x1x8xf32>
    %66 = vector.shape_cast %65 : vector<1x1x8xf32> to vector<1x8xf32>
    %67 = vector.shape_cast %64 : vector<1x8xf32> to vector<1x1x8xf32>
    tpu.vector_store %arg7[%c0_45, %c1_46, %c0_47], %67 {strides = array<i32>} : memref<1x2x8xf32, #tpu.memory_space<vmem>>, vector<1x1x8xf32>,
    return
  }
  func.func @transform_0(%arg0: i32) -> (i32, i32, i32) {
    %c0_i32 = arith.constant 0 : i32
    %c0_i32_0 = arith.constant 0 : i32
    %c0_i32_1 = arith.constant 0 : i32
    return %arg0, %c0_i32, %c0_i32_0 : i32, i32, i32
  }
  func.func @transform_1(%arg0: i32) -> (i32, i32, i32) {
    %c0_i32 = arith.constant 0 : i32
    %c0_i32_0 = arith.constant 0 : i32
    %c0_i32_1 = arith.constant 0 : i32
    %c0_i32_2 = arith.constant 0 : i32
    return %c0_i32, %c0_i32_0, %c0_i32_1 : i32, i32, i32
  }
  func.func @transform_2(%arg0: i32) -> (i32, i32) {
    %c0_i32 = arith.constant 0 : i32
    %c0_i32_0 = arith.constant 0 : i32
    %c0_i32_1 = arith.constant 0 : i32
    return %c0_i32, %c0_i32_0 : i32, i32
  }
  func.func @transform_3(%arg0: i32) -> (i32, i32, i32) {
    %c0_i32 = arith.constant 0 : i32
    %c0_i32_0 = arith.constant 0 : i32
    %c0_i32_1 = arith.constant 0 : i32
    return %arg0, %c0_i32, %c0_i32_0 : i32, i32, i32
  }
  func.func @transform_4(%arg0: i32) -> (i32, i32) {
    %c0_i32 = arith.constant 0 : i32
    %c0_i32_0 = arith.constant 0 : i32
    %c0_i32_1 = arith.constant 0 : i32
    return %c0_i32, %c0_i32_0 : i32, i32
  }
  func.func @transform_5(%arg0: i32) -> (i32, i32, i32) {
    %c0_i32 = arith.constant 0 : i32
    %c0_i32_0 = arith.constant 0 : i32
    %c0_i32_1 = arith.constant 0 : i32
    return %arg0, %c0_i32, %c0_i32_0 : i32, i32, i32
  }
  func.func @transform_6(%arg0: i32) -> (i32, i32, i32) {
    %c0_i32 = arith.constant 0 : i32
    %c0_i32_0 = arith.constant 0 : i32
    %c0_i32_1 = arith.constant 0 : i32
    return %arg0, %c0_i32, %c0_i32_0 : i32, i32, i32
  }
}

module attributes {stable_mosaic.version = 11 : i64} {
  func.func @_bn_relu_kernel(%arg0: i32, %arg1: memref<1x288x8xf32, #tpu.memory_space<vmem>>, %arg2: memref<1x8xf32, #tpu.memory_space<vmem>>, %arg3: memref<1x8xf32, #tpu.memory_space<vmem>>, %arg4: memref<1x288x8xf32, #tpu.memory_space<vmem>>) attributes {dimension_semantics = [#tpu.dimension_semantics<parallel>], iteration_bounds = array<i64: 2>, scalar_prefetch = 0 : i64, scratch_operands = 0 : i64, tpu.core_type = #tpu.core_type<tc>, window_params = [{transform_indices = @transform_0, window_bounds = array<i64: 1, 288, 8>}, {pipeline_mode = #tpu.pipeline_mode<synchronous>, transform_indices = @transform_1, window_bounds = array<i64: 1, 8>}, {pipeline_mode = #tpu.pipeline_mode<synchronous>, transform_indices = @transform_2, window_bounds = array<i64: 1, 8>}, {transform_indices = @transform_3, window_bounds = array<i64: 1, 288, 8>}]} {
    %c0 = arith.constant 0 : index
    %c0_0 = arith.constant 0 : index
    %c0_1 = arith.constant 0 : index
    %0 = vector.load %arg1[%c0, %c0_0, %c0_1] : memref<1x288x8xf32, #tpu.memory_space<vmem>>, vector<1x288x8xf32>
    %1 = vector.shape_cast %0 : vector<1x288x8xf32> to vector<288x8xf32>
    %c0_2 = arith.constant 0 : index
    %c0_3 = arith.constant 0 : index
    %2 = vector.load %arg2[%c0_2, %c0_3] : memref<1x8xf32, #tpu.memory_space<vmem>>, vector<1x8xf32>
    %3 = vector.broadcast %2 : vector<1x8xf32> to vector<288x8xf32>
    %4 = arith.mulf %1, %3 : vector<288x8xf32>
    %c0_4 = arith.constant 0 : index
    %c0_5 = arith.constant 0 : index
    %5 = vector.load %arg3[%c0_4, %c0_5] : memref<1x8xf32, #tpu.memory_space<vmem>>, vector<1x8xf32>
    %6 = vector.broadcast %5 : vector<1x8xf32> to vector<288x8xf32>
    %7 = arith.addf %4, %6 : vector<288x8xf32>
    %cst = arith.constant 0.000000e+00 : f32
    %8 = vector.broadcast %cst : f32 to vector<288x8xf32>
    %9 = arith.maximumf %7, %8 : vector<288x8xf32>
    %c0_6 = arith.constant 0 : index
    %c0_7 = arith.constant 0 : index
    %c0_8 = arith.constant 0 : index
    %10 = vector.load %arg4[%c0_6, %c0_7, %c0_8] : memref<1x288x8xf32, #tpu.memory_space<vmem>>, vector<1x288x8xf32>
    %11 = vector.shape_cast %10 : vector<1x288x8xf32> to vector<288x8xf32>
    %12 = vector.shape_cast %9 : vector<288x8xf32> to vector<1x288x8xf32>
    tpu.vector_store %arg4[%c0_6, %c0_7, %c0_8], %12 {strides = array<i32>} : memref<1x288x8xf32, #tpu.memory_space<vmem>>, vector<1x288x8xf32>,
    return
  }
  func.func @transform_0(%arg0: i32) -> (i32, i32, i32) {
    %c0_i32 = arith.constant 0 : i32
    %c0_i32_0 = arith.constant 0 : i32
    %c0_i32_1 = arith.constant 0 : i32
    return %arg0, %c0_i32, %c0_i32_0 : i32, i32, i32
  }
  func.func @transform_1(%arg0: i32) -> (i32, i32) {
    %c0_i32 = arith.constant 0 : i32
    %c0_i32_0 = arith.constant 0 : i32
    %c0_i32_1 = arith.constant 0 : i32
    return %c0_i32, %c0_i32_0 : i32, i32
  }
  func.func @transform_2(%arg0: i32) -> (i32, i32) {
    %c0_i32 = arith.constant 0 : i32
    %c0_i32_0 = arith.constant 0 : i32
    %c0_i32_1 = arith.constant 0 : i32
    return %c0_i32, %c0_i32_0 : i32, i32
  }
  func.func @transform_3(%arg0: i32) -> (i32, i32, i32) {
    %c0_i32 = arith.constant 0 : i32
    %c0_i32_0 = arith.constant 0 : i32
    %c0_i32_1 = arith.constant 0 : i32
    return %arg0, %c0_i32, %c0_i32_0 : i32, i32, i32
  }
}

</mosaic_0001>

<llo_original>
// kernel: resblock_forward.5
$region0: #{resblock_forward.5}
  #allocation0 [shape = 'u32[]', space=smem, size = 0x4, offset = 0x4, fixed_abs, tag = 'smem constant byte address 0x4 - core index']
  #allocation1 [shape = 'u32[144,128]{1,0:T(1,128)}', space=vmem, size = 0x12000, scoped, tag = 'internal scratch']
  %s0 = inlined_call_operand.vmem [shape: f32[2,288,8], index: 0, kind: input, shape index: {}]
  %s1 = inlined_call_operand.vmem [shape: f32[1,8], index: 1, kind: input, shape index: {}]
  %s2 = inlined_call_operand.vmem [shape: f32[1,8], index: 2, kind: input, shape index: {}]
  %s3 = inlined_call_operand.vmem [shape: bf16[2,288,8], index: 3, kind: output, shape index: {}]
  %s4 = sld [smem:[#allocation0]]
  $region45: #{resblock_forward.5} parent=0
    _
  %s6 = ssub.s32 1, %s4
  %s7 = scalar_select 0, %s6, %s4
  loop: start=0, step=1, limit=4
  $region2: #{resblock_forward.5} parent=0 // loop_pre_header
    _
  $region3: #{resblock_forward.5} parent=0 // loop_header
    %s9 = sphi 0, %s13
    %p10 = scmp.ge.s32.totalorder %s9, 4
    %s19 = sphi 0, %s21
    %s22 = sphi 0, %s19
    %s23 = sphi 0, %s22
    %s39 = sphi 0, %s23
    %s43 = sphi 0, %s43
    %s45 = sphi 0, %s43
    %s46 = sphi 0, %s45
    %s60 = sphi 0, %s46
    %s64 = sphi 0, %s64
    %s66 = sphi 0, %s64
    %s67 = sphi 0, %s66
    %s81 = sphi 0, %s67
    %s87 = sphi 0, %s89
    %s90 = sphi 0, %s87
    %s91 = sphi 0, %s90
    %s107 = sphi 0, %s91
  $region4: #{resblock_forward.5} parent=0 // loop_header_branch
    %12 = sbr.rel (%p10) target = $region8
  $region5: #{resblock_forward.5} parent=0 // loop_body
    %s14 = ssub.s32 %s9, 1
    %s15 = ssub.s32 %s9, 2
    %s16 = sadd.s32 %s9, 1
    %s17 = ssub.s32 %s9, %s16
    %p18 = scmp.eq.s32.totalorder %s17, 0
    %s20 = sadd.s32 %s19, 1
    %s21 = scalar_select %p18, %s19, %s20
    %p24 = pneg %p18
    %p25 = scmp.eq.s32.totalorder %s9, 1
    %p26 = por %p24, %p25
    %p27 = scmp.ne.s32.totalorder %s19, %s22
    %p28 = scmp.eq.s32.totalorder %s9, 0
    %p29 = por %p27, %p28
    %p30 = scmp.ne.s32.totalorder %s19, %s22
    %p31 = scmp.eq.s32.totalorder %s14, 1
    %p32 = por %p30, %p31
    %p33 = scmp.ne.s32.totalorder %s22, %s23
    %p34 = scmp.eq.s32.totalorder %s14, 0
    %p35 = por %p33, %p34
    %p36 = scmp.ne.s32.totalorder %s22, %s23
    %p37 = scmp.eq.s32.totalorder %s15, 1
    %p38 = por %p36, %p37
    %p40 = scmp.ne.s32.totalorder %s23, %s39
    %p41 = scmp.eq.s32.totalorder %s15, 0
    %p42 = por %p40, %p41
    %s44 = sadd.s32 %s43, 1
    %p47 = scmp.eq.s32.totalorder %s9, 1
    %p48 = scmp.ne.s32.totalorder %s43, %s45
    %p49 = scmp.eq.s32.totalorder %s9, 0
    %p50 = por %p48, %p49
    %p51 = scmp.ne.s32.totalorder %s43, %s45
    %p52 = scmp.eq.s32.totalorder %s14, 1
    %p53 = por %p51, %p52
    %p54 = scmp.ne.s32.totalorder %s45, %s46
    %p55 = scmp.eq.s32.totalorder %s14, 0
    %p56 = por %p54, %p55
    %p57 = scmp.ne.s32.totalorder %s45, %s46
    %p58 = scmp.eq.s32.totalorder %s15, 1
    %p59 = por %p57, %p58
    %p61 = scmp.ne.s32.totalorder %s46, %s60
    %p62 = scmp.eq.s32.totalorder %s15, 0
    %p63 = por %p61, %p62
    %s65 = sadd.s32 %s64, 1
    %p68 = scmp.eq.s32.totalorder %s9, 1
    %p69 = scmp.ne.s32.totalorder %s64, %s66
    %p70 = scmp.eq.s32.totalorder %s9, 0
    %p71 = por %p69, %p70
    %p72 = scmp.ne.s32.totalorder %s64, %s66
    %p73 = scmp.eq.s32.totalorder %s14, 1
    %p74 = por %p72, %p73
    %p75 = scmp.ne.s32.totalorder %s66, %s67
    %p76 = scmp.eq.s32.totalorder %s14, 0
    %p77 = por %p75, %p76
    %p78 = scmp.ne.s32.totalorder %s66, %s67
    %p79 = scmp.eq.s32.totalorder %s15, 1
    %p80 = por %p78, %p79
    %p82 = scmp.ne.s32.totalorder %s67, %s81
    %p83 = scmp.eq.s32.totalorder %s15, 0
    %p84 = por %p82, %p83
    %s85 = ssub.s32 %s9, %s16
    %p86 = scmp.eq.s32.totalorder %s85, 0
    %s88 = sadd.s32 %s87, 1
    %s89 = scalar_select %p86, %s87, %s88
    %p92 = pneg %p86
    %p93 = scmp.eq.s32.totalorder %s9, 1
    %p94 = por %p92, %p93
    %p95 = scmp.ne.s32.totalorder %s87, %s90
    %p96 = scmp.eq.s32.totalorder %s9, 0
    %p97 = por %p95, %p96
    %p98 = scmp.ne.s32.totalorder %s87, %s90
    %p99 = scmp.eq.s32.totalorder %s14, 1
    %p100 = por %p98, %p99
    %p101 = scmp.ne.s32.totalorder %s90, %s91
    %p102 = scmp.eq.s32.totalorder %s14, 0
    %p103 = por %p101, %p102
    %p104 = scmp.ne.s32.totalorder %s90, %s91
    %p105 = scmp.eq.s32.totalorder %s15, 1
    %p106 = por %p104, %p105
    %p108 = scmp.ne.s32.totalorder %s91, %s107
    %p109 = scmp.eq.s32.totalorder %s15, 0
    %p110 = por %p108, %p109
    %p111 = scmp.le.s32.totalorder 1, %s9
    %p112 = scmp.lt.s32.totalorder %s9, 3
    %p113 = pnand %p111, %p112
    %p114 = pneg %p113
    // Predicated region
    $region9: #{resblock_forward.5} parent=5 // pred_check
      _
    $region10: #{resblock_forward.5} parent=5 // pred_check_branch
      %116 = sbr.rel (%p113) target = $region12
    $region11: #{resblock_forward.5} parent=5 // pred_region
      %s117 = ssub.s32 %s9, 1
      // Predicated region
      $region13: #{resblock_forward.5} parent=11 // pred_check
        %p118 = pneg %p56
      $region14: #{resblock_forward.5} parent=11 // pred_check_branch
        %120 = sbr.rel (%p118) target = $region16
      $region15: #{resblock_forward.5} parent=11 // pred_region
        _
      $region16: #{resblock_forward.5} parent=11 // pred_fallthru
        _
      // Predicated region
      $region17: #{resblock_forward.5} parent=11 // pred_check
        %p121 = pneg %p77
      $region18: #{resblock_forward.5} parent=11 // pred_check_branch
        %123 = sbr.rel (%p121) target = $region20
      $region19: #{resblock_forward.5} parent=11 // pred_region
        _
      $region20: #{resblock_forward.5} parent=11 // pred_fallthru
        _
    $region12: #{resblock_forward.5} parent=5 // pred_fallthru
      _
    %p124 = scmp.lt.s32.totalorder %s9, 2
    // Predicated region
    $region21: #{resblock_forward.5} parent=5 // pred_check
      %p125 = pneg %p124
    $region22: #{resblock_forward.5} parent=5 // pred_check_branch
      %127 = sbr.rel (%p125) target = $region24
    $region23: #{resblock_forward.5} parent=5 // pred_region
      // Predicated region
      $region25: #{resblock_forward.5} parent=23 // pred_check
        %p128 = pneg %p29
      $region26: #{resblock_forward.5} parent=23 // pred_check_branch
        %130 = sbr.rel (%p128) target = $region28
      $region27: #{resblock_forward.5} parent=23 // pred_region
        %p131 = scmp.lt.s32.totalorder %s9, 1
        %s132 = scalar_select %p131, %s9, 1
        %s133 = smul.addr %s132, 36
        %s134 = smul.addr %s133, 8
        %s135 = scalar_lea.vmem %s0, %s134
      $region28: #{resblock_forward.5} parent=23 // pred_fallthru
        _
    $region24: #{resblock_forward.5} parent=5 // pred_fallthru
      _
    %p136 = scmp.le.s32.totalorder 1, %s9
    %p137 = scmp.lt.s32.totalorder %s9, 3
    %p138 = pnand %p136, %p137
    %p139 = pneg %p138
    // Predicated region
    $region29: #{resblock_forward.5} parent=5 // pred_check
      _
    $region30: #{resblock_forward.5} parent=5 // pred_check_branch
      %141 = sbr.rel (%p138) target = $region32
    $region31: #{resblock_forward.5} parent=5 // pred_region
      %s142 = ssub.s32 %s9, 1
      %p143 = scmp.lt.s32.totalorder %s14, 1
      %s144 = scalar_select %p143, %s14, 1
      %s145 = smul.addr %s144, 36
      %s146 = smul.addr %s145, 8
      %s147 = scalar_lea.vmem %s0, %s146
      %p148 = pneg %p35
      %p149 = pneg %p32
      %p150 = pneg %p56
      %p151 = pneg %p53
      %p152 = pneg %p77
      %p153 = pneg %p74
      %p154 = pneg %p103
      %p155 = pneg %p100
      %p156 = scmp.lt.s32.totalorder %s14, 1
      %s157 = scalar_select %p156, %s14, 1
      %s158 = smul.addr %s157, 36
      %s159 = smul.addr %s158, 4
      %s160 = scalar_lea.vmem %s3, %s159
      %p161 = scmp.lt.s32.totalorder %s14, 1
      %s162 = scalar_select %p161, %s14, 1
      %s163 = smul.addr %s162, 36
      %s164 = smul.addr %s163, 8
      %s165 = scalar_lea.vmem %s0, %s164
      %p166 = scmp.lt.s32.totalorder %s14, 1
      %s167 = scalar_select %p166, %s14, 1
      %s168 = smul.addr %s167, 36
      %s169 = smul.addr %s168, 4
      %s170 = scalar_lea.vmem %s3, %s169
      %v171 = vld [vmem:[%s165] sm:$0xff]
      %v172 = vld [vmem:[%s165 + $0x8] sm:$0xff]
      %v173 = vld [vmem:[%s165 + $0x10] sm:$0xff]
      %v174 = vld [vmem:[%s165 + $0x18] sm:$0xff]
      %v175 = vld [vmem:[%s165 + $0x20] sm:$0xff]
      %v176 = vld [vmem:[%s165 + $0x28] sm:$0xff]
      %v177 = vld [vmem:[%s165 + $0x30] sm:$0xff]
      %v178 = vld [vmem:[%s165 + $0x38] sm:$0xff]
      %v179 = vld [vmem:[%s165 + $0x40] sm:$0xff]
      %v180 = vld [vmem:[%s165 + $0x48] sm:$0xff]
      %v181 = vld [vmem:[%s165 + $0x50] sm:$0xff]
      %v182 = vld [vmem:[%s165 + $0x58] sm:$0xff]
      %v183 = vld [vmem:[%s165 + $0x60] sm:$0xff]
      %v184 = vld [vmem:[%s165 + $0x68] sm:$0xff]
      %v185 = vld [vmem:[%s165 + $0x70] sm:$0xff]
      %v186 = vld [vmem:[%s165 + $0x78] sm:$0xff]
      %v187 = vld [vmem:[%s165 + $0x80] sm:$0xff]
      %v188 = vld [vmem:[%s165 + $0x88] sm:$0xff]
      %v189 = vld [vmem:[%s165 + $0x90] sm:$0xff]
      %v190 = vld [vmem:[%s165 + $0x98] sm:$0xff]
      %v191 = vld [vmem:[%s165 + $0xa0] sm:$0xff]
      %v192 = vld [vmem:[%s165 + $0xa8] sm:$0xff]
      %v193 = vld [vmem:[%s165 + $0xb0] sm:$0xff]
      %v194 = vld [vmem:[%s165 + $0xb8] sm:$0xff]
      %v195 = vld [vmem:[%s165 + $0xc0] sm:$0xff]
      %v196 = vld [vmem:[%s165 + $0xc8] sm:$0xff]
      %v197 = vld [vmem:[%s165 + $0xd0] sm:$0xff]
      %v198 = vld [vmem:[%s165 + $0xd8] sm:$0xff]
      %v199 = vld [vmem:[%s165 + $0xe0] sm:$0xff]
      %v200 = vld [vmem:[%s165 + $0xe8] sm:$0xff]
      %v201 = vld [vmem:[%s165 + $0xf0] sm:$0xff]
      %v202 = vld [vmem:[%s165 + $0xf8] sm:$0xff]
      %v203 = vld [vmem:[%s165 + $0x100] sm:$0xff]
      %v204 = vld [vmem:[%s165 + $0x108] sm:$0xff]
      %v205 = vld [vmem:[%s165 + $0x110] sm:$0xff]
      %v206 = vld [vmem:[%s165 + $0x118] sm:$0xff]
      %v207 = vld [vmem:[%s1] sm:$0x1]
      %v209 = vlaneseq
      %v210 = vshrl.u32 %v209, 7
      %v211 = vsub.s32 0, %v210
      %v212 = vrot.slane %v207, %v211
      %v214 = vmul.f32 %v171, %v212
      %v215 = vmul.f32 %v172, %v212
      %v216 = vmul.f32 %v173, %v212
      %v217 = vmul.f32 %v174, %v212
      %v218 = vmul.f32 %v175, %v212
      %v219 = vmul.f32 %v176, %v212
      %v220 = vmul.f32 %v177, %v212
      %v221 = vmul.f32 %v178, %v212
      %v222 = vmul.f32 %v179, %v212
      %v223 = vmul.f32 %v180, %v212
      %v224 = vmul.f32 %v181, %v212
      %v225 = vmul.f32 %v182, %v212
      %v226 = vmul.f32 %v183, %v212
      %v227 = vmul.f32 %v184, %v212
      %v228 = vmul.f32 %v185, %v212
      %v229 = vmul.f32 %v186, %v212
      %v230 = vmul.f32 %v187, %v212
      %v231 = vmul.f32 %v188, %v212
      %v232 = vmul.f32 %v189, %v212
      %v233 = vmul.f32 %v190, %v212
      %v234 = vmul.f32 %v191, %v212
      %v235 = vmul.f32 %v192, %v212
      %v236 = vmul.f32 %v193, %v212
      %v237 = vmul.f32 %v194, %v212
      %v238 = vmul.f32 %v195, %v212
      %v239 = vmul.f32 %v196, %v212
      %v240 = vmul.f32 %v197, %v212
      %v241 = vmul.f32 %v198, %v212
      %v242 = vmul.f32 %v199, %v212
      %v243 = vmul.f32 %v200, %v212
      %v244 = vmul.f32 %v201, %v212
      %v245 = vmul.f32 %v202, %v212
      %v246 = vmul.f32 %v203, %v212
      %v247 = vmul.f32 %v204, %v212
      %v248 = vmul.f32 %v205, %v212
      %v249 = vmul.f32 %v206, %v212
      %v250 = vld [vmem:[%s2] sm:$0x1]
      %v252 = vlaneseq
      %v253 = vshrl.u32 %v252, 7
      %v254 = vsub.s32 0, %v253
      %v255 = vrot.slane %v250, %v254
      %v257 = vadd.f32 %v214, %v255
      %v258 = vadd.f32 %v215, %v255
      %v259 = vadd.f32 %v216, %v255
      %v260 = vadd.f32 %v217, %v255
      %v261 = vadd.f32 %v218, %v255
      %v262 = vadd.f32 %v219, %v255
      %v263 = vadd.f32 %v220, %v255
      %v264 = vadd.f32 %v221, %v255
      %v265 = vadd.f32 %v222, %v255
      %v266 = vadd.f32 %v223, %v255
      %v267 = vadd.f32 %v224, %v255
      %v268 = vadd.f32 %v225, %v255
      %v269 = vadd.f32 %v226, %v255
      %v270 = vadd.f32 %v227, %v255
      %v271 = vadd.f32 %v228, %v255
      %v272 = vadd.f32 %v229, %v255
      %v273 = vadd.f32 %v230, %v255
      %v274 = vadd.f32 %v231, %v255
      %v275 = vadd.f32 %v232, %v255
      %v276 = vadd.f32 %v233, %v255
      %v277 = vadd.f32 %v234, %v255
      %v278 = vadd.f32 %v235, %v255
      %v279 = vadd.f32 %v236, %v255
      %v280 = vadd.f32 %v237, %v255
      %v281 = vadd.f32 %v238, %v255
      %v282 = vadd.f32 %v239, %v255
      %v283 = vadd.f32 %v240, %v255
      %v284 = vadd.f32 %v241, %v255
      %v285 = vadd.f32 %v242, %v255
      %v286 = vadd.f32 %v243, %v255
      %v287 = vadd.f32 %v244, %v255
      %v288 = vadd.f32 %v245, %v255
      %v289 = vadd.f32 %v246, %v255
      %v290 = vadd.f32 %v247, %v255
      %v291 = vadd.f32 %v248, %v255
      %v292 = vadd.f32 %v249, %v255
      %v293 = vmax.f32 %v257, 0.0
      %v294 = vmax.f32 %v258, 0.0
      %v295 = vmax.f32 %v259, 0.0
      %v296 = vmax.f32 %v260, 0.0
      %v297 = vmax.f32 %v261, 0.0
      %v298 = vmax.f32 %v262, 0.0
      %v299 = vmax.f32 %v263, 0.0
      %v300 = vmax.f32 %v264, 0.0
      %v301 = vmax.f32 %v265, 0.0
      %v302 = vmax.f32 %v266, 0.0
      %v303 = vmax.f32 %v267, 0.0
      %v304 = vmax.f32 %v268, 0.0
      %v305 = vmax.f32 %v269, 0.0
      %v306 = vmax.f32 %v270, 0.0
      %v307 = vmax.f32 %v271, 0.0
      %v308 = vmax.f32 %v272, 0.0
      %v309 = vmax.f32 %v273, 0.0
      %v310 = vmax.f32 %v274, 0.0
      %v311 = vmax.f32 %v275, 0.0
      %v312 = vmax.f32 %v276, 0.0
      %v313 = vmax.f32 %v277, 0.0
      %v314 = vmax.f32 %v278, 0.0
      %v315 = vmax.f32 %v279, 0.0
      %v316 = vmax.f32 %v280, 0.0
      %v317 = vmax.f32 %v281, 0.0
      %v318 = vmax.f32 %v282, 0.0
      %v319 = vmax.f32 %v283, 0.0
      %v320 = vmax.f32 %v284, 0.0
      %v321 = vmax.f32 %v285, 0.0
      %v322 = vmax.f32 %v286, 0.0
      %v323 = vmax.f32 %v287, 0.0
      %v324 = vmax.f32 %v288, 0.0
      %v325 = vmax.f32 %v289, 0.0
      %v326 = vmax.f32 %v290, 0.0
      %v327 = vmax.f32 %v291, 0.0
      %v328 = vmax.f32 %v292, 0.0
      %v329 = vpack.c.bf16 %v294, %v293
      %v330 = vpack.c.bf16 %v296, %v295
      %v331 = vpack.c.bf16 %v298, %v297
      %v332 = vpack.c.bf16 %v300, %v299
      %v333 = vpack.c.bf16 %v302, %v301
      %v334 = vpack.c.bf16 %v304, %v303
      %v335 = vpack.c.bf16 %v306, %v305
      %v336 = vpack.c.bf16 %v308, %v307
      %v337 = vpack.c.bf16 %v310, %v309
      %v338 = vpack.c.bf16 %v312, %v311
      %v339 = vpack.c.bf16 %v314, %v313
      %v340 = vpack.c.bf16 %v316, %v315
      %v341 = vpack.c.bf16 %v318, %v317
      %v342 = vpack.c.bf16 %v320, %v319
      %v343 = vpack.c.bf16 %v322, %v321
      %v344 = vpack.c.bf16 %v324, %v323
      %v345 = vpack.c.bf16 %v326, %v325
      %v346 = vpack.c.bf16 %v328, %v327
      %v365 = vunpack.c.l.b16 %v329
      %v366 = vunpack.c.h.b16 %v329
      %v367 = vunpack.c.l.b16 %v330
      %v368 = vunpack.c.h.b16 %v330
      %v369 = vunpack.c.l.b16 %v331
      %v370 = vunpack.c.h.b16 %v331
      %v371 = vunpack.c.l.b16 %v332
      %v372 = vunpack.c.h.b16 %v332
      %v373 = vunpack.c.l.b16 %v333
      %v374 = vunpack.c.h.b16 %v333
      %v375 = vunpack.c.l.b16 %v334
      %v376 = vunpack.c.h.b16 %v334
      %v377 = vunpack.c.l.b16 %v335
      %v378 = vunpack.c.h.b16 %v335
      %v379 = vunpack.c.l.b16 %v336
      %v380 = vunpack.c.h.b16 %v336
      %v381 = vunpack.c.l.b16 %v337
      %v382 = vunpack.c.h.b16 %v337
      %v383 = vunpack.c.l.b16 %v338
      %v384 = vunpack.c.h.b16 %v338
      %v385 = vunpack.c.l.b16 %v339
      %v386 = vunpack.c.h.b16 %v339
      %v387 = vunpack.c.l.b16 %v340
      %v388 = vunpack.c.h.b16 %v340
      %v389 = vunpack.c.l.b16 %v341
      %v390 = vunpack.c.h.b16 %v341
      %v391 = vunpack.c.l.b16 %v342
      %v392 = vunpack.c.h.b16 %v342
      %v393 = vunpack.c.l.b16 %v343
      %v394 = vunpack.c.h.b16 %v343
      %v395 = vunpack.c.l.b16 %v344
      %v396 = vunpack.c.h.b16 %v344
      %v397 = vunpack.c.l.b16 %v345
      %v398 = vunpack.c.h.b16 %v345
      %v399 = vunpack.c.l.b16 %v346
      %v400 = vunpack.c.h.b16 %v346
      %v401 = vpack.c.b16 %v365, %v365
      %v402 = vpack.c.b16 %v366, %v366
      %v403 = vpack.c.b16 %v367, %v367
      %v404 = vpack.c.b16 %v368, %v368
      %v405 = vpack.c.b16 %v369, %v369
      %v406 = vpack.c.b16 %v370, %v370
      %v407 = vpack.c.b16 %v371, %v371
      %v408 = vpack.c.b16 %v372, %v372
      %v409 = vpack.c.b16 %v373, %v373
      %v410 = vpack.c.b16 %v374, %v374
      %v411 = vpack.c.b16 %v375, %v375
      %v412 = vpack.c.b16 %v376, %v376
      %v413 = vpack.c.b16 %v377, %v377
      %v414 = vpack.c.b16 %v378, %v378
      %v415 = vpack.c.b16 %v379, %v379
      %v416 = vpack.c.b16 %v380, %v380
      %v417 = vpack.c.b16 %v381, %v381
      %v418 = vpack.c.b16 %v382, %v382
      %v419 = vpack.c.b16 %v383, %v383
      %v420 = vpack.c.b16 %v384, %v384
      %v421 = vpack.c.b16 %v385, %v385
      %v422 = vpack.c.b16 %v386, %v386
      %v423 = vpack.c.b16 %v387, %v387
      %v424 = vpack.c.b16 %v388, %v388
      %v425 = vpack.c.b16 %v389, %v389
      %v426 = vpack.c.b16 %v390, %v390
      %v427 = vpack.c.b16 %v391, %v391
      %v428 = vpack.c.b16 %v392, %v392
      %v429 = vpack.c.b16 %v393, %v393
      %v430 = vpack.c.b16 %v394, %v394
      %v431 = vpack.c.b16 %v395, %v395
      %v432 = vpack.c.b16 %v396, %v396
      %v433 = vpack.c.b16 %v397, %v397
      %v434 = vpack.c.b16 %v398, %v398
      %v435 = vpack.c.b16 %v399, %v399
      %v436 = vpack.c.b16 %v400, %v400
      %vm473 = vcmask 60416
      %474 = vst.msk [vmem:[%s170] sm:$0xf] %vm473, %v401
      %475 = vst.msk [vmem:[%s170 + $0x4] sm:$0xf] %vm473, %v402
      %476 = vst.msk [vmem:[%s170 + $0x8] sm:$0xf] %vm473, %v403
      %477 = vst.msk [vmem:[%s170 + $0xc] sm:$0xf] %vm473, %v404
      %478 = vst.msk [vmem:[%s170 + $0x10] sm:$0xf] %vm473, %v405
      %479 = vst.msk [vmem:[%s170 + $0x14] sm:$0xf] %vm473, %v406
      %480 = vst.msk [vmem:[%s170 + $0x18] sm:$0xf] %vm473, %v407
      %481 = vst.msk [vmem:[%s170 + $0x1c] sm:$0xf] %vm473, %v408
      %482 = vst.msk [vmem:[%s170 + $0x20] sm:$0xf] %vm473, %v409
      %483 = vst.msk [vmem:[%s170 + $0x24] sm:$0xf] %vm473, %v410
      %484 = vst.msk [vmem:[%s170 + $0x28] sm:$0xf] %vm473, %v411
      %485 = vst.msk [vmem:[%s170 + $0x2c] sm:$0xf] %vm473, %v412
      %486 = vst.msk [vmem:[%s170 + $0x30] sm:$0xf] %vm473, %v413
      %487 = vst.msk [vmem:[%s170 + $0x34] sm:$0xf] %vm473, %v414
      %488 = vst.msk [vmem:[%s170 + $0x38] sm:$0xf] %vm473, %v415
      %489 = vst.msk [vmem:[%s170 + $0x3c] sm:$0xf] %vm473, %v416
      %490 = vst.msk [vmem:[%s170 + $0x40] sm:$0xf] %vm473, %v417
      %491 = vst.msk [vmem:[%s170 + $0x44] sm:$0xf] %vm473, %v418
      %492 = vst.msk [vmem:[%s170 + $0x48] sm:$0xf] %vm473, %v419
      %493 = vst.msk [vmem:[%s170 + $0x4c] sm:$0xf] %vm473, %v420
      %494 = vst.msk [vmem:[%s170 + $0x50] sm:$0xf] %vm473, %v421
      %495 = vst.msk [vmem:[%s170 + $0x54] sm:$0xf] %vm473, %v422
      %496 = vst.msk [vmem:[%s170 + $0x58] sm:$0xf] %vm473, %v423
      %497 = vst.msk [vmem:[%s170 + $0x5c] sm:$0xf] %vm473, %v424
      %498 = vst.msk [vmem:[%s170 + $0x60] sm:$0xf] %vm473, %v425
      %499 = vst.msk [vmem:[%s170 + $0x64] sm:$0xf] %vm473, %v426
      %500 = vst.msk [vmem:[%s170 + $0x68] sm:$0xf] %vm473, %v427
      %501 = vst.msk [vmem:[%s170 + $0x6c] sm:$0xf] %vm473, %v428
      %502 = vst.msk [vmem:[%s170 + $0x70] sm:$0xf] %vm473, %v429
      %503 = vst.msk [vmem:[%s170 + $0x74] sm:$0xf] %vm473, %v430
      %504 = vst.msk [vmem:[%s170 + $0x78] sm:$0xf] %vm473, %v431
      %505 = vst.msk [vmem:[%s170 + $0x7c] sm:$0xf] %vm473, %v432
      %506 = vst.msk [vmem:[%s170 + $0x80] sm:$0xf] %vm473, %v433
      %507 = vst.msk [vmem:[%s170 + $0x84] sm:$0xf] %vm473, %v434
      %508 = vst.msk [vmem:[%s170 + $0x88] sm:$0xf] %vm473, %v435
      %509 = vst.msk [vmem:[%s170 + $0x8c] sm:$0xf] %vm473, %v436
      %p510 = scmp.lt.s32.totalorder %s14, 1
      %s511 = scalar_select %p510, %s14, 1
      %s512 = smul.addr %s511, 36
      %s513 = smul.addr %s512, 4
      %s514 = scalar_lea.vmem %s3, %s513
      // Predicated region
      $region33: #{resblock_forward.5} parent=31 // pred_check
        %p515 = pneg %p100
      $region34: #{resblock_forward.5} parent=31 // pred_check_branch
        %517 = sbr.rel (%p515) target = $region36
      $region35: #{resblock_forward.5} parent=31 // pred_region
        _
      $region36: #{resblock_forward.5} parent=31 // pred_fallthru
        _
    $region32: #{resblock_forward.5} parent=5 // pred_fallthru
      _
    %p518 = scmp.le.s32.totalorder 2, %s9
    // Predicated region
    $region37: #{resblock_forward.5} parent=5 // pred_check
      %p519 = pneg %p518
    $region38: #{resblock_forward.5} parent=5 // pred_check_branch
      %521 = sbr.rel (%p519) target = $region40
    $region39: #{resblock_forward.5} parent=5 // pred_region
      %s522 = ssub.s32 %s9, 2
      // Predicated region
      $region41: #{resblock_forward.5} parent=39 // pred_check
        %p523 = pneg %p106
      $region42: #{resblock_forward.5} parent=39 // pred_check_branch
        %525 = sbr.rel (%p523) target = $region44
      $region43: #{resblock_forward.5} parent=39 // pred_region
        %p526 = scmp.lt.s32.totalorder %s15, 1
        %s527 = scalar_select %p526, %s15, 1
        %s528 = smul.addr %s527, 36
        %s529 = smul.addr %s528, 4
        %s530 = scalar_lea.vmem %s3, %s529
      $region44: #{resblock_forward.5} parent=39 // pred_fallthru
        _
    $region40: #{resblock_forward.5} parent=5 // pred_fallthru
      _
  $region6: #{resblock_forward.5} parent=0 // loop_footer
    %s13 = sadd.s32 1, %s9
  $region7: #{resblock_forward.5} parent=0 // loop_footer_branch
    %8 = sbr.rel target = $region3
  $region8: #{resblock_forward.5} parent=0 // loop_exit
    _

// kernel: resblock_forward.7
$region0: #{resblock_forward.7}
  #allocation0 [shape = 'u32[]', space=smem, size = 0x4, offset = 0x4, fixed_abs, tag = 'smem constant byte address 0x4 - core index']
  #allocation1 [shape = 'u32[144,128]{1,0:T(1,128)}', space=vmem, size = 0x12000, scoped, tag = 'internal scratch']
  %s0 = inlined_call_operand.vmem [shape: f32[2,288,8], index: 0, kind: input, shape index: {}]
  %s1 = inlined_call_operand.vmem [shape: f32[1,8], index: 1, kind: input, shape index: {}]
  %s2 = inlined_call_operand.vmem [shape: f32[1,8], index: 2, kind: input, shape index: {}]
  %s3 = inlined_call_operand.vmem [shape: f32[2,288,8], index: 3, kind: output, shape index: {}]
  %s4 = sld [smem:[#allocation0]]
  $region45: #{resblock_forward.7} parent=0
    _
  %s6 = ssub.s32 1, %s4
  %s7 = scalar_select 0, %s6, %s4
  loop: start=0, step=1, limit=4
  $region2: #{resblock_forward.7} parent=0 // loop_pre_header
    _
  $region3: #{resblock_forward.7} parent=0 // loop_header
    %s9 = sphi 0, %s13
    %p10 = scmp.ge.s32.totalorder %s9, 4
    %s19 = sphi 0, %s21
    %s22 = sphi 0, %s19
    %s23 = sphi 0, %s22
    %s39 = sphi 0, %s23
    %s43 = sphi 0, %s43
    %s45 = sphi 0, %s43
    %s46 = sphi 0, %s45
    %s60 = sphi 0, %s46
    %s64 = sphi 0, %s64
    %s66 = sphi 0, %s64
    %s67 = sphi 0, %s66
    %s81 = sphi 0, %s67
    %s87 = sphi 0, %s89
    %s90 = sphi 0, %s87
    %s91 = sphi 0, %s90
    %s107 = sphi 0, %s91
  $region4: #{resblock_forward.7} parent=0 // loop_header_branch
    %12 = sbr.rel (%p10) target = $region8
  $region5: #{resblock_forward.7} parent=0 // loop_body
    %s14 = ssub.s32 %s9, 1
    %s15 = ssub.s32 %s9, 2
    %s16 = sadd.s32 %s9, 1
    %s17 = ssub.s32 %s9, %s16
    %p18 = scmp.eq.s32.totalorder %s17, 0
    %s20 = sadd.s32 %s19, 1
    %s21 = scalar_select %p18, %s19, %s20
    %p24 = pneg %p18
    %p25 = scmp.eq.s32.totalorder %s9, 1
    %p26 = por %p24, %p25
    %p27 = scmp.ne.s32.totalorder %s19, %s22
    %p28 = scmp.eq.s32.totalorder %s9, 0
    %p29 = por %p27, %p28
    %p30 = scmp.ne.s32.totalorder %s19, %s22
    %p31 = scmp.eq.s32.totalorder %s14, 1
    %p32 = por %p30, %p31
    %p33 = scmp.ne.s32.totalorder %s22, %s23
    %p34 = scmp.eq.s32.totalorder %s14, 0
    %p35 = por %p33, %p34
    %p36 = scmp.ne.s32.totalorder %s22, %s23
    %p37 = scmp.eq.s32.totalorder %s15, 1
    %p38 = por %p36, %p37
    %p40 = scmp.ne.s32.totalorder %s23, %s39
    %p41 = scmp.eq.s32.totalorder %s15, 0
    %p42 = por %p40, %p41
    %s44 = sadd.s32 %s43, 1
    %p47 = scmp.eq.s32.totalorder %s9, 1
    %p48 = scmp.ne.s32.totalorder %s43, %s45
    %p49 = scmp.eq.s32.totalorder %s9, 0
    %p50 = por %p48, %p49
    %p51 = scmp.ne.s32.totalorder %s43, %s45
    %p52 = scmp.eq.s32.totalorder %s14, 1
    %p53 = por %p51, %p52
    %p54 = scmp.ne.s32.totalorder %s45, %s46
    %p55 = scmp.eq.s32.totalorder %s14, 0
    %p56 = por %p54, %p55
    %p57 = scmp.ne.s32.totalorder %s45, %s46
    %p58 = scmp.eq.s32.totalorder %s15, 1
    %p59 = por %p57, %p58
    %p61 = scmp.ne.s32.totalorder %s46, %s60
    %p62 = scmp.eq.s32.totalorder %s15, 0
    %p63 = por %p61, %p62
    %s65 = sadd.s32 %s64, 1
    %p68 = scmp.eq.s32.totalorder %s9, 1
    %p69 = scmp.ne.s32.totalorder %s64, %s66
    %p70 = scmp.eq.s32.totalorder %s9, 0
    %p71 = por %p69, %p70
    %p72 = scmp.ne.s32.totalorder %s64, %s66
    %p73 = scmp.eq.s32.totalorder %s14, 1
    %p74 = por %p72, %p73
    %p75 = scmp.ne.s32.totalorder %s66, %s67
    %p76 = scmp.eq.s32.totalorder %s14, 0
    %p77 = por %p75, %p76
    %p78 = scmp.ne.s32.totalorder %s66, %s67
    %p79 = scmp.eq.s32.totalorder %s15, 1
    %p80 = por %p78, %p79
    %p82 = scmp.ne.s32.totalorder %s67, %s81
    %p83 = scmp.eq.s32.totalorder %s15, 0
    %p84 = por %p82, %p83
    %s85 = ssub.s32 %s9, %s16
    %p86 = scmp.eq.s32.totalorder %s85, 0
    %s88 = sadd.s32 %s87, 1
    %s89 = scalar_select %p86, %s87, %s88
    %p92 = pneg %p86
    %p93 = scmp.eq.s32.totalorder %s9, 1
    %p94 = por %p92, %p93
    %p95 = scmp.ne.s32.totalorder %s87, %s90
    %p96 = scmp.eq.s32.totalorder %s9, 0
    %p97 = por %p95, %p96
    %p98 = scmp.ne.s32.totalorder %s87, %s90
    %p99 = scmp.eq.s32.totalorder %s14, 1
    %p100 = por %p98, %p99
    %p101 = scmp.ne.s32.totalorder %s90, %s91
    %p102 = scmp.eq.s32.totalorder %s14, 0
    %p103 = por %p101, %p102
    %p104 = scmp.ne.s32.totalorder %s90, %s91
    %p105 = scmp.eq.s32.totalorder %s15, 1
    %p106 = por %p104, %p105
    %p108 = scmp.ne.s32.totalorder %s91, %s107
    %p109 = scmp.eq.s32.totalorder %s15, 0
    %p110 = por %p108, %p109
    %p111 = scmp.le.s32.totalorder 1, %s9
    %p112 = scmp.lt.s32.totalorder %s9, 3
    %p113 = pnand %p111, %p112
    %p114 = pneg %p113
    // Predicated region
    $region9: #{resblock_forward.7} parent=5 // pred_check
      _
    $region10: #{resblock_forward.7} parent=5 // pred_check_branch
      %116 = sbr.rel (%p113) target = $region12
    $region11: #{resblock_forward.7} parent=5 // pred_region
      %s117 = ssub.s32 %s9, 1
      // Predicated region
      $region13: #{resblock_forward.7} parent=11 // pred_check
        %p118 = pneg %p56
      $region14: #{resblock_forward.7} parent=11 // pred_check_branch
        %120 = sbr.rel (%p118) target = $region16
      $region15: #{resblock_forward.7} parent=11 // pred_region
        _
      $region16: #{resblock_forward.7} parent=11 // pred_fallthru
        _
      // Predicated region
      $region17: #{resblock_forward.7} parent=11 // pred_check
        %p121 = pneg %p77
      $region18: #{resblock_forward.7} parent=11 // pred_check_branch
        %123 = sbr.rel (%p121) target = $region20
      $region19: #{resblock_forward.7} parent=11 // pred_region
        _
      $region20: #{resblock_forward.7} parent=11 // pred_fallthru
        _
    $region12: #{resblock_forward.7} parent=5 // pred_fallthru
      _
    %p124 = scmp.lt.s32.totalorder %s9, 2
    // Predicated region
    $region21: #{resblock_forward.7} parent=5 // pred_check
      %p125 = pneg %p124
    $region22: #{resblock_forward.7} parent=5 // pred_check_branch
      %127 = sbr.rel (%p125) target = $region24
    $region23: #{resblock_forward.7} parent=5 // pred_region
      // Predicated region
      $region25: #{resblock_forward.7} parent=23 // pred_check
        %p128 = pneg %p29
      $region26: #{resblock_forward.7} parent=23 // pred_check_branch
        %130 = sbr.rel (%p128) target = $region28
      $region27: #{resblock_forward.7} parent=23 // pred_region
        %p131 = scmp.lt.s32.totalorder %s9, 1
        %s132 = scalar_select %p131, %s9, 1
        %s133 = smul.addr %s132, 36
        %s134 = smul.addr %s133, 8
        %s135 = scalar_lea.vmem %s0, %s134
      $region28: #{resblock_forward.7} parent=23 // pred_fallthru
        _
    $region24: #{resblock_forward.7} parent=5 // pred_fallthru
      _
    %p136 = scmp.le.s32.totalorder 1, %s9
    %p137 = scmp.lt.s32.totalorder %s9, 3
    %p138 = pnand %p136, %p137
    %p139 = pneg %p138
    // Predicated region
    $region29: #{resblock_forward.7} parent=5 // pred_check
      _
    $region30: #{resblock_forward.7} parent=5 // pred_check_branch
      %141 = sbr.rel (%p138) target = $region32
    $region31: #{resblock_forward.7} parent=5 // pred_region
      %s142 = ssub.s32 %s9, 1
      %p143 = scmp.lt.s32.totalorder %s14, 1
      %s144 = scalar_select %p143, %s14, 1
      %s145 = smul.addr %s144, 36
      %s146 = smul.addr %s145, 8
      %s147 = scalar_lea.vmem %s0, %s146
      %p148 = pneg %p35
      %p149 = pneg %p32
      %p150 = pneg %p56
      %p151 = pneg %p53
      %p152 = pneg %p77
      %p153 = pneg %p74
      %p154 = pneg %p103
      %p155 = pneg %p100
      %p156 = scmp.lt.s32.totalorder %s14, 1
      %s157 = scalar_select %p156, %s14, 1
      %s158 = smul.addr %s157, 36
      %s159 = smul.addr %s158, 8
      %s160 = scalar_lea.vmem %s3, %s159
      %p161 = scmp.lt.s32.totalorder %s14, 1
      %s162 = scalar_select %p161, %s14, 1
      %s163 = smul.addr %s162, 36
      %s164 = smul.addr %s163, 8
      %s165 = scalar_lea.vmem %s0, %s164
      %p166 = scmp.lt.s32.totalorder %s14, 1
      %s167 = scalar_select %p166, %s14, 1
      %s168 = smul.addr %s167, 36
      %s169 = smul.addr %s168, 8
      %s170 = scalar_lea.vmem %s3, %s169
      %v171 = vld [vmem:[%s165] sm:$0xff]
      %v172 = vld [vmem:[%s165 + $0x8] sm:$0xff]
      %v173 = vld [vmem:[%s165 + $0x10] sm:$0xff]
      %v174 = vld [vmem:[%s165 + $0x18] sm:$0xff]
      %v175 = vld [vmem:[%s165 + $0x20] sm:$0xff]
      %v176 = vld [vmem:[%s165 + $0x28] sm:$0xff]
      %v177 = vld [vmem:[%s165 + $0x30] sm:$0xff]
      %v178 = vld [vmem:[%s165 + $0x38] sm:$0xff]
      %v179 = vld [vmem:[%s165 + $0x40] sm:$0xff]
      %v180 = vld [vmem:[%s165 + $0x48] sm:$0xff]
      %v181 = vld [vmem:[%s165 + $0x50] sm:$0xff]
      %v182 = vld [vmem:[%s165 + $0x58] sm:$0xff]
      %v183 = vld [vmem:[%s165 + $0x60] sm:$0xff]
      %v184 = vld [vmem:[%s165 + $0x68] sm:$0xff]
      %v185 = vld [vmem:[%s165 + $0x70] sm:$0xff]
      %v186 = vld [vmem:[%s165 + $0x78] sm:$0xff]
      %v187 = vld [vmem:[%s165 + $0x80] sm:$0xff]
      %v188 = vld [vmem:[%s165 + $0x88] sm:$0xff]
      %v189 = vld [vmem:[%s165 + $0x90] sm:$0xff]
      %v190 = vld [vmem:[%s165 + $0x98] sm:$0xff]
      %v191 = vld [vmem:[%s165 + $0xa0] sm:$0xff]
      %v192 = vld [vmem:[%s165 + $0xa8] sm:$0xff]
      %v193 = vld [vmem:[%s165 + $0xb0] sm:$0xff]
      %v194 = vld [vmem:[%s165 + $0xb8] sm:$0xff]
      %v195 = vld [vmem:[%s165 + $0xc0] sm:$0xff]
      %v196 = vld [vmem:[%s165 + $0xc8] sm:$0xff]
      %v197 = vld [vmem:[%s165 + $0xd0] sm:$0xff]
      %v198 = vld [vmem:[%s165 + $0xd8] sm:$0xff]
      %v199 = vld [vmem:[%s165 + $0xe0] sm:$0xff]
      %v200 = vld [vmem:[%s165 + $0xe8] sm:$0xff]
      %v201 = vld [vmem:[%s165 + $0xf0] sm:$0xff]
      %v202 = vld [vmem:[%s165 + $0xf8] sm:$0xff]
      %v203 = vld [vmem:[%s165 + $0x100] sm:$0xff]
      %v204 = vld [vmem:[%s165 + $0x108] sm:$0xff]
      %v205 = vld [vmem:[%s165 + $0x110] sm:$0xff]
      %v206 = vld [vmem:[%s165 + $0x118] sm:$0xff]
      %v207 = vld [vmem:[%s1] sm:$0x1]
      %v209 = vlaneseq
      %v210 = vshrl.u32 %v209, 7
      %v211 = vsub.s32 0, %v210
      %v212 = vrot.slane %v207, %v211
      %v214 = vmul.f32 %v171, %v212
      %v215 = vmul.f32 %v172, %v212
      %v216 = vmul.f32 %v173, %v212
      %v217 = vmul.f32 %v174, %v212
      %v218 = vmul.f32 %v175, %v212
      %v219 = vmul.f32 %v176, %v212
      %v220 = vmul.f32 %v177, %v212
      %v221 = vmul.f32 %v178, %v212
      %v222 = vmul.f32 %v179, %v212
      %v223 = vmul.f32 %v180, %v212
      %v224 = vmul.f32 %v181, %v212
      %v225 = vmul.f32 %v182, %v212
      %v226 = vmul.f32 %v183, %v212
      %v227 = vmul.f32 %v184, %v212
      %v228 = vmul.f32 %v185, %v212
      %v229 = vmul.f32 %v186, %v212
      %v230 = vmul.f32 %v187, %v212
      %v231 = vmul.f32 %v188, %v212
      %v232 = vmul.f32 %v189, %v212
      %v233 = vmul.f32 %v190, %v212
      %v234 = vmul.f32 %v191, %v212
      %v235 = vmul.f32 %v192, %v212
      %v236 = vmul.f32 %v193, %v212
      %v237 = vmul.f32 %v194, %v212
      %v238 = vmul.f32 %v195, %v212
      %v239 = vmul.f32 %v196, %v212
      %v240 = vmul.f32 %v197, %v212
      %v241 = vmul.f32 %v198, %v212
      %v242 = vmul.f32 %v199, %v212
      %v243 = vmul.f32 %v200, %v212
      %v244 = vmul.f32 %v201, %v212
      %v245 = vmul.f32 %v202, %v212
      %v246 = vmul.f32 %v203, %v212
      %v247 = vmul.f32 %v204, %v212
      %v248 = vmul.f32 %v205, %v212
      %v249 = vmul.f32 %v206, %v212
      %v250 = vld [vmem:[%s2] sm:$0x1]
      %v252 = vlaneseq
      %v253 = vshrl.u32 %v252, 7
      %v254 = vsub.s32 0, %v253
      %v255 = vrot.slane %v250, %v254
      %v257 = vadd.f32 %v214, %v255
      %v258 = vadd.f32 %v215, %v255
      %v259 = vadd.f32 %v216, %v255
      %v260 = vadd.f32 %v217, %v255
      %v261 = vadd.f32 %v218, %v255
      %v262 = vadd.f32 %v219, %v255
      %v263 = vadd.f32 %v220, %v255
      %v264 = vadd.f32 %v221, %v255
      %v265 = vadd.f32 %v222, %v255
      %v266 = vadd.f32 %v223, %v255
      %v267 = vadd.f32 %v224, %v255
      %v268 = vadd.f32 %v225, %v255
      %v269 = vadd.f32 %v226, %v255
      %v270 = vadd.f32 %v227, %v255
      %v271 = vadd.f32 %v228, %v255
      %v272 = vadd.f32 %v229, %v255
      %v273 = vadd.f32 %v230, %v255
      %v274 = vadd.f32 %v231, %v255
      %v275 = vadd.f32 %v232, %v255
      %v276 = vadd.f32 %v233, %v255
      %v277 = vadd.f32 %v234, %v255
      %v278 = vadd.f32 %v235, %v255
      %v279 = vadd.f32 %v236, %v255
      %v280 = vadd.f32 %v237, %v255
      %v281 = vadd.f32 %v238, %v255
      %v282 = vadd.f32 %v239, %v255
      %v283 = vadd.f32 %v240, %v255
      %v284 = vadd.f32 %v241, %v255
      %v285 = vadd.f32 %v242, %v255
      %v286 = vadd.f32 %v243, %v255
      %v287 = vadd.f32 %v244, %v255
      %v288 = vadd.f32 %v245, %v255
      %v289 = vadd.f32 %v246, %v255
      %v290 = vadd.f32 %v247, %v255
      %v291 = vadd.f32 %v248, %v255
      %v292 = vadd.f32 %v249, %v255
      %v293 = vmax.f32 %v257, 0.0
      %v294 = vmax.f32 %v258, 0.0
      %v295 = vmax.f32 %v259, 0.0
      %v296 = vmax.f32 %v260, 0.0
      %v297 = vmax.f32 %v261, 0.0
      %v298 = vmax.f32 %v262, 0.0
      %v299 = vmax.f32 %v263, 0.0
      %v300 = vmax.f32 %v264, 0.0
      %v301 = vmax.f32 %v265, 0.0
      %v302 = vmax.f32 %v266, 0.0
      %v303 = vmax.f32 %v267, 0.0
      %v304 = vmax.f32 %v268, 0.0
      %v305 = vmax.f32 %v269, 0.0
      %v306 = vmax.f32 %v270, 0.0
      %v307 = vmax.f32 %v271, 0.0
      %v308 = vmax.f32 %v272, 0.0
      %v309 = vmax.f32 %v273, 0.0
      %v310 = vmax.f32 %v274, 0.0
      %v311 = vmax.f32 %v275, 0.0
      %v312 = vmax.f32 %v276, 0.0
      %v313 = vmax.f32 %v277, 0.0
      %v314 = vmax.f32 %v278, 0.0
      %v315 = vmax.f32 %v279, 0.0
      %v316 = vmax.f32 %v280, 0.0
      %v317 = vmax.f32 %v281, 0.0
      %v318 = vmax.f32 %v282, 0.0
      %v319 = vmax.f32 %v283, 0.0
      %v320 = vmax.f32 %v284, 0.0
      %v321 = vmax.f32 %v285, 0.0
      %v322 = vmax.f32 %v286, 0.0
      %v323 = vmax.f32 %v287, 0.0
      %v324 = vmax.f32 %v288, 0.0
      %v325 = vmax.f32 %v289, 0.0
      %v326 = vmax.f32 %v290, 0.0
      %v327 = vmax.f32 %v291, 0.0
      %v328 = vmax.f32 %v292, 0.0
      %vm329 = vcmask 64512
      %330 = vst.msk [vmem:[%s170] sm:$0xff] %vm329, %v293
      %331 = vst.msk [vmem:[%s170 + $0x8] sm:$0xff] %vm329, %v294
      %332 = vst.msk [vmem:[%s170 + $0x10] sm:$0xff] %vm329, %v295
      %333 = vst.msk [vmem:[%s170 + $0x18] sm:$0xff] %vm329, %v296
      %334 = vst.msk [vmem:[%s170 + $0x20] sm:$0xff] %vm329, %v297
      %335 = vst.msk [vmem:[%s170 + $0x28] sm:$0xff] %vm329, %v298
      %336 = vst.msk [vmem:[%s170 + $0x30] sm:$0xff] %vm329, %v299
      %337 = vst.msk [vmem:[%s170 + $0x38] sm:$0xff] %vm329, %v300
      %338 = vst.msk [vmem:[%s170 + $0x40] sm:$0xff] %vm329, %v301
      %339 = vst.msk [vmem:[%s170 + $0x48] sm:$0xff] %vm329, %v302
      %340 = vst.msk [vmem:[%s170 + $0x50] sm:$0xff] %vm329, %v303
      %341 = vst.msk [vmem:[%s170 + $0x58] sm:$0xff] %vm329, %v304
      %342 = vst.msk [vmem:[%s170 + $0x60] sm:$0xff] %vm329, %v305
      %343 = vst.msk [vmem:[%s170 + $0x68] sm:$0xff] %vm329, %v306
      %344 = vst.msk [vmem:[%s170 + $0x70] sm:$0xff] %vm329, %v307
      %345 = vst.msk [vmem:[%s170 + $0x78] sm:$0xff] %vm329, %v308
      %346 = vst.msk [vmem:[%s170 + $0x80] sm:$0xff] %vm329, %v309
      %347 = vst.msk [vmem:[%s170 + $0x88] sm:$0xff] %vm329, %v310
      %348 = vst.msk [vmem:[%s170 + $0x90] sm:$0xff] %vm329, %v311
      %349 = vst.msk [vmem:[%s170 + $0x98] sm:$0xff] %vm329, %v312
      %350 = vst.msk [vmem:[%s170 + $0xa0] sm:$0xff] %vm329, %v313
      %351 = vst.msk [vmem:[%s170 + $0xa8] sm:$0xff] %vm329, %v314
      %352 = vst.msk [vmem:[%s170 + $0xb0] sm:$0xff] %vm329, %v315
      %353 = vst.msk [vmem:[%s170 + $0xb8] sm:$0xff] %vm329, %v316
      %354 = vst.msk [vmem:[%s170 + $0xc0] sm:$0xff] %vm329, %v317
      %355 = vst.msk [vmem:[%s170 + $0xc8] sm:$0xff] %vm329, %v318
      %356 = vst.msk [vmem:[%s170 + $0xd0] sm:$0xff] %vm329, %v319
      %357 = vst.msk [vmem:[%s170 + $0xd8] sm:$0xff] %vm329, %v320
      %358 = vst.msk [vmem:[%s170 + $0xe0] sm:$0xff] %vm329, %v321
      %359 = vst.msk [vmem:[%s170 + $0xe8] sm:$0xff] %vm329, %v322
      %360 = vst.msk [vmem:[%s170 + $0xf0] sm:$0xff] %vm329, %v323
      %361 = vst.msk [vmem:[%s170 + $0xf8] sm:$0xff] %vm329, %v324
      %362 = vst.msk [vmem:[%s170 + $0x100] sm:$0xff] %vm329, %v325
      %363 = vst.msk [vmem:[%s170 + $0x108] sm:$0xff] %vm329, %v326
      %364 = vst.msk [vmem:[%s170 + $0x110] sm:$0xff] %vm329, %v327
      %365 = vst.msk [vmem:[%s170 + $0x118] sm:$0xff] %vm329, %v328
      %p366 = scmp.lt.s32.totalorder %s14, 1
      %s367 = scalar_select %p366, %s14, 1
      %s368 = smul.addr %s367, 36
      %s369 = smul.addr %s368, 8
      %s370 = scalar_lea.vmem %s3, %s369
      // Predicated region
      $region33: #{resblock_forward.7} parent=31 // pred_check
        %p371 = pneg %p100
      $region34: #{resblock_forward.7} parent=31 // pred_check_branch
        %373 = sbr.rel (%p371) target = $region36
      $region35: #{resblock_forward.7} parent=31 // pred_region
        _
      $region36: #{resblock_forward.7} parent=31 // pred_fallthru
        _
    $region32: #{resblock_forward.7} parent=5 // pred_fallthru
      _
    %p374 = scmp.le.s32.totalorder 2, %s9
    // Predicated region
    $region37: #{resblock_forward.7} parent=5 // pred_check
      %p375 = pneg %p374
    $region38: #{resblock_forward.7} parent=5 // pred_check_branch
      %377 = sbr.rel (%p375) target = $region40
    $region39: #{resblock_forward.7} parent=5 // pred_region
      %s378 = ssub.s32 %s9, 2
      // Predicated region
      $region41: #{resblock_forward.7} parent=39 // pred_check
        %p379 = pneg %p106
      $region42: #{resblock_forward.7} parent=39 // pred_check_branch
        %381 = sbr.rel (%p379) target = $region44
      $region43: #{resblock_forward.7} parent=39 // pred_region
        %p382 = scmp.lt.s32.totalorder %s15, 1
        %s383 = scalar_select %p382, %s15, 1
        %s384 = smul.addr %s383, 36
        %s385 = smul.addr %s384, 8
        %s386 = scalar_lea.vmem %s3, %s385
      $region44: #{resblock_forward.7} parent=39 // pred_fallthru
        _
    $region40: #{resblock_forward.7} parent=5 // pred_fallthru
      _
  $region6: #{resblock_forward.7} parent=0 // loop_footer
    %s13 = sadd.s32 1, %s9
  $region7: #{resblock_forward.7} parent=0 // loop_footer_branch
    %8 = sbr.rel target = $region3
  $region8: #{resblock_forward.7} parent=0 // loop_exit
    _

// kernel: resblock_forward.4
$region0: #{resblock_forward.4}
  #allocation0 [shape = 'u32[]', space=smem, size = 0x4, offset = 0x4, fixed_abs, tag = 'smem constant byte address 0x4 - core index']
  #allocation1 [shape = 'u32[144,128]{1,0:T(1,128)}', space=vmem, size = 0x12000, scoped, tag = 'internal scratch']
  %s0 = inlined_call_operand.vmem [shape: bf16[2,326,4], index: 0, kind: input, shape index: {}]
  %s1 = inlined_call_operand.vmem [shape: bf16[9,4,8], index: 1, kind: input, shape index: {}]
  %s2 = inlined_call_operand.vmem [shape: f32[288,1], index: 2, kind: input, shape index: {}]
  %s3 = inlined_call_operand.vmem [shape: f32[2,288,8], index: 3, kind: output, shape index: {0}]
  %s4 = inlined_call_operand.vmem [shape: f32[2,2,8], index: 4, kind: output, shape index: {1}]
  %5 = xla_tuple %s3, %s4
  %s6 = sld [smem:[#allocation0]]
  $region53: #{resblock_forward.4} parent=0
    _
  %s8 = ssub.s32 1, %s6
  %s9 = scalar_select 0, %s8, %s6
  loop: start=0, step=1, limit=4
  $region2: #{resblock_forward.4} parent=0 // loop_pre_header
    _
  $region3: #{resblock_forward.4} parent=0 // loop_header
    %s11 = sphi 0, %s15
    %p12 = scmp.ge.s32.totalorder %s11, 4
    %s21 = sphi 0, %s23
    %s24 = sphi 0, %s21
    %s25 = sphi 0, %s24
    %s41 = sphi 0, %s25
    %s45 = sphi 0, %s45
    %s47 = sphi 0, %s45
    %s48 = sphi 0, %s47
    %s62 = sphi 0, %s48
    %s66 = sphi 0, %s66
    %s68 = sphi 0, %s66
    %s69 = sphi 0, %s68
    %s83 = sphi 0, %s69
    %s89 = sphi 0, %s91
    %s92 = sphi 0, %s89
    %s93 = sphi 0, %s92
    %s109 = sphi 0, %s93
    %s115 = sphi 0, %s117
    %s118 = sphi 0, %s115
    %s119 = sphi 0, %s118
    %s135 = sphi 0, %s119
  $region4: #{resblock_forward.4} parent=0 // loop_header_branch
    %14 = sbr.rel (%p12) target = $region8
  $region5: #{resblock_forward.4} parent=0 // loop_body
    %s16 = ssub.s32 %s11, 1
    %s17 = ssub.s32 %s11, 2
    %s18 = sadd.s32 %s11, 1
    %s19 = ssub.s32 %s11, %s18
    %p20 = scmp.eq.s32.totalorder %s19, 0
    %s22 = sadd.s32 %s21, 1
    %s23 = scalar_select %p20, %s21, %s22
    %p26 = pneg %p20
    %p27 = scmp.eq.s32.totalorder %s11, 1
    %p28 = por %p26, %p27
    %p29 = scmp.ne.s32.totalorder %s21, %s24
    %p30 = scmp.eq.s32.totalorder %s11, 0
    %p31 = por %p29, %p30
    %p32 = scmp.ne.s32.totalorder %s21, %s24
    %p33 = scmp.eq.s32.totalorder %s16, 1
    %p34 = por %p32, %p33
    %p35 = scmp.ne.s32.totalorder %s24, %s25
    %p36 = scmp.eq.s32.totalorder %s16, 0
    %p37 = por %p35, %p36
    %p38 = scmp.ne.s32.totalorder %s24, %s25
    %p39 = scmp.eq.s32.totalorder %s17, 1
    %p40 = por %p38, %p39
    %p42 = scmp.ne.s32.totalorder %s25, %s41
    %p43 = scmp.eq.s32.totalorder %s17, 0
    %p44 = por %p42, %p43
    %s46 = sadd.s32 %s45, 1
    %p49 = scmp.eq.s32.totalorder %s11, 1
    %p50 = scmp.ne.s32.totalorder %s45, %s47
    %p51 = scmp.eq.s32.totalorder %s11, 0
    %p52 = por %p50, %p51
    %p53 = scmp.ne.s32.totalorder %s45, %s47
    %p54 = scmp.eq.s32.totalorder %s16, 1
    %p55 = por %p53, %p54
    %p56 = scmp.ne.s32.totalorder %s47, %s48
    %p57 = scmp.eq.s32.totalorder %s16, 0
    %p58 = por %p56, %p57
    %p59 = scmp.ne.s32.totalorder %s47, %s48
    %p60 = scmp.eq.s32.totalorder %s17, 1
    %p61 = por %p59, %p60
    %p63 = scmp.ne.s32.totalorder %s48, %s62
    %p64 = scmp.eq.s32.totalorder %s17, 0
    %p65 = por %p63, %p64
    %s67 = sadd.s32 %s66, 1
    %p70 = scmp.eq.s32.totalorder %s11, 1
    %p71 = scmp.ne.s32.totalorder %s66, %s68
    %p72 = scmp.eq.s32.totalorder %s11, 0
    %p73 = por %p71, %p72
    %p74 = scmp.ne.s32.totalorder %s66, %s68
    %p75 = scmp.eq.s32.totalorder %s16, 1
    %p76 = por %p74, %p75
    %p77 = scmp.ne.s32.totalorder %s68, %s69
    %p78 = scmp.eq.s32.totalorder %s16, 0
    %p79 = por %p77, %p78
    %p80 = scmp.ne.s32.totalorder %s68, %s69
    %p81 = scmp.eq.s32.totalorder %s17, 1
    %p82 = por %p80, %p81
    %p84 = scmp.ne.s32.totalorder %s69, %s83
    %p85 = scmp.eq.s32.totalorder %s17, 0
    %p86 = por %p84, %p85
    %s87 = ssub.s32 %s11, %s18
    %p88 = scmp.eq.s32.totalorder %s87, 0
    %s90 = sadd.s32 %s89, 1
    %s91 = scalar_select %p88, %s89, %s90
    %p94 = pneg %p88
    %p95 = scmp.eq.s32.totalorder %s11, 1
    %p96 = por %p94, %p95
    %p97 = scmp.ne.s32.totalorder %s89, %s92
    %p98 = scmp.eq.s32.totalorder %s11, 0
    %p99 = por %p97, %p98
    %p100 = scmp.ne.s32.totalorder %s89, %s92
    %p101 = scmp.eq.s32.totalorder %s16, 1
    %p102 = por %p100, %p101
    %p103 = scmp.ne.s32.totalorder %s92, %s93
    %p104 = scmp.eq.s32.totalorder %s16, 0
    %p105 = por %p103, %p104
    %p106 = scmp.ne.s32.totalorder %s92, %s93
    %p107 = scmp.eq.s32.totalorder %s17, 1
    %p108 = por %p106, %p107
    %p110 = scmp.ne.s32.totalorder %s93, %s109
    %p111 = scmp.eq.s32.totalorder %s17, 0
    %p112 = por %p110, %p111
    %s113 = ssub.s32 %s11, %s18
    %p114 = scmp.eq.s32.totalorder %s113, 0
    %s116 = sadd.s32 %s115, 1
    %s117 = scalar_select %p114, %s115, %s116
    %p120 = pneg %p114
    %p121 = scmp.eq.s32.totalorder %s11, 1
    %p122 = por %p120, %p121
    %p123 = scmp.ne.s32.totalorder %s115, %s118
    %p124 = scmp.eq.s32.totalorder %s11, 0
    %p125 = por %p123, %p124
    %p126 = scmp.ne.s32.totalorder %s115, %s118
    %p127 = scmp.eq.s32.totalorder %s16, 1
    %p128 = por %p126, %p127
    %p129 = scmp.ne.s32.totalorder %s118, %s119
    %p130 = scmp.eq.s32.totalorder %s16, 0
    %p131 = por %p129, %p130
    %p132 = scmp.ne.s32.totalorder %s118, %s119
    %p133 = scmp.eq.s32.totalorder %s17, 1
    %p134 = por %p132, %p133
    %p136 = scmp.ne.s32.totalorder %s119, %s135
    %p137 = scmp.eq.s32.totalorder %s17, 0
    %p138 = por %p136, %p137
    %p139 = scmp.le.s32.totalorder 1, %s11
    %p140 = scmp.lt.s32.totalorder %s11, 3
    %p141 = pnand %p139, %p140
    %p142 = pneg %p141
    // Predicated region
    $region9: #{resblock_forward.4} parent=5 // pred_check
      _
    $region10: #{resblock_forward.4} parent=5 // pred_check_branch
      %144 = sbr.rel (%p141) target = $region12
    $region11: #{resblock_forward.4} parent=5 // pred_region
      %s145 = ssub.s32 %s11, 1
      // Predicated region
      $region13: #{resblock_forward.4} parent=11 // pred_check
        %p146 = pneg %p58
      $region14: #{resblock_forward.4} parent=11 // pred_check_branch
        %148 = sbr.rel (%p146) target = $region16
      $region15: #{resblock_forward.4} parent=11 // pred_region
        _
      $region16: #{resblock_forward.4} parent=11 // pred_fallthru
        _
      // Predicated region
      $region17: #{resblock_forward.4} parent=11 // pred_check
        %p149 = pneg %p79
      $region18: #{resblock_forward.4} parent=11 // pred_check_branch
        %151 = sbr.rel (%p149) target = $region20
      $region19: #{resblock_forward.4} parent=11 // pred_region
        _
      $region20: #{resblock_forward.4} parent=11 // pred_fallthru
        _
    $region12: #{resblock_forward.4} parent=5 // pred_fallthru
      _
    %p152 = scmp.lt.s32.totalorder %s11, 2
    // Predicated region
    $region21: #{resblock_forward.4} parent=5 // pred_check
      %p153 = pneg %p152
    $region22: #{resblock_forward.4} parent=5 // pred_check_branch
      %155 = sbr.rel (%p153) target = $region24
    $region23: #{resblock_forward.4} parent=5 // pred_region
      // Predicated region
      $region25: #{resblock_forward.4} parent=23 // pred_check
        %p156 = pneg %p31
      $region26: #{resblock_forward.4} parent=23 // pred_check_branch
        %158 = sbr.rel (%p156) target = $region28
      $region27: #{resblock_forward.4} parent=23 // pred_region
        %p159 = scmp.lt.s32.totalorder %s11, 1
        %s160 = scalar_select %p159, %s11, 1
        %s161 = smul.addr %s160, 41
        %s162 = smul.addr %s161, 4
        %s163 = scalar_lea.vmem %s0, %s162
      $region28: #{resblock_forward.4} parent=23 // pred_fallthru
        _
    $region24: #{resblock_forward.4} parent=5 // pred_fallthru
      _
    %p164 = scmp.le.s32.totalorder 1, %s11
    %p165 = scmp.lt.s32.totalorder %s11, 3
    %p166 = pnand %p164, %p165
    %p167 = pneg %p166
    // Predicated region
    $region29: #{resblock_forward.4} parent=5 // pred_check
      _
    $region30: #{resblock_forward.4} parent=5 // pred_check_branch
      %169 = sbr.rel (%p166) target = $region32
    $region31: #{resblock_forward.4} parent=5 // pred_region
      %s170 = ssub.s32 %s11, 1
      %p171 = scmp.lt.s32.totalorder %s16, 1
      %s172 = scalar_select %p171, %s16, 1
      %s173 = smul.addr %s172, 41
      %s174 = smul.addr %s173, 4
      %s175 = scalar_lea.vmem %s0, %s174
      %p176 = pneg %p37
      %p177 = pneg %p34
      %p178 = pneg %p58
      %p179 = pneg %p55
      %p180 = pneg %p79
      %p181 = pneg %p76
      %p182 = pneg %p105
      %p183 = pneg %p102
      %p184 = scmp.lt.s32.totalorder %s16, 1
      %s185 = scalar_select %p184, %s16, 1
      %s186 = smul.addr %s185, 36
      %s187 = smul.addr %s186, 8
      %s188 = scalar_lea.vmem %s3, %s187
      %p189 = pneg %p131
      %p190 = pneg %p128
      %p191 = scmp.lt.s32.totalorder %s16, 1
      %s192 = scalar_select %p191, %s16, 1
      %s193 = smul.addr %s192, 2
      %s194 = scalar_lea.vmem %s4, %s193
      %p195 = scmp.lt.s32.totalorder %s16, 1
      %s196 = scalar_select %p195, %s16, 1
      %s197 = smul.addr %s196, 41
      %s198 = smul.addr %s197, 4
      %s199 = scalar_lea.vmem %s0, %s198
      %p200 = scmp.lt.s32.totalorder %s16, 1
      %s201 = scalar_select %p200, %s16, 1
      %s202 = smul.addr %s201, 36
      %s203 = smul.addr %s202, 8
      %s204 = scalar_lea.vmem %s3, %s203
      %p205 = scmp.lt.s32.totalorder %s16, 1
      %s206 = scalar_select %p205, %s16, 1
      %s207 = smul.addr %s206, 2
      %s208 = scalar_lea.vmem %s4, %s207
      %v210 = vld [vmem:[%s199] sm:$0xf]
      %v211 = vld [vmem:[%s199 + $0x4] sm:$0xf]
      %v212 = vld [vmem:[%s199 + $0x8] sm:$0xf]
      %v213 = vld [vmem:[%s199 + $0xc] sm:$0xf]
      %v214 = vld [vmem:[%s199 + $0x10] sm:$0xf]
      %v215 = vld [vmem:[%s199 + $0x14] sm:$0xf]
      %v216 = vld [vmem:[%s199 + $0x18] sm:$0xf]
      %v217 = vld [vmem:[%s199 + $0x1c] sm:$0xf]
      %v218 = vld [vmem:[%s199 + $0x20] sm:$0xf]
      %v219 = vld [vmem:[%s199 + $0x24] sm:$0xf]
      %v220 = vld [vmem:[%s199 + $0x28] sm:$0xf]
      %v221 = vld [vmem:[%s199 + $0x2c] sm:$0xf]
      %v222 = vld [vmem:[%s199 + $0x30] sm:$0xf]
      %v223 = vld [vmem:[%s199 + $0x34] sm:$0xf]
      %v224 = vld [vmem:[%s199 + $0x38] sm:$0xf]
      %v225 = vld [vmem:[%s199 + $0x3c] sm:$0xf]
      %v226 = vld [vmem:[%s199 + $0x40] sm:$0xf]
      %v227 = vld [vmem:[%s199 + $0x44] sm:$0xf]
      %v228 = vld [vmem:[%s199 + $0x48] sm:$0xf]
      %v229 = vld [vmem:[%s199 + $0x4c] sm:$0xf]
      %v230 = vld [vmem:[%s199 + $0x50] sm:$0xf]
      %v231 = vld [vmem:[%s199 + $0x54] sm:$0xf]
      %v232 = vld [vmem:[%s199 + $0x58] sm:$0xf]
      %v233 = vld [vmem:[%s199 + $0x5c] sm:$0xf]
      %v234 = vld [vmem:[%s199 + $0x60] sm:$0xf]
      %v235 = vld [vmem:[%s199 + $0x64] sm:$0xf]
      %v236 = vld [vmem:[%s199 + $0x68] sm:$0xf]
      %v237 = vld [vmem:[%s199 + $0x6c] sm:$0xf]
      %v238 = vld [vmem:[%s199 + $0x70] sm:$0xf]
      %v239 = vld [vmem:[%s199 + $0x74] sm:$0xf]
      %v240 = vld [vmem:[%s199 + $0x78] sm:$0xf]
      %v241 = vld [vmem:[%s199 + $0x7c] sm:$0xf]
      %v242 = vld [vmem:[%s199 + $0x80] sm:$0xf]
      %v243 = vld [vmem:[%s199 + $0x84] sm:$0xf]
      %v244 = vld [vmem:[%s199 + $0x88] sm:$0xf]
      %v245 = vld [vmem:[%s199 + $0x8c] sm:$0xf]
      %v246 = vld [vmem:[%s199 + $0x90] sm:$0xf]
      %v247 = vld [vmem:[%s199 + $0x94] sm:$0xf]
      %v248 = vld [vmem:[%s199 + $0x98] sm:$0xf]
      %v249 = vld [vmem:[%s199 + $0x9c] sm:$0xf]
      %v250 = vld [vmem:[%s199 + $0xa0] sm:$0x7]
      %v251 = vld [vmem:[%s1] sm:$0x3]
      %s252 = scalar_lea.vmem %s1, 2
      %v253 = vld [vmem:[%s252] sm:$0x3]
      %v291 = vunpack.c.l.b16 %v210
      %v292 = vunpack.c.l.b16 %v211
      %v293 = vunpack.c.l.b16 %v212
      %v294 = vunpack.c.l.b16 %v213
      %v295 = vunpack.c.l.b16 %v214
      %v296 = vunpack.c.l.b16 %v215
      %v297 = vunpack.c.l.b16 %v216
      %v298 = vunpack.c.l.b16 %v217
      %v299 = vunpack.c.l.b16 %v218
      %v300 = vunpack.c.l.b16 %v219
      %v301 = vunpack.c.l.b16 %v220
      %v302 = vunpack.c.l.b16 %v221
      %v303 = vunpack.c.l.b16 %v222
      %v304 = vunpack.c.l.b16 %v223
      %v305 = vunpack.c.l.b16 %v224
      %v306 = vunpack.c.l.b16 %v225
      %v307 = vunpack.c.l.b16 %v226
      %v308 = vunpack.c.l.b16 %v227
      %v309 = vunpack.c.l.b16 %v228
      %v310 = vunpack.c.l.b16 %v229
      %v311 = vunpack.c.l.b16 %v230
      %v312 = vunpack.c.l.b16 %v231
      %v313 = vunpack.c.l.b16 %v232
      %v314 = vunpack.c.l.b16 %v233
      %v315 = vunpack.c.l.b16 %v234
      %v316 = vunpack.c.l.b16 %v235
      %v317 = vunpack.c.l.b16 %v236
      %v318 = vunpack.c.l.b16 %v237
      %v319 = vunpack.c.l.b16 %v238
      %v320 = vunpack.c.l.b16 %v239
      %v321 = vunpack.c.l.b16 %v240
      %v322 = vunpack.c.l.b16 %v241
      %v323 = vunpack.c.l.b16 %v242
      %v324 = vunpack.c.l.b16 %v243
      %v325 = vunpack.c.l.b16 %v244
      %v326 = vunpack.c.l.b16 %v245
      %v327 = vunpack.c.l.b16 %v246
      %v328 = vpack.c.b16 %v292, %v291
      %v329 = vpack.c.b16 %v294, %v293
      %v330 = vpack.c.b16 %v296, %v295
      %v331 = vpack.c.b16 %v298, %v297
      %v332 = vpack.c.b16 %v300, %v299
      %v333 = vpack.c.b16 %v302, %v301
      %v334 = vpack.c.b16 %v304, %v303
      %v335 = vpack.c.b16 %v306, %v305
      %v336 = vpack.c.b16 %v308, %v307
      %v337 = vpack.c.b16 %v310, %v309
      %v338 = vpack.c.b16 %v312, %v311
      %v339 = vpack.c.b16 %v314, %v313
      %v340 = vpack.c.b16 %v316, %v315
      %v341 = vpack.c.b16 %v318, %v317
      %v342 = vpack.c.b16 %v320, %v319
      %v343 = vpack.c.b16 %v322, %v321
      %v344 = vpack.c.b16 %v324, %v323
      %v345 = vpack.c.b16 %v326, %v325
      %v346 = vpack.c.b16 %v327, %v327
      %vm347 = vsmask.f32 7424
      %v349 = vshrl.u32 %v328, 16
      %v351 = vshll.u32 %v328, 16
      %v353 = vrot.slane %v351, 1
      %v354 = vor.u32 %v349, %v353
      %v356 = vshll.u32 %v329, 16
      %v358 = vrot.slane %v356, 1
      %v359 = vsel %vm347, %v354, %v358
      %v360 = vshrl.u32 %v329, 16
      %v362 = vor.u32 %v360, %v358
      %v364 = vshll.u32 %v330, 16
      %v366 = vrot.slane %v364, 1
      %v367 = vsel %vm347, %v362, %v366
      %v368 = vshrl.u32 %v330, 16
      %v370 = vor.u32 %v368, %v366
      %v372 = vshll.u32 %v331, 16
      %v374 = vrot.slane %v372, 1
      %v375 = vsel %vm347, %v370, %v374
      %v376 = vshrl.u32 %v331, 16
      %v378 = vor.u32 %v376, %v374
      %v380 = vshll.u32 %v332, 16
      %v382 = vrot.slane %v380, 1
      %v383 = vsel %vm347, %v378, %v382
      %v384 = vshrl.u32 %v332, 16
      %v386 = vor.u32 %v384, %v382
      %v388 = vshll.u32 %v333, 16
      %v390 = vrot.slane %v388, 1
      %v391 = vsel %vm347, %v386, %v390
      %v392 = vshrl.u32 %v333, 16
      %v394 = vor.u32 %v392, %v390
      %v396 = vshll.u32 %v334, 16
      %v398 = vrot.slane %v396, 1
      %v399 = vsel %vm347, %v394, %v398
      %v400 = vshrl.u32 %v334, 16
      %v402 = vor.u32 %v400, %v398
      %v404 = vshll.u32 %v335, 16
      %v406 = vrot.slane %v404, 1
      %v407 = vsel %vm347, %v402, %v406
      %v408 = vshrl.u32 %v335, 16
      %v410 = vor.u32 %v408, %v406
      %v412 = vshll.u32 %v336, 16
      %v414 = vrot.slane %v412, 1
      %v415 = vsel %vm347, %v410, %v414
      %v416 = vshrl.u32 %v336, 16
      %v418 = vor.u32 %v416, %v414
      %v420 = vshll.u32 %v337, 16
      %v422 = vrot.slane %v420, 1
      %v423 = vsel %vm347, %v418, %v422
      %v424 = vshrl.u32 %v337, 16
      %v426 = vor.u32 %v424, %v422
      %v428 = vshll.u32 %v338, 16
      %v430 = vrot.slane %v428, 1
      %v431 = vsel %vm347, %v426, %v430
      %v432 = vshrl.u32 %v338, 16
      %v434 = vor.u32 %v432, %v430
      %v436 = vshll.u32 %v339, 16
      %v438 = vrot.slane %v436, 1
      %v439 = vsel %vm347, %v434, %v438
      %v440 = vshrl.u32 %v339, 16
      %v442 = vor.u32 %v440, %v438
      %v444 = vshll.u32 %v340, 16
      %v446 = vrot.slane %v444, 1
      %v447 = vsel %vm347, %v442, %v446
      %v448 = vshrl.u32 %v340, 16
      %v450 = vor.u32 %v448, %v446
      %v452 = vshll.u32 %v341, 16
      %v454 = vrot.slane %v452, 1
      %v455 = vsel %vm347, %v450, %v454
      %v456 = vshrl.u32 %v341, 16
      %v458 = vor.u32 %v456, %v454
      %v460 = vshll.u32 %v342, 16
      %v462 = vrot.slane %v460, 1
      %v463 = vsel %vm347, %v458, %v462
      %v464 = vshrl.u32 %v342, 16
      %v466 = vor.u32 %v464, %v462
      %v468 = vshll.u32 %v343, 16
      %v470 = vrot.slane %v468, 1
      %v471 = vsel %vm347, %v466, %v470
      %v472 = vshrl.u32 %v343, 16
      %v474 = vor.u32 %v472, %v470
      %v476 = vshll.u32 %v344, 16
      %v478 = vrot.slane %v476, 1
      %v479 = vsel %vm347, %v474, %v478
      %v480 = vshrl.u32 %v344, 16
      %v482 = vor.u32 %v480, %v478
      %v484 = vshll.u32 %v345, 16
      %v486 = vrot.slane %v484, 1
      %v487 = vsel %vm347, %v482, %v486
      %v488 = vshrl.u32 %v345, 16
      %v490 = vor.u32 %v488, %v486
      %v492 = vshll.u32 %v346, 16
      %v494 = vrot.slane %v492, 1
      %v495 = vsel %vm347, %v490, %v494
      %vm496 = vcmask 31744
      %v498 = vsel %vm496, %v359, 0
      %v501 = vsel %vm496, %v367, 0
      %v504 = vsel %vm496, %v375, 0
      %v507 = vsel %vm496, %v383, 0
      %v510 = vsel %vm496, %v391, 0
      %v513 = vsel %vm496, %v399, 0
      %v516 = vsel %vm496, %v407, 0
      %v519 = vsel %vm496, %v415, 0
      %v522 = vsel %vm496, %v423, 0
      %v525 = vsel %vm496, %v431, 0
      %v528 = vsel %vm496, %v439, 0
      %v531 = vsel %vm496, %v447, 0
      %v534 = vsel %vm496, %v455, 0
      %v537 = vsel %vm496, %v463, 0
      %v540 = vsel %vm496, %v471, 0
      %v543 = vsel %vm496, %v479, 0
      %v546 = vsel %vm496, %v487, 0
      %v549 = vsel %vm496, %v495, 0
      %vm551 = vcmask 1041408
      %v553 = vsel %vm551, %v253, 0
      %555 = vmatprep.subr.bf16.mxu0 0
      %556 = vmatpush1.bf16.msra.mxu0 %v553
      %557 = vmatprep.subr.bf16.mxu0 0
      %558 = vmatpush1.bf16.msra.mxu0 0
      %559 = vmatprep.subr.bf16.mxu0 0
      %560 = vmatpush1.bf16.msra.mxu0 0
      %561 = vmatprep.subr.bf16.mxu0 0
      %562 = vmatpush1.bf16.msra.mxu0 0
      %563 = vmatprep.subr.bf16.mxu0 0
      %564 = vmatpush1.bf16.msra.mxu0 0
      %565 = vmatprep.subr.bf16.mxu0 0
      %566 = vmatpush1.bf16.msra.mxu0 0
      %567 = vmatprep.subr.bf16.mxu0 0
      %568 = vmatpush1.bf16.msra.mxu0 0
      %569 = vmatprep.subr.bf16.mxu0 0
      %570 = vmatpush1.bf16.msra.mxu0 0
      %571 = vmatprep.subr.bf16.mxu0 0
      %572 = vmatpush1.bf16.msra.mxu0 0
      %573 = vmatprep.subr.bf16.mxu0 0
      %574 = vmatpush1.bf16.msra.mxu0 0
      %575 = vmatprep.subr.bf16.mxu0 0
      %576 = vmatpush1.bf16.msra.mxu0 0
      %577 = vmatprep.subr.bf16.mxu0 0
      %578 = vmatpush1.bf16.msra.mxu0 0
      %579 = vmatprep.subr.bf16.mxu0 0
      %580 = vmatpush1.bf16.msra.mxu0 0
      %581 = vmatprep.subr.bf16.mxu0 0
      %582 = vmatpush1.bf16.msra.mxu0 0
      %583 = vmatprep.subr.bf16.mxu0 0
      %584 = vmatpush1.bf16.msra.mxu0 0
      %585 = vmatprep.subr.bf16.mxu0 0
      %586 = vmatpush1.bf16.msra.mxu0 0
      %587 = vmatprep.mubr.bf16.mxu0 0
      %588 = vmatmul.mubr.bf16.gmra.mrb[0].mxu0 %v498
      %v589 = vpop.f32.mrb[0].mxu0
      %v590 = vadd.f32 0.0, %v589
      %v591 = vpop.f32.mrb[0].mxu0
      %v592 = vpop.f32.mrb[0].mxu0
      %v593 = vadd.f32 0.0, %v592
      %v594 = vpop.f32.mrb[0].mxu0
      %595 = vmatprep.mubr.bf16.mxu0 0
      %596 = vmatmul.mubr.bf16.gmra.mrb[0].mxu0 %v501
      %v597 = vpop.f32.mrb[0].mxu0
      %v598 = vadd.f32 0.0, %v597
      %v599 = vpop.f32.mrb[0].mxu0
      %v600 = vpop.f32.mrb[0].mxu0
      %v601 = vadd.f32 0.0, %v600
      %v602 = vpop.f32.mrb[0].mxu0
      %603 = vmatprep.mubr.bf16.mxu0 0
      %604 = vmatmul.mubr.bf16.gmra.mrb[0].mxu0 %v504
      %v605 = vpop.f32.mrb[0].mxu0
      %v606 = vadd.f32 0.0, %v605
      %v607 = vpop.f32.mrb[0].mxu0
      %v608 = vpop.f32.mrb[0].mxu0
      %v609 = vadd.f32 0.0, %v608
      %v610 = vpop.f32.mrb[0].mxu0
      %611 = vmatprep.mubr.bf16.mxu0 0
      %612 = vmatmul.mubr.bf16.gmra.mrb[0].mxu0 %v507
      %v613 = vpop.f32.mrb[0].mxu0
      %v614 = vadd.f32 0.0, %v613
      %v615 = vpop.f32.mrb[0].mxu0
      %v616 = vpop.f32.mrb[0].mxu0
      %v617 = vadd.f32 0.0, %v616
      %v618 = vpop.f32.mrb[0].mxu0
      %619 = vmatprep.mubr.bf16.mxu0 0
      %620 = vmatmul.mubr.bf16.gmra.mrb[0].mxu0 %v510
      %v621 = vpop.f32.mrb[0].mxu0
      %v622 = vadd.f32 0.0, %v621
      %v623 = vpop.f32.mrb[0].mxu0
      %v624 = vpop.f32.mrb[0].mxu0
      %v625 = vadd.f32 0.0, %v624
      %v626 = vpop.f32.mrb[0].mxu0
      %627 = vmatprep.mubr.bf16.mxu0 0
      %628 = vmatmul.mubr.bf16.gmra.mrb[0].mxu0 %v513
      %v629 = vpop.f32.mrb[0].mxu0
      %v630 = vadd.f32 0.0, %v629
      %v631 = vpop.f32.mrb[0].mxu0
      %v632 = vpop.f32.mrb[0].mxu0
      %v633 = vadd.f32 0.0, %v632
      %v634 = vpop.f32.mrb[0].mxu0
      %635 = vmatprep.mubr.bf16.mxu0 0
      %636 = vmatmul.mubr.bf16.gmra.mrb[0].mxu0 %v516
      %v637 = vpop.f32.mrb[0].mxu0
      %v638 = vadd.f32 0.0, %v637
      %v639 = vpop.f32.mrb[0].mxu0
      %v640 = vpop.f32.mrb[0].mxu0
      %v641 = vadd.f32 0.0, %v640
      %v642 = vpop.f32.mrb[0].mxu0
      %643 = vmatprep.mubr.bf16.mxu0 0
      %644 = vmatmul.mubr.bf16.gmra.mrb[0].mxu0 %v519
      %v645 = vpop.f32.mrb[0].mxu0
      %v646 = vadd.f32 0.0, %v645
      %v647 = vpop.f32.mrb[0].mxu0
      %v648 = vpop.f32.mrb[0].mxu0
      %v649 = vadd.f32 0.0, %v648
      %v650 = vpop.f32.mrb[0].mxu0
      %651 = vmatprep.mubr.bf16.mxu0 0
      %652 = vmatmul.mubr.bf16.gmra.mrb[0].mxu0 %v522
      %v653 = vpop.f32.mrb[0].mxu0
      %v654 = vadd.f32 0.0, %v653
      %v655 = vpop.f32.mrb[0].mxu0
      %v656 = vpop.f32.mrb[0].mxu0
      %v657 = vadd.f32 0.0, %v656
      %v658 = vpop.f32.mrb[0].mxu0
      %659 = vmatprep.mubr.bf16.mxu0 0
      %660 = vmatmul.mubr.bf16.gmra.mrb[0].mxu0 %v525
      %v661 = vpop.f32.mrb[0].mxu0
      %v662 = vadd.f32 0.0, %v661
      %v663 = vpop.f32.mrb[0].mxu0
      %v664 = vpop.f32.mrb[0].mxu0
      %v665 = vadd.f32 0.0, %v664
      %v666 = vpop.f32.mrb[0].mxu0
      %667 = vmatprep.mubr.bf16.mxu0 0
      %668 = vmatmul.mubr.bf16.gmra.mrb[0].mxu0 %v528
      %v669 = vpop.f32.mrb[0].mxu0
      %v670 = vadd.f32 0.0, %v669
      %v671 = vpop.f32.mrb[0].mxu0
      %v672 = vpop.f32.mrb[0].mxu0
      %v673 = vadd.f32 0.0, %v672
      %v674 = vpop.f32.mrb[0].mxu0
      %675 = vmatprep.mubr.bf16.mxu0 0
      %676 = vmatmul.mubr.bf16.gmra.mrb[0].mxu0 %v531
      %v677 = vpop.f32.mrb[0].mxu0
      %v678 = vadd.f32 0.0, %v677
      %v679 = vpop.f32.mrb[0].mxu0
      %v680 = vpop.f32.mrb[0].mxu0
      %v681 = vadd.f32 0.0, %v680
      %v682 = vpop.f32.mrb[0].mxu0
      %683 = vmatprep.mubr.bf16.mxu0 0
      %684 = vmatmul.mubr.bf16.gmra.mrb[0].mxu0 %v534
      %v685 = vpop.f32.mrb[0].mxu0
      %v686 = vadd.f32 0.0, %v685
      %v687 = vpop.f32.mrb[0].mxu0
      %v688 = vpop.f32.mrb[0].mxu0
      %v689 = vadd.f32 0.0, %v688
      %v690 = vpop.f32.mrb[0].mxu0
      %691 = vmatprep.mubr.bf16.mxu0 0
      %692 = vmatmul.mubr.bf16.gmra.mrb[0].mxu0 %v537
      %v693 = vpop.f32.mrb[0].mxu0
      %v694 = vadd.f32 0.0, %v693
      %v695 = vpop.f32.mrb[0].mxu0
      %v696 = vpop.f32.mrb[0].mxu0
      %v697 = vadd.f32 0.0, %v696
      %v698 = vpop.f32.mrb[0].mxu0
      %699 = vmatprep.mubr.bf16.mxu0 0
      %700 = vmatmul.mubr.bf16.gmra.mrb[0].mxu0 %v540
      %v701 = vpop.f32.mrb[0].mxu0
      %v702 = vadd.f32 0.0, %v701
      %v703 = vpop.f32.mrb[0].mxu0
      %v704 = vpop.f32.mrb[0].mxu0
      %v705 = vadd.f32 0.0, %v704
      %v706 = vpop.f32.mrb[0].mxu0
      %707 = vmatprep.mubr.bf16.mxu0 0
      %708 = vmatmul.mubr.bf16.gmra.mrb[0].mxu0 %v543
      %v709 = vpop.f32.mrb[0].mxu0
      %v710 = vadd.f32 0.0, %v709
      %v711 = vpop.f32.mrb[0].mxu0
      %v712 = vpop.f32.mrb[0].mxu0
      %v713 = vadd.f32 0.0, %v712
      %v714 = vpop.f32.mrb[0].mxu0
      %715 = vmatprep.mubr.bf16.mxu0 0
      %716 = vmatmul.mubr.bf16.gmra.mrb[0].mxu0 %v546
      %v717 = vpop.f32.mrb[0].mxu0
      %v718 = vadd.f32 0.0, %v717
      %v719 = vpop.f32.mrb[0].mxu0
      %v720 = vpop.f32.mrb[0].mxu0
      %v721 = vadd.f32 0.0, %v720
      %v722 = vpop.f32.mrb[0].mxu0
      %723 = vmatprep.mubr.bf16.mxu0 0
      %724 = vmatmul.mubr.bf16.gmra.mrb[0].mxu0 %v549
      %v725 = vpop.f32.mrb[0].mxu0
      %v726 = vadd.f32 0.0, %v725
      %v727 = vpop.f32.mrb[0].mxu0
      %v728 = vpop.f32.mrb[0].mxu0
      %v729 = vadd.f32 0.0, %v728
      %v730 = vpop.f32.mrb[0].mxu0
      %731 = vdwg.mxu0
      %v732 = vsel %vm496, %v328, 0
      %v734 = vsel %vm496, %v329, 0
      %v736 = vsel %vm496, %v330, 0
      %v738 = vsel %vm496, %v331, 0
      %v740 = vsel %vm496, %v332, 0
      %v742 = vsel %vm496, %v333, 0
      %v744 = vsel %vm496, %v334, 0
      %v746 = vsel %vm496, %v335, 0
      %v748 = vsel %vm496, %v336, 0
      %v750 = vsel %vm496, %v337, 0
      %v752 = vsel %vm496, %v338, 0
      %v754 = vsel %vm496, %v339, 0
      %v756 = vsel %vm496, %v340, 0
      %v758 = vsel %vm496, %v341, 0
      %v760 = vsel %vm496, %v342, 0
      %v762 = vsel %vm496, %v343, 0
      %v764 = vsel %vm496, %v344, 0
      %v766 = vsel %vm496, %v345, 0
      %v769 = vsel %vm551, %v251, 0
      %771 = vmatprep.subr.bf16.mxu0 0
      %772 = vmatpush1.bf16.msra.mxu0 %v769
      %773 = vmatprep.subr.bf16.mxu0 0
      %774 = vmatpush1.bf16.msra.mxu0 0
      %775 = vmatprep.subr.bf16.mxu0 0
      %776 = vmatpush1.bf16.msra.mxu0 0
      %777 = vmatprep.subr.bf16.mxu0 0
      %778 = vmatpush1.bf16.msra.mxu0 0
      %779 = vmatprep.subr.bf16.mxu0 0
      %780 = vmatpush1.bf16.msra.mxu0 0
      %781 = vmatprep.subr.bf16.mxu0 0
      %782 = vmatpush1.bf16.msra.mxu0 0
      %783 = vmatprep.subr.bf16.mxu0 0
      %784 = vmatpush1.bf16.msra.mxu0 0
      %785 = vmatprep.subr.bf16.mxu0 0
      %786 = vmatpush1.bf16.msra.mxu0 0
      %787 = vmatprep.subr.bf16.mxu0 0
      %788 = vmatpush1.bf16.msra.mxu0 0
      %789 = vmatprep.subr.bf16.mxu0 0
      %790 = vmatpush1.bf16.msra.mxu0 0
      %791 = vmatprep.subr.bf16.mxu0 0
      %792 = vmatpush1.bf16.msra.mxu0 0
      %793 = vmatprep.subr.bf16.mxu0 0
      %794 = vmatpush1.bf16.msra.mxu0 0
      %795 = vmatprep.subr.bf16.mxu0 0
      %796 = vmatpush1.bf16.msra.mxu0 0
      %797 = vmatprep.subr.bf16.mxu0 0
      %798 = vmatpush1.bf16.msra.mxu0 0
      %799 = vmatprep.subr.bf16.mxu0 0
      %800 = vmatpush1.bf16.msra.mxu0 0
      %801 = vmatprep.subr.bf16.mxu0 0
      %802 = vmatpush1.bf16.msra.mxu0 0
      %803 = vmatprep.mubr.bf16.mxu0 0
      %804 = vmatmul.mubr.bf16.gmra.mrb[0].mxu0 %v732
      %v805 = vpop.f32.mrb[0].mxu0
      %v806 = vadd.f32 %v590, %v805
      %v807 = vpop.f32.mrb[0].mxu0
      %v808 = vpop.f32.mrb[0].mxu0
      %v809 = vadd.f32 %v593, %v808
      %v810 = vpop.f32.mrb[0].mxu0
      %811 = vmatprep.mubr.bf16.mxu0 0
      %812 = vmatmul.mubr.bf16.gmra.mrb[0].mxu0 %v734
      %v813 = vpop.f32.mrb[0].mxu0
      %v814 = vadd.f32 %v598, %v813
      %v815 = vpop.f32.mrb[0].mxu0
      %v816 = vpop.f32.mrb[0].mxu0
      %v817 = vadd.f32 %v601, %v816
      %v818 = vpop.f32.mrb[0].mxu0
      %819 = vmatprep.mubr.bf16.mxu0 0
      %820 = vmatmul.mubr.bf16.gmra.mrb[0].mxu0 %v736
      %v821 = vpop.f32.mrb[0].mxu0
      %v822 = vadd.f32 %v606, %v821
      %v823 = vpop.f32.mrb[0].mxu0
      %v824 = vpop.f32.mrb[0].mxu0
      %v825 = vadd.f32 %v609, %v824
      %v826 = vpop.f32.mrb[0].mxu0
      %827 = vmatprep.mubr.bf16.mxu0 0
      %828 = vmatmul.mubr.bf16.gmra.mrb[0].mxu0 %v738
      %v829 = vpop.f32.mrb[0].mxu0
      %v830 = vadd.f32 %v614, %v829
      %v831 = vpop.f32.mrb[0].mxu0
      %v832 = vpop.f32.mrb[0].mxu0
      %v833 = vadd.f32 %v617, %v832
      %v834 = vpop.f32.mrb[0].mxu0
      %835 = vmatprep.mubr.bf16.mxu0 0
      %836 = vmatmul.mubr.bf16.gmra.mrb[0].mxu0 %v740
      %v837 = vpop.f32.mrb[0].mxu0
      %v838 = vadd.f32 %v622, %v837
      %v839 = vpop.f32.mrb[0].mxu0
      %v840 = vpop.f32.mrb[0].mxu0
      %v841 = vadd.f32 %v625, %v840
      %v842 = vpop.f32.mrb[0].mxu0
      %843 = vmatprep.mubr.bf16.mxu0 0
      %844 = vmatmul.mubr.bf16.gmra.mrb[0].mxu0 %v742
      %v845 = vpop.f32.mrb[0].mxu0
      %v846 = vadd.f32 %v630, %v845
      %v847 = vpop.f32.mrb[0].mxu0
      %v848 = vpop.f32.mrb[0].mxu0
      %v849 = vadd.f32 %v633, %v848
      %v850 = vpop.f32.mrb[0].mxu0
      %851 = vmatprep.mubr.bf16.mxu0 0
      %852 = vmatmul.mubr.bf16.gmra.mrb[0].mxu0 %v744
      %v853 = vpop.f32.mrb[0].mxu0
      %v854 = vadd.f32 %v638, %v853
      %v855 = vpop.f32.mrb[0].mxu0
      %v856 = vpop.f32.mrb[0].mxu0
      %v857 = vadd.f32 %v641, %v856
      %v858 = vpop.f32.mrb[0].mxu0
      %859 = vmatprep.mubr.bf16.mxu0 0
      %860 = vmatmul.mubr.bf16.gmra.mrb[0].mxu0 %v746
      %v861 = vpop.f32.mrb[0].mxu0
      %v862 = vadd.f32 %v646, %v861
      %v863 = vpop.f32.mrb[0].mxu0
      %v864 = vpop.f32.mrb[0].mxu0
      %v865 = vadd.f32 %v649, %v864
      %v866 = vpop.f32.mrb[0].mxu0
      %867 = vmatprep.mubr.bf16.mxu0 0
      %868 = vmatmul.mubr.bf16.gmra.mrb[0].mxu0 %v748
      %v869 = vpop.f32.mrb[0].mxu0
      %v870 = vadd.f32 %v654, %v869
      %v871 = vpop.f32.mrb[0].mxu0
      %v872 = vpop.f32.mrb[0].mxu0
      %v873 = vadd.f32 %v657, %v872
      %v874 = vpop.f32.mrb[0].mxu0
      %875 = vmatprep.mubr.bf16.mxu0 0
      %876 = vmatmul.mubr.bf16.gmra.mrb[0].mxu0 %v750
      %v877 = vpop.f32.mrb[0].mxu0
      %v878 = vadd.f32 %v662, %v877
      %v879 = vpop.f32.mrb[0].mxu0
      %v880 = vpop.f32.mrb[0].mxu0
      %v881 = vadd.f32 %v665, %v880
      %v882 = vpop.f32.mrb[0].mxu0
      %883 = vmatprep.mubr.bf16.mxu0 0
      %884 = vmatmul.mubr.bf16.gmra.mrb[0].mxu0 %v752
      %v885 = vpop.f32.mrb[0].mxu0
      %v886 = vadd.f32 %v670, %v885
      %v887 = vpop.f32.mrb[0].mxu0
      %v888 = vpop.f32.mrb[0].mxu0
      %v889 = vadd.f32 %v673, %v888
      %v890 = vpop.f32.mrb[0].mxu0
      %891 = vmatprep.mubr.bf16.mxu0 0
      %892 = vmatmul.mubr.bf16.gmra.mrb[0].mxu0 %v754
      %v893 = vpop.f32.mrb[0].mxu0
      %v894 = vadd.f32 %v678, %v893
      %v895 = vpop.f32.mrb[0].mxu0
      %v896 = vpop.f32.mrb[0].mxu0
      %v897 = vadd.f32 %v681, %v896
      %v898 = vpop.f32.mrb[0].mxu0
      %899 = vmatprep.mubr.bf16.mxu0 0
      %900 = vmatmul.mubr.bf16.gmra.mrb[0].mxu0 %v756
      %v901 = vpop.f32.mrb[0].mxu0
      %v902 = vadd.f32 %v686, %v901
      %v903 = vpop.f32.mrb[0].mxu0
      %v904 = vpop.f32.mrb[0].mxu0
      %v905 = vadd.f32 %v689, %v904
      %v906 = vpop.f32.mrb[0].mxu0
      %907 = vmatprep.mubr.bf16.mxu0 0
      %908 = vmatmul.mubr.bf16.gmra.mrb[0].mxu0 %v758
      %v909 = vpop.f32.mrb[0].mxu0
      %v910 = vadd.f32 %v694, %v909
      %v911 = vpop.f32.mrb[0].mxu0
      %v912 = vpop.f32.mrb[0].mxu0
      %v913 = vadd.f32 %v697, %v912
      %v914 = vpop.f32.mrb[0].mxu0
      %915 = vmatprep.mubr.bf16.mxu0 0
      %916 = vmatmul.mubr.bf16.gmra.mrb[0].mxu0 %v760
      %v917 = vpop.f32.mrb[0].mxu0
      %v918 = vadd.f32 %v702, %v917
      %v919 = vpop.f32.mrb[0].mxu0
      %v920 = vpop.f32.mrb[0].mxu0
      %v921 = vadd.f32 %v705, %v920
      %v922 = vpop.f32.mrb[0].mxu0
      %923 = vmatprep.mubr.bf16.mxu0 0
      %924 = vmatmul.mubr.bf16.gmra.mrb[0].mxu0 %v762
      %v925 = vpop.f32.mrb[0].mxu0
      %v926 = vadd.f32 %v710, %v925
      %v927 = vpop.f32.mrb[0].mxu0
      %v928 = vpop.f32.mrb[0].mxu0
      %v929 = vadd.f32 %v713, %v928
      %v930 = vpop.f32.mrb[0].mxu0
      %931 = vmatprep.mubr.bf16.mxu0 0
      %932 = vmatmul.mubr.bf16.gmra.mrb[0].mxu0 %v764
      %v933 = vpop.f32.mrb[0].mxu0
      %v934 = vadd.f32 %v718, %v933
      %v935 = vpop.f32.mrb[0].mxu0
      %v936 = vpop.f32.mrb[0].mxu0
      %v937 = vadd.f32 %v721, %v936
      %v938 = vpop.f32.mrb[0].mxu0
      %939 = vmatprep.mubr.bf16.mxu0 0
      %940 = vmatmul.mubr.bf16.gmra.mrb[0].mxu0 %v766
      %v941 = vpop.f32.mrb[0].mxu0
      %v942 = vadd.f32 %v726, %v941
      %v943 = vpop.f32.mrb[0].mxu0
      %v944 = vpop.f32.mrb[0].mxu0
      %v945 = vadd.f32 %v729, %v944
      %v946 = vpop.f32.mrb[0].mxu0
      %947 = vdwg.mxu0
      %s948 = scalar_lea.vmem %s1, 4
      %v949 = vld [vmem:[%s948] sm:$0x3]
      %vm950 = vcmask 1046528
      %v951 = vrot.slane %v328, 1
      %v952 = vrot.slane %v329, 1
      %v953 = vsel %vm950, %v951, %v952
      %v954 = vrot.slane %v330, 1
      %v955 = vsel %vm950, %v952, %v954
      %v956 = vrot.slane %v331, 1
      %v957 = vsel %vm950, %v954, %v956
      %v958 = vrot.slane %v332, 1
      %v959 = vsel %vm950, %v956, %v958
      %v960 = vrot.slane %v333, 1
      %v961 = vsel %vm950, %v958, %v960
      %v962 = vrot.slane %v334, 1
      %v963 = vsel %vm950, %v960, %v962
      %v964 = vrot.slane %v335, 1
      %v965 = vsel %vm950, %v962, %v964
      %v966 = vrot.slane %v336, 1
      %v967 = vsel %vm950, %v964, %v966
      %v968 = vrot.slane %v337, 1
      %v969 = vsel %vm950, %v966, %v968
      %v970 = vrot.slane %v338, 1
      %v971 = vsel %vm950, %v968, %v970
      %v972 = vrot.slane %v339, 1
      %v973 = vsel %vm950, %v970, %v972
      %v974 = vrot.slane %v340, 1
      %v975 = vsel %vm950, %v972, %v974
      %v976 = vrot.slane %v341, 1
      %v977 = vsel %vm950, %v974, %v976
      %v978 = vrot.slane %v342, 1
      %v979 = vsel %vm950, %v976, %v978
      %v980 = vrot.slane %v343, 1
      %v981 = vsel %vm950, %v978, %v980
      %v982 = vrot.slane %v344, 1
      %v983 = vsel %vm950, %v980, %v982
      %v984 = vrot.slane %v345, 1
      %v985 = vsel %vm950, %v982, %v984
      %v986 = vrot.slane %v346, 1
      %v987 = vsel %vm950, %v984, %v986
      %v989 = vsel %vm496, %v953, 0
      %v992 = vsel %vm496, %v955, 0
      %v995 = vsel %vm496, %v957, 0
      %v998 = vsel %vm496, %v959, 0
      %v1001 = vsel %vm496, %v961, 0
      %v1004 = vsel %vm496, %v963, 0
      %v1007 = vsel %vm496, %v965, 0
      %v1010 = vsel %vm496, %v967, 0
      %v1013 = vsel %vm496, %v969, 0
      %v1016 = vsel %vm496, %v971, 0
      %v1019 = vsel %vm496, %v973, 0
      %v1022 = vsel %vm496, %v975, 0
      %v1025 = vsel %vm496, %v977, 0
      %v1028 = vsel %vm496, %v979, 0
      %v1031 = vsel %vm496, %v981, 0
      %v1034 = vsel %vm496, %v983, 0
      %v1037 = vsel %vm496, %v985, 0
      %v1040 = vsel %vm496, %v987, 0
      %v1043 = vsel %vm551, %v949, 0
      %1045 = vmatprep.subr.bf16.mxu0 0
      %1046 = vmatpush1.bf16.msra.mxu0 %v1043
      %1047 = vmatprep.subr.bf16.mxu0 0
      %1048 = vmatpush1.bf16.msra.mxu0 0
      %1049 = vmatprep.subr.bf16.mxu0 0
      %1050 = vmatpush1.bf16.msra.mxu0 0
      %1051 = vmatprep.subr.bf16.mxu0 0
      %1052 = vmatpush1.bf16.msra.mxu0 0
      %1053 = vmatprep.subr.bf16.mxu0 0
      %1054 = vmatpush1.bf16.msra.mxu0 0
      %1055 = vmatprep.subr.bf16.mxu0 0
      %1056 = vmatpush1.bf16.msra.mxu0 0
      %1057 = vmatprep.subr.bf16.mxu0 0
      %1058 = vmatpush1.bf16.msra.mxu0 0
      %1059 = vmatprep.subr.bf16.mxu0 0
      %1060 = vmatpush1.bf16.msra.mxu0 0
      %1061 = vmatprep.subr.bf16.mxu0 0
      %1062 = vmatpush1.bf16.msra.mxu0 0
      %1063 = vmatprep.subr.bf16.mxu0 0
      %1064 = vmatpush1.bf16.msra.mxu0 0
      %1065 = vmatprep.subr.bf16.mxu0 0
      %1066 = vmatpush1.bf16.msra.mxu0 0
      %1067 = vmatprep.subr.bf16.mxu0 0
      %1068 = vmatpush1.bf16.msra.mxu0 0
      %1069 = vmatprep.subr.bf16.mxu0 0
      %1070 = vmatpush1.bf16.msra.mxu0 0
      %1071 = vmatprep.subr.bf16.mxu0 0
      %1072 = vmatpush1.bf16.msra.mxu0 0
      %1073 = vmatprep.subr.bf16.mxu0 0
      %1074 = vmatpush1.bf16.msra.mxu0 0
      %1075 = vmatprep.subr.bf16.mxu0 0
      %1076 = vmatpush1.bf16.msra.mxu0 0
      %1077 = vmatprep.mubr.bf16.mxu0 0
      %1078 = vmatmul.mubr.bf16.gmra.mrb[0].mxu0 %v989
      %v1079 = vpop.f32.mrb[0].mxu0
      %v1080 = vadd.f32 0.0, %v1079
      %v1081 = vpop.f32.mrb[0].mxu0
      %v1082 = vpop.f32.mrb[0].mxu0
      %v1083 = vadd.f32 0.0, %v1082
      %v1084 = vpop.f32.mrb[0].mxu0
      %1085 = vmatprep.mubr.bf16.mxu0 0
      %1086 = vmatmul.mubr.bf16.gmra.mrb[0].mxu0 %v992
      %v1087 = vpop.f32.mrb[0].mxu0
      %v1088 = vadd.f32 0.0, %v1087
      %v1089 = vpop.f32.mrb[0].mxu0
      %v1090 = vpop.f32.mrb[0].mxu0
      %v1091 = vadd.f32 0.0, %v1090
      %v1092 = vpop.f32.mrb[0].mxu0
      %1093 = vmatprep.mubr.bf16.mxu0 0
      %1094 = vmatmul.mubr.bf16.gmra.mrb[0].mxu0 %v995
      %v1095 = vpop.f32.mrb[0].mxu0
      %v1096 = vadd.f32 0.0, %v1095
      %v1097 = vpop.f32.mrb[0].mxu0
      %v1098 = vpop.f32.mrb[0].mxu0
      %v1099 = vadd.f32 0.0, %v1098
      %v1100 = vpop.f32.mrb[0].mxu0
      %1101 = vmatprep.mubr.bf16.mxu0 0
      %1102 = vmatmul.mubr.bf16.gmra.mrb[0].mxu0 %v998
      %v1103 = vpop.f32.mrb[0].mxu0
      %v1104 = vadd.f32 0.0, %v1103
      %v1105 = vpop.f32.mrb[0].mxu0
      %v1106 = vpop.f32.mrb[0].mxu0
      %v1107 = vadd.f32 0.0, %v1106
      %v1108 = vpop.f32.mrb[0].mxu0
      %1109 = vmatprep.mubr.bf16.mxu0 0
      %1110 = vmatmul.mubr.bf16.gmra.mrb[0].mxu0 %v1001
      %v1111 = vpop.f32.mrb[0].mxu0
      %v1112 = vadd.f32 0.0, %v1111
      %v1113 = vpop.f32.mrb[0].mxu0
      %v1114 = vpop.f32.mrb[0].mxu0
      %v1115 = vadd.f32 0.0, %v1114
      %v1116 = vpop.f32.mrb[0].mxu0
      %1117 = vmatprep.mubr.bf16.mxu0 0
      %1118 = vmatmul.mubr.bf16.gmra.mrb[0].mxu0 %v1004
      %v1119 = vpop.f32.mrb[0].mxu0
      %v1120 = vadd.f32 0.0, %v1119
      %v1121 = vpop.f32.mrb[0].mxu0
      %v1122 = vpop.f32.mrb[0].mxu0
      %v1123 = vadd.f32 0.0, %v1122
      %v1124 = vpop.f32.mrb[0].mxu0
      %1125 = vmatprep.mubr.bf16.mxu0 0
      %1126 = vmatmul.mubr.bf16.gmra.mrb[0].mxu0 %v1007
      %v1127 = vpop.f32.mrb[0].mxu0
      %v1128 = vadd.f32 0.0, %v1127
      %v1129 = vpop.f32.mrb[0].mxu0
      %v1130 = vpop.f32.mrb[0].mxu0
      %v1131 = vadd.f32 0.0, %v1130
      %v1132 = vpop.f32.mrb[0].mxu0
      %1133 = vmatprep.mubr.bf16.mxu0 0
      %1134 = vmatmul.mubr.bf16.gmra.mrb[0].mxu0 %v1010
      %v1135 = vpop.f32.mrb[0].mxu0
      %v1136 = vadd.f32 0.0, %v1135
      %v1137 = vpop.f32.mrb[0].mxu0
      %v1138 = vpop.f32.mrb[0].mxu0
      %v1139 = vadd.f32 0.0, %v1138
      %v1140 = vpop.f32.mrb[0].mxu0
      %1141 = vmatprep.mubr.bf16.mxu0 0
      %1142 = vmatmul.mubr.bf16.gmra.mrb[0].mxu0 %v1013
      %v1143 = vpop.f32.mrb[0].mxu0
      %v1144 = vadd.f32 0.0, %v1143
      %v1145 = vpop.f32.mrb[0].mxu0
      %v1146 = vpop.f32.mrb[0].mxu0
      %v1147 = vadd.f32 0.0, %v1146
      %v1148 = vpop.f32.mrb[0].mxu0
      %1149 = vmatprep.mubr.bf16.mxu0 0
      %1150 = vmatmul.mubr.bf16.gmra.mrb[0].mxu0 %v1016
      %v1151 = vpop.f32.mrb[0].mxu0
      %v1152 = vadd.f32 0.0, %v1151
      %v1153 = vpop.f32.mrb[0].mxu0
      %v1154 = vpop.f32.mrb[0].mxu0
      %v1155 = vadd.f32 0.0, %v1154
      %v1156 = vpop.f32.mrb[0].mxu0
      %1157 = vmatprep.mubr.bf16.mxu0 0
      %1158 = vmatmul.mubr.bf16.gmra.mrb[0].mxu0 %v1019
      %v1159 = vpop.f32.mrb[0].mxu0
      %v1160 = vadd.f32 0.0, %v1159
      %v1161 = vpop.f32.mrb[0].mxu0
      %v1162 = vpop.f32.mrb[0].mxu0
      %v1163 = vadd.f32 0.0, %v1162
      %v1164 = vpop.f32.mrb[0].mxu0
      %1165 = vmatprep.mubr.bf16.mxu0 0
      %1166 = vmatmul.mubr.bf16.gmra.mrb[0].mxu0 %v1022
      %v1167 = vpop.f32.mrb[0].mxu0
      %v1168 = vadd.f32 0.0, %v1167
      %v1169 = vpop.f32.mrb[0].mxu0
      %v1170 = vpop.f32.mrb[0].mxu0
      %v1171 = vadd.f32 0.0, %v1170
      %v1172 = vpop.f32.mrb[0].mxu0
      %1173 = vmatprep.mubr.bf16.mxu0 0
      %1174 = vmatmul.mubr.bf16.gmra.mrb[0].mxu0 %v1025
      %v1175 = vpop.f32.mrb[0].mxu0
      %v1176 = vadd.f32 0.0, %v1175
      %v1177 = vpop.f32.mrb[0].mxu0
      %v1178 = vpop.f32.mrb[0].mxu0
      %v1179 = vadd.f32 0.0, %v1178
      %v1180 = vpop.f32.mrb[0].mxu0
      %1181 = vmatprep.mubr.bf16.mxu0 0
      %1182 = vmatmul.mubr.bf16.gmra.mrb[0].mxu0 %v1028
      %v1183 = vpop.f32.mrb[0].mxu0
      %v1184 = vadd.f32 0.0, %v1183
      %v1185 = vpop.f32.mrb[0].mxu0
      %v1186 = vpop.f32.mrb[0].mxu0
      %v1187 = vadd.f32 0.0, %v1186
      %v1188 = vpop.f32.mrb[0].mxu0
      %1189 = vmatprep.mubr.bf16.mxu0 0
      %1190 = vmatmul.mubr.bf16.gmra.mrb[0].mxu0 %v1031
      %v1191 = vpop.f32.mrb[0].mxu0
      %v1192 = vadd.f32 0.0, %v1191
      %v1193 = vpop.f32.mrb[0].mxu0
      %v1194 = vpop.f32.mrb[0].mxu0
      %v1195 = vadd.f32 0.0, %v1194
      %v1196 = vpop.f32.mrb[0].mxu0
      %1197 = vmatprep.mubr.bf16.mxu0 0
      %1198 = vmatmul.mubr.bf16.gmra.mrb[0].mxu0 %v1034
      %v1199 = vpop.f32.mrb[0].mxu0
      %v1200 = vadd.f32 0.0, %v1199
      %v1201 = vpop.f32.mrb[0].mxu0
      %v1202 = vpop.f32.mrb[0].mxu0
      %v1203 = vadd.f32 0.0, %v1202
      %v1204 = vpop.f32.mrb[0].mxu0
      %1205 = vmatprep.mubr.bf16.mxu0 0
      %1206 = vmatmul.mubr.bf16.gmra.mrb[0].mxu0 %v1037
      %v1207 = vpop.f32.mrb[0].mxu0
      %v1208 = vadd.f32 0.0, %v1207
      %v1209 = vpop.f32.mrb[0].mxu0
      %v1210 = vpop.f32.mrb[0].mxu0
      %v1211 = vadd.f32 0.0, %v1210
      %v1212 = vpop.f32.mrb[0].mxu0
      %1213 = vmatprep.mubr.bf16.mxu0 0
      %1214 = vmatmul.mubr.bf16.gmra.mrb[0].mxu0 %v1040
      %v1215 = vpop.f32.mrb[0].mxu0
      %v1216 = vadd.f32 0.0, %v1215
      %v1217 = vpop.f32.mrb[0].mxu0
      %v1218 = vpop.f32.mrb[0].mxu0
      %v1219 = vadd.f32 0.0, %v1218
      %v1220 = vpop.f32.mrb[0].mxu0
      %1221 = vdwg.mxu0
      %v1222 = vadd.f32 %v806, %v1080
      %v1223 = vadd.f32 %v809, %v1083
      %v1224 = vadd.f32 %v814, %v1088
      %v1225 = vadd.f32 %v817, %v1091
      %v1226 = vadd.f32 %v822, %v1096
      %v1227 = vadd.f32 %v825, %v1099
      %v1228 = vadd.f32 %v830, %v1104
      %v1229 = vadd.f32 %v833, %v1107
      %v1230 = vadd.f32 %v838, %v1112
      %v1231 = vadd.f32 %v841, %v1115
      %v1232 = vadd.f32 %v846, %v1120
      %v1233 = vadd.f32 %v849, %v1123
      %v1234 = vadd.f32 %v854, %v1128
      %v1235 = vadd.f32 %v857, %v1131
      %v1236 = vadd.f32 %v862, %v1136
      %v1237 = vadd.f32 %v865, %v1139
      %v1238 = vadd.f32 %v870, %v1144
      %v1239 = vadd.f32 %v873, %v1147
      %v1240 = vadd.f32 %v878, %v1152
      %v1241 = vadd.f32 %v881, %v1155
      %v1242 = vadd.f32 %v886, %v1160
      %v1243 = vadd.f32 %v889, %v1163
      %v1244 = vadd.f32 %v894, %v1168
      %v1245 = vadd.f32 %v897, %v1171
      %v1246 = vadd.f32 %v902, %v1176
      %v1247 = vadd.f32 %v905, %v1179
      %v1248 = vadd.f32 %v910, %v1184
      %v1249 = vadd.f32 %v913, %v1187
      %v1250 = vadd.f32 %v918, %v1192
      %v1251 = vadd.f32 %v921, %v1195
      %v1252 = vadd.f32 %v926, %v1200
      %v1253 = vadd.f32 %v929, %v1203
      %v1254 = vadd.f32 %v934, %v1208
      %v1255 = vadd.f32 %v937, %v1211
      %v1256 = vadd.f32 %v942, %v1216
      %v1257 = vadd.f32 %v945, %v1219
      %s1258 = scalar_lea.vmem %s1, 6
      %v1259 = vld [vmem:[%s1258] sm:$0x3]
      %v1262 = vunpack.c.l.b16 %v247
      %v1263 = vunpack.c.l.b16 %v248
      %v1264 = vpack.c.b16 %v1262, %v327
      %v1265 = vpack.c.b16 %v1263, %v1263
      %v1266 = vrot.slane %v1264, 1
      %v1267 = vsel %vm950, %v984, %v1266
      %v1268 = vrot.slane %v1265, 1
      %v1269 = vsel %vm950, %v1266, %v1268
      %v1271 = vsel %vm496, %v1267, 0
      %v1274 = vsel %vm496, %v1269, 0
      %v1277 = vsel %vm551, %v1259, 0
      %1279 = vmatprep.subr.bf16.mxu0 0
      %1280 = vmatpush1.bf16.msra.mxu0 %v1277
      %1281 = vmatprep.subr.bf16.mxu0 0
      %1282 = vmatpush1.bf16.msra.mxu0 0
      %1283 = vmatprep.subr.bf16.mxu0 0
      %1284 = vmatpush1.bf16.msra.mxu0 0
      %1285 = vmatprep.subr.bf16.mxu0 0
      %1286 = vmatpush1.bf16.msra.mxu0 0
      %1287 = vmatprep.subr.bf16.mxu0 0
      %1288 = vmatpush1.bf16.msra.mxu0 0
      %1289 = vmatprep.subr.bf16.mxu0 0
      %1290 = vmatpush1.bf16.msra.mxu0 0
      %1291 = vmatprep.subr.bf16.mxu0 0
      %1292 = vmatpush1.bf16.msra.mxu0 0
      %1293 = vmatprep.subr.bf16.mxu0 0
      %1294 = vmatpush1.bf16.msra.mxu0 0
      %1295 = vmatprep.subr.bf16.mxu0 0
      %1296 = vmatpush1.bf16.msra.mxu0 0
      %1297 = vmatprep.subr.bf16.mxu0 0
      %1298 = vmatpush1.bf16.msra.mxu0 0
      %1299 = vmatprep.subr.bf16.mxu0 0
      %1300 = vmatpush1.bf16.msra.mxu0 0
      %1301 = vmatprep.subr.bf16.mxu0 0
      %1302 = vmatpush1.bf16.msra.mxu0 0
      %1303 = vmatprep.subr.bf16.mxu0 0
      %1304 = vmatpush1.bf16.msra.mxu0 0
      %1305 = vmatprep.subr.bf16.mxu0 0
      %1306 = vmatpush1.bf16.msra.mxu0 0
      %1307 = vmatprep.subr.bf16.mxu0 0
      %1308 = vmatpush1.bf16.msra.mxu0 0
      %1309 = vmatprep.subr.bf16.mxu0 0
      %1310 = vmatpush1.bf16.msra.mxu0 0
      %1311 = vmatprep.mubr.bf16.mxu0 0
      %1312 = vmatmul.mubr.bf16.gmra.mrb[0].mxu0 %v992
      %v1313 = vpop.f32.mrb[0].mxu0
      %v1314 = vadd.f32 0.0, %v1313
      %v1315 = vpop.f32.mrb[0].mxu0
      %v1316 = vpop.f32.mrb[0].mxu0
      %v1317 = vadd.f32 0.0, %v1316
      %v1318 = vpop.f32.mrb[0].mxu0
      %1319 = vmatprep.mubr.bf16.mxu0 0
      %1320 = vmatmul.mubr.bf16.gmra.mrb[0].mxu0 %v995
      %v1321 = vpop.f32.mrb[0].mxu0
      %v1322 = vadd.f32 0.0, %v1321
      %v1323 = vpop.f32.mrb[0].mxu0
      %v1324 = vpop.f32.mrb[0].mxu0
      %v1325 = vadd.f32 0.0, %v1324
      %v1326 = vpop.f32.mrb[0].mxu0
      %1327 = vmatprep.mubr.bf16.mxu0 0
      %1328 = vmatmul.mubr.bf16.gmra.mrb[0].mxu0 %v998
      %v1329 = vpop.f32.mrb[0].mxu0
      %v1330 = vadd.f32 0.0, %v1329
      %v1331 = vpop.f32.mrb[0].mxu0
      %v1332 = vpop.f32.mrb[0].mxu0
      %v1333 = vadd.f32 0.0, %v1332
      %v1334 = vpop.f32.mrb[0].mxu0
      %1335 = vmatprep.mubr.bf16.mxu0 0
      %1336 = vmatmul.mubr.bf16.gmra.mrb[0].mxu0 %v1001
      %v1337 = vpop.f32.mrb[0].mxu0
      %v1338 = vadd.f32 0.0, %v1337
      %v1339 = vpop.f32.mrb[0].mxu0
      %v1340 = vpop.f32.mrb[0].mxu0
      %v1341 = vadd.f32 0.0, %v1340
      %v1342 = vpop.f32.mrb[0].mxu0
      %1343 = vmatprep.mubr.bf16.mxu0 0
      %1344 = vmatmul.mubr.bf16.gmra.mrb[0].mxu0 %v1004
      %v1345 = vpop.f32.mrb[0].mxu0
      %v1346 = vadd.f32 0.0, %v1345
      %v1347 = vpop.f32.mrb[0].mxu0
      %v1348 = vpop.f32.mrb[0].mxu0
      %v1349 = vadd.f32 0.0, %v1348
      %v1350 = vpop.f32.mrb[0].mxu0
      %1351 = vmatprep.mubr.bf16.mxu0 0
      %1352 = vmatmul.mubr.bf16.gmra.mrb[0].mxu0 %v1007
      %v1353 = vpop.f32.mrb[0].mxu0
      %v1354 = vadd.f32 0.0, %v1353
      %v1355 = vpop.f32.mrb[0].mxu0
      %v1356 = vpop.f32.mrb[0].mxu0
      %v1357 = vadd.f32 0.0, %v1356
      %v1358 = vpop.f32.mrb[0].mxu0
      %1359 = vmatprep.mubr.bf16.mxu0 0
      %1360 = vmatmul.mubr.bf16.gmra.mrb[0].mxu0 %v1010
      %v1361 = vpop.f32.mrb[0].mxu0
      %v1362 = vadd.f32 0.0, %v1361
      %v1363 = vpop.f32.mrb[0].mxu0
      %v1364 = vpop.f32.mrb[0].mxu0
      %v1365 = vadd.f32 0.0, %v1364
      %v1366 = vpop.f32.mrb[0].mxu0
      %1367 = vmatprep.mubr.bf16.mxu0 0
      %1368 = vmatmul.mubr.bf16.gmra.mrb[0].mxu0 %v1013
      %v1369 = vpop.f32.mrb[0].mxu0
      %v1370 = vadd.f32 0.0, %v1369
      %v1371 = vpop.f32.mrb[0].mxu0
      %v1372 = vpop.f32.mrb[0].mxu0
      %v1373 = vadd.f32 0.0, %v1372
      %v1374 = vpop.f32.mrb[0].mxu0
      %1375 = vmatprep.mubr.bf16.mxu0 0
      %1376 = vmatmul.mubr.bf16.gmra.mrb[0].mxu0 %v1016
      %v1377 = vpop.f32.mrb[0].mxu0
      %v1378 = vadd.f32 0.0, %v1377
      %v1379 = vpop.f32.mrb[0].mxu0
      %v1380 = vpop.f32.mrb[0].mxu0
      %v1381 = vadd.f32 0.0, %v1380
      %v1382 = vpop.f32.mrb[0].mxu0
      %1383 = vmatprep.mubr.bf16.mxu0 0
      %1384 = vmatmul.mubr.bf16.gmra.mrb[0].mxu0 %v1019
      %v1385 = vpop.f32.mrb[0].mxu0
      %v1386 = vadd.f32 0.0, %v1385
      %v1387 = vpop.f32.mrb[0].mxu0
      %v1388 = vpop.f32.mrb[0].mxu0
      %v1389 = vadd.f32 0.0, %v1388
      %v1390 = vpop.f32.mrb[0].mxu0
      %1391 = vmatprep.mubr.bf16.mxu0 0
      %1392 = vmatmul.mubr.bf16.gmra.mrb[0].mxu0 %v1022
      %v1393 = vpop.f32.mrb[0].mxu0
      %v1394 = vadd.f32 0.0, %v1393
      %v1395 = vpop.f32.mrb[0].mxu0
      %v1396 = vpop.f32.mrb[0].mxu0
      %v1397 = vadd.f32 0.0, %v1396
      %v1398 = vpop.f32.mrb[0].mxu0
      %1399 = vmatprep.mubr.bf16.mxu0 0
      %1400 = vmatmul.mubr.bf16.gmra.mrb[0].mxu0 %v1025
      %v1401 = vpop.f32.mrb[0].mxu0
      %v1402 = vadd.f32 0.0, %v1401
      %v1403 = vpop.f32.mrb[0].mxu0
      %v1404 = vpop.f32.mrb[0].mxu0
      %v1405 = vadd.f32 0.0, %v1404
      %v1406 = vpop.f32.mrb[0].mxu0
      %1407 = vmatprep.mubr.bf16.mxu0 0
      %1408 = vmatmul.mubr.bf16.gmra.mrb[0].mxu0 %v1028
      %v1409 = vpop.f32.mrb[0].mxu0
      %v1410 = vadd.f32 0.0, %v1409
      %v1411 = vpop.f32.mrb[0].mxu0
      %v1412 = vpop.f32.mrb[0].mxu0
      %v1413 = vadd.f32 0.0, %v1412
      %v1414 = vpop.f32.mrb[0].mxu0
      %1415 = vmatprep.mubr.bf16.mxu0 0
      %1416 = vmatmul.mubr.bf16.gmra.mrb[0].mxu0 %v1031
      %v1417 = vpop.f32.mrb[0].mxu0
      %v1418 = vadd.f32 0.0, %v1417
      %v1419 = vpop.f32.mrb[0].mxu0
      %v1420 = vpop.f32.mrb[0].mxu0
      %v1421 = vadd.f32 0.0, %v1420
      %v1422 = vpop.f32.mrb[0].mxu0
      %1423 = vmatprep.mubr.bf16.mxu0 0
      %1424 = vmatmul.mubr.bf16.gmra.mrb[0].mxu0 %v1034
      %v1425 = vpop.f32.mrb[0].mxu0
      %v1426 = vadd.f32 0.0, %v1425
      %v1427 = vpop.f32.mrb[0].mxu0
      %v1428 = vpop.f32.mrb[0].mxu0
      %v1429 = vadd.f32 0.0, %v1428
      %v1430 = vpop.f32.mrb[0].mxu0
      %1431 = vmatprep.mubr.bf16.mxu0 0
      %1432 = vmatmul.mubr.bf16.gmra.mrb[0].mxu0 %v1037
      %v1433 = vpop.f32.mrb[0].mxu0
      %v1434 = vadd.f32 0.0, %v1433
      %v1435 = vpop.f32.mrb[0].mxu0
      %v1436 = vpop.f32.mrb[0].mxu0
      %v1437 = vadd.f32 0.0, %v1436
      %v1438 = vpop.f32.mrb[0].mxu0
      %1439 = vmatprep.mubr.bf16.mxu0 0
      %1440 = vmatmul.mubr.bf16.gmra.mrb[0].mxu0 %v1271
      %v1441 = vpop.f32.mrb[0].mxu0
      %v1442 = vadd.f32 0.0, %v1441
      %v1443 = vpop.f32.mrb[0].mxu0
      %v1444 = vpop.f32.mrb[0].mxu0
      %v1445 = vadd.f32 0.0, %v1444
      %v1446 = vpop.f32.mrb[0].mxu0
      %1447 = vmatprep.mubr.bf16.mxu0 0
      %1448 = vmatmul.mubr.bf16.gmra.mrb[0].mxu0 %v1274
      %v1449 = vpop.f32.mrb[0].mxu0
      %v1450 = vadd.f32 0.0, %v1449
      %v1451 = vpop.f32.mrb[0].mxu0
      %v1452 = vpop.f32.mrb[0].mxu0
      %v1453 = vadd.f32 0.0, %v1452
      %v1454 = vpop.f32.mrb[0].mxu0
      %1455 = vdwg.mxu0
      %v1456 = vadd.f32 %v1222, %v1314
      %v1457 = vadd.f32 %v1223, %v1317
      %v1458 = vadd.f32 %v1224, %v1322
      %v1459 = vadd.f32 %v1225, %v1325
      %v1460 = vadd.f32 %v1226, %v1330
      %v1461 = vadd.f32 %v1227, %v1333
      %v1462 = vadd.f32 %v1228, %v1338
      %v1463 = vadd.f32 %v1229, %v1341
      %v1464 = vadd.f32 %v1230, %v1346
      %v1465 = vadd.f32 %v1231, %v1349
      %v1466 = vadd.f32 %v1232, %v1354
      %v1467 = vadd.f32 %v1233, %v1357
      %v1468 = vadd.f32 %v1234, %v1362
      %v1469 = vadd.f32 %v1235, %v1365
      %v1470 = vadd.f32 %v1236, %v1370
      %v1471 = vadd.f32 %v1237, %v1373
      %v1472 = vadd.f32 %v1238, %v1378
      %v1473 = vadd.f32 %v1239, %v1381
      %v1474 = vadd.f32 %v1240, %v1386
      %v1475 = vadd.f32 %v1241, %v1389
      %v1476 = vadd.f32 %v1242, %v1394
      %v1477 = vadd.f32 %v1243, %v1397
      %v1478 = vadd.f32 %v1244, %v1402
      %v1479 = vadd.f32 %v1245, %v1405
      %v1480 = vadd.f32 %v1246, %v1410
      %v1481 = vadd.f32 %v1247, %v1413
      %v1482 = vadd.f32 %v1248, %v1418
      %v1483 = vadd.f32 %v1249, %v1421
      %v1484 = vadd.f32 %v1250, %v1426
      %v1485 = vadd.f32 %v1251, %v1429
      %v1486 = vadd.f32 %v1252, %v1434
      %v1487 = vadd.f32 %v1253, %v1437
      %v1488 = vadd.f32 %v1254, %v1442
      %v1489 = vadd.f32 %v1255, %v1445
      %v1490 = vadd.f32 %v1256, %v1450
      %v1491 = vadd.f32 %v1257, %v1453
      %s1492 = scalar_lea.vmem %s1, 8
      %v1493 = vld [vmem:[%s1492] sm:$0x3]
      %vm1494 = vsmask.f32 6400
      %v1495 = vrot.slane %v360, 1
      %v1496 = vrot.slane %v356, 2
      %v1497 = vor.u32 %v1495, %v1496
      %v1498 = vrot.slane %v368, 1
      %v1499 = vrot.slane %v364, 2
      %v1500 = vor.u32 %v1498, %v1499
      %v1501 = vsel %vm1494, %v1497, %v1500
      %v1502 = vrot.slane %v376, 1
      %v1503 = vrot.slane %v372, 2
      %v1504 = vor.u32 %v1502, %v1503
      %v1505 = vsel %vm1494, %v1500, %v1504
      %v1506 = vrot.slane %v384, 1
      %v1507 = vrot.slane %v380, 2
      %v1508 = vor.u32 %v1506, %v1507
      %v1509 = vsel %vm1494, %v1504, %v1508
      %v1510 = vrot.slane %v392, 1
      %v1511 = vrot.slane %v388, 2
      %v1512 = vor.u32 %v1510, %v1511
      %v1513 = vsel %vm1494, %v1508, %v1512
      %v1514 = vrot.slane %v400, 1
      %v1515 = vrot.slane %v396, 2
      %v1516 = vor.u32 %v1514, %v1515
      %v1517 = vsel %vm1494, %v1512, %v1516
      %v1518 = vrot.slane %v408, 1
      %v1519 = vrot.slane %v404, 2
      %v1520 = vor.u32 %v1518, %v1519
      %v1521 = vsel %vm1494, %v1516, %v1520
      %v1522 = vrot.slane %v416, 1
      %v1523 = vrot.slane %v412, 2
      %v1524 = vor.u32 %v1522, %v1523
      %v1525 = vsel %vm1494, %v1520, %v1524
      %v1526 = vrot.slane %v424, 1
      %v1527 = vrot.slane %v420, 2
      %v1528 = vor.u32 %v1526, %v1527
      %v1529 = vsel %vm1494, %v1524, %v1528
      %v1530 = vrot.slane %v432, 1
      %v1531 = vrot.slane %v428, 2
      %v1532 = vor.u32 %v1530, %v1531
      %v1533 = vsel %vm1494, %v1528, %v1532
      %v1534 = vrot.slane %v440, 1
      %v1535 = vrot.slane %v436, 2
      %v1536 = vor.u32 %v1534, %v1535
      %v1537 = vsel %vm1494, %v1532, %v1536
      %v1538 = vrot.slane %v448, 1
      %v1539 = vrot.slane %v444, 2
      %v1540 = vor.u32 %v1538, %v1539
      %v1541 = vsel %vm1494, %v1536, %v1540
      %v1542 = vrot.slane %v456, 1
      %v1543 = vrot.slane %v452, 2
      %v1544 = vor.u32 %v1542, %v1543
      %v1545 = vsel %vm1494, %v1540, %v1544
      %v1546 = vrot.slane %v464, 1
      %v1547 = vrot.slane %v460, 2
      %v1548 = vor.u32 %v1546, %v1547
      %v1549 = vsel %vm1494, %v1544, %v1548
      %v1550 = vrot.slane %v472, 1
      %v1551 = vrot.slane %v468, 2
      %v1552 = vor.u32 %v1550, %v1551
      %v1553 = vsel %vm1494, %v1548, %v1552
      %v1554 = vrot.slane %v480, 1
      %v1555 = vrot.slane %v476, 2
      %v1556 = vor.u32 %v1554, %v1555
      %v1557 = vsel %vm1494, %v1552, %v1556
      %v1558 = vrot.slane %v488, 1
      %v1559 = vrot.slane %v484, 2
      %v1560 = vor.u32 %v1558, %v1559
      %v1561 = vsel %vm1494, %v1556, %v1560
      %v1563 = vshrl.u32 %v1264, 16
      %v1565 = vrot.slane %v1563, 1
      %v1566 = vshll.u32 %v1264, 16
      %v1568 = vrot.slane %v1566, 2
      %v1569 = vor.u32 %v1565, %v1568
      %v1570 = vsel %vm1494, %v1560, %v1569
      %v1572 = vshrl.u32 %v1265, 16
      %v1574 = vrot.slane %v1572, 1
      %v1575 = vshll.u32 %v1265, 16
      %v1577 = vrot.slane %v1575, 2
      %v1578 = vor.u32 %v1574, %v1577
      %v1579 = vsel %vm1494, %v1569, %v1578
      %v1581 = vsel %vm496, %v1501, 0
      %v1584 = vsel %vm496, %v1505, 0
      %v1587 = vsel %vm496, %v1509, 0
      %v1590 = vsel %vm496, %v1513, 0
      %v1593 = vsel %vm496, %v1517, 0
      %v1596 = vsel %vm496, %v1521, 0
      %v1599 = vsel %vm496, %v1525, 0
      %v1602 = vsel %vm496, %v1529, 0
      %v1605 = vsel %vm496, %v1533, 0
      %v1608 = vsel %vm496, %v1537, 0
      %v1611 = vsel %vm496, %v1541, 0
      %v1614 = vsel %vm496, %v1545, 0
      %v1617 = vsel %vm496, %v1549, 0
      %v1620 = vsel %vm496, %v1553, 0
      %v1623 = vsel %vm496, %v1557, 0
      %v1626 = vsel %vm496, %v1561, 0
      %v1629 = vsel %vm496, %v1570, 0
      %v1632 = vsel %vm496, %v1579, 0
      %v1635 = vsel %vm551, %v1493, 0
      %1637 = vmatprep.subr.bf16.mxu0 0
      %1638 = vmatpush1.bf16.msra.mxu0 %v1635
      %1639 = vmatprep.subr.bf16.mxu0 0
      %1640 = vmatpush1.bf16.msra.mxu0 0
      %1641 = vmatprep.subr.bf16.mxu0 0
      %1642 = vmatpush1.bf16.msra.mxu0 0
      %1643 = vmatprep.subr.bf16.mxu0 0
      %1644 = vmatpush1.bf16.msra.mxu0 0
      %1645 = vmatprep.subr.bf16.mxu0 0
      %1646 = vmatpush1.bf16.msra.mxu0 0
      %1647 = vmatprep.subr.bf16.mxu0 0
      %1648 = vmatpush1.bf16.msra.mxu0 0
      %1649 = vmatprep.subr.bf16.mxu0 0
      %1650 = vmatpush1.bf16.msra.mxu0 0
      %1651 = vmatprep.subr.bf16.mxu0 0
      %1652 = vmatpush1.bf16.msra.mxu0 0
      %1653 = vmatprep.subr.bf16.mxu0 0
      %1654 = vmatpush1.bf16.msra.mxu0 0
      %1655 = vmatprep.subr.bf16.mxu0 0
      %1656 = vmatpush1.bf16.msra.mxu0 0
      %1657 = vmatprep.subr.bf16.mxu0 0
      %1658 = vmatpush1.bf16.msra.mxu0 0
      %1659 = vmatprep.subr.bf16.mxu0 0
      %1660 = vmatpush1.bf16.msra.mxu0 0
      %1661 = vmatprep.subr.bf16.mxu0 0
      %1662 = vmatpush1.bf16.msra.mxu0 0
      %1663 = vmatprep.subr.bf16.mxu0 0
      %1664 = vmatpush1.bf16.msra.mxu0 0
      %1665 = vmatprep.subr.bf16.mxu0 0
      %1666 = vmatpush1.bf16.msra.mxu0 0
      %1667 = vmatprep.subr.bf16.mxu0 0
      %1668 = vmatpush1.bf16.msra.mxu0 0
      %1669 = vmatprep.mubr.bf16.mxu0 0
      %1670 = vmatmul.mubr.bf16.gmra.mrb[0].mxu0 %v1581
      %v1671 = vpop.f32.mrb[0].mxu0
      %v1672 = vadd.f32 0.0, %v1671
      %v1673 = vpop.f32.mrb[0].mxu0
      %v1674 = vpop.f32.mrb[0].mxu0
      %v1675 = vadd.f32 0.0, %v1674
      %v1676 = vpop.f32.mrb[0].mxu0
      %1677 = vmatprep.mubr.bf16.mxu0 0
      %1678 = vmatmul.mubr.bf16.gmra.mrb[0].mxu0 %v1584
      %v1679 = vpop.f32.mrb[0].mxu0
      %v1680 = vadd.f32 0.0, %v1679
      %v1681 = vpop.f32.mrb[0].mxu0
      %v1682 = vpop.f32.mrb[0].mxu0
      %v1683 = vadd.f32 0.0, %v1682
      %v1684 = vpop.f32.mrb[0].mxu0
      %1685 = vmatprep.mubr.bf16.mxu0 0
      %1686 = vmatmul.mubr.bf16.gmra.mrb[0].mxu0 %v1587
      %v1687 = vpop.f32.mrb[0].mxu0
      %v1688 = vadd.f32 0.0, %v1687
      %v1689 = vpop.f32.mrb[0].mxu0
      %v1690 = vpop.f32.mrb[0].mxu0
      %v1691 = vadd.f32 0.0, %v1690
      %v1692 = vpop.f32.mrb[0].mxu0
      %1693 = vmatprep.mubr.bf16.mxu0 0
      %1694 = vmatmul.mubr.bf16.gmra.mrb[0].mxu0 %v1590
      %v1695 = vpop.f32.mrb[0].mxu0
      %v1696 = vadd.f32 0.0, %v1695
      %v1697 = vpop.f32.mrb[0].mxu0
      %v1698 = vpop.f32.mrb[0].mxu0
      %v1699 = vadd.f32 0.0, %v1698
      %v1700 = vpop.f32.mrb[0].mxu0
      %1701 = vmatprep.mubr.bf16.mxu0 0
      %1702 = vmatmul.mubr.bf16.gmra.mrb[0].mxu0 %v1593
      %v1703 = vpop.f32.mrb[0].mxu0
      %v1704 = vadd.f32 0.0, %v1703
      %v1705 = vpop.f32.mrb[0].mxu0
      %v1706 = vpop.f32.mrb[0].mxu0
      %v1707 = vadd.f32 0.0, %v1706
      %v1708 = vpop.f32.mrb[0].mxu0
      %1709 = vmatprep.mubr.bf16.mxu0 0
      %1710 = vmatmul.mubr.bf16.gmra.mrb[0].mxu0 %v1596
      %v1711 = vpop.f32.mrb[0].mxu0
      %v1712 = vadd.f32 0.0, %v1711
      %v1713 = vpop.f32.mrb[0].mxu0
      %v1714 = vpop.f32.mrb[0].mxu0
      %v1715 = vadd.f32 0.0, %v1714
      %v1716 = vpop.f32.mrb[0].mxu0
      %1717 = vmatprep.mubr.bf16.mxu0 0
      %1718 = vmatmul.mubr.bf16.gmra.mrb[0].mxu0 %v1599
      %v1719 = vpop.f32.mrb[0].mxu0
      %v1720 = vadd.f32 0.0, %v1719
      %v1721 = vpop.f32.mrb[0].mxu0
      %v1722 = vpop.f32.mrb[0].mxu0
      %v1723 = vadd.f32 0.0, %v1722
      %v1724 = vpop.f32.mrb[0].mxu0
      %1725 = vmatprep.mubr.bf16.mxu0 0
      %1726 = vmatmul.mubr.bf16.gmra.mrb[0].mxu0 %v1602
      %v1727 = vpop.f32.mrb[0].mxu0
      %v1728 = vadd.f32 0.0, %v1727
      %v1729 = vpop.f32.mrb[0].mxu0
      %v1730 = vpop.f32.mrb[0].mxu0
      %v1731 = vadd.f32 0.0, %v1730
      %v1732 = vpop.f32.mrb[0].mxu0
      %1733 = vmatprep.mubr.bf16.mxu0 0
      %1734 = vmatmul.mubr.bf16.gmra.mrb[0].mxu0 %v1605
      %v1735 = vpop.f32.mrb[0].mxu0
      %v1736 = vadd.f32 0.0, %v1735
      %v1737 = vpop.f32.mrb[0].mxu0
      %v1738 = vpop.f32.mrb[0].mxu0
      %v1739 = vadd.f32 0.0, %v1738
      %v1740 = vpop.f32.mrb[0].mxu0
      %1741 = vmatprep.mubr.bf16.mxu0 0
      %1742 = vmatmul.mubr.bf16.gmra.mrb[0].mxu0 %v1608
      %v1743 = vpop.f32.mrb[0].mxu0
      %v1744 = vadd.f32 0.0, %v1743
      %v1745 = vpop.f32.mrb[0].mxu0
      %v1746 = vpop.f32.mrb[0].mxu0
      %v1747 = vadd.f32 0.0, %v1746
      %v1748 = vpop.f32.mrb[0].mxu0
      %1749 = vmatprep.mubr.bf16.mxu0 0
      %1750 = vmatmul.mubr.bf16.gmra.mrb[0].mxu0 %v1611
      %v1751 = vpop.f32.mrb[0].mxu0
      %v1752 = vadd.f32 0.0, %v1751
      %v1753 = vpop.f32.mrb[0].mxu0
      %v1754 = vpop.f32.mrb[0].mxu0
      %v1755 = vadd.f32 0.0, %v1754
      %v1756 = vpop.f32.mrb[0].mxu0
      %1757 = vmatprep.mubr.bf16.mxu0 0
      %1758 = vmatmul.mubr.bf16.gmra.mrb[0].mxu0 %v1614
      %v1759 = vpop.f32.mrb[0].mxu0
      %v1760 = vadd.f32 0.0, %v1759
      %v1761 = vpop.f32.mrb[0].mxu0
      %v1762 = vpop.f32.mrb[0].mxu0
      %v1763 = vadd.f32 0.0, %v1762
      %v1764 = vpop.f32.mrb[0].mxu0
      %1765 = vmatprep.mubr.bf16.mxu0 0
      %1766 = vmatmul.mubr.bf16.gmra.mrb[0].mxu0 %v1617
      %v1767 = vpop.f32.mrb[0].mxu0
      %v1768 = vadd.f32 0.0, %v1767
      %v1769 = vpop.f32.mrb[0].mxu0
      %v1770 = vpop.f32.mrb[0].mxu0
      %v1771 = vadd.f32 0.0, %v1770
      %v1772 = vpop.f32.mrb[0].mxu0
      %1773 = vmatprep.mubr.bf16.mxu0 0
      %1774 = vmatmul.mubr.bf16.gmra.mrb[0].mxu0 %v1620
      %v1775 = vpop.f32.mrb[0].mxu0
      %v1776 = vadd.f32 0.0, %v1775
      %v1777 = vpop.f32.mrb[0].mxu0
      %v1778 = vpop.f32.mrb[0].mxu0
      %v1779 = vadd.f32 0.0, %v1778
      %v1780 = vpop.f32.mrb[0].mxu0
      %1781 = vmatprep.mubr.bf16.mxu0 0
      %1782 = vmatmul.mubr.bf16.gmra.mrb[0].mxu0 %v1623
      %v1783 = vpop.f32.mrb[0].mxu0
      %v1784 = vadd.f32 0.0, %v1783
      %v1785 = vpop.f32.mrb[0].mxu0
      %v1786 = vpop.f32.mrb[0].mxu0
      %v1787 = vadd.f32 0.0, %v1786
      %v1788 = vpop.f32.mrb[0].mxu0
      %1789 = vmatprep.mubr.bf16.mxu0 0
      %1790 = vmatmul.mubr.bf16.gmra.mrb[0].mxu0 %v1626
      %v1791 = vpop.f32.mrb[0].mxu0
      %v1792 = vadd.f32 0.0, %v1791
      %v1793 = vpop.f32.mrb[0].mxu0
      %v1794 = vpop.f32.mrb[0].mxu0
      %v1795 = vadd.f32 0.0, %v1794
      %v1796 = vpop.f32.mrb[0].mxu0
      %1797 = vmatprep.mubr.bf16.mxu0 0
      %1798 = vmatmul.mubr.bf16.gmra.mrb[0].mxu0 %v1629
      %v1799 = vpop.f32.mrb[0].mxu0
      %v1800 = vadd.f32 0.0, %v1799
      %v1801 = vpop.f32.mrb[0].mxu0
      %v1802 = vpop.f32.mrb[0].mxu0
      %v1803 = vadd.f32 0.0, %v1802
      %v1804 = vpop.f32.mrb[0].mxu0
      %1805 = vmatprep.mubr.bf16.mxu0 0
      %1806 = vmatmul.mubr.bf16.gmra.mrb[0].mxu0 %v1632
      %v1807 = vpop.f32.mrb[0].mxu0
      %v1808 = vadd.f32 0.0, %v1807
      %v1809 = vpop.f32.mrb[0].mxu0
      %v1810 = vpop.f32.mrb[0].mxu0
      %v1811 = vadd.f32 0.0, %v1810
      %v1812 = vpop.f32.mrb[0].mxu0
      %1813 = vdwg.mxu0
      %v1814 = vadd.f32 %v1456, %v1672
      %v1815 = vadd.f32 %v1457, %v1675
      %v1816 = vadd.f32 %v1458, %v1680
      %v1817 = vadd.f32 %v1459, %v1683
      %v1818 = vadd.f32 %v1460, %v1688
      %v1819 = vadd.f32 %v1461, %v1691
      %v1820 = vadd.f32 %v1462, %v1696
      %v1821 = vadd.f32 %v1463, %v1699
      %v1822 = vadd.f32 %v1464, %v1704
      %v1823 = vadd.f32 %v1465, %v1707
      %v1824 = vadd.f32 %v1466, %v1712
      %v1825 = vadd.f32 %v1467, %v1715
      %v1826 = vadd.f32 %v1468, %v1720
      %v1827 = vadd.f32 %v1469, %v1723
      %v1828 = vadd.f32 %v1470, %v1728
      %v1829 = vadd.f32 %v1471, %v1731
      %v1830 = vadd.f32 %v1472, %v1736
      %v1831 = vadd.f32 %v1473, %v1739
      %v1832 = vadd.f32 %v1474, %v1744
      %v1833 = vadd.f32 %v1475, %v1747
      %v1834 = vadd.f32 %v1476, %v1752
      %v1835 = vadd.f32 %v1477, %v1755
      %v1836 = vadd.f32 %v1478, %v1760
      %v1837 = vadd.f32 %v1479, %v1763
      %v1838 = vadd.f32 %v1480, %v1768
      %v1839 = vadd.f32 %v1481, %v1771
      %v1840 = vadd.f32 %v1482, %v1776
      %v1841 = vadd.f32 %v1483, %v1779
      %v1842 = vadd.f32 %v1484, %v1784
      %v1843 = vadd.f32 %v1485, %v1787
      %v1844 = vadd.f32 %v1486, %v1792
      %v1845 = vadd.f32 %v1487, %v1795
      %v1846 = vadd.f32 %v1488, %v1800
      %v1847 = vadd.f32 %v1489, %v1803
      %v1848 = vadd.f32 %v1490, %v1808
      %v1849 = vadd.f32 %v1491, %v1811
      %s1850 = scalar_lea.vmem %s1, 10
      %v1851 = vld [vmem:[%s1850] sm:$0x3]
      %vm1852 = vcmask 1045504
      %v1853 = vrot.slane %v329, 2
      %v1854 = vrot.slane %v330, 2
      %v1855 = vsel %vm1852, %v1853, %v1854
      %v1856 = vrot.slane %v331, 2
      %v1857 = vsel %vm1852, %v1854, %v1856
      %v1858 = vrot.slane %v332, 2
      %v1859 = vsel %vm1852, %v1856, %v1858
      %v1860 = vrot.slane %v333, 2
      %v1861 = vsel %vm1852, %v1858, %v1860
      %v1862 = vrot.slane %v334, 2
      %v1863 = vsel %vm1852, %v1860, %v1862
      %v1864 = vrot.slane %v335, 2
      %v1865 = vsel %vm1852, %v1862, %v1864
      %v1866 = vrot.slane %v336, 2
      %v1867 = vsel %vm1852, %v1864, %v1866
      %v1868 = vrot.slane %v337, 2
      %v1869 = vsel %vm1852, %v1866, %v1868
      %v1870 = vrot.slane %v338, 2
      %v1871 = vsel %vm1852, %v1868, %v1870
      %v1872 = vrot.slane %v339, 2
      %v1873 = vsel %vm1852, %v1870, %v1872
      %v1874 = vrot.slane %v340, 2
      %v1875 = vsel %vm1852, %v1872, %v1874
      %v1876 = vrot.slane %v341, 2
      %v1877 = vsel %vm1852, %v1874, %v1876
      %v1878 = vrot.slane %v342, 2
      %v1879 = vsel %vm1852, %v1876, %v1878
      %v1880 = vrot.slane %v343, 2
      %v1881 = vsel %vm1852, %v1878, %v1880
      %v1882 = vrot.slane %v344, 2
      %v1883 = vsel %vm1852, %v1880, %v1882
      %v1884 = vrot.slane %v345, 2
      %v1885 = vsel %vm1852, %v1882, %v1884
      %v1886 = vrot.slane %v1264, 2
      %v1887 = vsel %vm1852, %v1884, %v1886
      %v1888 = vrot.slane %v1265, 2
      %v1889 = vsel %vm1852, %v1886, %v1888
      %v1891 = vsel %vm496, %v1855, 0
      %v1894 = vsel %vm496, %v1857, 0
      %v1897 = vsel %vm496, %v1859, 0
      %v1900 = vsel %vm496, %v1861, 0
      %v1903 = vsel %vm496, %v1863, 0
      %v1906 = vsel %vm496, %v1865, 0
      %v1909 = vsel %vm496, %v1867, 0
      %v1912 = vsel %vm496, %v1869, 0
      %v1915 = vsel %vm496, %v1871, 0
      %v1918 = vsel %vm496, %v1873, 0
      %v1921 = vsel %vm496, %v1875, 0
      %v1924 = vsel %vm496, %v1877, 0
      %v1927 = vsel %vm496, %v1879, 0
      %v1930 = vsel %vm496, %v1881, 0
      %v1933 = vsel %vm496, %v1883, 0
      %v1936 = vsel %vm496, %v1885, 0
      %v1939 = vsel %vm496, %v1887, 0
      %v1942 = vsel %vm496, %v1889, 0
      %v1945 = vsel %vm551, %v1851, 0
      %1947 = vmatprep.subr.bf16.mxu0 0
      %1948 = vmatpush1.bf16.msra.mxu0 %v1945
      %1949 = vmatprep.subr.bf16.mxu0 0
      %1950 = vmatpush1.bf16.msra.mxu0 0
      %1951 = vmatprep.subr.bf16.mxu0 0
      %1952 = vmatpush1.bf16.msra.mxu0 0
      %1953 = vmatprep.subr.bf16.mxu0 0
      %1954 = vmatpush1.bf16.msra.mxu0 0
      %1955 = vmatprep.subr.bf16.mxu0 0
      %1956 = vmatpush1.bf16.msra.mxu0 0
      %1957 = vmatprep.subr.bf16.mxu0 0
      %1958 = vmatpush1.bf16.msra.mxu0 0
      %1959 = vmatprep.subr.bf16.mxu0 0
      %1960 = vmatpush1.bf16.msra.mxu0 0
      %1961 = vmatprep.subr.bf16.mxu0 0
      %1962 = vmatpush1.bf16.msra.mxu0 0
      %1963 = vmatprep.subr.bf16.mxu0 0
      %1964 = vmatpush1.bf16.msra.mxu0 0
      %1965 = vmatprep.subr.bf16.mxu0 0
      %1966 = vmatpush1.bf16.msra.mxu0 0
      %1967 = vmatprep.subr.bf16.mxu0 0
      %1968 = vmatpush1.bf16.msra.mxu0 0
      %1969 = vmatprep.subr.bf16.mxu0 0
      %1970 = vmatpush1.bf16.msra.mxu0 0
      %1971 = vmatprep.subr.bf16.mxu0 0
      %1972 = vmatpush1.bf16.msra.mxu0 0
      %1973 = vmatprep.subr.bf16.mxu0 0
      %1974 = vmatpush1.bf16.msra.mxu0 0
      %1975 = vmatprep.subr.bf16.mxu0 0
      %1976 = vmatpush1.bf16.msra.mxu0 0
      %1977 = vmatprep.subr.bf16.mxu0 0
      %1978 = vmatpush1.bf16.msra.mxu0 0
      %1979 = vmatprep.mubr.bf16.mxu0 0
      %1980 = vmatmul.mubr.bf16.gmra.mrb[0].mxu0 %v1891
      %v1981 = vpop.f32.mrb[0].mxu0
      %v1982 = vadd.f32 0.0, %v1981
      %v1983 = vpop.f32.mrb[0].mxu0
      %v1984 = vpop.f32.mrb[0].mxu0
      %v1985 = vadd.f32 0.0, %v1984
      %v1986 = vpop.f32.mrb[0].mxu0
      %1987 = vmatprep.mubr.bf16.mxu0 0
      %1988 = vmatmul.mubr.bf16.gmra.mrb[0].mxu0 %v1894
      %v1989 = vpop.f32.mrb[0].mxu0
      %v1990 = vadd.f32 0.0, %v1989
      %v1991 = vpop.f32.mrb[0].mxu0
      %v1992 = vpop.f32.mrb[0].mxu0
      %v1993 = vadd.f32 0.0, %v1992
      %v1994 = vpop.f32.mrb[0].mxu0
      %1995 = vmatprep.mubr.bf16.mxu0 0
      %1996 = vmatmul.mubr.bf16.gmra.mrb[0].mxu0 %v1897
      %v1997 = vpop.f32.mrb[0].mxu0
      %v1998 = vadd.f32 0.0, %v1997
      %v1999 = vpop.f32.mrb[0].mxu0
      %v2000 = vpop.f32.mrb[0].mxu0
      %v2001 = vadd.f32 0.0, %v2000
      %v2002 = vpop.f32.mrb[0].mxu0
      %2003 = vmatprep.mubr.bf16.mxu0 0
      %2004 = vmatmul.mubr.bf16.gmra.mrb[0].mxu0 %v1900
      %v2005 = vpop.f32.mrb[0].mxu0
      %v2006 = vadd.f32 0.0, %v2005
      %v2007 = vpop.f32.mrb[0].mxu0
      %v2008 = vpop.f32.mrb[0].mxu0
      %v2009 = vadd.f32 0.0, %v2008
      %v2010 = vpop.f32.mrb[0].mxu0
      %2011 = vmatprep.mubr.bf16.mxu0 0
      %2012 = vmatmul.mubr.bf16.gmra.mrb[0].mxu0 %v1903
      %v2013 = vpop.f32.mrb[0].mxu0
      %v2014 = vadd.f32 0.0, %v2013
      %v2015 = vpop.f32.mrb[0].mxu0
      %v2016 = vpop.f32.mrb[0].mxu0
      %v2017 = vadd.f32 0.0, %v2016
      %v2018 = vpop.f32.mrb[0].mxu0
      %2019 = vmatprep.mubr.bf16.mxu0 0
      %2020 = vmatmul.mubr.bf16.gmra.mrb[0].mxu0 %v1906
      %v2021 = vpop.f32.mrb[0].mxu0
      %v2022 = vadd.f32 0.0, %v2021
      %v2023 = vpop.f32.mrb[0].mxu0
      %v2024 = vpop.f32.mrb[0].mxu0
      %v2025 = vadd.f32 0.0, %v2024
      %v2026 = vpop.f32.mrb[0].mxu0
      %2027 = vmatprep.mubr.bf16.mxu0 0
      %2028 = vmatmul.mubr.bf16.gmra.mrb[0].mxu0 %v1909
      %v2029 = vpop.f32.mrb[0].mxu0
      %v2030 = vadd.f32 0.0, %v2029
      %v2031 = vpop.f32.mrb[0].mxu0
      %v2032 = vpop.f32.mrb[0].mxu0
      %v2033 = vadd.f32 0.0, %v2032
      %v2034 = vpop.f32.mrb[0].mxu0
      %2035 = vmatprep.mubr.bf16.mxu0 0
      %2036 = vmatmul.mubr.bf16.gmra.mrb[0].mxu0 %v1912
      %v2037 = vpop.f32.mrb[0].mxu0
      %v2038 = vadd.f32 0.0, %v2037
      %v2039 = vpop.f32.mrb[0].mxu0
      %v2040 = vpop.f32.mrb[0].mxu0
      %v2041 = vadd.f32 0.0, %v2040
      %v2042 = vpop.f32.mrb[0].mxu0
      %2043 = vmatprep.mubr.bf16.mxu0 0
      %2044 = vmatmul.mubr.bf16.gmra.mrb[0].mxu0 %v1915
      %v2045 = vpop.f32.mrb[0].mxu0
      %v2046 = vadd.f32 0.0, %v2045
      %v2047 = vpop.f32.mrb[0].mxu0
      %v2048 = vpop.f32.mrb[0].mxu0
      %v2049 = vadd.f32 0.0, %v2048
      %v2050 = vpop.f32.mrb[0].mxu0
      %2051 = vmatprep.mubr.bf16.mxu0 0
      %2052 = vmatmul.mubr.bf16.gmra.mrb[0].mxu0 %v1918
      %v2053 = vpop.f32.mrb[0].mxu0
      %v2054 = vadd.f32 0.0, %v2053
      %v2055 = vpop.f32.mrb[0].mxu0
      %v2056 = vpop.f32.mrb[0].mxu0
      %v2057 = vadd.f32 0.0, %v2056
      %v2058 = vpop.f32.mrb[0].mxu0
      %2059 = vmatprep.mubr.bf16.mxu0 0
      %2060 = vmatmul.mubr.bf16.gmra.mrb[0].mxu0 %v1921
      %v2061 = vpop.f32.mrb[0].mxu0
      %v2062 = vadd.f32 0.0, %v2061
      %v2063 = vpop.f32.mrb[0].mxu0
      %v2064 = vpop.f32.mrb[0].mxu0
      %v2065 = vadd.f32 0.0, %v2064
      %v2066 = vpop.f32.mrb[0].mxu0
      %2067 = vmatprep.mubr.bf16.mxu0 0
      %2068 = vmatmul.mubr.bf16.gmra.mrb[0].mxu0 %v1924
      %v2069 = vpop.f32.mrb[0].mxu0
      %v2070 = vadd.f32 0.0, %v2069
      %v2071 = vpop.f32.mrb[0].mxu0
      %v2072 = vpop.f32.mrb[0].mxu0
      %v2073 = vadd.f32 0.0, %v2072
      %v2074 = vpop.f32.mrb[0].mxu0
      %2075 = vmatprep.mubr.bf16.mxu0 0
      %2076 = vmatmul.mubr.bf16.gmra.mrb[0].mxu0 %v1927
      %v2077 = vpop.f32.mrb[0].mxu0
      %v2078 = vadd.f32 0.0, %v2077
      %v2079 = vpop.f32.mrb[0].mxu0
      %v2080 = vpop.f32.mrb[0].mxu0
      %v2081 = vadd.f32 0.0, %v2080
      %v2082 = vpop.f32.mrb[0].mxu0
      %2083 = vmatprep.mubr.bf16.mxu0 0
      %2084 = vmatmul.mubr.bf16.gmra.mrb[0].mxu0 %v1930
      %v2085 = vpop.f32.mrb[0].mxu0
      %v2086 = vadd.f32 0.0, %v2085
      %v2087 = vpop.f32.mrb[0].mxu0
      %v2088 = vpop.f32.mrb[0].mxu0
      %v2089 = vadd.f32 0.0, %v2088
      %v2090 = vpop.f32.mrb[0].mxu0
      %2091 = vmatprep.mubr.bf16.mxu0 0
      %2092 = vmatmul.mubr.bf16.gmra.mrb[0].mxu0 %v1933
      %v2093 = vpop.f32.mrb[0].mxu0
      %v2094 = vadd.f32 0.0, %v2093
      %v2095 = vpop.f32.mrb[0].mxu0
      %v2096 = vpop.f32.mrb[0].mxu0
      %v2097 = vadd.f32 0.0, %v2096
      %v2098 = vpop.f32.mrb[0].mxu0
      %2099 = vmatprep.mubr.bf16.mxu0 0
      %2100 = vmatmul.mubr.bf16.gmra.mrb[0].mxu0 %v1936
      %v2101 = vpop.f32.mrb[0].mxu0
      %v2102 = vadd.f32 0.0, %v2101
      %v2103 = vpop.f32.mrb[0].mxu0
      %v2104 = vpop.f32.mrb[0].mxu0
      %v2105 = vadd.f32 0.0, %v2104
      %v2106 = vpop.f32.mrb[0].mxu0
      %2107 = vmatprep.mubr.bf16.mxu0 0
      %2108 = vmatmul.mubr.bf16.gmra.mrb[0].mxu0 %v1939
      %v2109 = vpop.f32.mrb[0].mxu0
      %v2110 = vadd.f32 0.0, %v2109
      %v2111 = vpop.f32.mrb[0].mxu0
      %v2112 = vpop.f32.mrb[0].mxu0
      %v2113 = vadd.f32 0.0, %v2112
      %v2114 = vpop.f32.mrb[0].mxu0
      %2115 = vmatprep.mubr.bf16.mxu0 0
      %2116 = vmatmul.mubr.bf16.gmra.mrb[0].mxu0 %v1942
      %v2117 = vpop.f32.mrb[0].mxu0
      %v2118 = vadd.f32 0.0, %v2117
      %v2119 = vpop.f32.mrb[0].mxu0
      %v2120 = vpop.f32.mrb[0].mxu0
      %v2121 = vadd.f32 0.0, %v2120
      %v2122 = vpop.f32.mrb[0].mxu0
      %2123 = vdwg.mxu0
      %v2124 = vadd.f32 %v1814, %v1982
      %v2125 = vadd.f32 %v1815, %v1985
      %v2126 = vadd.f32 %v1816, %v1990
      %v2127 = vadd.f32 %v1817, %v1993
      %v2128 = vadd.f32 %v1818, %v1998
      %v2129 = vadd.f32 %v1819, %v2001
      %v2130 = vadd.f32 %v1820, %v2006
      %v2131 = vadd.f32 %v1821, %v2009
      %v2132 = vadd.f32 %v1822, %v2014
      %v2133 = vadd.f32 %v1823, %v2017
      %v2134 = vadd.f32 %v1824, %v2022
      %v2135 = vadd.f32 %v1825, %v2025
      %v2136 = vadd.f32 %v1826, %v2030
      %v2137 = vadd.f32 %v1827, %v2033
      %v2138 = vadd.f32 %v1828, %v2038
      %v2139 = vadd.f32 %v1829, %v2041
      %v2140 = vadd.f32 %v1830, %v2046
      %v2141 = vadd.f32 %v1831, %v2049
      %v2142 = vadd.f32 %v1832, %v2054
      %v2143 = vadd.f32 %v1833, %v2057
      %v2144 = vadd.f32 %v1834, %v2062
      %v2145 = vadd.f32 %v1835, %v2065
      %v2146 = vadd.f32 %v1836, %v2070
      %v2147 = vadd.f32 %v1837, %v2073
      %v2148 = vadd.f32 %v1838, %v2078
      %v2149 = vadd.f32 %v1839, %v2081
      %v2150 = vadd.f32 %v1840, %v2086
      %v2151 = vadd.f32 %v1841, %v2089
      %v2152 = vadd.f32 %v1842, %v2094
      %v2153 = vadd.f32 %v1843, %v2097
      %v2154 = vadd.f32 %v1844, %v2102
      %v2155 = vadd.f32 %v1845, %v2105
      %v2156 = vadd.f32 %v1846, %v2110
      %v2157 = vadd.f32 %v1847, %v2113
      %v2158 = vadd.f32 %v1848, %v2118
      %v2159 = vadd.f32 %v1849, %v2121
      %s2160 = scalar_lea.vmem %s1, 12
      %v2161 = vld [vmem:[%s2160] sm:$0x3]
      %v2164 = vunpack.c.l.b16 %v249
      %v2165 = vunpack.c.l.b16 %v250
      %v2166 = vpack.c.b16 %v2164, %v1263
      %v2167 = vpack.c.b16 %v2165, %v2165
      %v2168 = vrot.slane %v2166, 2
      %v2169 = vsel %vm1852, %v1886, %v2168
      %v2170 = vrot.slane %v2167, 2
      %v2171 = vsel %vm1852, %v2168, %v2170
      %v2173 = vsel %vm496, %v2169, 0
      %v2176 = vsel %vm496, %v2171, 0
      %v2179 = vsel %vm551, %v2161, 0
      %2181 = vmatprep.subr.bf16.mxu0 0
      %2182 = vmatpush1.bf16.msra.mxu0 %v2179
      %2183 = vmatprep.subr.bf16.mxu0 0
      %2184 = vmatpush1.bf16.msra.mxu0 0
      %2185 = vmatprep.subr.bf16.mxu0 0
      %2186 = vmatpush1.bf16.msra.mxu0 0
      %2187 = vmatprep.subr.bf16.mxu0 0
      %2188 = vmatpush1.bf16.msra.mxu0 0
      %2189 = vmatprep.subr.bf16.mxu0 0
      %2190 = vmatpush1.bf16.msra.mxu0 0
      %2191 = vmatprep.subr.bf16.mxu0 0
      %2192 = vmatpush1.bf16.msra.mxu0 0
      %2193 = vmatprep.subr.bf16.mxu0 0
      %2194 = vmatpush1.bf16.msra.mxu0 0
      %2195 = vmatprep.subr.bf16.mxu0 0
      %2196 = vmatpush1.bf16.msra.mxu0 0
      %2197 = vmatprep.subr.bf16.mxu0 0
      %2198 = vmatpush1.bf16.msra.mxu0 0
      %2199 = vmatprep.subr.bf16.mxu0 0
      %2200 = vmatpush1.bf16.msra.mxu0 0
      %2201 = vmatprep.subr.bf16.mxu0 0
      %2202 = vmatpush1.bf16.msra.mxu0 0
      %2203 = vmatprep.subr.bf16.mxu0 0
      %2204 = vmatpush1.bf16.msra.mxu0 0
      %2205 = vmatprep.subr.bf16.mxu0 0
      %2206 = vmatpush1.bf16.msra.mxu0 0
      %2207 = vmatprep.subr.bf16.mxu0 0
      %2208 = vmatpush1.bf16.msra.mxu0 0
      %2209 = vmatprep.subr.bf16.mxu0 0
      %2210 = vmatpush1.bf16.msra.mxu0 0
      %2211 = vmatprep.subr.bf16.mxu0 0
      %2212 = vmatpush1.bf16.msra.mxu0 0
      %2213 = vmatprep.mubr.bf16.mxu0 0
      %2214 = vmatmul.mubr.bf16.gmra.mrb[0].mxu0 %v1894
      %v2215 = vpop.f32.mrb[0].mxu0
      %v2216 = vadd.f32 0.0, %v2215
      %v2217 = vpop.f32.mrb[0].mxu0
      %v2218 = vpop.f32.mrb[0].mxu0
      %v2219 = vadd.f32 0.0, %v2218
      %v2220 = vpop.f32.mrb[0].mxu0
      %2221 = vmatprep.mubr.bf16.mxu0 0
      %2222 = vmatmul.mubr.bf16.gmra.mrb[0].mxu0 %v1897
      %v2223 = vpop.f32.mrb[0].mxu0
      %v2224 = vadd.f32 0.0, %v2223
      %v2225 = vpop.f32.mrb[0].mxu0
      %v2226 = vpop.f32.mrb[0].mxu0
      %v2227 = vadd.f32 0.0, %v2226
      %v2228 = vpop.f32.mrb[0].mxu0
      %2229 = vmatprep.mubr.bf16.mxu0 0
      %2230 = vmatmul.mubr.bf16.gmra.mrb[0].mxu0 %v1900
      %v2231 = vpop.f32.mrb[0].mxu0
      %v2232 = vadd.f32 0.0, %v2231
      %v2233 = vpop.f32.mrb[0].mxu0
      %v2234 = vpop.f32.mrb[0].mxu0
      %v2235 = vadd.f32 0.0, %v2234
      %v2236 = vpop.f32.mrb[0].mxu0
      %2237 = vmatprep.mubr.bf16.mxu0 0
      %2238 = vmatmul.mubr.bf16.gmra.mrb[0].mxu0 %v1903
      %v2239 = vpop.f32.mrb[0].mxu0
      %v2240 = vadd.f32 0.0, %v2239
      %v2241 = vpop.f32.mrb[0].mxu0
      %v2242 = vpop.f32.mrb[0].mxu0
      %v2243 = vadd.f32 0.0, %v2242
      %v2244 = vpop.f32.mrb[0].mxu0
      %2245 = vmatprep.mubr.bf16.mxu0 0
      %2246 = vmatmul.mubr.bf16.gmra.mrb[0].mxu0 %v1906
      %v2247 = vpop.f32.mrb[0].mxu0
      %v2248 = vadd.f32 0.0, %v2247
      %v2249 = vpop.f32.mrb[0].mxu0
      %v2250 = vpop.f32.mrb[0].mxu0
      %v2251 = vadd.f32 0.0, %v2250
      %v2252 = vpop.f32.mrb[0].mxu0
      %2253 = vmatprep.mubr.bf16.mxu0 0
      %2254 = vmatmul.mubr.bf16.gmra.mrb[0].mxu0 %v1909
      %v2255 = vpop.f32.mrb[0].mxu0
      %v2256 = vadd.f32 0.0, %v2255
      %v2257 = vpop.f32.mrb[0].mxu0
      %v2258 = vpop.f32.mrb[0].mxu0
      %v2259 = vadd.f32 0.0, %v2258
      %v2260 = vpop.f32.mrb[0].mxu0
      %2261 = vmatprep.mubr.bf16.mxu0 0
      %2262 = vmatmul.mubr.bf16.gmra.mrb[0].mxu0 %v1912
      %v2263 = vpop.f32.mrb[0].mxu0
      %v2264 = vadd.f32 0.0, %v2263
      %v2265 = vpop.f32.mrb[0].mxu0
      %v2266 = vpop.f32.mrb[0].mxu0
      %v2267 = vadd.f32 0.0, %v2266
      %v2268 = vpop.f32.mrb[0].mxu0
      %2269 = vmatprep.mubr.bf16.mxu0 0
      %2270 = vmatmul.mubr.bf16.gmra.mrb[0].mxu0 %v1915
      %v2271 = vpop.f32.mrb[0].mxu0
      %v2272 = vadd.f32 0.0, %v2271
      %v2273 = vpop.f32.mrb[0].mxu0
      %v2274 = vpop.f32.mrb[0].mxu0
      %v2275 = vadd.f32 0.0, %v2274
      %v2276 = vpop.f32.mrb[0].mxu0
      %2277 = vmatprep.mubr.bf16.mxu0 0
      %2278 = vmatmul.mubr.bf16.gmra.mrb[0].mxu0 %v1918
      %v2279 = vpop.f32.mrb[0].mxu0
      %v2280 = vadd.f32 0.0, %v2279
      %v2281 = vpop.f32.mrb[0].mxu0
      %v2282 = vpop.f32.mrb[0].mxu0
      %v2283 = vadd.f32 0.0, %v2282
      %v2284 = vpop.f32.mrb[0].mxu0
      %2285 = vmatprep.mubr.bf16.mxu0 0
      %2286 = vmatmul.mubr.bf16.gmra.mrb[0].mxu0 %v1921
      %v2287 = vpop.f32.mrb[0].mxu0
      %v2288 = vadd.f32 0.0, %v2287
      %v2289 = vpop.f32.mrb[0].mxu0
      %v2290 = vpop.f32.mrb[0].mxu0
      %v2291 = vadd.f32 0.0, %v2290
      %v2292 = vpop.f32.mrb[0].mxu0
      %2293 = vmatprep.mubr.bf16.mxu0 0
      %2294 = vmatmul.mubr.bf16.gmra.mrb[0].mxu0 %v1924
      %v2295 = vpop.f32.mrb[0].mxu0
      %v2296 = vadd.f32 0.0, %v2295
      %v2297 = vpop.f32.mrb[0].mxu0
      %v2298 = vpop.f32.mrb[0].mxu0
      %v2299 = vadd.f32 0.0, %v2298
      %v2300 = vpop.f32.mrb[0].mxu0
      %2301 = vmatprep.mubr.bf16.mxu0 0
      %2302 = vmatmul.mubr.bf16.gmra.mrb[0].mxu0 %v1927
      %v2303 = vpop.f32.mrb[0].mxu0
      %v2304 = vadd.f32 0.0, %v2303
      %v2305 = vpop.f32.mrb[0].mxu0
      %v2306 = vpop.f32.mrb[0].mxu0
      %v2307 = vadd.f32 0.0, %v2306
      %v2308 = vpop.f32.mrb[0].mxu0
      %2309 = vmatprep.mubr.bf16.mxu0 0
      %2310 = vmatmul.mubr.bf16.gmra.mrb[0].mxu0 %v1930
      %v2311 = vpop.f32.mrb[0].mxu0
      %v2312 = vadd.f32 0.0, %v2311
      %v2313 = vpop.f32.mrb[0].mxu0
      %v2314 = vpop.f32.mrb[0].mxu0
      %v2315 = vadd.f32 0.0, %v2314
      %v2316 = vpop.f32.mrb[0].mxu0
      %2317 = vmatprep.mubr.bf16.mxu0 0
      %2318 = vmatmul.mubr.bf16.gmra.mrb[0].mxu0 %v1933
      %v2319 = vpop.f32.mrb[0].mxu0
      %v2320 = vadd.f32 0.0, %v2319
      %v2321 = vpop.f32.mrb[0].mxu0
      %v2322 = vpop.f32.mrb[0].mxu0
      %v2323 = vadd.f32 0.0, %v2322
      %v2324 = vpop.f32.mrb[0].mxu0
      %2325 = vmatprep.mubr.bf16.mxu0 0
      %2326 = vmatmul.mubr.bf16.gmra.mrb[0].mxu0 %v1936
      %v2327 = vpop.f32.mrb[0].mxu0
      %v2328 = vadd.f32 0.0, %v2327
      %v2329 = vpop.f32.mrb[0].mxu0
      %v2330 = vpop.f32.mrb[0].mxu0
      %v2331 = vadd.f32 0.0, %v2330
      %v2332 = vpop.f32.mrb[0].mxu0
      %2333 = vmatprep.mubr.bf16.mxu0 0
      %2334 = vmatmul.mubr.bf16.gmra.mrb[0].mxu0 %v1939
      %v2335 = vpop.f32.mrb[0].mxu0
      %v2336 = vadd.f32 0.0, %v2335
      %v2337 = vpop.f32.mrb[0].mxu0
      %v2338 = vpop.f32.mrb[0].mxu0
      %v2339 = vadd.f32 0.0, %v2338
      %v2340 = vpop.f32.mrb[0].mxu0
      %2341 = vmatprep.mubr.bf16.mxu0 0
      %2342 = vmatmul.mubr.bf16.gmra.mrb[0].mxu0 %v2173
      %v2343 = vpop.f32.mrb[0].mxu0
      %v2344 = vadd.f32 0.0, %v2343
      %v2345 = vpop.f32.mrb[0].mxu0
      %v2346 = vpop.f32.mrb[0].mxu0
      %v2347 = vadd.f32 0.0, %v2346
      %v2348 = vpop.f32.mrb[0].mxu0
      %2349 = vmatprep.mubr.bf16.mxu0 0
      %2350 = vmatmul.mubr.bf16.gmra.mrb[0].mxu0 %v2176
      %v2351 = vpop.f32.mrb[0].mxu0
      %v2352 = vadd.f32 0.0, %v2351
      %v2353 = vpop.f32.mrb[0].mxu0
      %v2354 = vpop.f32.mrb[0].mxu0
      %v2355 = vadd.f32 0.0, %v2354
      %v2356 = vpop.f32.mrb[0].mxu0
      %2357 = vdwg.mxu0
      %v2358 = vadd.f32 %v2124, %v2216
      %v2359 = vadd.f32 %v2125, %v2219
      %v2360 = vadd.f32 %v2126, %v2224
      %v2361 = vadd.f32 %v2127, %v2227
      %v2362 = vadd.f32 %v2128, %v2232
      %v2363 = vadd.f32 %v2129, %v2235
      %v2364 = vadd.f32 %v2130, %v2240
      %v2365 = vadd.f32 %v2131, %v2243
      %v2366 = vadd.f32 %v2132, %v2248
      %v2367 = vadd.f32 %v2133, %v2251
      %v2368 = vadd.f32 %v2134, %v2256
      %v2369 = vadd.f32 %v2135, %v2259
      %v2370 = vadd.f32 %v2136, %v2264
      %v2371 = vadd.f32 %v2137, %v2267
      %v2372 = vadd.f32 %v2138, %v2272
      %v2373 = vadd.f32 %v2139, %v2275
      %v2374 = vadd.f32 %v2140, %v2280
      %v2375 = vadd.f32 %v2141, %v2283
      %v2376 = vadd.f32 %v2142, %v2288
      %v2377 = vadd.f32 %v2143, %v2291
      %v2378 = vadd.f32 %v2144, %v2296
      %v2379 = vadd.f32 %v2145, %v2299
      %v2380 = vadd.f32 %v2146, %v2304
      %v2381 = vadd.f32 %v2147, %v2307
      %v2382 = vadd.f32 %v2148, %v2312
      %v2383 = vadd.f32 %v2149, %v2315
      %v2384 = vadd.f32 %v2150, %v2320
      %v2385 = vadd.f32 %v2151, %v2323
      %v2386 = vadd.f32 %v2152, %v2328
      %v2387 = vadd.f32 %v2153, %v2331
      %v2388 = vadd.f32 %v2154, %v2336
      %v2389 = vadd.f32 %v2155, %v2339
      %v2390 = vadd.f32 %v2156, %v2344
      %v2391 = vadd.f32 %v2157, %v2347
      %v2392 = vadd.f32 %v2158, %v2352
      %v2393 = vadd.f32 %v2159, %v2355
      %s2394 = scalar_lea.vmem %s1, 14
      %v2395 = vld [vmem:[%s2394] sm:$0x3]
      %vm2396 = vsmask.f32 5376
      %v2397 = vrot.slane %v368, 2
      %v2398 = vrot.slane %v364, 3
      %v2399 = vor.u32 %v2397, %v2398
      %v2400 = vrot.slane %v376, 2
      %v2401 = vrot.slane %v372, 3
      %v2402 = vor.u32 %v2400, %v2401
      %v2403 = vsel %vm2396, %v2399, %v2402
      %v2404 = vrot.slane %v384, 2
      %v2405 = vrot.slane %v380, 3
      %v2406 = vor.u32 %v2404, %v2405
      %v2407 = vsel %vm2396, %v2402, %v2406
      %v2408 = vrot.slane %v392, 2
      %v2409 = vrot.slane %v388, 3
      %v2410 = vor.u32 %v2408, %v2409
      %v2411 = vsel %vm2396, %v2406, %v2410
      %v2412 = vrot.slane %v400, 2
      %v2413 = vrot.slane %v396, 3
      %v2414 = vor.u32 %v2412, %v2413
      %v2415 = vsel %vm2396, %v2410, %v2414
      %v2416 = vrot.slane %v408, 2
      %v2417 = vrot.slane %v404, 3
      %v2418 = vor.u32 %v2416, %v2417
      %v2419 = vsel %vm2396, %v2414, %v2418
      %v2420 = vrot.slane %v416, 2
      %v2421 = vrot.slane %v412, 3
      %v2422 = vor.u32 %v2420, %v2421
      %v2423 = vsel %vm2396, %v2418, %v2422
      %v2424 = vrot.slane %v424, 2
      %v2425 = vrot.slane %v420, 3
      %v2426 = vor.u32 %v2424, %v2425
      %v2427 = vsel %vm2396, %v2422, %v2426
      %v2428 = vrot.slane %v432, 2
      %v2429 = vrot.slane %v428, 3
      %v2430 = vor.u32 %v2428, %v2429
      %v2431 = vsel %vm2396, %v2426, %v2430
      %v2432 = vrot.slane %v440, 2
      %v2433 = vrot.slane %v436, 3
      %v2434 = vor.u32 %v2432, %v2433
      %v2435 = vsel %vm2396, %v2430, %v2434
      %v2436 = vrot.slane %v448, 2
      %v2437 = vrot.slane %v444, 3
      %v2438 = vor.u32 %v2436, %v2437
      %v2439 = vsel %vm2396, %v2434, %v2438
      %v2440 = vrot.slane %v456, 2
      %v2441 = vrot.slane %v452, 3
      %v2442 = vor.u32 %v2440, %v2441
      %v2443 = vsel %vm2396, %v2438, %v2442
      %v2444 = vrot.slane %v464, 2
      %v2445 = vrot.slane %v460, 3
      %v2446 = vor.u32 %v2444, %v2445
      %v2447 = vsel %vm2396, %v2442, %v2446
      %v2448 = vrot.slane %v472, 2
      %v2449 = vrot.slane %v468, 3
      %v2450 = vor.u32 %v2448, %v2449
      %v2451 = vsel %vm2396, %v2446, %v2450
      %v2452 = vrot.slane %v480, 2
      %v2453 = vrot.slane %v476, 3
      %v2454 = vor.u32 %v2452, %v2453
      %v2455 = vsel %vm2396, %v2450, %v2454
      %v2456 = vrot.slane %v488, 2
      %v2457 = vrot.slane %v484, 3
      %v2458 = vor.u32 %v2456, %v2457
      %v2459 = vsel %vm2396, %v2454, %v2458
      %v2460 = vrot.slane %v1563, 2
      %v2461 = vrot.slane %v1566, 3
      %v2462 = vor.u32 %v2460, %v2461
      %v2463 = vsel %vm2396, %v2458, %v2462
      %v2465 = vshrl.u32 %v2166, 16
      %v2467 = vrot.slane %v2465, 2
      %v2468 = vshll.u32 %v2166, 16
      %v2470 = vrot.slane %v2468, 3
      %v2471 = vor.u32 %v2467, %v2470
      %v2472 = vsel %vm2396, %v2462, %v2471
      %v2474 = vshrl.u32 %v2167, 16
      %v2476 = vrot.slane %v2474, 2
      %v2477 = vshll.u32 %v2167, 16
      %v2479 = vrot.slane %v2477, 3
      %v2480 = vor.u32 %v2476, %v2479
      %v2481 = vsel %vm2396, %v2471, %v2480
      %v2483 = vsel %vm496, %v2403, 0
      %v2486 = vsel %vm496, %v2407, 0
      %v2489 = vsel %vm496, %v2411, 0
      %v2492 = vsel %vm496, %v2415, 0
      %v2495 = vsel %vm496, %v2419, 0
      %v2498 = vsel %vm496, %v2423, 0
      %v2501 = vsel %vm496, %v2427, 0
      %v2504 = vsel %vm496, %v2431, 0
      %v2507 = vsel %vm496, %v2435, 0
      %v2510 = vsel %vm496, %v2439, 0
      %v2513 = vsel %vm496, %v2443, 0
      %v2516 = vsel %vm496, %v2447, 0
      %v2519 = vsel %vm496, %v2451, 0
      %v2522 = vsel %vm496, %v2455, 0
      %v2525 = vsel %vm496, %v2459, 0
      %v2528 = vsel %vm496, %v2463, 0
      %v2531 = vsel %vm496, %v2472, 0
      %v2534 = vsel %vm496, %v2481, 0
      %v2537 = vsel %vm551, %v2395, 0
      %2539 = vmatprep.subr.bf16.mxu0 0
      %2540 = vmatpush1.bf16.msra.mxu0 %v2537
      %2541 = vmatprep.subr.bf16.mxu0 0
      %2542 = vmatpush1.bf16.msra.mxu0 0
      %2543 = vmatprep.subr.bf16.mxu0 0
      %2544 = vmatpush1.bf16.msra.mxu0 0
      %2545 = vmatprep.subr.bf16.mxu0 0
      %2546 = vmatpush1.bf16.msra.mxu0 0
      %2547 = vmatprep.subr.bf16.mxu0 0
      %2548 = vmatpush1.bf16.msra.mxu0 0
      %2549 = vmatprep.subr.bf16.mxu0 0
      %2550 = vmatpush1.bf16.msra.mxu0 0
      %2551 = vmatprep.subr.bf16.mxu0 0
      %2552 = vmatpush1.bf16.msra.mxu0 0
      %2553 = vmatprep.subr.bf16.mxu0 0
      %2554 = vmatpush1.bf16.msra.mxu0 0
      %2555 = vmatprep.subr.bf16.mxu0 0
      %2556 = vmatpush1.bf16.msra.mxu0 0
      %2557 = vmatprep.subr.bf16.mxu0 0
      %2558 = vmatpush1.bf16.msra.mxu0 0
      %2559 = vmatprep.subr.bf16.mxu0 0
      %2560 = vmatpush1.bf16.msra.mxu0 0
      %2561 = vmatprep.subr.bf16.mxu0 0
      %2562 = vmatpush1.bf16.msra.mxu0 0
      %2563 = vmatprep.subr.bf16.mxu0 0
      %2564 = vmatpush1.bf16.msra.mxu0 0
      %2565 = vmatprep.subr.bf16.mxu0 0
      %2566 = vmatpush1.bf16.msra.mxu0 0
      %2567 = vmatprep.subr.bf16.mxu0 0
      %2568 = vmatpush1.bf16.msra.mxu0 0
      %2569 = vmatprep.subr.bf16.mxu0 0
      %2570 = vmatpush1.bf16.msra.mxu0 0
      %2571 = vmatprep.mubr.bf16.mxu0 0
      %2572 = vmatmul.mubr.bf16.gmra.mrb[0].mxu0 %v2483
      %v2573 = vpop.f32.mrb[0].mxu0
      %v2574 = vadd.f32 0.0, %v2573
      %v2575 = vpop.f32.mrb[0].mxu0
      %v2576 = vpop.f32.mrb[0].mxu0
      %v2577 = vadd.f32 0.0, %v2576
      %v2578 = vpop.f32.mrb[0].mxu0
      %2579 = vmatprep.mubr.bf16.mxu0 0
      %2580 = vmatmul.mubr.bf16.gmra.mrb[0].mxu0 %v2486
      %v2581 = vpop.f32.mrb[0].mxu0
      %v2582 = vadd.f32 0.0, %v2581
      %v2583 = vpop.f32.mrb[0].mxu0
      %v2584 = vpop.f32.mrb[0].mxu0
      %v2585 = vadd.f32 0.0, %v2584
      %v2586 = vpop.f32.mrb[0].mxu0
      %2587 = vmatprep.mubr.bf16.mxu0 0
      %2588 = vmatmul.mubr.bf16.gmra.mrb[0].mxu0 %v2489
      %v2589 = vpop.f32.mrb[0].mxu0
      %v2590 = vadd.f32 0.0, %v2589
      %v2591 = vpop.f32.mrb[0].mxu0
      %v2592 = vpop.f32.mrb[0].mxu0
      %v2593 = vadd.f32 0.0, %v2592
      %v2594 = vpop.f32.mrb[0].mxu0
      %2595 = vmatprep.mubr.bf16.mxu0 0
      %2596 = vmatmul.mubr.bf16.gmra.mrb[0].mxu0 %v2492
      %v2597 = vpop.f32.mrb[0].mxu0
      %v2598 = vadd.f32 0.0, %v2597
      %v2599 = vpop.f32.mrb[0].mxu0
      %v2600 = vpop.f32.mrb[0].mxu0
      %v2601 = vadd.f32 0.0, %v2600
      %v2602 = vpop.f32.mrb[0].mxu0
      %2603 = vmatprep.mubr.bf16.mxu0 0
      %2604 = vmatmul.mubr.bf16.gmra.mrb[0].mxu0 %v2495
      %v2605 = vpop.f32.mrb[0].mxu0
      %v2606 = vadd.f32 0.0, %v2605
      %v2607 = vpop.f32.mrb[0].mxu0
      %v2608 = vpop.f32.mrb[0].mxu0
      %v2609 = vadd.f32 0.0, %v2608
      %v2610 = vpop.f32.mrb[0].mxu0
      %2611 = vmatprep.mubr.bf16.mxu0 0
      %2612 = vmatmul.mubr.bf16.gmra.mrb[0].mxu0 %v2498
      %v2613 = vpop.f32.mrb[0].mxu0
      %v2614 = vadd.f32 0.0, %v2613
      %v2615 = vpop.f32.mrb[0].mxu0
      %v2616 = vpop.f32.mrb[0].mxu0
      %v2617 = vadd.f32 0.0, %v2616
      %v2618 = vpop.f32.mrb[0].mxu0
      %2619 = vmatprep.mubr.bf16.mxu0 0
      %2620 = vmatmul.mubr.bf16.gmra.mrb[0].mxu0 %v2501
      %v2621 = vpop.f32.mrb[0].mxu0
      %v2622 = vadd.f32 0.0, %v2621
      %v2623 = vpop.f32.mrb[0].mxu0
      %v2624 = vpop.f32.mrb[0].mxu0
      %v2625 = vadd.f32 0.0, %v2624
      %v2626 = vpop.f32.mrb[0].mxu0
      %2627 = vmatprep.mubr.bf16.mxu0 0
      %2628 = vmatmul.mubr.bf16.gmra.mrb[0].mxu0 %v2504
      %v2629 = vpop.f32.mrb[0].mxu0
      %v2630 = vadd.f32 0.0, %v2629
      %v2631 = vpop.f32.mrb[0].mxu0
      %v2632 = vpop.f32.mrb[0].mxu0
      %v2633 = vadd.f32 0.0, %v2632
      %v2634 = vpop.f32.mrb[0].mxu0
      %2635 = vmatprep.mubr.bf16.mxu0 0
      %2636 = vmatmul.mubr.bf16.gmra.mrb[0].mxu0 %v2507
      %v2637 = vpop.f32.mrb[0].mxu0
      %v2638 = vadd.f32 0.0, %v2637
      %v2639 = vpop.f32.mrb[0].mxu0
      %v2640 = vpop.f32.mrb[0].mxu0
      %v2641 = vadd.f32 0.0, %v2640
      %v2642 = vpop.f32.mrb[0].mxu0
      %2643 = vmatprep.mubr.bf16.mxu0 0
      %2644 = vmatmul.mubr.bf16.gmra.mrb[0].mxu0 %v2510
      %v2645 = vpop.f32.mrb[0].mxu0
      %v2646 = vadd.f32 0.0, %v2645
      %v2647 = vpop.f32.mrb[0].mxu0
      %v2648 = vpop.f32.mrb[0].mxu0
      %v2649 = vadd.f32 0.0, %v2648
      %v2650 = vpop.f32.mrb[0].mxu0
      %2651 = vmatprep.mubr.bf16.mxu0 0
      %2652 = vmatmul.mubr.bf16.gmra.mrb[0].mxu0 %v2513
      %v2653 = vpop.f32.mrb[0].mxu0
      %v2654 = vadd.f32 0.0, %v2653
      %v2655 = vpop.f32.mrb[0].mxu0
      %v2656 = vpop.f32.mrb[0].mxu0
      %v2657 = vadd.f32 0.0, %v2656
      %v2658 = vpop.f32.mrb[0].mxu0
      %2659 = vmatprep.mubr.bf16.mxu0 0
      %2660 = vmatmul.mubr.bf16.gmra.mrb[0].mxu0 %v2516
      %v2661 = vpop.f32.mrb[0].mxu0
      %v2662 = vadd.f32 0.0, %v2661
      %v2663 = vpop.f32.mrb[0].mxu0
      %v2664 = vpop.f32.mrb[0].mxu0
      %v2665 = vadd.f32 0.0, %v2664
      %v2666 = vpop.f32.mrb[0].mxu0
      %2667 = vmatprep.mubr.bf16.mxu0 0
      %2668 = vmatmul.mubr.bf16.gmra.mrb[0].mxu0 %v2519
      %v2669 = vpop.f32.mrb[0].mxu0
      %v2670 = vadd.f32 0.0, %v2669
      %v2671 = vpop.f32.mrb[0].mxu0
      %v2672 = vpop.f32.mrb[0].mxu0
      %v2673 = vadd.f32 0.0, %v2672
      %v2674 = vpop.f32.mrb[0].mxu0
      %2675 = vmatprep.mubr.bf16.mxu0 0
      %2676 = vmatmul.mubr.bf16.gmra.mrb[0].mxu0 %v2522
      %v2677 = vpop.f32.mrb[0].mxu0
      %v2678 = vadd.f32 0.0, %v2677
      %v2679 = vpop.f32.mrb[0].mxu0
      %v2680 = vpop.f32.mrb[0].mxu0
      %v2681 = vadd.f32 0.0, %v2680
      %v2682 = vpop.f32.mrb[0].mxu0
      %2683 = vmatprep.mubr.bf16.mxu0 0
      %2684 = vmatmul.mubr.bf16.gmra.mrb[0].mxu0 %v2525
      %v2685 = vpop.f32.mrb[0].mxu0
      %v2686 = vadd.f32 0.0, %v2685
      %v2687 = vpop.f32.mrb[0].mxu0
      %v2688 = vpop.f32.mrb[0].mxu0
      %v2689 = vadd.f32 0.0, %v2688
      %v2690 = vpop.f32.mrb[0].mxu0
      %2691 = vmatprep.mubr.bf16.mxu0 0
      %2692 = vmatmul.mubr.bf16.gmra.mrb[0].mxu0 %v2528
      %v2693 = vpop.f32.mrb[0].mxu0
      %v2694 = vadd.f32 0.0, %v2693
      %v2695 = vpop.f32.mrb[0].mxu0
      %v2696 = vpop.f32.mrb[0].mxu0
      %v2697 = vadd.f32 0.0, %v2696
      %v2698 = vpop.f32.mrb[0].mxu0
      %2699 = vmatprep.mubr.bf16.mxu0 0
      %2700 = vmatmul.mubr.bf16.gmra.mrb[0].mxu0 %v2531
      %v2701 = vpop.f32.mrb[0].mxu0
      %v2702 = vadd.f32 0.0, %v2701
      %v2703 = vpop.f32.mrb[0].mxu0
      %v2704 = vpop.f32.mrb[0].mxu0
      %v2705 = vadd.f32 0.0, %v2704
      %v2706 = vpop.f32.mrb[0].mxu0
      %2707 = vmatprep.mubr.bf16.mxu0 0
      %2708 = vmatmul.mubr.bf16.gmra.mrb[0].mxu0 %v2534
      %v2709 = vpop.f32.mrb[0].mxu0
      %v2710 = vadd.f32 0.0, %v2709
      %v2711 = vpop.f32.mrb[0].mxu0
      %v2712 = vpop.f32.mrb[0].mxu0
      %v2713 = vadd.f32 0.0, %v2712
      %v2714 = vpop.f32.mrb[0].mxu0
      %2715 = vdwg.mxu0
      %v2716 = vadd.f32 %v2358, %v2574
      %v2717 = vadd.f32 %v2359, %v2577
      %v2718 = vadd.f32 %v2360, %v2582
      %v2719 = vadd.f32 %v2361, %v2585
      %v2720 = vadd.f32 %v2362, %v2590
      %v2721 = vadd.f32 %v2363, %v2593
      %v2722 = vadd.f32 %v2364, %v2598
      %v2723 = vadd.f32 %v2365, %v2601
      %v2724 = vadd.f32 %v2366, %v2606
      %v2725 = vadd.f32 %v2367, %v2609
      %v2726 = vadd.f32 %v2368, %v2614
      %v2727 = vadd.f32 %v2369, %v2617
      %v2728 = vadd.f32 %v2370, %v2622
      %v2729 = vadd.f32 %v2371, %v2625
      %v2730 = vadd.f32 %v2372, %v2630
      %v2731 = vadd.f32 %v2373, %v2633
      %v2732 = vadd.f32 %v2374, %v2638
      %v2733 = vadd.f32 %v2375, %v2641
      %v2734 = vadd.f32 %v2376, %v2646
      %v2735 = vadd.f32 %v2377, %v2649
      %v2736 = vadd.f32 %v2378, %v2654
      %v2737 = vadd.f32 %v2379, %v2657
      %v2738 = vadd.f32 %v2380, %v2662
      %v2739 = vadd.f32 %v2381, %v2665
      %v2740 = vadd.f32 %v2382, %v2670
      %v2741 = vadd.f32 %v2383, %v2673
      %v2742 = vadd.f32 %v2384, %v2678
      %v2743 = vadd.f32 %v2385, %v2681
      %v2744 = vadd.f32 %v2386, %v2686
      %v2745 = vadd.f32 %v2387, %v2689
      %v2746 = vadd.f32 %v2388, %v2694
      %v2747 = vadd.f32 %v2389, %v2697
      %v2748 = vadd.f32 %v2390, %v2702
      %v2749 = vadd.f32 %v2391, %v2705
      %v2750 = vadd.f32 %v2392, %v2710
      %v2751 = vadd.f32 %v2393, %v2713
      %s2752 = scalar_lea.vmem %s1, 16
      %v2753 = vld [vmem:[%s2752] sm:$0x3]
      %vm2754 = vcmask 1044480
      %v2755 = vrot.slane %v330, 3
      %v2756 = vrot.slane %v331, 3
      %v2757 = vsel %vm2754, %v2755, %v2756
      %v2758 = vrot.slane %v332, 3
      %v2759 = vsel %vm2754, %v2756, %v2758
      %v2760 = vrot.slane %v333, 3
      %v2761 = vsel %vm2754, %v2758, %v2760
      %v2762 = vrot.slane %v334, 3
      %v2763 = vsel %vm2754, %v2760, %v2762
      %v2764 = vrot.slane %v335, 3
      %v2765 = vsel %vm2754, %v2762, %v2764
      %v2766 = vrot.slane %v336, 3
      %v2767 = vsel %vm2754, %v2764, %v2766
      %v2768 = vrot.slane %v337, 3
      %v2769 = vsel %vm2754, %v2766, %v2768
      %v2770 = vrot.slane %v338, 3
      %v2771 = vsel %vm2754, %v2768, %v2770
      %v2772 = vrot.slane %v339, 3
      %v2773 = vsel %vm2754, %v2770, %v2772
      %v2774 = vrot.slane %v340, 3
      %v2775 = vsel %vm2754, %v2772, %v2774
      %v2776 = vrot.slane %v341, 3
      %v2777 = vsel %vm2754, %v2774, %v2776
      %v2778 = vrot.slane %v342, 3
      %v2779 = vsel %vm2754, %v2776, %v2778
      %v2780 = vrot.slane %v343, 3
      %v2781 = vsel %vm2754, %v2778, %v2780
      %v2782 = vrot.slane %v344, 3
      %v2783 = vsel %vm2754, %v2780, %v2782
      %v2784 = vrot.slane %v345, 3
      %v2785 = vsel %vm2754, %v2782, %v2784
      %v2786 = vrot.slane %v1264, 3
      %v2787 = vsel %vm2754, %v2784, %v2786
      %v2788 = vrot.slane %v2166, 3
      %v2789 = vsel %vm2754, %v2786, %v2788
      %v2790 = vrot.slane %v2167, 3
      %v2791 = vsel %vm2754, %v2788, %v2790
      %v2793 = vsel %vm496, %v2757, 0
      %v2796 = vsel %vm496, %v2759, 0
      %v2799 = vsel %vm496, %v2761, 0
      %v2802 = vsel %vm496, %v2763, 0
      %v2805 = vsel %vm496, %v2765, 0
      %v2808 = vsel %vm496, %v2767, 0
      %v2811 = vsel %vm496, %v2769, 0
      %v2814 = vsel %vm496, %v2771, 0
      %v2817 = vsel %vm496, %v2773, 0
      %v2820 = vsel %vm496, %v2775, 0
      %v2823 = vsel %vm496, %v2777, 0
      %v2826 = vsel %vm496, %v2779, 0
      %v2829 = vsel %vm496, %v2781, 0
      %v2832 = vsel %vm496, %v2783, 0
      %v2835 = vsel %vm496, %v2785, 0
      %v2838 = vsel %vm496, %v2787, 0
      %v2841 = vsel %vm496, %v2789, 0
      %v2844 = vsel %vm496, %v2791, 0
      %v2847 = vsel %vm551, %v2753, 0
      %2849 = vmatprep.subr.bf16.mxu0 0
      %2850 = vmatpush1.bf16.msra.mxu0 %v2847
      %2851 = vmatprep.subr.bf16.mxu0 0
      %2852 = vmatpush1.bf16.msra.mxu0 0
      %2853 = vmatprep.subr.bf16.mxu0 0
      %2854 = vmatpush1.bf16.msra.mxu0 0
      %2855 = vmatprep.subr.bf16.mxu0 0
      %2856 = vmatpush1.bf16.msra.mxu0 0
      %2857 = vmatprep.subr.bf16.mxu0 0
      %2858 = vmatpush1.bf16.msra.mxu0 0
      %2859 = vmatprep.subr.bf16.mxu0 0
      %2860 = vmatpush1.bf16.msra.mxu0 0
      %2861 = vmatprep.subr.bf16.mxu0 0
      %2862 = vmatpush1.bf16.msra.mxu0 0
      %2863 = vmatprep.subr.bf16.mxu0 0
      %2864 = vmatpush1.bf16.msra.mxu0 0
      %2865 = vmatprep.subr.bf16.mxu0 0
      %2866 = vmatpush1.bf16.msra.mxu0 0
      %2867 = vmatprep.subr.bf16.mxu0 0
      %2868 = vmatpush1.bf16.msra.mxu0 0
      %2869 = vmatprep.subr.bf16.mxu0 0
      %2870 = vmatpush1.bf16.msra.mxu0 0
      %2871 = vmatprep.subr.bf16.mxu0 0
      %2872 = vmatpush1.bf16.msra.mxu0 0
      %2873 = vmatprep.subr.bf16.mxu0 0
      %2874 = vmatpush1.bf16.msra.mxu0 0
      %2875 = vmatprep.subr.bf16.mxu0 0
      %2876 = vmatpush1.bf16.msra.mxu0 0
      %2877 = vmatprep.subr.bf16.mxu0 0
      %2878 = vmatpush1.bf16.msra.mxu0 0
      %2879 = vmatprep.subr.bf16.mxu0 0
      %2880 = vmatpush1.bf16.msra.mxu0 0
      %2881 = vmatprep.mubr.bf16.mxu0 0
      %2882 = vmatmul.mubr.bf16.gmra.mrb[0].mxu0 %v2793
      %v2883 = vpop.f32.mrb[0].mxu0
      %v2884 = vadd.f32 0.0, %v2883
      %v2885 = vpop.f32.mrb[0].mxu0
      %v2886 = vpop.f32.mrb[0].mxu0
      %v2887 = vadd.f32 0.0, %v2886
      %v2888 = vpop.f32.mrb[0].mxu0
      %2889 = vmatprep.mubr.bf16.mxu0 0
      %2890 = vmatmul.mubr.bf16.gmra.mrb[0].mxu0 %v2796
      %v2891 = vpop.f32.mrb[0].mxu0
      %v2892 = vadd.f32 0.0, %v2891
      %v2893 = vpop.f32.mrb[0].mxu0
      %v2894 = vpop.f32.mrb[0].mxu0
      %v2895 = vadd.f32 0.0, %v2894
      %v2896 = vpop.f32.mrb[0].mxu0
      %2897 = vmatprep.mubr.bf16.mxu0 0
      %2898 = vmatmul.mubr.bf16.gmra.mrb[0].mxu0 %v2799
      %v2899 = vpop.f32.mrb[0].mxu0
      %v2900 = vadd.f32 0.0, %v2899
      %v2901 = vpop.f32.mrb[0].mxu0
      %v2902 = vpop.f32.mrb[0].mxu0
      %v2903 = vadd.f32 0.0, %v2902
      %v2904 = vpop.f32.mrb[0].mxu0
      %2905 = vmatprep.mubr.bf16.mxu0 0
      %2906 = vmatmul.mubr.bf16.gmra.mrb[0].mxu0 %v2802
      %v2907 = vpop.f32.mrb[0].mxu0
      %v2908 = vadd.f32 0.0, %v2907
      %v2909 = vpop.f32.mrb[0].mxu0
      %v2910 = vpop.f32.mrb[0].mxu0
      %v2911 = vadd.f32 0.0, %v2910
      %v2912 = vpop.f32.mrb[0].mxu0
      %2913 = vmatprep.mubr.bf16.mxu0 0
      %2914 = vmatmul.mubr.bf16.gmra.mrb[0].mxu0 %v2805
      %v2915 = vpop.f32.mrb[0].mxu0
      %v2916 = vadd.f32 0.0, %v2915
      %v2917 = vpop.f32.mrb[0].mxu0
      %v2918 = vpop.f32.mrb[0].mxu0
      %v2919 = vadd.f32 0.0, %v2918
      %v2920 = vpop.f32.mrb[0].mxu0
      %2921 = vmatprep.mubr.bf16.mxu0 0
      %2922 = vmatmul.mubr.bf16.gmra.mrb[0].mxu0 %v2808
      %v2923 = vpop.f32.mrb[0].mxu0
      %v2924 = vadd.f32 0.0, %v2923
      %v2925 = vpop.f32.mrb[0].mxu0
      %v2926 = vpop.f32.mrb[0].mxu0
      %v2927 = vadd.f32 0.0, %v2926
      %v2928 = vpop.f32.mrb[0].mxu0
      %2929 = vmatprep.mubr.bf16.mxu0 0
      %2930 = vmatmul.mubr.bf16.gmra.mrb[0].mxu0 %v2811
      %v2931 = vpop.f32.mrb[0].mxu0
      %v2932 = vadd.f32 0.0, %v2931
      %v2933 = vpop.f32.mrb[0].mxu0
      %v2934 = vpop.f32.mrb[0].mxu0
      %v2935 = vadd.f32 0.0, %v2934
      %v2936 = vpop.f32.mrb[0].mxu0
      %2937 = vmatprep.mubr.bf16.mxu0 0
      %2938 = vmatmul.mubr.bf16.gmra.mrb[0].mxu0 %v2814
      %v2939 = vpop.f32.mrb[0].mxu0
      %v2940 = vadd.f32 0.0, %v2939
      %v2941 = vpop.f32.mrb[0].mxu0
      %v2942 = vpop.f32.mrb[0].mxu0
      %v2943 = vadd.f32 0.0, %v2942
      %v2944 = vpop.f32.mrb[0].mxu0
      %2945 = vmatprep.mubr.bf16.mxu0 0
      %2946 = vmatmul.mubr.bf16.gmra.mrb[0].mxu0 %v2817
      %v2947 = vpop.f32.mrb[0].mxu0
      %v2948 = vadd.f32 0.0, %v2947
      %v2949 = vpop.f32.mrb[0].mxu0
      %v2950 = vpop.f32.mrb[0].mxu0
      %v2951 = vadd.f32 0.0, %v2950
      %v2952 = vpop.f32.mrb[0].mxu0
      %2953 = vmatprep.mubr.bf16.mxu0 0
      %2954 = vmatmul.mubr.bf16.gmra.mrb[0].mxu0 %v2820
      %v2955 = vpop.f32.mrb[0].mxu0
      %v2956 = vadd.f32 0.0, %v2955
      %v2957 = vpop.f32.mrb[0].mxu0
      %v2958 = vpop.f32.mrb[0].mxu0
      %v2959 = vadd.f32 0.0, %v2958
      %v2960 = vpop.f32.mrb[0].mxu0
      %2961 = vmatprep.mubr.bf16.mxu0 0
      %2962 = vmatmul.mubr.bf16.gmra.mrb[0].mxu0 %v2823
      %v2963 = vpop.f32.mrb[0].mxu0
      %v2964 = vadd.f32 0.0, %v2963
      %v2965 = vpop.f32.mrb[0].mxu0
      %v2966 = vpop.f32.mrb[0].mxu0
      %v2967 = vadd.f32 0.0, %v2966
      %v2968 = vpop.f32.mrb[0].mxu0
      %2969 = vmatprep.mubr.bf16.mxu0 0
      %2970 = vmatmul.mubr.bf16.gmra.mrb[0].mxu0 %v2826
      %v2971 = vpop.f32.mrb[0].mxu0
      %v2972 = vadd.f32 0.0, %v2971
      %v2973 = vpop.f32.mrb[0].mxu0
      %v2974 = vpop.f32.mrb[0].mxu0
      %v2975 = vadd.f32 0.0, %v2974
      %v2976 = vpop.f32.mrb[0].mxu0
      %2977 = vmatprep.mubr.bf16.mxu0 0
      %2978 = vmatmul.mubr.bf16.gmra.mrb[0].mxu0 %v2829
      %v2979 = vpop.f32.mrb[0].mxu0
      %v2980 = vadd.f32 0.0, %v2979
      %v2981 = vpop.f32.mrb[0].mxu0
      %v2982 = vpop.f32.mrb[0].mxu0
      %v2983 = vadd.f32 0.0, %v2982
      %v2984 = vpop.f32.mrb[0].mxu0
      %2985 = vmatprep.mubr.bf16.mxu0 0
      %2986 = vmatmul.mubr.bf16.gmra.mrb[0].mxu0 %v2832
      %v2987 = vpop.f32.mrb[0].mxu0
      %v2988 = vadd.f32 0.0, %v2987
      %v2989 = vpop.f32.mrb[0].mxu0
      %v2990 = vpop.f32.mrb[0].mxu0
      %v2991 = vadd.f32 0.0, %v2990
      %v2992 = vpop.f32.mrb[0].mxu0
      %2993 = vmatprep.mubr.bf16.mxu0 0
      %2994 = vmatmul.mubr.bf16.gmra.mrb[0].mxu0 %v2835
      %v2995 = vpop.f32.mrb[0].mxu0
      %v2996 = vadd.f32 0.0, %v2995
      %v2997 = vpop.f32.mrb[0].mxu0
      %v2998 = vpop.f32.mrb[0].mxu0
      %v2999 = vadd.f32 0.0, %v2998
      %v3000 = vpop.f32.mrb[0].mxu0
      %3001 = vmatprep.mubr.bf16.mxu0 0
      %3002 = vmatmul.mubr.bf16.gmra.mrb[0].mxu0 %v2838
      %v3003 = vpop.f32.mrb[0].mxu0
      %v3004 = vadd.f32 0.0, %v3003
      %v3005 = vpop.f32.mrb[0].mxu0
      %v3006 = vpop.f32.mrb[0].mxu0
      %v3007 = vadd.f32 0.0, %v3006
      %v3008 = vpop.f32.mrb[0].mxu0
      %3009 = vmatprep.mubr.bf16.mxu0 0
      %3010 = vmatmul.mubr.bf16.gmra.mrb[0].mxu0 %v2841
      %v3011 = vpop.f32.mrb[0].mxu0
      %v3012 = vadd.f32 0.0, %v3011
      %v3013 = vpop.f32.mrb[0].mxu0
      %v3014 = vpop.f32.mrb[0].mxu0
      %v3015 = vadd.f32 0.0, %v3014
      %v3016 = vpop.f32.mrb[0].mxu0
      %3017 = vmatprep.mubr.bf16.mxu0 0
      %3018 = vmatmul.mubr.bf16.gmra.mrb[0].mxu0 %v2844
      %v3019 = vpop.f32.mrb[0].mxu0
      %v3020 = vadd.f32 0.0, %v3019
      %v3021 = vpop.f32.mrb[0].mxu0
      %v3022 = vpop.f32.mrb[0].mxu0
      %v3023 = vadd.f32 0.0, %v3022
      %v3024 = vpop.f32.mrb[0].mxu0
      %3025 = vdwg.mxu0
      %v3026 = vadd.f32 %v2716, %v2884
      %v3027 = vadd.f32 %v2717, %v2887
      %v3028 = vadd.f32 %v2718, %v2892
      %v3029 = vadd.f32 %v2719, %v2895
      %v3030 = vadd.f32 %v2720, %v2900
      %v3031 = vadd.f32 %v2721, %v2903
      %v3032 = vadd.f32 %v2722, %v2908
      %v3033 = vadd.f32 %v2723, %v2911
      %v3034 = vadd.f32 %v2724, %v2916
      %v3035 = vadd.f32 %v2725, %v2919
      %v3036 = vadd.f32 %v2726, %v2924
      %v3037 = vadd.f32 %v2727, %v2927
      %v3038 = vadd.f32 %v2728, %v2932
      %v3039 = vadd.f32 %v2729, %v2935
      %v3040 = vadd.f32 %v2730, %v2940
      %v3041 = vadd.f32 %v2731, %v2943
      %v3042 = vadd.f32 %v2732, %v2948
      %v3043 = vadd.f32 %v2733, %v2951
      %v3044 = vadd.f32 %v2734, %v2956
      %v3045 = vadd.f32 %v2735, %v2959
      %v3046 = vadd.f32 %v2736, %v2964
      %v3047 = vadd.f32 %v2737, %v2967
      %v3048 = vadd.f32 %v2738, %v2972
      %v3049 = vadd.f32 %v2739, %v2975
      %v3050 = vadd.f32 %v2740, %v2980
      %v3051 = vadd.f32 %v2741, %v2983
      %v3052 = vadd.f32 %v2742, %v2988
      %v3053 = vadd.f32 %v2743, %v2991
      %v3054 = vadd.f32 %v2744, %v2996
      %v3055 = vadd.f32 %v2745, %v2999
      %v3056 = vadd.f32 %v2746, %v3004
      %v3057 = vadd.f32 %v2747, %v3007
      %v3058 = vadd.f32 %v2748, %v3012
      %v3059 = vadd.f32 %v2749, %v3015
      %v3060 = vadd.f32 %v2750, %v3020
      %v3061 = vadd.f32 %v2751, %v3023
      %vm3062 = vcmask 64512
      %3063 = vst.msk [vmem:[%s204] sm:$0xff] %vm3062, %v3026
      %3064 = vst.msk [vmem:[%s204 + $0x8] sm:$0xff] %vm3062, %v3027
      %3065 = vst.msk [vmem:[%s204 + $0x10] sm:$0xff] %vm3062, %v3028
      %3066 = vst.msk [vmem:[%s204 + $0x18] sm:$0xff] %vm3062, %v3029
      %3067 = vst.msk [vmem:[%s204 + $0x20] sm:$0xff] %vm3062, %v3030
      %3068 = vst.msk [vmem:[%s204 + $0x28] sm:$0xff] %vm3062, %v3031
      %3069 = vst.msk [vmem:[%s204 + $0x30] sm:$0xff] %vm3062, %v3032
      %3070 = vst.msk [vmem:[%s204 + $0x38] sm:$0xff] %vm3062, %v3033
      %3071 = vst.msk [vmem:[%s204 + $0x40] sm:$0xff] %vm3062, %v3034
      %3072 = vst.msk [vmem:[%s204 + $0x48] sm:$0xff] %vm3062, %v3035
      %3073 = vst.msk [vmem:[%s204 + $0x50] sm:$0xff] %vm3062, %v3036
      %3074 = vst.msk [vmem:[%s204 + $0x58] sm:$0xff] %vm3062, %v3037
      %3075 = vst.msk [vmem:[%s204 + $0x60] sm:$0xff] %vm3062, %v3038
      %3076 = vst.msk [vmem:[%s204 + $0x68] sm:$0xff] %vm3062, %v3039
      %3077 = vst.msk [vmem:[%s204 + $0x70] sm:$0xff] %vm3062, %v3040
      %3078 = vst.msk [vmem:[%s204 + $0x78] sm:$0xff] %vm3062, %v3041
      %3079 = vst.msk [vmem:[%s204 + $0x80] sm:$0xff] %vm3062, %v3042
      %3080 = vst.msk [vmem:[%s204 + $0x88] sm:$0xff] %vm3062, %v3043
      %3081 = vst.msk [vmem:[%s204 + $0x90] sm:$0xff] %vm3062, %v3044
      %3082 = vst.msk [vmem:[%s204 + $0x98] sm:$0xff] %vm3062, %v3045
      %3083 = vst.msk [vmem:[%s204 + $0xa0] sm:$0xff] %vm3062, %v3046
      %3084 = vst.msk [vmem:[%s204 + $0xa8] sm:$0xff] %vm3062, %v3047
      %3085 = vst.msk [vmem:[%s204 + $0xb0] sm:$0xff] %vm3062, %v3048
      %3086 = vst.msk [vmem:[%s204 + $0xb8] sm:$0xff] %vm3062, %v3049
      %3087 = vst.msk [vmem:[%s204 + $0xc0] sm:$0xff] %vm3062, %v3050
      %3088 = vst.msk [vmem:[%s204 + $0xc8] sm:$0xff] %vm3062, %v3051
      %3089 = vst.msk [vmem:[%s204 + $0xd0] sm:$0xff] %vm3062, %v3052
      %3090 = vst.msk [vmem:[%s204 + $0xd8] sm:$0xff] %vm3062, %v3053
      %3091 = vst.msk [vmem:[%s204 + $0xe0] sm:$0xff] %vm3062, %v3054
      %3092 = vst.msk [vmem:[%s204 + $0xe8] sm:$0xff] %vm3062, %v3055
      %3093 = vst.msk [vmem:[%s204 + $0xf0] sm:$0xff] %vm3062, %v3056
      %3094 = vst.msk [vmem:[%s204 + $0xf8] sm:$0xff] %vm3062, %v3057
      %3095 = vst.msk [vmem:[%s204 + $0x100] sm:$0xff] %vm3062, %v3058
      %3096 = vst.msk [vmem:[%s204 + $0x108] sm:$0xff] %vm3062, %v3059
      %3097 = vst.msk [vmem:[%s204 + $0x110] sm:$0xff] %vm3062, %v3060
      %3098 = vst.msk [vmem:[%s204 + $0x118] sm:$0xff] %vm3062, %v3061
      %v3099 = vld [vmem:[%s2] sm:$0xff]
      %v3100 = vld [vmem:[%s2 + $0x8] sm:$0xff]
      %v3101 = vld [vmem:[%s2 + $0x10] sm:$0xff]
      %v3102 = vld [vmem:[%s2 + $0x18] sm:$0xff]
      %v3103 = vld [vmem:[%s2 + $0x20] sm:$0xff]
      %v3104 = vld [vmem:[%s2 + $0x28] sm:$0xff]
      %v3105 = vld [vmem:[%s2 + $0x30] sm:$0xff]
      %v3106 = vld [vmem:[%s2 + $0x38] sm:$0xff]
      %v3107 = vld [vmem:[%s2 + $0x40] sm:$0xff]
      %v3108 = vld [vmem:[%s2 + $0x48] sm:$0xff]
      %v3109 = vld [vmem:[%s2 + $0x50] sm:$0xff]
      %v3110 = vld [vmem:[%s2 + $0x58] sm:$0xff]
      %v3111 = vld [vmem:[%s2 + $0x60] sm:$0xff]
      %v3112 = vld [vmem:[%s2 + $0x68] sm:$0xff]
      %v3113 = vld [vmem:[%s2 + $0x70] sm:$0xff]
      %v3114 = vld [vmem:[%s2 + $0x78] sm:$0xff]
      %v3115 = vld [vmem:[%s2 + $0x80] sm:$0xff]
      %v3116 = vld [vmem:[%s2 + $0x88] sm:$0xff]
      %v3117 = vld [vmem:[%s2 + $0x90] sm:$0xff]
      %v3118 = vld [vmem:[%s2 + $0x98] sm:$0xff]
      %v3119 = vld [vmem:[%s2 + $0xa0] sm:$0xff]
      %v3120 = vld [vmem:[%s2 + $0xa8] sm:$0xff]
      %v3121 = vld [vmem:[%s2 + $0xb0] sm:$0xff]
      %v3122 = vld [vmem:[%s2 + $0xb8] sm:$0xff]
      %v3123 = vld [vmem:[%s2 + $0xc0] sm:$0xff]
      %v3124 = vld [vmem:[%s2 + $0xc8] sm:$0xff]
      %v3125 = vld [vmem:[%s2 + $0xd0] sm:$0xff]
      %v3126 = vld [vmem:[%s2 + $0xd8] sm:$0xff]
      %v3127 = vld [vmem:[%s2 + $0xe0] sm:$0xff]
      %v3128 = vld [vmem:[%s2 + $0xe8] sm:$0xff]
      %v3129 = vld [vmem:[%s2 + $0xf0] sm:$0xff]
      %v3130 = vld [vmem:[%s2 + $0xf8] sm:$0xff]
      %v3131 = vld [vmem:[%s2 + $0x100] sm:$0xff]
      %v3132 = vld [vmem:[%s2 + $0x108] sm:$0xff]
      %v3133 = vld [vmem:[%s2 + $0x110] sm:$0xff]
      %v3134 = vld [vmem:[%s2 + $0x118] sm:$0xff]
      %3136 = vset.pattern.permute.xlu0 0
      %3137 = vperm.xlu0 %3136, %v3099
      %v3138 = vpop.permute.xlu0 %3137
      %3141 = vset.pattern.permute.xlu0 0
      %3142 = vperm.xlu0 %3141, %v3100
      %v3143 = vpop.permute.xlu0 %3142
      %3146 = vset.pattern.permute.xlu0 0
      %3147 = vperm.xlu0 %3146, %v3101
      %v3148 = vpop.permute.xlu0 %3147
      %3151 = vset.pattern.permute.xlu0 0
      %3152 = vperm.xlu0 %3151, %v3102
      %v3153 = vpop.permute.xlu0 %3152
      %3156 = vset.pattern.permute.xlu0 0
      %3157 = vperm.xlu0 %3156, %v3103
      %v3158 = vpop.permute.xlu0 %3157
      %3161 = vset.pattern.permute.xlu0 0
      %3162 = vperm.xlu0 %3161, %v3104
      %v3163 = vpop.permute.xlu0 %3162
      %3166 = vset.pattern.permute.xlu0 0
      %3167 = vperm.xlu0 %3166, %v3105
      %v3168 = vpop.permute.xlu0 %3167
      %3171 = vset.pattern.permute.xlu0 0
      %3172 = vperm.xlu0 %3171, %v3106
      %v3173 = vpop.permute.xlu0 %3172
      %3176 = vset.pattern.permute.xlu0 0
      %3177 = vperm.xlu0 %3176, %v3107
      %v3178 = vpop.permute.xlu0 %3177
      %3181 = vset.pattern.permute.xlu0 0
      %3182 = vperm.xlu0 %3181, %v3108
      %v3183 = vpop.permute.xlu0 %3182
      %3186 = vset.pattern.permute.xlu0 0
      %3187 = vperm.xlu0 %3186, %v3109
      %v3188 = vpop.permute.xlu0 %3187
      %3191 = vset.pattern.permute.xlu0 0
      %3192 = vperm.xlu0 %3191, %v3110
      %v3193 = vpop.permute.xlu0 %3192
      %3196 = vset.pattern.permute.xlu0 0
      %3197 = vperm.xlu0 %3196, %v3111
      %v3198 = vpop.permute.xlu0 %3197
      %3201 = vset.pattern.permute.xlu0 0
      %3202 = vperm.xlu0 %3201, %v3112
      %v3203 = vpop.permute.xlu0 %3202
      %3206 = vset.pattern.permute.xlu0 0
      %3207 = vperm.xlu0 %3206, %v3113
      %v3208 = vpop.permute.xlu0 %3207
      %3211 = vset.pattern.permute.xlu0 0
      %3212 = vperm.xlu0 %3211, %v3114
      %v3213 = vpop.permute.xlu0 %3212
      %3216 = vset.pattern.permute.xlu0 0
      %3217 = vperm.xlu0 %3216, %v3115
      %v3218 = vpop.permute.xlu0 %3217
      %3221 = vset.pattern.permute.xlu0 0
      %3222 = vperm.xlu0 %3221, %v3116
      %v3223 = vpop.permute.xlu0 %3222
      %3226 = vset.pattern.permute.xlu0 0
      %3227 = vperm.xlu0 %3226, %v3117
      %v3228 = vpop.permute.xlu0 %3227
      %3231 = vset.pattern.permute.xlu0 0
      %3232 = vperm.xlu0 %3231, %v3118
      %v3233 = vpop.permute.xlu0 %3232
      %3236 = vset.pattern.permute.xlu0 0
      %3237 = vperm.xlu0 %3236, %v3119
      %v3238 = vpop.permute.xlu0 %3237
      %3241 = vset.pattern.permute.xlu0 0
      %3242 = vperm.xlu0 %3241, %v3120
      %v3243 = vpop.permute.xlu0 %3242
      %3246 = vset.pattern.permute.xlu0 0
      %3247 = vperm.xlu0 %3246, %v3121
      %v3248 = vpop.permute.xlu0 %3247
      %3251 = vset.pattern.permute.xlu0 0
      %3252 = vperm.xlu0 %3251, %v3122
      %v3253 = vpop.permute.xlu0 %3252
      %3256 = vset.pattern.permute.xlu0 0
      %3257 = vperm.xlu0 %3256, %v3123
      %v3258 = vpop.permute.xlu0 %3257
      %3261 = vset.pattern.permute.xlu0 0
      %3262 = vperm.xlu0 %3261, %v3124
      %v3263 = vpop.permute.xlu0 %3262
      %3266 = vset.pattern.permute.xlu0 0
      %3267 = vperm.xlu0 %3266, %v3125
      %v3268 = vpop.permute.xlu0 %3267
      %3271 = vset.pattern.permute.xlu0 0
      %3272 = vperm.xlu0 %3271, %v3126
      %v3273 = vpop.permute.xlu0 %3272
      %3276 = vset.pattern.permute.xlu0 0
      %3277 = vperm.xlu0 %3276, %v3127
      %v3278 = vpop.permute.xlu0 %3277
      %3281 = vset.pattern.permute.xlu0 0
      %3282 = vperm.xlu0 %3281, %v3128
      %v3283 = vpop.permute.xlu0 %3282
      %3286 = vset.pattern.permute.xlu0 0
      %3287 = vperm.xlu0 %3286, %v3129
      %v3288 = vpop.permute.xlu0 %3287
      %3291 = vset.pattern.permute.xlu0 0
      %3292 = vperm.xlu0 %3291, %v3130
      %v3293 = vpop.permute.xlu0 %3292
      %3296 = vset.pattern.permute.xlu0 0
      %3297 = vperm.xlu0 %3296, %v3131
      %v3298 = vpop.permute.xlu0 %3297
      %3301 = vset.pattern.permute.xlu0 0
      %3302 = vperm.xlu0 %3301, %v3132
      %v3303 = vpop.permute.xlu0 %3302
      %3306 = vset.pattern.permute.xlu0 0
      %3307 = vperm.xlu0 %3306, %v3133
      %v3308 = vpop.permute.xlu0 %3307
      %3311 = vset.pattern.permute.xlu0 0
      %3312 = vperm.xlu0 %3311, %v3134
      %v3313 = vpop.permute.xlu0 %3312
      %v3315 = vmul.f32 %v3026, %v3138
      %v3316 = vmul.f32 %v3027, %v3143
      %v3317 = vmul.f32 %v3028, %v3148
      %v3318 = vmul.f32 %v3029, %v3153
      %v3319 = vmul.f32 %v3030, %v3158
      %v3320 = vmul.f32 %v3031, %v3163
      %v3321 = vmul.f32 %v3032, %v3168
      %v3322 = vmul.f32 %v3033, %v3173
      %v3323 = vmul.f32 %v3034, %v3178
      %v3324 = vmul.f32 %v3035, %v3183
      %v3325 = vmul.f32 %v3036, %v3188
      %v3326 = vmul.f32 %v3037, %v3193
      %v3327 = vmul.f32 %v3038, %v3198
      %v3328 = vmul.f32 %v3039, %v3203
      %v3329 = vmul.f32 %v3040, %v3208
      %v3330 = vmul.f32 %v3041, %v3213
      %v3331 = vmul.f32 %v3042, %v3218
      %v3332 = vmul.f32 %v3043, %v3223
      %v3333 = vmul.f32 %v3044, %v3228
      %v3334 = vmul.f32 %v3045, %v3233
      %v3335 = vmul.f32 %v3046, %v3238
      %v3336 = vmul.f32 %v3047, %v3243
      %v3337 = vmul.f32 %v3048, %v3248
      %v3338 = vmul.f32 %v3049, %v3253
      %v3339 = vmul.f32 %v3050, %v3258
      %v3340 = vmul.f32 %v3051, %v3263
      %v3341 = vmul.f32 %v3052, %v3268
      %v3342 = vmul.f32 %v3053, %v3273
      %v3343 = vmul.f32 %v3054, %v3278
      %v3344 = vmul.f32 %v3055, %v3283
      %v3345 = vmul.f32 %v3056, %v3288
      %v3346 = vmul.f32 %v3057, %v3293
      %v3347 = vmul.f32 %v3058, %v3298
      %v3348 = vmul.f32 %v3059, %v3303
      %v3349 = vmul.f32 %v3060, %v3308
      %v3350 = vmul.f32 %v3061, %v3313
      %v3351 = vsel %vm3062, %v3315, 0.0
      %v3352 = vsel %vm3062, %v3316, 0.0
      %v3353 = vadd.f32 %v3351, %v3352
      %v3354 = vsel %vm3062, %v3317, 0.0
      %v3355 = vadd.f32 %v3353, %v3354
      %v3356 = vsel %vm3062, %v3318, 0.0
      %v3357 = vadd.f32 %v3355, %v3356
      %v3358 = vsel %vm3062, %v3319, 0.0
      %v3359 = vadd.f32 %v3357, %v3358
      %v3360 = vsel %vm3062, %v3320, 0.0
      %v3361 = vadd.f32 %v3359, %v3360
      %v3362 = vsel %vm3062, %v3321, 0.0
      %v3363 = vadd.f32 %v3361, %v3362
      %v3364 = vsel %vm3062, %v3322, 0.0
      %v3365 = vadd.f32 %v3363, %v3364
      %v3366 = vsel %vm3062, %v3323, 0.0
      %v3367 = vadd.f32 %v3365, %v3366
      %v3368 = vsel %vm3062, %v3324, 0.0
      %v3369 = vadd.f32 %v3367, %v3368
      %v3370 = vsel %vm3062, %v3325, 0.0
      %v3371 = vadd.f32 %v3369, %v3370
      %v3372 = vsel %vm3062, %v3326, 0.0
      %v3373 = vadd.f32 %v3371, %v3372
      %v3374 = vsel %vm3062, %v3327, 0.0
      %v3375 = vadd.f32 %v3373, %v3374
      %v3376 = vsel %vm3062, %v3328, 0.0
      %v3377 = vadd.f32 %v3375, %v3376
      %v3378 = vsel %vm3062, %v3329, 0.0
      %v3379 = vadd.f32 %v3377, %v3378
      %v3380 = vsel %vm3062, %v3330, 0.0
      %v3381 = vadd.f32 %v3379, %v3380
      %v3382 = vsel %vm3062, %v3331, 0.0
      %v3383 = vadd.f32 %v3381, %v3382
      %v3384 = vsel %vm3062, %v3332, 0.0
      %v3385 = vadd.f32 %v3383, %v3384
      %v3386 = vsel %vm3062, %v3333, 0.0
      %v3387 = vadd.f32 %v3385, %v3386
      %v3388 = vsel %vm3062, %v3334, 0.0
      %v3389 = vadd.f32 %v3387, %v3388
      %v3390 = vsel %vm3062, %v3335, 0.0
      %v3391 = vadd.f32 %v3389, %v3390
      %v3392 = vsel %vm3062, %v3336, 0.0
      %v3393 = vadd.f32 %v3391, %v3392
      %v3394 = vsel %vm3062, %v3337, 0.0
      %v3395 = vadd.f32 %v3393, %v3394
      %v3396 = vsel %vm3062, %v3338, 0.0
      %v3397 = vadd.f32 %v3395, %v3396
      %v3398 = vsel %vm3062, %v3339, 0.0
      %v3399 = vadd.f32 %v3397, %v3398
      %v3400 = vsel %vm3062, %v3340, 0.0
      %v3401 = vadd.f32 %v3399, %v3400
      %v3402 = vsel %vm3062, %v3341, 0.0
      %v3403 = vadd.f32 %v3401, %v3402
      %v3404 = vsel %vm3062, %v3342, 0.0
      %v3405 = vadd.f32 %v3403, %v3404
      %v3406 = vsel %vm3062, %v3343, 0.0
      %v3407 = vadd.f32 %v3405, %v3406
      %v3408 = vsel %vm3062, %v3344, 0.0
      %v3409 = vadd.f32 %v3407, %v3408
      %v3410 = vsel %vm3062, %v3345, 0.0
      %v3411 = vadd.f32 %v3409, %v3410
      %v3412 = vsel %vm3062, %v3346, 0.0
      %v3413 = vadd.f32 %v3411, %v3412
      %v3414 = vsel %vm3062, %v3347, 0.0
      %v3415 = vadd.f32 %v3413, %v3414
      %v3416 = vsel %vm3062, %v3348, 0.0
      %v3417 = vadd.f32 %v3415, %v3416
      %v3418 = vsel %vm3062, %v3349, 0.0
      %v3419 = vadd.f32 %v3417, %v3418
      %v3420 = vsel %vm3062, %v3350, 0.0
      %v3421 = vadd.f32 %v3419, %v3420
      %v3422 = vrot.slane %v3421, 4
      %v3423 = vadd.f32 %v3421, %v3422
      %v3424 = vrot.slane %v3423, 2
      %v3425 = vadd.f32 %v3423, %v3424
      %v3426 = vrot.slane %v3425, 1
      %v3427 = vadd.f32 %v3425, %v3426
      %vm3428 = vcmask 57344
      %3429 = vst.msk [vmem:[%s208] sm:$0x1] %vm3428, %v3427
      %v3430 = vmul.f32 %v3315, %v3315
      %v3431 = vmul.f32 %v3316, %v3316
      %v3432 = vmul.f32 %v3317, %v3317
      %v3433 = vmul.f32 %v3318, %v3318
      %v3434 = vmul.f32 %v3319, %v3319
      %v3435 = vmul.f32 %v3320, %v3320
      %v3436 = vmul.f32 %v3321, %v3321
      %v3437 = vmul.f32 %v3322, %v3322
      %v3438 = vmul.f32 %v3323, %v3323
      %v3439 = vmul.f32 %v3324, %v3324
      %v3440 = vmul.f32 %v3325, %v3325
      %v3441 = vmul.f32 %v3326, %v3326
      %v3442 = vmul.f32 %v3327, %v3327
      %v3443 = vmul.f32 %v3328, %v3328
      %v3444 = vmul.f32 %v3329, %v3329
      %v3445 = vmul.f32 %v3330, %v3330
      %v3446 = vmul.f32 %v3331, %v3331
      %v3447 = vmul.f32 %v3332, %v3332
      %v3448 = vmul.f32 %v3333, %v3333
      %v3449 = vmul.f32 %v3334, %v3334
      %v3450 = vmul.f32 %v3335, %v3335
      %v3451 = vmul.f32 %v3336, %v3336
      %v3452 = vmul.f32 %v3337, %v3337
      %v3453 = vmul.f32 %v3338, %v3338
      %v3454 = vmul.f32 %v3339, %v3339
      %v3455 = vmul.f32 %v3340, %v3340
      %v3456 = vmul.f32 %v3341, %v3341
      %v3457 = vmul.f32 %v3342, %v3342
      %v3458 = vmul.f32 %v3343, %v3343
      %v3459 = vmul.f32 %v3344, %v3344
      %v3460 = vmul.f32 %v3345, %v3345
      %v3461 = vmul.f32 %v3346, %v3346
      %v3462 = vmul.f32 %v3347, %v3347
      %v3463 = vmul.f32 %v3348, %v3348
      %v3464 = vmul.f32 %v3349, %v3349
      %v3465 = vmul.f32 %v3350, %v3350
      %v3466 = vsel %vm3062, %v3430, 0.0
      %v3467 = vsel %vm3062, %v3431, 0.0
      %v3468 = vadd.f32 %v3466, %v3467
      %v3469 = vsel %vm3062, %v3432, 0.0
      %v3470 = vadd.f32 %v3468, %v3469
      %v3471 = vsel %vm3062, %v3433, 0.0
      %v3472 = vadd.f32 %v3470, %v3471
      %v3473 = vsel %vm3062, %v3434, 0.0
      %v3474 = vadd.f32 %v3472, %v3473
      %v3475 = vsel %vm3062, %v3435, 0.0
      %v3476 = vadd.f32 %v3474, %v3475
      %v3477 = vsel %vm3062, %v3436, 0.0
      %v3478 = vadd.f32 %v3476, %v3477
      %v3479 = vsel %vm3062, %v3437, 0.0
      %v3480 = vadd.f32 %v3478, %v3479
      %v3481 = vsel %vm3062, %v3438, 0.0
      %v3482 = vadd.f32 %v3480, %v3481
      %v3483 = vsel %vm3062, %v3439, 0.0
      %v3484 = vadd.f32 %v3482, %v3483
      %v3485 = vsel %vm3062, %v3440, 0.0
      %v3486 = vadd.f32 %v3484, %v3485
      %v3487 = vsel %vm3062, %v3441, 0.0
      %v3488 = vadd.f32 %v3486, %v3487
      %v3489 = vsel %vm3062, %v3442, 0.0
      %v3490 = vadd.f32 %v3488, %v3489
      %v3491 = vsel %vm3062, %v3443, 0.0
      %v3492 = vadd.f32 %v3490, %v3491
      %v3493 = vsel %vm3062, %v3444, 0.0
      %v3494 = vadd.f32 %v3492, %v3493
      %v3495 = vsel %vm3062, %v3445, 0.0
      %v3496 = vadd.f32 %v3494, %v3495
      %v3497 = vsel %vm3062, %v3446, 0.0
      %v3498 = vadd.f32 %v3496, %v3497
      %v3499 = vsel %vm3062, %v3447, 0.0
      %v3500 = vadd.f32 %v3498, %v3499
      %v3501 = vsel %vm3062, %v3448, 0.0
      %v3502 = vadd.f32 %v3500, %v3501
      %v3503 = vsel %vm3062, %v3449, 0.0
      %v3504 = vadd.f32 %v3502, %v3503
      %v3505 = vsel %vm3062, %v3450, 0.0
      %v3506 = vadd.f32 %v3504, %v3505
      %v3507 = vsel %vm3062, %v3451, 0.0
      %v3508 = vadd.f32 %v3506, %v3507
      %v3509 = vsel %vm3062, %v3452, 0.0
      %v3510 = vadd.f32 %v3508, %v3509
      %v3511 = vsel %vm3062, %v3453, 0.0
      %v3512 = vadd.f32 %v3510, %v3511
      %v3513 = vsel %vm3062, %v3454, 0.0
      %v3514 = vadd.f32 %v3512, %v3513
      %v3515 = vsel %vm3062, %v3455, 0.0
      %v3516 = vadd.f32 %v3514, %v3515
      %v3517 = vsel %vm3062, %v3456, 0.0
      %v3518 = vadd.f32 %v3516, %v3517
      %v3519 = vsel %vm3062, %v3457, 0.0
      %v3520 = vadd.f32 %v3518, %v3519
      %v3521 = vsel %vm3062, %v3458, 0.0
      %v3522 = vadd.f32 %v3520, %v3521
      %v3523 = vsel %vm3062, %v3459, 0.0
      %v3524 = vadd.f32 %v3522, %v3523
      %v3525 = vsel %vm3062, %v3460, 0.0
      %v3526 = vadd.f32 %v3524, %v3525
      %v3527 = vsel %vm3062, %v3461, 0.0
      %v3528 = vadd.f32 %v3526, %v3527
      %v3529 = vsel %vm3062, %v3462, 0.0
      %v3530 = vadd.f32 %v3528, %v3529
      %v3531 = vsel %vm3062, %v3463, 0.0
      %v3532 = vadd.f32 %v3530, %v3531
      %v3533 = vsel %vm3062, %v3464, 0.0
      %v3534 = vadd.f32 %v3532, %v3533
      %v3535 = vsel %vm3062, %v3465, 0.0
      %v3536 = vadd.f32 %v3534, %v3535
      %v3537 = vrot.slane %v3536, 4
      %v3538 = vadd.f32 %v3536, %v3537
      %v3539 = vrot.slane %v3538, 2
      %v3540 = vadd.f32 %v3538, %v3539
      %v3541 = vrot.slane %v3540, 1
      %v3542 = vadd.f32 %v3540, %v3541
      %3543 = vst.msk [vmem:[%s208 + $0x1] sm:$0x1] %vm3428, %v3542
      %p3544 = scmp.lt.s32.totalorder %s16, 1
      %s3545 = scalar_select %p3544, %s16, 1
      %s3546 = smul.addr %s3545, 36
      %s3547 = smul.addr %s3546, 8
      %s3548 = scalar_lea.vmem %s3, %s3547
      %p3549 = scmp.lt.s32.totalorder %s16, 1
      %s3550 = scalar_select %p3549, %s16, 1
      %s3551 = smul.addr %s3550, 2
      %s3552 = scalar_lea.vmem %s4, %s3551
      // Predicated region
      $region33: #{resblock_forward.4} parent=31 // pred_check
        %p3553 = pneg %p102
      $region34: #{resblock_forward.4} parent=31 // pred_check_branch
        %3555 = sbr.rel (%p3553) target = $region36
      $region35: #{resblock_forward.4} parent=31 // pred_region
        _
      $region36: #{resblock_forward.4} parent=31 // pred_fallthru
        _
      // Predicated region
      $region37: #{resblock_forward.4} parent=31 // pred_check
        %p3556 = pneg %p128
      $region38: #{resblock_forward.4} parent=31 // pred_check_branch
        %3558 = sbr.rel (%p3556) target = $region40
      $region39: #{resblock_forward.4} parent=31 // pred_region
        _
      $region40: #{resblock_forward.4} parent=31 // pred_fallthru
        _
    $region32: #{resblock_forward.4} parent=5 // pred_fallthru
      _
    %p3559 = scmp.le.s32.totalorder 2, %s11
    // Predicated region
    $region41: #{resblock_forward.4} parent=5 // pred_check
      %p3560 = pneg %p3559
    $region42: #{resblock_forward.4} parent=5 // pred_check_branch
      %3562 = sbr.rel (%p3560) target = $region44
    $region43: #{resblock_forward.4} parent=5 // pred_region
      %s3563 = ssub.s32 %s11, 2
      // Predicated region
      $region45: #{resblock_forward.4} parent=43 // pred_check
        %p3564 = pneg %p108
      $region46: #{resblock_forward.4} parent=43 // pred_check_branch
        %3566 = sbr.rel (%p3564) target = $region48
      $region47: #{resblock_forward.4} parent=43 // pred_region
        %p3567 = scmp.lt.s32.totalorder %s17, 1
        %s3568 = scalar_select %p3567, %s17, 1
        %s3569 = smul.addr %s3568, 36
        %s3570 = smul.addr %s3569, 8
        %s3571 = scalar_lea.vmem %s3, %s3570
      $region48: #{resblock_forward.4} parent=43 // pred_fallthru
        _
      // Predicated region
      $region49: #{resblock_forward.4} parent=43 // pred_check
        %p3572 = pneg %p134
      $region50: #{resblock_forward.4} parent=43 // pred_check_branch
        %3574 = sbr.rel (%p3572) target = $region52
      $region51: #{resblock_forward.4} parent=43 // pred_region
        %p3575 = scmp.lt.s32.totalorder %s17, 1
        %s3576 = scalar_select %p3575, %s17, 1
        %s3577 = smul.addr %s3576, 2
        %s3578 = scalar_lea.vmem %s4, %s3577
      $region52: #{resblock_forward.4} parent=43 // pred_fallthru
        _
    $region44: #{resblock_forward.4} parent=5 // pred_fallthru
      _
  $region6: #{resblock_forward.4} parent=0 // loop_footer
    %s15 = sadd.s32 1, %s11
  $region7: #{resblock_forward.4} parent=0 // loop_footer_branch
    %10 = sbr.rel target = $region3
  $region8: #{resblock_forward.4} parent=0 // loop_exit
    _

// kernel: resblock_forward.6
$region0: #{resblock_forward.6}
  #allocation0 [shape = 'u32[]', space=smem, size = 0x4, offset = 0x4, fixed_abs, tag = 'smem constant byte address 0x4 - core index']
  #allocation1 [shape = 'u32[144,128]{1,0:T(1,128)}', space=vmem, size = 0x12000, scoped, tag = 'internal scratch']
  %s0 = inlined_call_operand.vmem [shape: bf16[2,326,8], index: 0, kind: input, shape index: {}]
  %s1 = inlined_call_operand.vmem [shape: bf16[9,8,8], index: 1, kind: input, shape index: {}]
  %s2 = inlined_call_operand.vmem [shape: f32[288,1], index: 2, kind: input, shape index: {}]
  %s3 = inlined_call_operand.vmem [shape: bf16[2,288,4], index: 3, kind: input, shape index: {}]
  %s4 = inlined_call_operand.vmem [shape: bf16[4,8], index: 4, kind: input, shape index: {}]
  %s5 = inlined_call_operand.vmem [shape: f32[2,288,8], index: 5, kind: output, shape index: {0}]
  %s6 = inlined_call_operand.vmem [shape: f32[2,2,8], index: 6, kind: output, shape index: {1}]
  %7 = xla_tuple %s5, %s6
  %s8 = sld [smem:[#allocation0]]
  $region61: #{resblock_forward.6} parent=0
    _
  %s10 = ssub.s32 1, %s8
  %s11 = scalar_select 0, %s10, %s8
  loop: start=0, step=1, limit=4
  $region2: #{resblock_forward.6} parent=0 // loop_pre_header
    _
  $region3: #{resblock_forward.6} parent=0 // loop_header
    %s13 = sphi 0, %s17
    %p14 = scmp.ge.s32.totalorder %s13, 4
    %s23 = sphi 0, %s25
    %s26 = sphi 0, %s23
    %s27 = sphi 0, %s26
    %s43 = sphi 0, %s27
    %s47 = sphi 0, %s47
    %s49 = sphi 0, %s47
    %s50 = sphi 0, %s49
    %s64 = sphi 0, %s50
    %s68 = sphi 0, %s68
    %s70 = sphi 0, %s68
    %s71 = sphi 0, %s70
    %s85 = sphi 0, %s71
    %s91 = sphi 0, %s93
    %s94 = sphi 0, %s91
    %s95 = sphi 0, %s94
    %s111 = sphi 0, %s95
    %s115 = sphi 0, %s115
    %s117 = sphi 0, %s115
    %s118 = sphi 0, %s117
    %s132 = sphi 0, %s118
    %s138 = sphi 0, %s140
    %s141 = sphi 0, %s138
    %s142 = sphi 0, %s141
    %s158 = sphi 0, %s142
    %s164 = sphi 0, %s166
    %s167 = sphi 0, %s164
    %s168 = sphi 0, %s167
    %s184 = sphi 0, %s168
  $region4: #{resblock_forward.6} parent=0 // loop_header_branch
    %16 = sbr.rel (%p14) target = $region8
  $region5: #{resblock_forward.6} parent=0 // loop_body
    %s18 = ssub.s32 %s13, 1
    %s19 = ssub.s32 %s13, 2
    %s20 = sadd.s32 %s13, 1
    %s21 = ssub.s32 %s13, %s20
    %p22 = scmp.eq.s32.totalorder %s21, 0
    %s24 = sadd.s32 %s23, 1
    %s25 = scalar_select %p22, %s23, %s24
    %p28 = pneg %p22
    %p29 = scmp.eq.s32.totalorder %s13, 1
    %p30 = por %p28, %p29
    %p31 = scmp.ne.s32.totalorder %s23, %s26
    %p32 = scmp.eq.s32.totalorder %s13, 0
    %p33 = por %p31, %p32
    %p34 = scmp.ne.s32.totalorder %s23, %s26
    %p35 = scmp.eq.s32.totalorder %s18, 1
    %p36 = por %p34, %p35
    %p37 = scmp.ne.s32.totalorder %s26, %s27
    %p38 = scmp.eq.s32.totalorder %s18, 0
    %p39 = por %p37, %p38
    %p40 = scmp.ne.s32.totalorder %s26, %s27
    %p41 = scmp.eq.s32.totalorder %s19, 1
    %p42 = por %p40, %p41
    %p44 = scmp.ne.s32.totalorder %s27, %s43
    %p45 = scmp.eq.s32.totalorder %s19, 0
    %p46 = por %p44, %p45
    %s48 = sadd.s32 %s47, 1
    %p51 = scmp.eq.s32.totalorder %s13, 1
    %p52 = scmp.ne.s32.totalorder %s47, %s49
    %p53 = scmp.eq.s32.totalorder %s13, 0
    %p54 = por %p52, %p53
    %p55 = scmp.ne.s32.totalorder %s47, %s49
    %p56 = scmp.eq.s32.totalorder %s18, 1
    %p57 = por %p55, %p56
    %p58 = scmp.ne.s32.totalorder %s49, %s50
    %p59 = scmp.eq.s32.totalorder %s18, 0
    %p60 = por %p58, %p59
    %p61 = scmp.ne.s32.totalorder %s49, %s50
    %p62 = scmp.eq.s32.totalorder %s19, 1
    %p63 = por %p61, %p62
    %p65 = scmp.ne.s32.totalorder %s50, %s64
    %p66 = scmp.eq.s32.totalorder %s19, 0
    %p67 = por %p65, %p66
    %s69 = sadd.s32 %s68, 1
    %p72 = scmp.eq.s32.totalorder %s13, 1
    %p73 = scmp.ne.s32.totalorder %s68, %s70
    %p74 = scmp.eq.s32.totalorder %s13, 0
    %p75 = por %p73, %p74
    %p76 = scmp.ne.s32.totalorder %s68, %s70
    %p77 = scmp.eq.s32.totalorder %s18, 1
    %p78 = por %p76, %p77
    %p79 = scmp.ne.s32.totalorder %s70, %s71
    %p80 = scmp.eq.s32.totalorder %s18, 0
    %p81 = por %p79, %p80
    %p82 = scmp.ne.s32.totalorder %s70, %s71
    %p83 = scmp.eq.s32.totalorder %s19, 1
    %p84 = por %p82, %p83
    %p86 = scmp.ne.s32.totalorder %s71, %s85
    %p87 = scmp.eq.s32.totalorder %s19, 0
    %p88 = por %p86, %p87
    %s89 = ssub.s32 %s13, %s20
    %p90 = scmp.eq.s32.totalorder %s89, 0
    %s92 = sadd.s32 %s91, 1
    %s93 = scalar_select %p90, %s91, %s92
    %p96 = pneg %p90
    %p97 = scmp.eq.s32.totalorder %s13, 1
    %p98 = por %p96, %p97
    %p99 = scmp.ne.s32.totalorder %s91, %s94
    %p100 = scmp.eq.s32.totalorder %s13, 0
    %p101 = por %p99, %p100
    %p102 = scmp.ne.s32.totalorder %s91, %s94
    %p103 = scmp.eq.s32.totalorder %s18, 1
    %p104 = por %p102, %p103
    %p105 = scmp.ne.s32.totalorder %s94, %s95
    %p106 = scmp.eq.s32.totalorder %s18, 0
    %p107 = por %p105, %p106
    %p108 = scmp.ne.s32.totalorder %s94, %s95
    %p109 = scmp.eq.s32.totalorder %s19, 1
    %p110 = por %p108, %p109
    %p112 = scmp.ne.s32.totalorder %s95, %s111
    %p113 = scmp.eq.s32.totalorder %s19, 0
    %p114 = por %p112, %p113
    %s116 = sadd.s32 %s115, 1
    %p119 = scmp.eq.s32.totalorder %s13, 1
    %p120 = scmp.ne.s32.totalorder %s115, %s117
    %p121 = scmp.eq.s32.totalorder %s13, 0
    %p122 = por %p120, %p121
    %p123 = scmp.ne.s32.totalorder %s115, %s117
    %p124 = scmp.eq.s32.totalorder %s18, 1
    %p125 = por %p123, %p124
    %p126 = scmp.ne.s32.totalorder %s117, %s118
    %p127 = scmp.eq.s32.totalorder %s18, 0
    %p128 = por %p126, %p127
    %p129 = scmp.ne.s32.totalorder %s117, %s118
    %p130 = scmp.eq.s32.totalorder %s19, 1
    %p131 = por %p129, %p130
    %p133 = scmp.ne.s32.totalorder %s118, %s132
    %p134 = scmp.eq.s32.totalorder %s19, 0
    %p135 = por %p133, %p134
    %s136 = ssub.s32 %s13, %s20
    %p137 = scmp.eq.s32.totalorder %s136, 0
    %s139 = sadd.s32 %s138, 1
    %s140 = scalar_select %p137, %s138, %s139
    %p143 = pneg %p137
    %p144 = scmp.eq.s32.totalorder %s13, 1
    %p145 = por %p143, %p144
    %p146 = scmp.ne.s32.totalorder %s138, %s141
    %p147 = scmp.eq.s32.totalorder %s13, 0
    %p148 = por %p146, %p147
    %p149 = scmp.ne.s32.totalorder %s138, %s141
    %p150 = scmp.eq.s32.totalorder %s18, 1
    %p151 = por %p149, %p150
    %p152 = scmp.ne.s32.totalorder %s141, %s142
    %p153 = scmp.eq.s32.totalorder %s18, 0
    %p154 = por %p152, %p153
    %p155 = scmp.ne.s32.totalorder %s141, %s142
    %p156 = scmp.eq.s32.totalorder %s19, 1
    %p157 = por %p155, %p156
    %p159 = scmp.ne.s32.totalorder %s142, %s158
    %p160 = scmp.eq.s32.totalorder %s19, 0
    %p161 = por %p159, %p160
    %s162 = ssub.s32 %s13, %s20
    %p163 = scmp.eq.s32.totalorder %s162, 0
    %s165 = sadd.s32 %s164, 1
    %s166 = scalar_select %p163, %s164, %s165
    %p169 = pneg %p163
    %p170 = scmp.eq.s32.totalorder %s13, 1
    %p171 = por %p169, %p170
    %p172 = scmp.ne.s32.totalorder %s164, %s167
    %p173 = scmp.eq.s32.totalorder %s13, 0
    %p174 = por %p172, %p173
    %p175 = scmp.ne.s32.totalorder %s164, %s167
    %p176 = scmp.eq.s32.totalorder %s18, 1
    %p177 = por %p175, %p176
    %p178 = scmp.ne.s32.totalorder %s167, %s168
    %p179 = scmp.eq.s32.totalorder %s18, 0
    %p180 = por %p178, %p179
    %p181 = scmp.ne.s32.totalorder %s167, %s168
    %p182 = scmp.eq.s32.totalorder %s19, 1
    %p183 = por %p181, %p182
    %p185 = scmp.ne.s32.totalorder %s168, %s184
    %p186 = scmp.eq.s32.totalorder %s19, 0
    %p187 = por %p185, %p186
    %p188 = scmp.le.s32.totalorder 1, %s13
    %p189 = scmp.lt.s32.totalorder %s13, 3
    %p190 = pnand %p188, %p189
    %p191 = pneg %p190
    // Predicated region
    $region9: #{resblock_forward.6} parent=5 // pred_check
      _
    $region10: #{resblock_forward.6} parent=5 // pred_check_branch
      %193 = sbr.rel (%p190) target = $region12
    $region11: #{resblock_forward.6} parent=5 // pred_region
      %s194 = ssub.s32 %s13, 1
      // Predicated region
      $region13: #{resblock_forward.6} parent=11 // pred_check
        %p195 = pneg %p60
      $region14: #{resblock_forward.6} parent=11 // pred_check_branch
        %197 = sbr.rel (%p195) target = $region16
      $region15: #{resblock_forward.6} parent=11 // pred_region
        _
      $region16: #{resblock_forward.6} parent=11 // pred_fallthru
        _
      // Predicated region
      $region17: #{resblock_forward.6} parent=11 // pred_check
        %p198 = pneg %p81
      $region18: #{resblock_forward.6} parent=11 // pred_check_branch
        %200 = sbr.rel (%p198) target = $region20
      $region19: #{resblock_forward.6} parent=11 // pred_region
        _
      $region20: #{resblock_forward.6} parent=11 // pred_fallthru
        _
      // Predicated region
      $region21: #{resblock_forward.6} parent=11 // pred_check
        %p201 = pneg %p128
      $region22: #{resblock_forward.6} parent=11 // pred_check_branch
        %203 = sbr.rel (%p201) target = $region24
      $region23: #{resblock_forward.6} parent=11 // pred_region
        _
      $region24: #{resblock_forward.6} parent=11 // pred_fallthru
        _
    $region12: #{resblock_forward.6} parent=5 // pred_fallthru
      _
    %p204 = scmp.lt.s32.totalorder %s13, 2
    // Predicated region
    $region25: #{resblock_forward.6} parent=5 // pred_check
      %p205 = pneg %p204
    $region26: #{resblock_forward.6} parent=5 // pred_check_branch
      %207 = sbr.rel (%p205) target = $region28
    $region27: #{resblock_forward.6} parent=5 // pred_region
      // Predicated region
      $region29: #{resblock_forward.6} parent=27 // pred_check
        %p208 = pneg %p33
      $region30: #{resblock_forward.6} parent=27 // pred_check_branch
        %210 = sbr.rel (%p208) target = $region32
      $region31: #{resblock_forward.6} parent=27 // pred_region
        %p211 = scmp.lt.s32.totalorder %s13, 1
        %s212 = scalar_select %p211, %s13, 1
        %s213 = smul.addr %s212, 41
        %s214 = smul.addr %s213, 4
        %s215 = scalar_lea.vmem %s0, %s214
      $region32: #{resblock_forward.6} parent=27 // pred_fallthru
        _
      // Predicated region
      $region33: #{resblock_forward.6} parent=27 // pred_check
        %p216 = pneg %p101
      $region34: #{resblock_forward.6} parent=27 // pred_check_branch
        %218 = sbr.rel (%p216) target = $region36
      $region35: #{resblock_forward.6} parent=27 // pred_region
        %p219 = scmp.lt.s32.totalorder %s13, 1
        %s220 = scalar_select %p219, %s13, 1
        %s221 = smul.addr %s220, 36
        %s222 = smul.addr %s221, 4
        %s223 = scalar_lea.vmem %s3, %s222
      $region36: #{resblock_forward.6} parent=27 // pred_fallthru
        _
    $region28: #{resblock_forward.6} parent=5 // pred_fallthru
      _
    %p224 = scmp.le.s32.totalorder 1, %s13
    %p225 = scmp.lt.s32.totalorder %s13, 3
    %p226 = pnand %p224, %p225
    %p227 = pneg %p226
    // Predicated region
    $region37: #{resblock_forward.6} parent=5 // pred_check
      _
    $region38: #{resblock_forward.6} parent=5 // pred_check_branch
      %229 = sbr.rel (%p226) target = $region40
    $region39: #{resblock_forward.6} parent=5 // pred_region
      %s230 = ssub.s32 %s13, 1
      %p231 = scmp.lt.s32.totalorder %s18, 1
      %s232 = scalar_select %p231, %s18, 1
      %s233 = smul.addr %s232, 41
      %s234 = smul.addr %s233, 4
      %s235 = scalar_lea.vmem %s0, %s234
      %p236 = pneg %p39
      %p237 = pneg %p36
      %p238 = pneg %p60
      %p239 = pneg %p57
      %p240 = pneg %p81
      %p241 = pneg %p78
      %p242 = scmp.lt.s32.totalorder %s18, 1
      %s243 = scalar_select %p242, %s18, 1
      %s244 = smul.addr %s243, 36
      %s245 = smul.addr %s244, 4
      %s246 = scalar_lea.vmem %s3, %s245
      %p247 = pneg %p107
      %p248 = pneg %p104
      %p249 = pneg %p128
      %p250 = pneg %p125
      %p251 = pneg %p154
      %p252 = pneg %p151
      %p253 = scmp.lt.s32.totalorder %s18, 1
      %s254 = scalar_select %p253, %s18, 1
      %s255 = smul.addr %s254, 36
      %s256 = smul.addr %s255, 8
      %s257 = scalar_lea.vmem %s5, %s256
      %p258 = pneg %p180
      %p259 = pneg %p177
      %p260 = scmp.lt.s32.totalorder %s18, 1
      %s261 = scalar_select %p260, %s18, 1
      %s262 = smul.addr %s261, 2
      %s263 = scalar_lea.vmem %s6, %s262
      %p264 = scmp.lt.s32.totalorder %s18, 1
      %s265 = scalar_select %p264, %s18, 1
      %s266 = smul.addr %s265, 41
      %s267 = smul.addr %s266, 4
      %s268 = scalar_lea.vmem %s0, %s267
      %p269 = scmp.lt.s32.totalorder %s18, 1
      %s270 = scalar_select %p269, %s18, 1
      %s271 = smul.addr %s270, 36
      %s272 = smul.addr %s271, 4
      %s273 = scalar_lea.vmem %s3, %s272
      %p274 = scmp.lt.s32.totalorder %s18, 1
      %s275 = scalar_select %p274, %s18, 1
      %s276 = smul.addr %s275, 36
      %s277 = smul.addr %s276, 8
      %s278 = scalar_lea.vmem %s5, %s277
      %p279 = scmp.lt.s32.totalorder %s18, 1
      %s280 = scalar_select %p279, %s18, 1
      %s281 = smul.addr %s280, 2
      %s282 = scalar_lea.vmem %s6, %s281
      %v284 = vld [vmem:[%s268] sm:$0xf]
      %v285 = vld [vmem:[%s268 + $0x4] sm:$0xf]
      %v286 = vld [vmem:[%s268 + $0x8] sm:$0xf]
      %v287 = vld [vmem:[%s268 + $0xc] sm:$0xf]
      %v288 = vld [vmem:[%s268 + $0x10] sm:$0xf]
      %v289 = vld [vmem:[%s268 + $0x14] sm:$0xf]
      %v290 = vld [vmem:[%s268 + $0x18] sm:$0xf]
      %v291 = vld [vmem:[%s268 + $0x1c] sm:$0xf]
      %v292 = vld [vmem:[%s268 + $0x20] sm:$0xf]
      %v293 = vld [vmem:[%s268 + $0x24] sm:$0xf]
      %v294 = vld [vmem:[%s268 + $0x28] sm:$0xf]
      %v295 = vld [vmem:[%s268 + $0x2c] sm:$0xf]
      %v296 = vld [vmem:[%s268 + $0x30] sm:$0xf]
      %v297 = vld [vmem:[%s268 + $0x34] sm:$0xf]
      %v298 = vld [vmem:[%s268 + $0x38] sm:$0xf]
      %v299 = vld [vmem:[%s268 + $0x3c] sm:$0xf]
      %v300 = vld [vmem:[%s268 + $0x40] sm:$0xf]
      %v301 = vld [vmem:[%s268 + $0x44] sm:$0xf]
      %v302 = vld [vmem:[%s268 + $0x48] sm:$0xf]
      %v303 = vld [vmem:[%s268 + $0x4c] sm:$0xf]
      %v304 = vld [vmem:[%s268 + $0x50] sm:$0xf]
      %v305 = vld [vmem:[%s268 + $0x54] sm:$0xf]
      %v306 = vld [vmem:[%s268 + $0x58] sm:$0xf]
      %v307 = vld [vmem:[%s268 + $0x5c] sm:$0xf]
      %v308 = vld [vmem:[%s268 + $0x60] sm:$0xf]
      %v309 = vld [vmem:[%s268 + $0x64] sm:$0xf]
      %v310 = vld [vmem:[%s268 + $0x68] sm:$0xf]
      %v311 = vld [vmem:[%s268 + $0x6c] sm:$0xf]
      %v312 = vld [vmem:[%s268 + $0x70] sm:$0xf]
      %v313 = vld [vmem:[%s268 + $0x74] sm:$0xf]
      %v314 = vld [vmem:[%s268 + $0x78] sm:$0xf]
      %v315 = vld [vmem:[%s268 + $0x7c] sm:$0xf]
      %v316 = vld [vmem:[%s268 + $0x80] sm:$0xf]
      %v317 = vld [vmem:[%s268 + $0x84] sm:$0xf]
      %v318 = vld [vmem:[%s268 + $0x88] sm:$0xf]
      %v319 = vld [vmem:[%s268 + $0x8c] sm:$0xf]
      %v320 = vld [vmem:[%s268 + $0x90] sm:$0xf]
      %v321 = vld [vmem:[%s268 + $0x94] sm:$0xf]
      %v322 = vld [vmem:[%s268 + $0x98] sm:$0xf]
      %v323 = vld [vmem:[%s268 + $0x9c] sm:$0xf]
      %v324 = vld [vmem:[%s268 + $0xa0] sm:$0x7]
      %v325 = vld [vmem:[%s1] sm:$0xf]
      %s326 = scalar_lea.vmem %s1, 4
      %v327 = vld [vmem:[%s326] sm:$0xf]
      %v365 = vunpack.c.l.b16 %v284
      %v366 = vunpack.c.l.b16 %v285
      %v367 = vunpack.c.l.b16 %v286
      %v368 = vunpack.c.l.b16 %v287
      %v369 = vunpack.c.l.b16 %v288
      %v370 = vunpack.c.l.b16 %v289
      %v371 = vunpack.c.l.b16 %v290
      %v372 = vunpack.c.l.b16 %v291
      %v373 = vunpack.c.l.b16 %v292
      %v374 = vunpack.c.l.b16 %v293
      %v375 = vunpack.c.l.b16 %v294
      %v376 = vunpack.c.l.b16 %v295
      %v377 = vunpack.c.l.b16 %v296
      %v378 = vunpack.c.l.b16 %v297
      %v379 = vunpack.c.l.b16 %v298
      %v380 = vunpack.c.l.b16 %v299
      %v381 = vunpack.c.l.b16 %v300
      %v382 = vunpack.c.l.b16 %v301
      %v383 = vunpack.c.l.b16 %v302
      %v384 = vunpack.c.l.b16 %v303
      %v385 = vunpack.c.l.b16 %v304
      %v386 = vunpack.c.l.b16 %v305
      %v387 = vunpack.c.l.b16 %v306
      %v388 = vunpack.c.l.b16 %v307
      %v389 = vunpack.c.l.b16 %v308
      %v390 = vunpack.c.l.b16 %v309
      %v391 = vunpack.c.l.b16 %v310
      %v392 = vunpack.c.l.b16 %v311
      %v393 = vunpack.c.l.b16 %v312
      %v394 = vunpack.c.l.b16 %v313
      %v395 = vunpack.c.l.b16 %v314
      %v396 = vunpack.c.l.b16 %v315
      %v397 = vunpack.c.l.b16 %v316
      %v398 = vunpack.c.l.b16 %v317
      %v399 = vunpack.c.l.b16 %v318
      %v400 = vunpack.c.l.b16 %v319
      %v401 = vunpack.c.l.b16 %v320
      %v402 = vpack.c.b16 %v366, %v365
      %v403 = vpack.c.b16 %v368, %v367
      %v404 = vpack.c.b16 %v370, %v369
      %v405 = vpack.c.b16 %v372, %v371
      %v406 = vpack.c.b16 %v374, %v373
      %v407 = vpack.c.b16 %v376, %v375
      %v408 = vpack.c.b16 %v378, %v377
      %v409 = vpack.c.b16 %v380, %v379
      %v410 = vpack.c.b16 %v382, %v381
      %v411 = vpack.c.b16 %v384, %v383
      %v412 = vpack.c.b16 %v386, %v385
      %v413 = vpack.c.b16 %v388, %v387
      %v414 = vpack.c.b16 %v390, %v389
      %v415 = vpack.c.b16 %v392, %v391
      %v416 = vpack.c.b16 %v394, %v393
      %v417 = vpack.c.b16 %v396, %v395
      %v418 = vpack.c.b16 %v398, %v397
      %v419 = vpack.c.b16 %v400, %v399
      %v420 = vpack.c.b16 %v401, %v401
      %vm421 = vsmask.f32 7424
      %v423 = vshrl.u32 %v402, 16
      %v425 = vshll.u32 %v402, 16
      %v427 = vrot.slane %v425, 1
      %v428 = vor.u32 %v423, %v427
      %v430 = vshll.u32 %v403, 16
      %v432 = vrot.slane %v430, 1
      %v433 = vsel %vm421, %v428, %v432
      %v434 = vshrl.u32 %v403, 16
      %v436 = vor.u32 %v434, %v432
      %v438 = vshll.u32 %v404, 16
      %v440 = vrot.slane %v438, 1
      %v441 = vsel %vm421, %v436, %v440
      %v442 = vshrl.u32 %v404, 16
      %v444 = vor.u32 %v442, %v440
      %v446 = vshll.u32 %v405, 16
      %v448 = vrot.slane %v446, 1
      %v449 = vsel %vm421, %v444, %v448
      %v450 = vshrl.u32 %v405, 16
      %v452 = vor.u32 %v450, %v448
      %v454 = vshll.u32 %v406, 16
      %v456 = vrot.slane %v454, 1
      %v457 = vsel %vm421, %v452, %v456
      %v458 = vshrl.u32 %v406, 16
      %v460 = vor.u32 %v458, %v456
      %v462 = vshll.u32 %v407, 16
      %v464 = vrot.slane %v462, 1
      %v465 = vsel %vm421, %v460, %v464
      %v466 = vshrl.u32 %v407, 16
      %v468 = vor.u32 %v466, %v464
      %v470 = vshll.u32 %v408, 16
      %v472 = vrot.slane %v470, 1
      %v473 = vsel %vm421, %v468, %v472
      %v474 = vshrl.u32 %v408, 16
      %v476 = vor.u32 %v474, %v472
      %v478 = vshll.u32 %v409, 16
      %v480 = vrot.slane %v478, 1
      %v481 = vsel %vm421, %v476, %v480
      %v482 = vshrl.u32 %v409, 16
      %v484 = vor.u32 %v482, %v480
      %v486 = vshll.u32 %v410, 16
      %v488 = vrot.slane %v486, 1
      %v489 = vsel %vm421, %v484, %v488
      %v490 = vshrl.u32 %v410, 16
      %v492 = vor.u32 %v490, %v488
      %v494 = vshll.u32 %v411, 16
      %v496 = vrot.slane %v494, 1
      %v497 = vsel %vm421, %v492, %v496
      %v498 = vshrl.u32 %v411, 16
      %v500 = vor.u32 %v498, %v496
      %v502 = vshll.u32 %v412, 16
      %v504 = vrot.slane %v502, 1
      %v505 = vsel %vm421, %v500, %v504
      %v506 = vshrl.u32 %v412, 16
      %v508 = vor.u32 %v506, %v504
      %v510 = vshll.u32 %v413, 16
      %v512 = vrot.slane %v510, 1
      %v513 = vsel %vm421, %v508, %v512
      %v514 = vshrl.u32 %v413, 16
      %v516 = vor.u32 %v514, %v512
      %v518 = vshll.u32 %v414, 16
      %v520 = vrot.slane %v518, 1
      %v521 = vsel %vm421, %v516, %v520
      %v522 = vshrl.u32 %v414, 16
      %v524 = vor.u32 %v522, %v520
      %v526 = vshll.u32 %v415, 16
      %v528 = vrot.slane %v526, 1
      %v529 = vsel %vm421, %v524, %v528
      %v530 = vshrl.u32 %v415, 16
      %v532 = vor.u32 %v530, %v528
      %v534 = vshll.u32 %v416, 16
      %v536 = vrot.slane %v534, 1
      %v537 = vsel %vm421, %v532, %v536
      %v538 = vshrl.u32 %v416, 16
      %v540 = vor.u32 %v538, %v536
      %v542 = vshll.u32 %v417, 16
      %v544 = vrot.slane %v542, 1
      %v545 = vsel %vm421, %v540, %v544
      %v546 = vshrl.u32 %v417, 16
      %v548 = vor.u32 %v546, %v544
      %v550 = vshll.u32 %v418, 16
      %v552 = vrot.slane %v550, 1
      %v553 = vsel %vm421, %v548, %v552
      %v554 = vshrl.u32 %v418, 16
      %v556 = vor.u32 %v554, %v552
      %v558 = vshll.u32 %v419, 16
      %v560 = vrot.slane %v558, 1
      %v561 = vsel %vm421, %v556, %v560
      %v562 = vshrl.u32 %v419, 16
      %v564 = vor.u32 %v562, %v560
      %v566 = vshll.u32 %v420, 16
      %v568 = vrot.slane %v566, 1
      %v569 = vsel %vm421, %v564, %v568
      %vm570 = vcmask 64512
      %v572 = vsel %vm570, %v433, 0
      %v575 = vsel %vm570, %v441, 0
      %v578 = vsel %vm570, %v449, 0
      %v581 = vsel %vm570, %v457, 0
      %v584 = vsel %vm570, %v465, 0
      %v587 = vsel %vm570, %v473, 0
      %v590 = vsel %vm570, %v481, 0
      %v593 = vsel %vm570, %v489, 0
      %v596 = vsel %vm570, %v497, 0
      %v599 = vsel %vm570, %v505, 0
      %v602 = vsel %vm570, %v513, 0
      %v605 = vsel %vm570, %v521, 0
      %v608 = vsel %vm570, %v529, 0
      %v611 = vsel %vm570, %v537, 0
      %v614 = vsel %vm570, %v545, 0
      %v617 = vsel %vm570, %v553, 0
      %v620 = vsel %vm570, %v561, 0
      %v623 = vsel %vm570, %v569, 0
      %vm625 = vcmask 1043456
      %v627 = vsel %vm625, %v327, 0
      %629 = vmatprep.subr.bf16.mxu0 0
      %630 = vmatpush1.bf16.msra.mxu0 %v627
      %631 = vmatprep.subr.bf16.mxu0 0
      %632 = vmatpush1.bf16.msra.mxu0 0
      %633 = vmatprep.subr.bf16.mxu0 0
      %634 = vmatpush1.bf16.msra.mxu0 0
      %635 = vmatprep.subr.bf16.mxu0 0
      %636 = vmatpush1.bf16.msra.mxu0 0
      %637 = vmatprep.subr.bf16.mxu0 0
      %638 = vmatpush1.bf16.msra.mxu0 0
      %639 = vmatprep.subr.bf16.mxu0 0
      %640 = vmatpush1.bf16.msra.mxu0 0
      %641 = vmatprep.subr.bf16.mxu0 0
      %642 = vmatpush1.bf16.msra.mxu0 0
      %643 = vmatprep.subr.bf16.mxu0 0
      %644 = vmatpush1.bf16.msra.mxu0 0
      %645 = vmatprep.subr.bf16.mxu0 0
      %646 = vmatpush1.bf16.msra.mxu0 0
      %647 = vmatprep.subr.bf16.mxu0 0
      %648 = vmatpush1.bf16.msra.mxu0 0
      %649 = vmatprep.subr.bf16.mxu0 0
      %650 = vmatpush1.bf16.msra.mxu0 0
      %651 = vmatprep.subr.bf16.mxu0 0
      %652 = vmatpush1.bf16.msra.mxu0 0
      %653 = vmatprep.subr.bf16.mxu0 0
      %654 = vmatpush1.bf16.msra.mxu0 0
      %655 = vmatprep.subr.bf16.mxu0 0
      %656 = vmatpush1.bf16.msra.mxu0 0
      %657 = vmatprep.subr.bf16.mxu0 0
      %658 = vmatpush1.bf16.msra.mxu0 0
      %659 = vmatprep.subr.bf16.mxu0 0
      %660 = vmatpush1.bf16.msra.mxu0 0
      %661 = vmatprep.mubr.bf16.mxu0 0
      %662 = vmatmul.mubr.bf16.gmra.mrb[0].mxu0 %v572
      %v663 = vpop.f32.mrb[0].mxu0
      %v664 = vadd.f32 0.0, %v663
      %v665 = vpop.f32.mrb[0].mxu0
      %v666 = vpop.f32.mrb[0].mxu0
      %v667 = vadd.f32 0.0, %v666
      %v668 = vpop.f32.mrb[0].mxu0
      %669 = vmatprep.mubr.bf16.mxu0 0
      %670 = vmatmul.mubr.bf16.gmra.mrb[0].mxu0 %v575
      %v671 = vpop.f32.mrb[0].mxu0
      %v672 = vadd.f32 0.0, %v671
      %v673 = vpop.f32.mrb[0].mxu0
      %v674 = vpop.f32.mrb[0].mxu0
      %v675 = vadd.f32 0.0, %v674
      %v676 = vpop.f32.mrb[0].mxu0
      %677 = vmatprep.mubr.bf16.mxu0 0
      %678 = vmatmul.mubr.bf16.gmra.mrb[0].mxu0 %v578
      %v679 = vpop.f32.mrb[0].mxu0
      %v680 = vadd.f32 0.0, %v679
      %v681 = vpop.f32.mrb[0].mxu0
      %v682 = vpop.f32.mrb[0].mxu0
      %v683 = vadd.f32 0.0, %v682
      %v684 = vpop.f32.mrb[0].mxu0
      %685 = vmatprep.mubr.bf16.mxu0 0
      %686 = vmatmul.mubr.bf16.gmra.mrb[0].mxu0 %v581
      %v687 = vpop.f32.mrb[0].mxu0
      %v688 = vadd.f32 0.0, %v687
      %v689 = vpop.f32.mrb[0].mxu0
      %v690 = vpop.f32.mrb[0].mxu0
      %v691 = vadd.f32 0.0, %v690
      %v692 = vpop.f32.mrb[0].mxu0
      %693 = vmatprep.mubr.bf16.mxu0 0
      %694 = vmatmul.mubr.bf16.gmra.mrb[0].mxu0 %v584
      %v695 = vpop.f32.mrb[0].mxu0
      %v696 = vadd.f32 0.0, %v695
      %v697 = vpop.f32.mrb[0].mxu0
      %v698 = vpop.f32.mrb[0].mxu0
      %v699 = vadd.f32 0.0, %v698
      %v700 = vpop.f32.mrb[0].mxu0
      %701 = vmatprep.mubr.bf16.mxu0 0
      %702 = vmatmul.mubr.bf16.gmra.mrb[0].mxu0 %v587
      %v703 = vpop.f32.mrb[0].mxu0
      %v704 = vadd.f32 0.0, %v703
      %v705 = vpop.f32.mrb[0].mxu0
      %v706 = vpop.f32.mrb[0].mxu0
      %v707 = vadd.f32 0.0, %v706
      %v708 = vpop.f32.mrb[0].mxu0
      %709 = vmatprep.mubr.bf16.mxu0 0
      %710 = vmatmul.mubr.bf16.gmra.mrb[0].mxu0 %v590
      %v711 = vpop.f32.mrb[0].mxu0
      %v712 = vadd.f32 0.0, %v711
      %v713 = vpop.f32.mrb[0].mxu0
      %v714 = vpop.f32.mrb[0].mxu0
      %v715 = vadd.f32 0.0, %v714
      %v716 = vpop.f32.mrb[0].mxu0
      %717 = vmatprep.mubr.bf16.mxu0 0
      %718 = vmatmul.mubr.bf16.gmra.mrb[0].mxu0 %v593
      %v719 = vpop.f32.mrb[0].mxu0
      %v720 = vadd.f32 0.0, %v719
      %v721 = vpop.f32.mrb[0].mxu0
      %v722 = vpop.f32.mrb[0].mxu0
      %v723 = vadd.f32 0.0, %v722
      %v724 = vpop.f32.mrb[0].mxu0
      %725 = vmatprep.mubr.bf16.mxu0 0
      %726 = vmatmul.mubr.bf16.gmra.mrb[0].mxu0 %v596
      %v727 = vpop.f32.mrb[0].mxu0
      %v728 = vadd.f32 0.0, %v727
      %v729 = vpop.f32.mrb[0].mxu0
      %v730 = vpop.f32.mrb[0].mxu0
      %v731 = vadd.f32 0.0, %v730
      %v732 = vpop.f32.mrb[0].mxu0
      %733 = vmatprep.mubr.bf16.mxu0 0
      %734 = vmatmul.mubr.bf16.gmra.mrb[0].mxu0 %v599
      %v735 = vpop.f32.mrb[0].mxu0
      %v736 = vadd.f32 0.0, %v735
      %v737 = vpop.f32.mrb[0].mxu0
      %v738 = vpop.f32.mrb[0].mxu0
      %v739 = vadd.f32 0.0, %v738
      %v740 = vpop.f32.mrb[0].mxu0
      %741 = vmatprep.mubr.bf16.mxu0 0
      %742 = vmatmul.mubr.bf16.gmra.mrb[0].mxu0 %v602
      %v743 = vpop.f32.mrb[0].mxu0
      %v744 = vadd.f32 0.0, %v743
      %v745 = vpop.f32.mrb[0].mxu0
      %v746 = vpop.f32.mrb[0].mxu0
      %v747 = vadd.f32 0.0, %v746
      %v748 = vpop.f32.mrb[0].mxu0
      %749 = vmatprep.mubr.bf16.mxu0 0
      %750 = vmatmul.mubr.bf16.gmra.mrb[0].mxu0 %v605
      %v751 = vpop.f32.mrb[0].mxu0
      %v752 = vadd.f32 0.0, %v751
      %v753 = vpop.f32.mrb[0].mxu0
      %v754 = vpop.f32.mrb[0].mxu0
      %v755 = vadd.f32 0.0, %v754
      %v756 = vpop.f32.mrb[0].mxu0
      %757 = vmatprep.mubr.bf16.mxu0 0
      %758 = vmatmul.mubr.bf16.gmra.mrb[0].mxu0 %v608
      %v759 = vpop.f32.mrb[0].mxu0
      %v760 = vadd.f32 0.0, %v759
      %v761 = vpop.f32.mrb[0].mxu0
      %v762 = vpop.f32.mrb[0].mxu0
      %v763 = vadd.f32 0.0, %v762
      %v764 = vpop.f32.mrb[0].mxu0
      %765 = vmatprep.mubr.bf16.mxu0 0
      %766 = vmatmul.mubr.bf16.gmra.mrb[0].mxu0 %v611
      %v767 = vpop.f32.mrb[0].mxu0
      %v768 = vadd.f32 0.0, %v767
      %v769 = vpop.f32.mrb[0].mxu0
      %v770 = vpop.f32.mrb[0].mxu0
      %v771 = vadd.f32 0.0, %v770
      %v772 = vpop.f32.mrb[0].mxu0
      %773 = vmatprep.mubr.bf16.mxu0 0
      %774 = vmatmul.mubr.bf16.gmra.mrb[0].mxu0 %v614
      %v775 = vpop.f32.mrb[0].mxu0
      %v776 = vadd.f32 0.0, %v775
      %v777 = vpop.f32.mrb[0].mxu0
      %v778 = vpop.f32.mrb[0].mxu0
      %v779 = vadd.f32 0.0, %v778
      %v780 = vpop.f32.mrb[0].mxu0
      %781 = vmatprep.mubr.bf16.mxu0 0
      %782 = vmatmul.mubr.bf16.gmra.mrb[0].mxu0 %v617
      %v783 = vpop.f32.mrb[0].mxu0
      %v784 = vadd.f32 0.0, %v783
      %v785 = vpop.f32.mrb[0].mxu0
      %v786 = vpop.f32.mrb[0].mxu0
      %v787 = vadd.f32 0.0, %v786
      %v788 = vpop.f32.mrb[0].mxu0
      %789 = vmatprep.mubr.bf16.mxu0 0
      %790 = vmatmul.mubr.bf16.gmra.mrb[0].mxu0 %v620
      %v791 = vpop.f32.mrb[0].mxu0
      %v792 = vadd.f32 0.0, %v791
      %v793 = vpop.f32.mrb[0].mxu0
      %v794 = vpop.f32.mrb[0].mxu0
      %v795 = vadd.f32 0.0, %v794
      %v796 = vpop.f32.mrb[0].mxu0
      %797 = vmatprep.mubr.bf16.mxu0 0
      %798 = vmatmul.mubr.bf16.gmra.mrb[0].mxu0 %v623
      %v799 = vpop.f32.mrb[0].mxu0
      %v800 = vadd.f32 0.0, %v799
      %v801 = vpop.f32.mrb[0].mxu0
      %v802 = vpop.f32.mrb[0].mxu0
      %v803 = vadd.f32 0.0, %v802
      %v804 = vpop.f32.mrb[0].mxu0
      %805 = vdwg.mxu0
      %v806 = vsel %vm570, %v402, 0
      %v808 = vsel %vm570, %v403, 0
      %v810 = vsel %vm570, %v404, 0
      %v812 = vsel %vm570, %v405, 0
      %v814 = vsel %vm570, %v406, 0
      %v816 = vsel %vm570, %v407, 0
      %v818 = vsel %vm570, %v408, 0
      %v820 = vsel %vm570, %v409, 0
      %v822 = vsel %vm570, %v410, 0
      %v824 = vsel %vm570, %v411, 0
      %v826 = vsel %vm570, %v412, 0
      %v828 = vsel %vm570, %v413, 0
      %v830 = vsel %vm570, %v414, 0
      %v832 = vsel %vm570, %v415, 0
      %v834 = vsel %vm570, %v416, 0
      %v836 = vsel %vm570, %v417, 0
      %v838 = vsel %vm570, %v418, 0
      %v840 = vsel %vm570, %v419, 0
      %v843 = vsel %vm625, %v325, 0
      %845 = vmatprep.subr.bf16.mxu0 0
      %846 = vmatpush1.bf16.msra.mxu0 %v843
      %847 = vmatprep.subr.bf16.mxu0 0
      %848 = vmatpush1.bf16.msra.mxu0 0
      %849 = vmatprep.subr.bf16.mxu0 0
      %850 = vmatpush1.bf16.msra.mxu0 0
      %851 = vmatprep.subr.bf16.mxu0 0
      %852 = vmatpush1.bf16.msra.mxu0 0
      %853 = vmatprep.subr.bf16.mxu0 0
      %854 = vmatpush1.bf16.msra.mxu0 0
      %855 = vmatprep.subr.bf16.mxu0 0
      %856 = vmatpush1.bf16.msra.mxu0 0
      %857 = vmatprep.subr.bf16.mxu0 0
      %858 = vmatpush1.bf16.msra.mxu0 0
      %859 = vmatprep.subr.bf16.mxu0 0
      %860 = vmatpush1.bf16.msra.mxu0 0
      %861 = vmatprep.subr.bf16.mxu0 0
      %862 = vmatpush1.bf16.msra.mxu0 0
      %863 = vmatprep.subr.bf16.mxu0 0
      %864 = vmatpush1.bf16.msra.mxu0 0
      %865 = vmatprep.subr.bf16.mxu0 0
      %866 = vmatpush1.bf16.msra.mxu0 0
      %867 = vmatprep.subr.bf16.mxu0 0
      %868 = vmatpush1.bf16.msra.mxu0 0
      %869 = vmatprep.subr.bf16.mxu0 0
      %870 = vmatpush1.bf16.msra.mxu0 0
      %871 = vmatprep.subr.bf16.mxu0 0
      %872 = vmatpush1.bf16.msra.mxu0 0
      %873 = vmatprep.subr.bf16.mxu0 0
      %874 = vmatpush1.bf16.msra.mxu0 0
      %875 = vmatprep.subr.bf16.mxu0 0
      %876 = vmatpush1.bf16.msra.mxu0 0
      %877 = vmatprep.mubr.bf16.mxu0 0
      %878 = vmatmul.mubr.bf16.gmra.mrb[0].mxu0 %v806
      %v879 = vpop.f32.mrb[0].mxu0
      %v880 = vadd.f32 %v664, %v879
      %v881 = vpop.f32.mrb[0].mxu0
      %v882 = vpop.f32.mrb[0].mxu0
      %v883 = vadd.f32 %v667, %v882
      %v884 = vpop.f32.mrb[0].mxu0
      %885 = vmatprep.mubr.bf16.mxu0 0
      %886 = vmatmul.mubr.bf16.gmra.mrb[0].mxu0 %v808
      %v887 = vpop.f32.mrb[0].mxu0
      %v888 = vadd.f32 %v672, %v887
      %v889 = vpop.f32.mrb[0].mxu0
      %v890 = vpop.f32.mrb[0].mxu0
      %v891 = vadd.f32 %v675, %v890
      %v892 = vpop.f32.mrb[0].mxu0
      %893 = vmatprep.mubr.bf16.mxu0 0
      %894 = vmatmul.mubr.bf16.gmra.mrb[0].mxu0 %v810
      %v895 = vpop.f32.mrb[0].mxu0
      %v896 = vadd.f32 %v680, %v895
      %v897 = vpop.f32.mrb[0].mxu0
      %v898 = vpop.f32.mrb[0].mxu0
      %v899 = vadd.f32 %v683, %v898
      %v900 = vpop.f32.mrb[0].mxu0
      %901 = vmatprep.mubr.bf16.mxu0 0
      %902 = vmatmul.mubr.bf16.gmra.mrb[0].mxu0 %v812
      %v903 = vpop.f32.mrb[0].mxu0
      %v904 = vadd.f32 %v688, %v903
      %v905 = vpop.f32.mrb[0].mxu0
      %v906 = vpop.f32.mrb[0].mxu0
      %v907 = vadd.f32 %v691, %v906
      %v908 = vpop.f32.mrb[0].mxu0
      %909 = vmatprep.mubr.bf16.mxu0 0
      %910 = vmatmul.mubr.bf16.gmra.mrb[0].mxu0 %v814
      %v911 = vpop.f32.mrb[0].mxu0
      %v912 = vadd.f32 %v696, %v911
      %v913 = vpop.f32.mrb[0].mxu0
      %v914 = vpop.f32.mrb[0].mxu0
      %v915 = vadd.f32 %v699, %v914
      %v916 = vpop.f32.mrb[0].mxu0
      %917 = vmatprep.mubr.bf16.mxu0 0
      %918 = vmatmul.mubr.bf16.gmra.mrb[0].mxu0 %v816
      %v919 = vpop.f32.mrb[0].mxu0
      %v920 = vadd.f32 %v704, %v919
      %v921 = vpop.f32.mrb[0].mxu0
      %v922 = vpop.f32.mrb[0].mxu0
      %v923 = vadd.f32 %v707, %v922
      %v924 = vpop.f32.mrb[0].mxu0
      %925 = vmatprep.mubr.bf16.mxu0 0
      %926 = vmatmul.mubr.bf16.gmra.mrb[0].mxu0 %v818
      %v927 = vpop.f32.mrb[0].mxu0
      %v928 = vadd.f32 %v712, %v927
      %v929 = vpop.f32.mrb[0].mxu0
      %v930 = vpop.f32.mrb[0].mxu0
      %v931 = vadd.f32 %v715, %v930
      %v932 = vpop.f32.mrb[0].mxu0
      %933 = vmatprep.mubr.bf16.mxu0 0
      %934 = vmatmul.mubr.bf16.gmra.mrb[0].mxu0 %v820
      %v935 = vpop.f32.mrb[0].mxu0
      %v936 = vadd.f32 %v720, %v935
      %v937 = vpop.f32.mrb[0].mxu0
      %v938 = vpop.f32.mrb[0].mxu0
      %v939 = vadd.f32 %v723, %v938
      %v940 = vpop.f32.mrb[0].mxu0
      %941 = vmatprep.mubr.bf16.mxu0 0
      %942 = vmatmul.mubr.bf16.gmra.mrb[0].mxu0 %v822
      %v943 = vpop.f32.mrb[0].mxu0
      %v944 = vadd.f32 %v728, %v943
      %v945 = vpop.f32.mrb[0].mxu0
      %v946 = vpop.f32.mrb[0].mxu0
      %v947 = vadd.f32 %v731, %v946
      %v948 = vpop.f32.mrb[0].mxu0
      %949 = vmatprep.mubr.bf16.mxu0 0
      %950 = vmatmul.mubr.bf16.gmra.mrb[0].mxu0 %v824
      %v951 = vpop.f32.mrb[0].mxu0
      %v952 = vadd.f32 %v736, %v951
      %v953 = vpop.f32.mrb[0].mxu0
      %v954 = vpop.f32.mrb[0].mxu0
      %v955 = vadd.f32 %v739, %v954
      %v956 = vpop.f32.mrb[0].mxu0
      %957 = vmatprep.mubr.bf16.mxu0 0
      %958 = vmatmul.mubr.bf16.gmra.mrb[0].mxu0 %v826
      %v959 = vpop.f32.mrb[0].mxu0
      %v960 = vadd.f32 %v744, %v959
      %v961 = vpop.f32.mrb[0].mxu0
      %v962 = vpop.f32.mrb[0].mxu0
      %v963 = vadd.f32 %v747, %v962
      %v964 = vpop.f32.mrb[0].mxu0
      %965 = vmatprep.mubr.bf16.mxu0 0
      %966 = vmatmul.mubr.bf16.gmra.mrb[0].mxu0 %v828
      %v967 = vpop.f32.mrb[0].mxu0
      %v968 = vadd.f32 %v752, %v967
      %v969 = vpop.f32.mrb[0].mxu0
      %v970 = vpop.f32.mrb[0].mxu0
      %v971 = vadd.f32 %v755, %v970
      %v972 = vpop.f32.mrb[0].mxu0
      %973 = vmatprep.mubr.bf16.mxu0 0
      %974 = vmatmul.mubr.bf16.gmra.mrb[0].mxu0 %v830
      %v975 = vpop.f32.mrb[0].mxu0
      %v976 = vadd.f32 %v760, %v975
      %v977 = vpop.f32.mrb[0].mxu0
      %v978 = vpop.f32.mrb[0].mxu0
      %v979 = vadd.f32 %v763, %v978
      %v980 = vpop.f32.mrb[0].mxu0
      %981 = vmatprep.mubr.bf16.mxu0 0
      %982 = vmatmul.mubr.bf16.gmra.mrb[0].mxu0 %v832
      %v983 = vpop.f32.mrb[0].mxu0
      %v984 = vadd.f32 %v768, %v983
      %v985 = vpop.f32.mrb[0].mxu0
      %v986 = vpop.f32.mrb[0].mxu0
      %v987 = vadd.f32 %v771, %v986
      %v988 = vpop.f32.mrb[0].mxu0
      %989 = vmatprep.mubr.bf16.mxu0 0
      %990 = vmatmul.mubr.bf16.gmra.mrb[0].mxu0 %v834
      %v991 = vpop.f32.mrb[0].mxu0
      %v992 = vadd.f32 %v776, %v991
      %v993 = vpop.f32.mrb[0].mxu0
      %v994 = vpop.f32.mrb[0].mxu0
      %v995 = vadd.f32 %v779, %v994
      %v996 = vpop.f32.mrb[0].mxu0
      %997 = vmatprep.mubr.bf16.mxu0 0
      %998 = vmatmul.mubr.bf16.gmra.mrb[0].mxu0 %v836
      %v999 = vpop.f32.mrb[0].mxu0
      %v1000 = vadd.f32 %v784, %v999
      %v1001 = vpop.f32.mrb[0].mxu0
      %v1002 = vpop.f32.mrb[0].mxu0
      %v1003 = vadd.f32 %v787, %v1002
      %v1004 = vpop.f32.mrb[0].mxu0
      %1005 = vmatprep.mubr.bf16.mxu0 0
      %1006 = vmatmul.mubr.bf16.gmra.mrb[0].mxu0 %v838
      %v1007 = vpop.f32.mrb[0].mxu0
      %v1008 = vadd.f32 %v792, %v1007
      %v1009 = vpop.f32.mrb[0].mxu0
      %v1010 = vpop.f32.mrb[0].mxu0
      %v1011 = vadd.f32 %v795, %v1010
      %v1012 = vpop.f32.mrb[0].mxu0
      %1013 = vmatprep.mubr.bf16.mxu0 0
      %1014 = vmatmul.mubr.bf16.gmra.mrb[0].mxu0 %v840
      %v1015 = vpop.f32.mrb[0].mxu0
      %v1016 = vadd.f32 %v800, %v1015
      %v1017 = vpop.f32.mrb[0].mxu0
      %v1018 = vpop.f32.mrb[0].mxu0
      %v1019 = vadd.f32 %v803, %v1018
      %v1020 = vpop.f32.mrb[0].mxu0
      %1021 = vdwg.mxu0
      %s1022 = scalar_lea.vmem %s1, 8
      %v1023 = vld [vmem:[%s1022] sm:$0xf]
      %vm1024 = vcmask 1046528
      %v1025 = vrot.slane %v402, 1
      %v1026 = vrot.slane %v403, 1
      %v1027 = vsel %vm1024, %v1025, %v1026
      %v1028 = vrot.slane %v404, 1
      %v1029 = vsel %vm1024, %v1026, %v1028
      %v1030 = vrot.slane %v405, 1
      %v1031 = vsel %vm1024, %v1028, %v1030
      %v1032 = vrot.slane %v406, 1
      %v1033 = vsel %vm1024, %v1030, %v1032
      %v1034 = vrot.slane %v407, 1
      %v1035 = vsel %vm1024, %v1032, %v1034
      %v1036 = vrot.slane %v408, 1
      %v1037 = vsel %vm1024, %v1034, %v1036
      %v1038 = vrot.slane %v409, 1
      %v1039 = vsel %vm1024, %v1036, %v1038
      %v1040 = vrot.slane %v410, 1
      %v1041 = vsel %vm1024, %v1038, %v1040
      %v1042 = vrot.slane %v411, 1
      %v1043 = vsel %vm1024, %v1040, %v1042
      %v1044 = vrot.slane %v412, 1
      %v1045 = vsel %vm1024, %v1042, %v1044
      %v1046 = vrot.slane %v413, 1
      %v1047 = vsel %vm1024, %v1044, %v1046
      %v1048 = vrot.slane %v414, 1
      %v1049 = vsel %vm1024, %v1046, %v1048
      %v1050 = vrot.slane %v415, 1
      %v1051 = vsel %vm1024, %v1048, %v1050
      %v1052 = vrot.slane %v416, 1
      %v1053 = vsel %vm1024, %v1050, %v1052
      %v1054 = vrot.slane %v417, 1
      %v1055 = vsel %vm1024, %v1052, %v1054
      %v1056 = vrot.slane %v418, 1
      %v1057 = vsel %vm1024, %v1054, %v1056
      %v1058 = vrot.slane %v419, 1
      %v1059 = vsel %vm1024, %v1056, %v1058
      %v1060 = vrot.slane %v420, 1
      %v1061 = vsel %vm1024, %v1058, %v1060
      %v1063 = vsel %vm570, %v1027, 0
      %v1066 = vsel %vm570, %v1029, 0
      %v1069 = vsel %vm570, %v1031, 0
      %v1072 = vsel %vm570, %v1033, 0
      %v1075 = vsel %vm570, %v1035, 0
      %v1078 = vsel %vm570, %v1037, 0
      %v1081 = vsel %vm570, %v1039, 0
      %v1084 = vsel %vm570, %v1041, 0
      %v1087 = vsel %vm570, %v1043, 0
      %v1090 = vsel %vm570, %v1045, 0
      %v1093 = vsel %vm570, %v1047, 0
      %v1096 = vsel %vm570, %v1049, 0
      %v1099 = vsel %vm570, %v1051, 0
      %v1102 = vsel %vm570, %v1053, 0
      %v1105 = vsel %vm570, %v1055, 0
      %v1108 = vsel %vm570, %v1057, 0
      %v1111 = vsel %vm570, %v1059, 0
      %v1114 = vsel %vm570, %v1061, 0
      %v1117 = vsel %vm625, %v1023, 0
      %1119 = vmatprep.subr.bf16.mxu0 0
      %1120 = vmatpush1.bf16.msra.mxu0 %v1117
      %1121 = vmatprep.subr.bf16.mxu0 0
      %1122 = vmatpush1.bf16.msra.mxu0 0
      %1123 = vmatprep.subr.bf16.mxu0 0
      %1124 = vmatpush1.bf16.msra.mxu0 0
      %1125 = vmatprep.subr.bf16.mxu0 0
      %1126 = vmatpush1.bf16.msra.mxu0 0
      %1127 = vmatprep.subr.bf16.mxu0 0
      %1128 = vmatpush1.bf16.msra.mxu0 0
      %1129 = vmatprep.subr.bf16.mxu0 0
      %1130 = vmatpush1.bf16.msra.mxu0 0
      %1131 = vmatprep.subr.bf16.mxu0 0
      %1132 = vmatpush1.bf16.msra.mxu0 0
      %1133 = vmatprep.subr.bf16.mxu0 0
      %1134 = vmatpush1.bf16.msra.mxu0 0
      %1135 = vmatprep.subr.bf16.mxu0 0
      %1136 = vmatpush1.bf16.msra.mxu0 0
      %1137 = vmatprep.subr.bf16.mxu0 0
      %1138 = vmatpush1.bf16.msra.mxu0 0
      %1139 = vmatprep.subr.bf16.mxu0 0
      %1140 = vmatpush1.bf16.msra.mxu0 0
      %1141 = vmatprep.subr.bf16.mxu0 0
      %1142 = vmatpush1.bf16.msra.mxu0 0
      %1143 = vmatprep.subr.bf16.mxu0 0
      %1144 = vmatpush1.bf16.msra.mxu0 0
      %1145 = vmatprep.subr.bf16.mxu0 0
      %1146 = vmatpush1.bf16.msra.mxu0 0
      %1147 = vmatprep.subr.bf16.mxu0 0
      %1148 = vmatpush1.bf16.msra.mxu0 0
      %1149 = vmatprep.subr.bf16.mxu0 0
      %1150 = vmatpush1.bf16.msra.mxu0 0
      %1151 = vmatprep.mubr.bf16.mxu0 0
      %1152 = vmatmul.mubr.bf16.gmra.mrb[0].mxu0 %v1063
      %v1153 = vpop.f32.mrb[0].mxu0
      %v1154 = vadd.f32 0.0, %v1153
      %v1155 = vpop.f32.mrb[0].mxu0
      %v1156 = vpop.f32.mrb[0].mxu0
      %v1157 = vadd.f32 0.0, %v1156
      %v1158 = vpop.f32.mrb[0].mxu0
      %1159 = vmatprep.mubr.bf16.mxu0 0
      %1160 = vmatmul.mubr.bf16.gmra.mrb[0].mxu0 %v1066
      %v1161 = vpop.f32.mrb[0].mxu0
      %v1162 = vadd.f32 0.0, %v1161
      %v1163 = vpop.f32.mrb[0].mxu0
      %v1164 = vpop.f32.mrb[0].mxu0
      %v1165 = vadd.f32 0.0, %v1164
      %v1166 = vpop.f32.mrb[0].mxu0
      %1167 = vmatprep.mubr.bf16.mxu0 0
      %1168 = vmatmul.mubr.bf16.gmra.mrb[0].mxu0 %v1069
      %v1169 = vpop.f32.mrb[0].mxu0
      %v1170 = vadd.f32 0.0, %v1169
      %v1171 = vpop.f32.mrb[0].mxu0
      %v1172 = vpop.f32.mrb[0].mxu0
      %v1173 = vadd.f32 0.0, %v1172
      %v1174 = vpop.f32.mrb[0].mxu0
      %1175 = vmatprep.mubr.bf16.mxu0 0
      %1176 = vmatmul.mubr.bf16.gmra.mrb[0].mxu0 %v1072
      %v1177 = vpop.f32.mrb[0].mxu0
      %v1178 = vadd.f32 0.0, %v1177
      %v1179 = vpop.f32.mrb[0].mxu0
      %v1180 = vpop.f32.mrb[0].mxu0
      %v1181 = vadd.f32 0.0, %v1180
      %v1182 = vpop.f32.mrb[0].mxu0
      %1183 = vmatprep.mubr.bf16.mxu0 0
      %1184 = vmatmul.mubr.bf16.gmra.mrb[0].mxu0 %v1075
      %v1185 = vpop.f32.mrb[0].mxu0
      %v1186 = vadd.f32 0.0, %v1185
      %v1187 = vpop.f32.mrb[0].mxu0
      %v1188 = vpop.f32.mrb[0].mxu0
      %v1189 = vadd.f32 0.0, %v1188
      %v1190 = vpop.f32.mrb[0].mxu0
      %1191 = vmatprep.mubr.bf16.mxu0 0
      %1192 = vmatmul.mubr.bf16.gmra.mrb[0].mxu0 %v1078
      %v1193 = vpop.f32.mrb[0].mxu0
      %v1194 = vadd.f32 0.0, %v1193
      %v1195 = vpop.f32.mrb[0].mxu0
      %v1196 = vpop.f32.mrb[0].mxu0
      %v1197 = vadd.f32 0.0, %v1196
      %v1198 = vpop.f32.mrb[0].mxu0
      %1199 = vmatprep.mubr.bf16.mxu0 0
      %1200 = vmatmul.mubr.bf16.gmra.mrb[0].mxu0 %v1081
      %v1201 = vpop.f32.mrb[0].mxu0
      %v1202 = vadd.f32 0.0, %v1201
      %v1203 = vpop.f32.mrb[0].mxu0
      %v1204 = vpop.f32.mrb[0].mxu0
      %v1205 = vadd.f32 0.0, %v1204
      %v1206 = vpop.f32.mrb[0].mxu0
      %1207 = vmatprep.mubr.bf16.mxu0 0
      %1208 = vmatmul.mubr.bf16.gmra.mrb[0].mxu0 %v1084
      %v1209 = vpop.f32.mrb[0].mxu0
      %v1210 = vadd.f32 0.0, %v1209
      %v1211 = vpop.f32.mrb[0].mxu0
      %v1212 = vpop.f32.mrb[0].mxu0
      %v1213 = vadd.f32 0.0, %v1212
      %v1214 = vpop.f32.mrb[0].mxu0
      %1215 = vmatprep.mubr.bf16.mxu0 0
      %1216 = vmatmul.mubr.bf16.gmra.mrb[0].mxu0 %v1087
      %v1217 = vpop.f32.mrb[0].mxu0
      %v1218 = vadd.f32 0.0, %v1217
      %v1219 = vpop.f32.mrb[0].mxu0
      %v1220 = vpop.f32.mrb[0].mxu0
      %v1221 = vadd.f32 0.0, %v1220
      %v1222 = vpop.f32.mrb[0].mxu0
      %1223 = vmatprep.mubr.bf16.mxu0 0
      %1224 = vmatmul.mubr.bf16.gmra.mrb[0].mxu0 %v1090
      %v1225 = vpop.f32.mrb[0].mxu0
      %v1226 = vadd.f32 0.0, %v1225
      %v1227 = vpop.f32.mrb[0].mxu0
      %v1228 = vpop.f32.mrb[0].mxu0
      %v1229 = vadd.f32 0.0, %v1228
      %v1230 = vpop.f32.mrb[0].mxu0
      %1231 = vmatprep.mubr.bf16.mxu0 0
      %1232 = vmatmul.mubr.bf16.gmra.mrb[0].mxu0 %v1093
      %v1233 = vpop.f32.mrb[0].mxu0
      %v1234 = vadd.f32 0.0, %v1233
      %v1235 = vpop.f32.mrb[0].mxu0
      %v1236 = vpop.f32.mrb[0].mxu0
      %v1237 = vadd.f32 0.0, %v1236
      %v1238 = vpop.f32.mrb[0].mxu0
      %1239 = vmatprep.mubr.bf16.mxu0 0
      %1240 = vmatmul.mubr.bf16.gmra.mrb[0].mxu0 %v1096
      %v1241 = vpop.f32.mrb[0].mxu0
      %v1242 = vadd.f32 0.0, %v1241
      %v1243 = vpop.f32.mrb[0].mxu0
      %v1244 = vpop.f32.mrb[0].mxu0
      %v1245 = vadd.f32 0.0, %v1244
      %v1246 = vpop.f32.mrb[0].mxu0
      %1247 = vmatprep.mubr.bf16.mxu0 0
      %1248 = vmatmul.mubr.bf16.gmra.mrb[0].mxu0 %v1099
      %v1249 = vpop.f32.mrb[0].mxu0
      %v1250 = vadd.f32 0.0, %v1249
      %v1251 = vpop.f32.mrb[0].mxu0
      %v1252 = vpop.f32.mrb[0].mxu0
      %v1253 = vadd.f32 0.0, %v1252
      %v1254 = vpop.f32.mrb[0].mxu0
      %1255 = vmatprep.mubr.bf16.mxu0 0
      %1256 = vmatmul.mubr.bf16.gmra.mrb[0].mxu0 %v1102
      %v1257 = vpop.f32.mrb[0].mxu0
      %v1258 = vadd.f32 0.0, %v1257
      %v1259 = vpop.f32.mrb[0].mxu0
      %v1260 = vpop.f32.mrb[0].mxu0
      %v1261 = vadd.f32 0.0, %v1260
      %v1262 = vpop.f32.mrb[0].mxu0
      %1263 = vmatprep.mubr.bf16.mxu0 0
      %1264 = vmatmul.mubr.bf16.gmra.mrb[0].mxu0 %v1105
      %v1265 = vpop.f32.mrb[0].mxu0
      %v1266 = vadd.f32 0.0, %v1265
      %v1267 = vpop.f32.mrb[0].mxu0
      %v1268 = vpop.f32.mrb[0].mxu0
      %v1269 = vadd.f32 0.0, %v1268
      %v1270 = vpop.f32.mrb[0].mxu0
      %1271 = vmatprep.mubr.bf16.mxu0 0
      %1272 = vmatmul.mubr.bf16.gmra.mrb[0].mxu0 %v1108
      %v1273 = vpop.f32.mrb[0].mxu0
      %v1274 = vadd.f32 0.0, %v1273
      %v1275 = vpop.f32.mrb[0].mxu0
      %v1276 = vpop.f32.mrb[0].mxu0
      %v1277 = vadd.f32 0.0, %v1276
      %v1278 = vpop.f32.mrb[0].mxu0
      %1279 = vmatprep.mubr.bf16.mxu0 0
      %1280 = vmatmul.mubr.bf16.gmra.mrb[0].mxu0 %v1111
      %v1281 = vpop.f32.mrb[0].mxu0
      %v1282 = vadd.f32 0.0, %v1281
      %v1283 = vpop.f32.mrb[0].mxu0
      %v1284 = vpop.f32.mrb[0].mxu0
      %v1285 = vadd.f32 0.0, %v1284
      %v1286 = vpop.f32.mrb[0].mxu0
      %1287 = vmatprep.mubr.bf16.mxu0 0
      %1288 = vmatmul.mubr.bf16.gmra.mrb[0].mxu0 %v1114
      %v1289 = vpop.f32.mrb[0].mxu0
      %v1290 = vadd.f32 0.0, %v1289
      %v1291 = vpop.f32.mrb[0].mxu0
      %v1292 = vpop.f32.mrb[0].mxu0
      %v1293 = vadd.f32 0.0, %v1292
      %v1294 = vpop.f32.mrb[0].mxu0
      %1295 = vdwg.mxu0
      %v1296 = vadd.f32 %v880, %v1154
      %v1297 = vadd.f32 %v883, %v1157
      %v1298 = vadd.f32 %v888, %v1162
      %v1299 = vadd.f32 %v891, %v1165
      %v1300 = vadd.f32 %v896, %v1170
      %v1301 = vadd.f32 %v899, %v1173
      %v1302 = vadd.f32 %v904, %v1178
      %v1303 = vadd.f32 %v907, %v1181
      %v1304 = vadd.f32 %v912, %v1186
      %v1305 = vadd.f32 %v915, %v1189
      %v1306 = vadd.f32 %v920, %v1194
      %v1307 = vadd.f32 %v923, %v1197
      %v1308 = vadd.f32 %v928, %v1202
      %v1309 = vadd.f32 %v931, %v1205
      %v1310 = vadd.f32 %v936, %v1210
      %v1311 = vadd.f32 %v939, %v1213
      %v1312 = vadd.f32 %v944, %v1218
      %v1313 = vadd.f32 %v947, %v1221
      %v1314 = vadd.f32 %v952, %v1226
      %v1315 = vadd.f32 %v955, %v1229
      %v1316 = vadd.f32 %v960, %v1234
      %v1317 = vadd.f32 %v963, %v1237
      %v1318 = vadd.f32 %v968, %v1242
      %v1319 = vadd.f32 %v971, %v1245
      %v1320 = vadd.f32 %v976, %v1250
      %v1321 = vadd.f32 %v979, %v1253
      %v1322 = vadd.f32 %v984, %v1258
      %v1323 = vadd.f32 %v987, %v1261
      %v1324 = vadd.f32 %v992, %v1266
      %v1325 = vadd.f32 %v995, %v1269
      %v1326 = vadd.f32 %v1000, %v1274
      %v1327 = vadd.f32 %v1003, %v1277
      %v1328 = vadd.f32 %v1008, %v1282
      %v1329 = vadd.f32 %v1011, %v1285
      %v1330 = vadd.f32 %v1016, %v1290
      %v1331 = vadd.f32 %v1019, %v1293
      %s1332 = scalar_lea.vmem %s1, 12
      %v1333 = vld [vmem:[%s1332] sm:$0xf]
      %v1336 = vunpack.c.l.b16 %v321
      %v1337 = vunpack.c.l.b16 %v322
      %v1338 = vpack.c.b16 %v1336, %v401
      %v1339 = vpack.c.b16 %v1337, %v1337
      %v1340 = vrot.slane %v1338, 1
      %v1341 = vsel %vm1024, %v1058, %v1340
      %v1342 = vrot.slane %v1339, 1
      %v1343 = vsel %vm1024, %v1340, %v1342
      %v1345 = vsel %vm570, %v1341, 0
      %v1348 = vsel %vm570, %v1343, 0
      %v1351 = vsel %vm625, %v1333, 0
      %1353 = vmatprep.subr.bf16.mxu0 0
      %1354 = vmatpush1.bf16.msra.mxu0 %v1351
      %1355 = vmatprep.subr.bf16.mxu0 0
      %1356 = vmatpush1.bf16.msra.mxu0 0
      %1357 = vmatprep.subr.bf16.mxu0 0
      %1358 = vmatpush1.bf16.msra.mxu0 0
      %1359 = vmatprep.subr.bf16.mxu0 0
      %1360 = vmatpush1.bf16.msra.mxu0 0
      %1361 = vmatprep.subr.bf16.mxu0 0
      %1362 = vmatpush1.bf16.msra.mxu0 0
      %1363 = vmatprep.subr.bf16.mxu0 0
      %1364 = vmatpush1.bf16.msra.mxu0 0
      %1365 = vmatprep.subr.bf16.mxu0 0
      %1366 = vmatpush1.bf16.msra.mxu0 0
      %1367 = vmatprep.subr.bf16.mxu0 0
      %1368 = vmatpush1.bf16.msra.mxu0 0
      %1369 = vmatprep.subr.bf16.mxu0 0
      %1370 = vmatpush1.bf16.msra.mxu0 0
      %1371 = vmatprep.subr.bf16.mxu0 0
      %1372 = vmatpush1.bf16.msra.mxu0 0
      %1373 = vmatprep.subr.bf16.mxu0 0
      %1374 = vmatpush1.bf16.msra.mxu0 0
      %1375 = vmatprep.subr.bf16.mxu0 0
      %1376 = vmatpush1.bf16.msra.mxu0 0
      %1377 = vmatprep.subr.bf16.mxu0 0
      %1378 = vmatpush1.bf16.msra.mxu0 0
      %1379 = vmatprep.subr.bf16.mxu0 0
      %1380 = vmatpush1.bf16.msra.mxu0 0
      %1381 = vmatprep.subr.bf16.mxu0 0
      %1382 = vmatpush1.bf16.msra.mxu0 0
      %1383 = vmatprep.subr.bf16.mxu0 0
      %1384 = vmatpush1.bf16.msra.mxu0 0
      %1385 = vmatprep.mubr.bf16.mxu0 0
      %1386 = vmatmul.mubr.bf16.gmra.mrb[0].mxu0 %v1066
      %v1387 = vpop.f32.mrb[0].mxu0
      %v1388 = vadd.f32 0.0, %v1387
      %v1389 = vpop.f32.mrb[0].mxu0
      %v1390 = vpop.f32.mrb[0].mxu0
      %v1391 = vadd.f32 0.0, %v1390
      %v1392 = vpop.f32.mrb[0].mxu0
      %1393 = vmatprep.mubr.bf16.mxu0 0
      %1394 = vmatmul.mubr.bf16.gmra.mrb[0].mxu0 %v1069
      %v1395 = vpop.f32.mrb[0].mxu0
      %v1396 = vadd.f32 0.0, %v1395
      %v1397 = vpop.f32.mrb[0].mxu0
      %v1398 = vpop.f32.mrb[0].mxu0
      %v1399 = vadd.f32 0.0, %v1398
      %v1400 = vpop.f32.mrb[0].mxu0
      %1401 = vmatprep.mubr.bf16.mxu0 0
      %1402 = vmatmul.mubr.bf16.gmra.mrb[0].mxu0 %v1072
      %v1403 = vpop.f32.mrb[0].mxu0
      %v1404 = vadd.f32 0.0, %v1403
      %v1405 = vpop.f32.mrb[0].mxu0
      %v1406 = vpop.f32.mrb[0].mxu0
      %v1407 = vadd.f32 0.0, %v1406
      %v1408 = vpop.f32.mrb[0].mxu0
      %1409 = vmatprep.mubr.bf16.mxu0 0
      %1410 = vmatmul.mubr.bf16.gmra.mrb[0].mxu0 %v1075
      %v1411 = vpop.f32.mrb[0].mxu0
      %v1412 = vadd.f32 0.0, %v1411
      %v1413 = vpop.f32.mrb[0].mxu0
      %v1414 = vpop.f32.mrb[0].mxu0
      %v1415 = vadd.f32 0.0, %v1414
      %v1416 = vpop.f32.mrb[0].mxu0
      %1417 = vmatprep.mubr.bf16.mxu0 0
      %1418 = vmatmul.mubr.bf16.gmra.mrb[0].mxu0 %v1078
      %v1419 = vpop.f32.mrb[0].mxu0
      %v1420 = vadd.f32 0.0, %v1419
      %v1421 = vpop.f32.mrb[0].mxu0
      %v1422 = vpop.f32.mrb[0].mxu0
      %v1423 = vadd.f32 0.0, %v1422
      %v1424 = vpop.f32.mrb[0].mxu0
      %1425 = vmatprep.mubr.bf16.mxu0 0
      %1426 = vmatmul.mubr.bf16.gmra.mrb[0].mxu0 %v1081
      %v1427 = vpop.f32.mrb[0].mxu0
      %v1428 = vadd.f32 0.0, %v1427
      %v1429 = vpop.f32.mrb[0].mxu0
      %v1430 = vpop.f32.mrb[0].mxu0
      %v1431 = vadd.f32 0.0, %v1430
      %v1432 = vpop.f32.mrb[0].mxu0
      %1433 = vmatprep.mubr.bf16.mxu0 0
      %1434 = vmatmul.mubr.bf16.gmra.mrb[0].mxu0 %v1084
      %v1435 = vpop.f32.mrb[0].mxu0
      %v1436 = vadd.f32 0.0, %v1435
      %v1437 = vpop.f32.mrb[0].mxu0
      %v1438 = vpop.f32.mrb[0].mxu0
      %v1439 = vadd.f32 0.0, %v1438
      %v1440 = vpop.f32.mrb[0].mxu0
      %1441 = vmatprep.mubr.bf16.mxu0 0
      %1442 = vmatmul.mubr.bf16.gmra.mrb[0].mxu0 %v1087
      %v1443 = vpop.f32.mrb[0].mxu0
      %v1444 = vadd.f32 0.0, %v1443
      %v1445 = vpop.f32.mrb[0].mxu0
      %v1446 = vpop.f32.mrb[0].mxu0
      %v1447 = vadd.f32 0.0, %v1446
      %v1448 = vpop.f32.mrb[0].mxu0
      %1449 = vmatprep.mubr.bf16.mxu0 0
      %1450 = vmatmul.mubr.bf16.gmra.mrb[0].mxu0 %v1090
      %v1451 = vpop.f32.mrb[0].mxu0
      %v1452 = vadd.f32 0.0, %v1451
      %v1453 = vpop.f32.mrb[0].mxu0
      %v1454 = vpop.f32.mrb[0].mxu0
      %v1455 = vadd.f32 0.0, %v1454
      %v1456 = vpop.f32.mrb[0].mxu0
      %1457 = vmatprep.mubr.bf16.mxu0 0
      %1458 = vmatmul.mubr.bf16.gmra.mrb[0].mxu0 %v1093
      %v1459 = vpop.f32.mrb[0].mxu0
      %v1460 = vadd.f32 0.0, %v1459
      %v1461 = vpop.f32.mrb[0].mxu0
      %v1462 = vpop.f32.mrb[0].mxu0
      %v1463 = vadd.f32 0.0, %v1462
      %v1464 = vpop.f32.mrb[0].mxu0
      %1465 = vmatprep.mubr.bf16.mxu0 0
      %1466 = vmatmul.mubr.bf16.gmra.mrb[0].mxu0 %v1096
      %v1467 = vpop.f32.mrb[0].mxu0
      %v1468 = vadd.f32 0.0, %v1467
      %v1469 = vpop.f32.mrb[0].mxu0
      %v1470 = vpop.f32.mrb[0].mxu0
      %v1471 = vadd.f32 0.0, %v1470
      %v1472 = vpop.f32.mrb[0].mxu0
      %1473 = vmatprep.mubr.bf16.mxu0 0
      %1474 = vmatmul.mubr.bf16.gmra.mrb[0].mxu0 %v1099
      %v1475 = vpop.f32.mrb[0].mxu0
      %v1476 = vadd.f32 0.0, %v1475
      %v1477 = vpop.f32.mrb[0].mxu0
      %v1478 = vpop.f32.mrb[0].mxu0
      %v1479 = vadd.f32 0.0, %v1478
      %v1480 = vpop.f32.mrb[0].mxu0
      %1481 = vmatprep.mubr.bf16.mxu0 0
      %1482 = vmatmul.mubr.bf16.gmra.mrb[0].mxu0 %v1102
      %v1483 = vpop.f32.mrb[0].mxu0
      %v1484 = vadd.f32 0.0, %v1483
      %v1485 = vpop.f32.mrb[0].mxu0
      %v1486 = vpop.f32.mrb[0].mxu0
      %v1487 = vadd.f32 0.0, %v1486
      %v1488 = vpop.f32.mrb[0].mxu0
      %1489 = vmatprep.mubr.bf16.mxu0 0
      %1490 = vmatmul.mubr.bf16.gmra.mrb[0].mxu0 %v1105
      %v1491 = vpop.f32.mrb[0].mxu0
      %v1492 = vadd.f32 0.0, %v1491
      %v1493 = vpop.f32.mrb[0].mxu0
      %v1494 = vpop.f32.mrb[0].mxu0
      %v1495 = vadd.f32 0.0, %v1494
      %v1496 = vpop.f32.mrb[0].mxu0
      %1497 = vmatprep.mubr.bf16.mxu0 0
      %1498 = vmatmul.mubr.bf16.gmra.mrb[0].mxu0 %v1108
      %v1499 = vpop.f32.mrb[0].mxu0
      %v1500 = vadd.f32 0.0, %v1499
      %v1501 = vpop.f32.mrb[0].mxu0
      %v1502 = vpop.f32.mrb[0].mxu0
      %v1503 = vadd.f32 0.0, %v1502
      %v1504 = vpop.f32.mrb[0].mxu0
      %1505 = vmatprep.mubr.bf16.mxu0 0
      %1506 = vmatmul.mubr.bf16.gmra.mrb[0].mxu0 %v1111
      %v1507 = vpop.f32.mrb[0].mxu0
      %v1508 = vadd.f32 0.0, %v1507
      %v1509 = vpop.f32.mrb[0].mxu0
      %v1510 = vpop.f32.mrb[0].mxu0
      %v1511 = vadd.f32 0.0, %v1510
      %v1512 = vpop.f32.mrb[0].mxu0
      %1513 = vmatprep.mubr.bf16.mxu0 0
      %1514 = vmatmul.mubr.bf16.gmra.mrb[0].mxu0 %v1345
      %v1515 = vpop.f32.mrb[0].mxu0
      %v1516 = vadd.f32 0.0, %v1515
      %v1517 = vpop.f32.mrb[0].mxu0
      %v1518 = vpop.f32.mrb[0].mxu0
      %v1519 = vadd.f32 0.0, %v1518
      %v1520 = vpop.f32.mrb[0].mxu0
      %1521 = vmatprep.mubr.bf16.mxu0 0
      %1522 = vmatmul.mubr.bf16.gmra.mrb[0].mxu0 %v1348
      %v1523 = vpop.f32.mrb[0].mxu0
      %v1524 = vadd.f32 0.0, %v1523
      %v1525 = vpop.f32.mrb[0].mxu0
      %v1526 = vpop.f32.mrb[0].mxu0
      %v1527 = vadd.f32 0.0, %v1526
      %v1528 = vpop.f32.mrb[0].mxu0
      %1529 = vdwg.mxu0
      %v1530 = vadd.f32 %v1296, %v1388
      %v1531 = vadd.f32 %v1297, %v1391
      %v1532 = vadd.f32 %v1298, %v1396
      %v1533 = vadd.f32 %v1299, %v1399
      %v1534 = vadd.f32 %v1300, %v1404
      %v1535 = vadd.f32 %v1301, %v1407
      %v1536 = vadd.f32 %v1302, %v1412
      %v1537 = vadd.f32 %v1303, %v1415
      %v1538 = vadd.f32 %v1304, %v1420
      %v1539 = vadd.f32 %v1305, %v1423
      %v1540 = vadd.f32 %v1306, %v1428
      %v1541 = vadd.f32 %v1307, %v1431
      %v1542 = vadd.f32 %v1308, %v1436
      %v1543 = vadd.f32 %v1309, %v1439
      %v1544 = vadd.f32 %v1310, %v1444
      %v1545 = vadd.f32 %v1311, %v1447
      %v1546 = vadd.f32 %v1312, %v1452
      %v1547 = vadd.f32 %v1313, %v1455
      %v1548 = vadd.f32 %v1314, %v1460
      %v1549 = vadd.f32 %v1315, %v1463
      %v1550 = vadd.f32 %v1316, %v1468
      %v1551 = vadd.f32 %v1317, %v1471
      %v1552 = vadd.f32 %v1318, %v1476
      %v1553 = vadd.f32 %v1319, %v1479
      %v1554 = vadd.f32 %v1320, %v1484
      %v1555 = vadd.f32 %v1321, %v1487
      %v1556 = vadd.f32 %v1322, %v1492
      %v1557 = vadd.f32 %v1323, %v1495
      %v1558 = vadd.f32 %v1324, %v1500
      %v1559 = vadd.f32 %v1325, %v1503
      %v1560 = vadd.f32 %v1326, %v1508
      %v1561 = vadd.f32 %v1327, %v1511
      %v1562 = vadd.f32 %v1328, %v1516
      %v1563 = vadd.f32 %v1329, %v1519
      %v1564 = vadd.f32 %v1330, %v1524
      %v1565 = vadd.f32 %v1331, %v1527
      %s1566 = scalar_lea.vmem %s1, 16
      %v1567 = vld [vmem:[%s1566] sm:$0xf]
      %vm1568 = vsmask.f32 6400
      %v1569 = vrot.slane %v434, 1
      %v1570 = vrot.slane %v430, 2
      %v1571 = vor.u32 %v1569, %v1570
      %v1572 = vrot.slane %v442, 1
      %v1573 = vrot.slane %v438, 2
      %v1574 = vor.u32 %v1572, %v1573
      %v1575 = vsel %vm1568, %v1571, %v1574
      %v1576 = vrot.slane %v450, 1
      %v1577 = vrot.slane %v446, 2
      %v1578 = vor.u32 %v1576, %v1577
      %v1579 = vsel %vm1568, %v1574, %v1578
      %v1580 = vrot.slane %v458, 1
      %v1581 = vrot.slane %v454, 2
      %v1582 = vor.u32 %v1580, %v1581
      %v1583 = vsel %vm1568, %v1578, %v1582
      %v1584 = vrot.slane %v466, 1
      %v1585 = vrot.slane %v462, 2
      %v1586 = vor.u32 %v1584, %v1585
      %v1587 = vsel %vm1568, %v1582, %v1586
      %v1588 = vrot.slane %v474, 1
      %v1589 = vrot.slane %v470, 2
      %v1590 = vor.u32 %v1588, %v1589
      %v1591 = vsel %vm1568, %v1586, %v1590
      %v1592 = vrot.slane %v482, 1
      %v1593 = vrot.slane %v478, 2
      %v1594 = vor.u32 %v1592, %v1593
      %v1595 = vsel %vm1568, %v1590, %v1594
      %v1596 = vrot.slane %v490, 1
      %v1597 = vrot.slane %v486, 2
      %v1598 = vor.u32 %v1596, %v1597
      %v1599 = vsel %vm1568, %v1594, %v1598
      %v1600 = vrot.slane %v498, 1
      %v1601 = vrot.slane %v494, 2
      %v1602 = vor.u32 %v1600, %v1601
      %v1603 = vsel %vm1568, %v1598, %v1602
      %v1604 = vrot.slane %v506, 1
      %v1605 = vrot.slane %v502, 2
      %v1606 = vor.u32 %v1604, %v1605
      %v1607 = vsel %vm1568, %v1602, %v1606
      %v1608 = vrot.slane %v514, 1
      %v1609 = vrot.slane %v510, 2
      %v1610 = vor.u32 %v1608, %v1609
      %v1611 = vsel %vm1568, %v1606, %v1610
      %v1612 = vrot.slane %v522, 1
      %v1613 = vrot.slane %v518, 2
      %v1614 = vor.u32 %v1612, %v1613
      %v1615 = vsel %vm1568, %v1610, %v1614
      %v1616 = vrot.slane %v530, 1
      %v1617 = vrot.slane %v526, 2
      %v1618 = vor.u32 %v1616, %v1617
      %v1619 = vsel %vm1568, %v1614, %v1618
      %v1620 = vrot.slane %v538, 1
      %v1621 = vrot.slane %v534, 2
      %v1622 = vor.u32 %v1620, %v1621
      %v1623 = vsel %vm1568, %v1618, %v1622
      %v1624 = vrot.slane %v546, 1
      %v1625 = vrot.slane %v542, 2
      %v1626 = vor.u32 %v1624, %v1625
      %v1627 = vsel %vm1568, %v1622, %v1626
      %v1628 = vrot.slane %v554, 1
      %v1629 = vrot.slane %v550, 2
      %v1630 = vor.u32 %v1628, %v1629
      %v1631 = vsel %vm1568, %v1626, %v1630
      %v1632 = vrot.slane %v562, 1
      %v1633 = vrot.slane %v558, 2
      %v1634 = vor.u32 %v1632, %v1633
      %v1635 = vsel %vm1568, %v1630, %v1634
      %v1637 = vshrl.u32 %v1338, 16
      %v1639 = vrot.slane %v1637, 1
      %v1640 = vshll.u32 %v1338, 16
      %v1642 = vrot.slane %v1640, 2
      %v1643 = vor.u32 %v1639, %v1642
      %v1644 = vsel %vm1568, %v1634, %v1643
      %v1646 = vshrl.u32 %v1339, 16
      %v1648 = vrot.slane %v1646, 1
      %v1649 = vshll.u32 %v1339, 16
      %v1651 = vrot.slane %v1649, 2
      %v1652 = vor.u32 %v1648, %v1651
      %v1653 = vsel %vm1568, %v1643, %v1652
      %v1655 = vsel %vm570, %v1575, 0
      %v1658 = vsel %vm570, %v1579, 0
      %v1661 = vsel %vm570, %v1583, 0
      %v1664 = vsel %vm570, %v1587, 0
      %v1667 = vsel %vm570, %v1591, 0
      %v1670 = vsel %vm570, %v1595, 0
      %v1673 = vsel %vm570, %v1599, 0
      %v1676 = vsel %vm570, %v1603, 0
      %v1679 = vsel %vm570, %v1607, 0
      %v1682 = vsel %vm570, %v1611, 0
      %v1685 = vsel %vm570, %v1615, 0
      %v1688 = vsel %vm570, %v1619, 0
      %v1691 = vsel %vm570, %v1623, 0
      %v1694 = vsel %vm570, %v1627, 0
      %v1697 = vsel %vm570, %v1631, 0
      %v1700 = vsel %vm570, %v1635, 0
      %v1703 = vsel %vm570, %v1644, 0
      %v1706 = vsel %vm570, %v1653, 0
      %v1709 = vsel %vm625, %v1567, 0
      %1711 = vmatprep.subr.bf16.mxu0 0
      %1712 = vmatpush1.bf16.msra.mxu0 %v1709
      %1713 = vmatprep.subr.bf16.mxu0 0
      %1714 = vmatpush1.bf16.msra.mxu0 0
      %1715 = vmatprep.subr.bf16.mxu0 0
      %1716 = vmatpush1.bf16.msra.mxu0 0
      %1717 = vmatprep.subr.bf16.mxu0 0
      %1718 = vmatpush1.bf16.msra.mxu0 0
      %1719 = vmatprep.subr.bf16.mxu0 0
      %1720 = vmatpush1.bf16.msra.mxu0 0
      %1721 = vmatprep.subr.bf16.mxu0 0
      %1722 = vmatpush1.bf16.msra.mxu0 0
      %1723 = vmatprep.subr.bf16.mxu0 0
      %1724 = vmatpush1.bf16.msra.mxu0 0
      %1725 = vmatprep.subr.bf16.mxu0 0
      %1726 = vmatpush1.bf16.msra.mxu0 0
      %1727 = vmatprep.subr.bf16.mxu0 0
      %1728 = vmatpush1.bf16.msra.mxu0 0
      %1729 = vmatprep.subr.bf16.mxu0 0
      %1730 = vmatpush1.bf16.msra.mxu0 0
      %1731 = vmatprep.subr.bf16.mxu0 0
      %1732 = vmatpush1.bf16.msra.mxu0 0
      %1733 = vmatprep.subr.bf16.mxu0 0
      %1734 = vmatpush1.bf16.msra.mxu0 0
      %1735 = vmatprep.subr.bf16.mxu0 0
      %1736 = vmatpush1.bf16.msra.mxu0 0
      %1737 = vmatprep.subr.bf16.mxu0 0
      %1738 = vmatpush1.bf16.msra.mxu0 0
      %1739 = vmatprep.subr.bf16.mxu0 0
      %1740 = vmatpush1.bf16.msra.mxu0 0
      %1741 = vmatprep.subr.bf16.mxu0 0
      %1742 = vmatpush1.bf16.msra.mxu0 0
      %1743 = vmatprep.mubr.bf16.mxu0 0
      %1744 = vmatmul.mubr.bf16.gmra.mrb[0].mxu0 %v1655
      %v1745 = vpop.f32.mrb[0].mxu0
      %v1746 = vadd.f32 0.0, %v1745
      %v1747 = vpop.f32.mrb[0].mxu0
      %v1748 = vpop.f32.mrb[0].mxu0
      %v1749 = vadd.f32 0.0, %v1748
      %v1750 = vpop.f32.mrb[0].mxu0
      %1751 = vmatprep.mubr.bf16.mxu0 0
      %1752 = vmatmul.mubr.bf16.gmra.mrb[0].mxu0 %v1658
      %v1753 = vpop.f32.mrb[0].mxu0
      %v1754 = vadd.f32 0.0, %v1753
      %v1755 = vpop.f32.mrb[0].mxu0
      %v1756 = vpop.f32.mrb[0].mxu0
      %v1757 = vadd.f32 0.0, %v1756
      %v1758 = vpop.f32.mrb[0].mxu0
      %1759 = vmatprep.mubr.bf16.mxu0 0
      %1760 = vmatmul.mubr.bf16.gmra.mrb[0].mxu0 %v1661
      %v1761 = vpop.f32.mrb[0].mxu0
      %v1762 = vadd.f32 0.0, %v1761
      %v1763 = vpop.f32.mrb[0].mxu0
      %v1764 = vpop.f32.mrb[0].mxu0
      %v1765 = vadd.f32 0.0, %v1764
      %v1766 = vpop.f32.mrb[0].mxu0
      %1767 = vmatprep.mubr.bf16.mxu0 0
      %1768 = vmatmul.mubr.bf16.gmra.mrb[0].mxu0 %v1664
      %v1769 = vpop.f32.mrb[0].mxu0
      %v1770 = vadd.f32 0.0, %v1769
      %v1771 = vpop.f32.mrb[0].mxu0
      %v1772 = vpop.f32.mrb[0].mxu0
      %v1773 = vadd.f32 0.0, %v1772
      %v1774 = vpop.f32.mrb[0].mxu0
      %1775 = vmatprep.mubr.bf16.mxu0 0
      %1776 = vmatmul.mubr.bf16.gmra.mrb[0].mxu0 %v1667
      %v1777 = vpop.f32.mrb[0].mxu0
      %v1778 = vadd.f32 0.0, %v1777
      %v1779 = vpop.f32.mrb[0].mxu0
      %v1780 = vpop.f32.mrb[0].mxu0
      %v1781 = vadd.f32 0.0, %v1780
      %v1782 = vpop.f32.mrb[0].mxu0
      %1783 = vmatprep.mubr.bf16.mxu0 0
      %1784 = vmatmul.mubr.bf16.gmra.mrb[0].mxu0 %v1670
      %v1785 = vpop.f32.mrb[0].mxu0
      %v1786 = vadd.f32 0.0, %v1785
      %v1787 = vpop.f32.mrb[0].mxu0
      %v1788 = vpop.f32.mrb[0].mxu0
      %v1789 = vadd.f32 0.0, %v1788
      %v1790 = vpop.f32.mrb[0].mxu0
      %1791 = vmatprep.mubr.bf16.mxu0 0
      %1792 = vmatmul.mubr.bf16.gmra.mrb[0].mxu0 %v1673
      %v1793 = vpop.f32.mrb[0].mxu0
      %v1794 = vadd.f32 0.0, %v1793
      %v1795 = vpop.f32.mrb[0].mxu0
      %v1796 = vpop.f32.mrb[0].mxu0
      %v1797 = vadd.f32 0.0, %v1796
      %v1798 = vpop.f32.mrb[0].mxu0
      %1799 = vmatprep.mubr.bf16.mxu0 0
      %1800 = vmatmul.mubr.bf16.gmra.mrb[0].mxu0 %v1676
      %v1801 = vpop.f32.mrb[0].mxu0
      %v1802 = vadd.f32 0.0, %v1801
      %v1803 = vpop.f32.mrb[0].mxu0
      %v1804 = vpop.f32.mrb[0].mxu0
      %v1805 = vadd.f32 0.0, %v1804
      %v1806 = vpop.f32.mrb[0].mxu0
      %1807 = vmatprep.mubr.bf16.mxu0 0
      %1808 = vmatmul.mubr.bf16.gmra.mrb[0].mxu0 %v1679
      %v1809 = vpop.f32.mrb[0].mxu0
      %v1810 = vadd.f32 0.0, %v1809
      %v1811 = vpop.f32.mrb[0].mxu0
      %v1812 = vpop.f32.mrb[0].mxu0
      %v1813 = vadd.f32 0.0, %v1812
      %v1814 = vpop.f32.mrb[0].mxu0
      %1815 = vmatprep.mubr.bf16.mxu0 0
      %1816 = vmatmul.mubr.bf16.gmra.mrb[0].mxu0 %v1682
      %v1817 = vpop.f32.mrb[0].mxu0
      %v1818 = vadd.f32 0.0, %v1817
      %v1819 = vpop.f32.mrb[0].mxu0
      %v1820 = vpop.f32.mrb[0].mxu0
      %v1821 = vadd.f32 0.0, %v1820
      %v1822 = vpop.f32.mrb[0].mxu0
      %1823 = vmatprep.mubr.bf16.mxu0 0
      %1824 = vmatmul.mubr.bf16.gmra.mrb[0].mxu0 %v1685
      %v1825 = vpop.f32.mrb[0].mxu0
      %v1826 = vadd.f32 0.0, %v1825
      %v1827 = vpop.f32.mrb[0].mxu0
      %v1828 = vpop.f32.mrb[0].mxu0
      %v1829 = vadd.f32 0.0, %v1828
      %v1830 = vpop.f32.mrb[0].mxu0
      %1831 = vmatprep.mubr.bf16.mxu0 0
      %1832 = vmatmul.mubr.bf16.gmra.mrb[0].mxu0 %v1688
      %v1833 = vpop.f32.mrb[0].mxu0
      %v1834 = vadd.f32 0.0, %v1833
      %v1835 = vpop.f32.mrb[0].mxu0
      %v1836 = vpop.f32.mrb[0].mxu0
      %v1837 = vadd.f32 0.0, %v1836
      %v1838 = vpop.f32.mrb[0].mxu0
      %1839 = vmatprep.mubr.bf16.mxu0 0
      %1840 = vmatmul.mubr.bf16.gmra.mrb[0].mxu0 %v1691
      %v1841 = vpop.f32.mrb[0].mxu0
      %v1842 = vadd.f32 0.0, %v1841
      %v1843 = vpop.f32.mrb[0].mxu0
      %v1844 = vpop.f32.mrb[0].mxu0
      %v1845 = vadd.f32 0.0, %v1844
      %v1846 = vpop.f32.mrb[0].mxu0
      %1847 = vmatprep.mubr.bf16.mxu0 0
      %1848 = vmatmul.mubr.bf16.gmra.mrb[0].mxu0 %v1694
      %v1849 = vpop.f32.mrb[0].mxu0
      %v1850 = vadd.f32 0.0, %v1849
      %v1851 = vpop.f32.mrb[0].mxu0
      %v1852 = vpop.f32.mrb[0].mxu0
      %v1853 = vadd.f32 0.0, %v1852
      %v1854 = vpop.f32.mrb[0].mxu0
      %1855 = vmatprep.mubr.bf16.mxu0 0
      %1856 = vmatmul.mubr.bf16.gmra.mrb[0].mxu0 %v1697
      %v1857 = vpop.f32.mrb[0].mxu0
      %v1858 = vadd.f32 0.0, %v1857
      %v1859 = vpop.f32.mrb[0].mxu0
      %v1860 = vpop.f32.mrb[0].mxu0
      %v1861 = vadd.f32 0.0, %v1860
      %v1862 = vpop.f32.mrb[0].mxu0
      %1863 = vmatprep.mubr.bf16.mxu0 0
      %1864 = vmatmul.mubr.bf16.gmra.mrb[0].mxu0 %v1700
      %v1865 = vpop.f32.mrb[0].mxu0
      %v1866 = vadd.f32 0.0, %v1865
      %v1867 = vpop.f32.mrb[0].mxu0
      %v1868 = vpop.f32.mrb[0].mxu0
      %v1869 = vadd.f32 0.0, %v1868
      %v1870 = vpop.f32.mrb[0].mxu0
      %1871 = vmatprep.mubr.bf16.mxu0 0
      %1872 = vmatmul.mubr.bf16.gmra.mrb[0].mxu0 %v1703
      %v1873 = vpop.f32.mrb[0].mxu0
      %v1874 = vadd.f32 0.0, %v1873
      %v1875 = vpop.f32.mrb[0].mxu0
      %v1876 = vpop.f32.mrb[0].mxu0
      %v1877 = vadd.f32 0.0, %v1876
      %v1878 = vpop.f32.mrb[0].mxu0
      %1879 = vmatprep.mubr.bf16.mxu0 0
      %1880 = vmatmul.mubr.bf16.gmra.mrb[0].mxu0 %v1706
      %v1881 = vpop.f32.mrb[0].mxu0
      %v1882 = vadd.f32 0.0, %v1881
      %v1883 = vpop.f32.mrb[0].mxu0
      %v1884 = vpop.f32.mrb[0].mxu0
      %v1885 = vadd.f32 0.0, %v1884
      %v1886 = vpop.f32.mrb[0].mxu0
      %1887 = vdwg.mxu0
      %v1888 = vadd.f32 %v1530, %v1746
      %v1889 = vadd.f32 %v1531, %v1749
      %v1890 = vadd.f32 %v1532, %v1754
      %v1891 = vadd.f32 %v1533, %v1757
      %v1892 = vadd.f32 %v1534, %v1762
      %v1893 = vadd.f32 %v1535, %v1765
      %v1894 = vadd.f32 %v1536, %v1770
      %v1895 = vadd.f32 %v1537, %v1773
      %v1896 = vadd.f32 %v1538, %v1778
      %v1897 = vadd.f32 %v1539, %v1781
      %v1898 = vadd.f32 %v1540, %v1786
      %v1899 = vadd.f32 %v1541, %v1789
      %v1900 = vadd.f32 %v1542, %v1794
      %v1901 = vadd.f32 %v1543, %v1797
      %v1902 = vadd.f32 %v1544, %v1802
      %v1903 = vadd.f32 %v1545, %v1805
      %v1904 = vadd.f32 %v1546, %v1810
      %v1905 = vadd.f32 %v1547, %v1813
      %v1906 = vadd.f32 %v1548, %v1818
      %v1907 = vadd.f32 %v1549, %v1821
      %v1908 = vadd.f32 %v1550, %v1826
      %v1909 = vadd.f32 %v1551, %v1829
      %v1910 = vadd.f32 %v1552, %v1834
      %v1911 = vadd.f32 %v1553, %v1837
      %v1912 = vadd.f32 %v1554, %v1842
      %v1913 = vadd.f32 %v1555, %v1845
      %v1914 = vadd.f32 %v1556, %v1850
      %v1915 = vadd.f32 %v1557, %v1853
      %v1916 = vadd.f32 %v1558, %v1858
      %v1917 = vadd.f32 %v1559, %v1861
      %v1918 = vadd.f32 %v1560, %v1866
      %v1919 = vadd.f32 %v1561, %v1869
      %v1920 = vadd.f32 %v1562, %v1874
      %v1921 = vadd.f32 %v1563, %v1877
      %v1922 = vadd.f32 %v1564, %v1882
      %v1923 = vadd.f32 %v1565, %v1885
      %s1924 = scalar_lea.vmem %s1, 20
      %v1925 = vld [vmem:[%s1924] sm:$0xf]
      %vm1926 = vcmask 1045504
      %v1927 = vrot.slane %v403, 2
      %v1928 = vrot.slane %v404, 2
      %v1929 = vsel %vm1926, %v1927, %v1928
      %v1930 = vrot.slane %v405, 2
      %v1931 = vsel %vm1926, %v1928, %v1930
      %v1932 = vrot.slane %v406, 2
      %v1933 = vsel %vm1926, %v1930, %v1932
      %v1934 = vrot.slane %v407, 2
      %v1935 = vsel %vm1926, %v1932, %v1934
      %v1936 = vrot.slane %v408, 2
      %v1937 = vsel %vm1926, %v1934, %v1936
      %v1938 = vrot.slane %v409, 2
      %v1939 = vsel %vm1926, %v1936, %v1938
      %v1940 = vrot.slane %v410, 2
      %v1941 = vsel %vm1926, %v1938, %v1940
      %v1942 = vrot.slane %v411, 2
      %v1943 = vsel %vm1926, %v1940, %v1942
      %v1944 = vrot.slane %v412, 2
      %v1945 = vsel %vm1926, %v1942, %v1944
      %v1946 = vrot.slane %v413, 2
      %v1947 = vsel %vm1926, %v1944, %v1946
      %v1948 = vrot.slane %v414, 2
      %v1949 = vsel %vm1926, %v1946, %v1948
      %v1950 = vrot.slane %v415, 2
      %v1951 = vsel %vm1926, %v1948, %v1950
      %v1952 = vrot.slane %v416, 2
      %v1953 = vsel %vm1926, %v1950, %v1952
      %v1954 = vrot.slane %v417, 2
      %v1955 = vsel %vm1926, %v1952, %v1954
      %v1956 = vrot.slane %v418, 2
      %v1957 = vsel %vm1926, %v1954, %v1956
      %v1958 = vrot.slane %v419, 2
      %v1959 = vsel %vm1926, %v1956, %v1958
      %v1960 = vrot.slane %v1338, 2
      %v1961 = vsel %vm1926, %v1958, %v1960
      %v1962 = vrot.slane %v1339, 2
      %v1963 = vsel %vm1926, %v1960, %v1962
      %v1965 = vsel %vm570, %v1929, 0
      %v1968 = vsel %vm570, %v1931, 0
      %v1971 = vsel %vm570, %v1933, 0
      %v1974 = vsel %vm570, %v1935, 0
      %v1977 = vsel %vm570, %v1937, 0
      %v1980 = vsel %vm570, %v1939, 0
      %v1983 = vsel %vm570, %v1941, 0
      %v1986 = vsel %vm570, %v1943, 0
      %v1989 = vsel %vm570, %v1945, 0
      %v1992 = vsel %vm570, %v1947, 0
      %v1995 = vsel %vm570, %v1949, 0
      %v1998 = vsel %vm570, %v1951, 0
      %v2001 = vsel %vm570, %v1953, 0
      %v2004 = vsel %vm570, %v1955, 0
      %v2007 = vsel %vm570, %v1957, 0
      %v2010 = vsel %vm570, %v1959, 0
      %v2013 = vsel %vm570, %v1961, 0
      %v2016 = vsel %vm570, %v1963, 0
      %v2019 = vsel %vm625, %v1925, 0
      %2021 = vmatprep.subr.bf16.mxu0 0
      %2022 = vmatpush1.bf16.msra.mxu0 %v2019
      %2023 = vmatprep.subr.bf16.mxu0 0
      %2024 = vmatpush1.bf16.msra.mxu0 0
      %2025 = vmatprep.subr.bf16.mxu0 0
      %2026 = vmatpush1.bf16.msra.mxu0 0
      %2027 = vmatprep.subr.bf16.mxu0 0
      %2028 = vmatpush1.bf16.msra.mxu0 0
      %2029 = vmatprep.subr.bf16.mxu0 0
      %2030 = vmatpush1.bf16.msra.mxu0 0
      %2031 = vmatprep.subr.bf16.mxu0 0
      %2032 = vmatpush1.bf16.msra.mxu0 0
      %2033 = vmatprep.subr.bf16.mxu0 0
      %2034 = vmatpush1.bf16.msra.mxu0 0
      %2035 = vmatprep.subr.bf16.mxu0 0
      %2036 = vmatpush1.bf16.msra.mxu0 0
      %2037 = vmatprep.subr.bf16.mxu0 0
      %2038 = vmatpush1.bf16.msra.mxu0 0
      %2039 = vmatprep.subr.bf16.mxu0 0
      %2040 = vmatpush1.bf16.msra.mxu0 0
      %2041 = vmatprep.subr.bf16.mxu0 0
      %2042 = vmatpush1.bf16.msra.mxu0 0
      %2043 = vmatprep.subr.bf16.mxu0 0
      %2044 = vmatpush1.bf16.msra.mxu0 0
      %2045 = vmatprep.subr.bf16.mxu0 0
      %2046 = vmatpush1.bf16.msra.mxu0 0
      %2047 = vmatprep.subr.bf16.mxu0 0
      %2048 = vmatpush1.bf16.msra.mxu0 0
      %2049 = vmatprep.subr.bf16.mxu0 0
      %2050 = vmatpush1.bf16.msra.mxu0 0
      %2051 = vmatprep.subr.bf16.mxu0 0
      %2052 = vmatpush1.bf16.msra.mxu0 0
      %2053 = vmatprep.mubr.bf16.mxu0 0
      %2054 = vmatmul.mubr.bf16.gmra.mrb[0].mxu0 %v1965
      %v2055 = vpop.f32.mrb[0].mxu0
      %v2056 = vadd.f32 0.0, %v2055
      %v2057 = vpop.f32.mrb[0].mxu0
      %v2058 = vpop.f32.mrb[0].mxu0
      %v2059 = vadd.f32 0.0, %v2058
      %v2060 = vpop.f32.mrb[0].mxu0
      %2061 = vmatprep.mubr.bf16.mxu0 0
      %2062 = vmatmul.mubr.bf16.gmra.mrb[0].mxu0 %v1968
      %v2063 = vpop.f32.mrb[0].mxu0
      %v2064 = vadd.f32 0.0, %v2063
      %v2065 = vpop.f32.mrb[0].mxu0
      %v2066 = vpop.f32.mrb[0].mxu0
      %v2067 = vadd.f32 0.0, %v2066
      %v2068 = vpop.f32.mrb[0].mxu0
      %2069 = vmatprep.mubr.bf16.mxu0 0
      %2070 = vmatmul.mubr.bf16.gmra.mrb[0].mxu0 %v1971
      %v2071 = vpop.f32.mrb[0].mxu0
      %v2072 = vadd.f32 0.0, %v2071
      %v2073 = vpop.f32.mrb[0].mxu0
      %v2074 = vpop.f32.mrb[0].mxu0
      %v2075 = vadd.f32 0.0, %v2074
      %v2076 = vpop.f32.mrb[0].mxu0
      %2077 = vmatprep.mubr.bf16.mxu0 0
      %2078 = vmatmul.mubr.bf16.gmra.mrb[0].mxu0 %v1974
      %v2079 = vpop.f32.mrb[0].mxu0
      %v2080 = vadd.f32 0.0, %v2079
      %v2081 = vpop.f32.mrb[0].mxu0
      %v2082 = vpop.f32.mrb[0].mxu0
      %v2083 = vadd.f32 0.0, %v2082
      %v2084 = vpop.f32.mrb[0].mxu0
      %2085 = vmatprep.mubr.bf16.mxu0 0
      %2086 = vmatmul.mubr.bf16.gmra.mrb[0].mxu0 %v1977
      %v2087 = vpop.f32.mrb[0].mxu0
      %v2088 = vadd.f32 0.0, %v2087
      %v2089 = vpop.f32.mrb[0].mxu0
      %v2090 = vpop.f32.mrb[0].mxu0
      %v2091 = vadd.f32 0.0, %v2090
      %v2092 = vpop.f32.mrb[0].mxu0
      %2093 = vmatprep.mubr.bf16.mxu0 0
      %2094 = vmatmul.mubr.bf16.gmra.mrb[0].mxu0 %v1980
      %v2095 = vpop.f32.mrb[0].mxu0
      %v2096 = vadd.f32 0.0, %v2095
      %v2097 = vpop.f32.mrb[0].mxu0
      %v2098 = vpop.f32.mrb[0].mxu0
      %v2099 = vadd.f32 0.0, %v2098
      %v2100 = vpop.f32.mrb[0].mxu0
      %2101 = vmatprep.mubr.bf16.mxu0 0
      %2102 = vmatmul.mubr.bf16.gmra.mrb[0].mxu0 %v1983
      %v2103 = vpop.f32.mrb[0].mxu0
      %v2104 = vadd.f32 0.0, %v2103
      %v2105 = vpop.f32.mrb[0].mxu0
      %v2106 = vpop.f32.mrb[0].mxu0
      %v2107 = vadd.f32 0.0, %v2106
      %v2108 = vpop.f32.mrb[0].mxu0
      %2109 = vmatprep.mubr.bf16.mxu0 0
      %2110 = vmatmul.mubr.bf16.gmra.mrb[0].mxu0 %v1986
      %v2111 = vpop.f32.mrb[0].mxu0
      %v2112 = vadd.f32 0.0, %v2111
      %v2113 = vpop.f32.mrb[0].mxu0
      %v2114 = vpop.f32.mrb[0].mxu0
      %v2115 = vadd.f32 0.0, %v2114
      %v2116 = vpop.f32.mrb[0].mxu0
      %2117 = vmatprep.mubr.bf16.mxu0 0
      %2118 = vmatmul.mubr.bf16.gmra.mrb[0].mxu0 %v1989
      %v2119 = vpop.f32.mrb[0].mxu0
      %v2120 = vadd.f32 0.0, %v2119
      %v2121 = vpop.f32.mrb[0].mxu0
      %v2122 = vpop.f32.mrb[0].mxu0
      %v2123 = vadd.f32 0.0, %v2122
      %v2124 = vpop.f32.mrb[0].mxu0
      %2125 = vmatprep.mubr.bf16.mxu0 0
      %2126 = vmatmul.mubr.bf16.gmra.mrb[0].mxu0 %v1992
      %v2127 = vpop.f32.mrb[0].mxu0
      %v2128 = vadd.f32 0.0, %v2127
      %v2129 = vpop.f32.mrb[0].mxu0
      %v2130 = vpop.f32.mrb[0].mxu0
      %v2131 = vadd.f32 0.0, %v2130
      %v2132 = vpop.f32.mrb[0].mxu0
      %2133 = vmatprep.mubr.bf16.mxu0 0
      %2134 = vmatmul.mubr.bf16.gmra.mrb[0].mxu0 %v1995
      %v2135 = vpop.f32.mrb[0].mxu0
      %v2136 = vadd.f32 0.0, %v2135
      %v2137 = vpop.f32.mrb[0].mxu0
      %v2138 = vpop.f32.mrb[0].mxu0
      %v2139 = vadd.f32 0.0, %v2138
      %v2140 = vpop.f32.mrb[0].mxu0
      %2141 = vmatprep.mubr.bf16.mxu0 0
      %2142 = vmatmul.mubr.bf16.gmra.mrb[0].mxu0 %v1998
      %v2143 = vpop.f32.mrb[0].mxu0
      %v2144 = vadd.f32 0.0, %v2143
      %v2145 = vpop.f32.mrb[0].mxu0
      %v2146 = vpop.f32.mrb[0].mxu0
      %v2147 = vadd.f32 0.0, %v2146
      %v2148 = vpop.f32.mrb[0].mxu0
      %2149 = vmatprep.mubr.bf16.mxu0 0
      %2150 = vmatmul.mubr.bf16.gmra.mrb[0].mxu0 %v2001
      %v2151 = vpop.f32.mrb[0].mxu0
      %v2152 = vadd.f32 0.0, %v2151
      %v2153 = vpop.f32.mrb[0].mxu0
      %v2154 = vpop.f32.mrb[0].mxu0
      %v2155 = vadd.f32 0.0, %v2154
      %v2156 = vpop.f32.mrb[0].mxu0
      %2157 = vmatprep.mubr.bf16.mxu0 0
      %2158 = vmatmul.mubr.bf16.gmra.mrb[0].mxu0 %v2004
      %v2159 = vpop.f32.mrb[0].mxu0
      %v2160 = vadd.f32 0.0, %v2159
      %v2161 = vpop.f32.mrb[0].mxu0
      %v2162 = vpop.f32.mrb[0].mxu0
      %v2163 = vadd.f32 0.0, %v2162
      %v2164 = vpop.f32.mrb[0].mxu0
      %2165 = vmatprep.mubr.bf16.mxu0 0
      %2166 = vmatmul.mubr.bf16.gmra.mrb[0].mxu0 %v2007
      %v2167 = vpop.f32.mrb[0].mxu0
      %v2168 = vadd.f32 0.0, %v2167
      %v2169 = vpop.f32.mrb[0].mxu0
      %v2170 = vpop.f32.mrb[0].mxu0
      %v2171 = vadd.f32 0.0, %v2170
      %v2172 = vpop.f32.mrb[0].mxu0
      %2173 = vmatprep.mubr.bf16.mxu0 0
      %2174 = vmatmul.mubr.bf16.gmra.mrb[0].mxu0 %v2010
      %v2175 = vpop.f32.mrb[0].mxu0
      %v2176 = vadd.f32 0.0, %v2175
      %v2177 = vpop.f32.mrb[0].mxu0
      %v2178 = vpop.f32.mrb[0].mxu0
      %v2179 = vadd.f32 0.0, %v2178
      %v2180 = vpop.f32.mrb[0].mxu0
      %2181 = vmatprep.mubr.bf16.mxu0 0
      %2182 = vmatmul.mubr.bf16.gmra.mrb[0].mxu0 %v2013
      %v2183 = vpop.f32.mrb[0].mxu0
      %v2184 = vadd.f32 0.0, %v2183
      %v2185 = vpop.f32.mrb[0].mxu0
      %v2186 = vpop.f32.mrb[0].mxu0
      %v2187 = vadd.f32 0.0, %v2186
      %v2188 = vpop.f32.mrb[0].mxu0
      %2189 = vmatprep.mubr.bf16.mxu0 0
      %2190 = vmatmul.mubr.bf16.gmra.mrb[0].mxu0 %v2016
      %v2191 = vpop.f32.mrb[0].mxu0
      %v2192 = vadd.f32 0.0, %v2191
      %v2193 = vpop.f32.mrb[0].mxu0
      %v2194 = vpop.f32.mrb[0].mxu0
      %v2195 = vadd.f32 0.0, %v2194
      %v2196 = vpop.f32.mrb[0].mxu0
      %2197 = vdwg.mxu0
      %v2198 = vadd.f32 %v1888, %v2056
      %v2199 = vadd.f32 %v1889, %v2059
      %v2200 = vadd.f32 %v1890, %v2064
      %v2201 = vadd.f32 %v1891, %v2067
      %v2202 = vadd.f32 %v1892, %v2072
      %v2203 = vadd.f32 %v1893, %v2075
      %v2204 = vadd.f32 %v1894, %v2080
      %v2205 = vadd.f32 %v1895, %v2083
      %v2206 = vadd.f32 %v1896, %v2088
      %v2207 = vadd.f32 %v1897, %v2091
      %v2208 = vadd.f32 %v1898, %v2096
      %v2209 = vadd.f32 %v1899, %v2099
      %v2210 = vadd.f32 %v1900, %v2104
      %v2211 = vadd.f32 %v1901, %v2107
      %v2212 = vadd.f32 %v1902, %v2112
      %v2213 = vadd.f32 %v1903, %v2115
      %v2214 = vadd.f32 %v1904, %v2120
      %v2215 = vadd.f32 %v1905, %v2123
      %v2216 = vadd.f32 %v1906, %v2128
      %v2217 = vadd.f32 %v1907, %v2131
      %v2218 = vadd.f32 %v1908, %v2136
      %v2219 = vadd.f32 %v1909, %v2139
      %v2220 = vadd.f32 %v1910, %v2144
      %v2221 = vadd.f32 %v1911, %v2147
      %v2222 = vadd.f32 %v1912, %v2152
      %v2223 = vadd.f32 %v1913, %v2155
      %v2224 = vadd.f32 %v1914, %v2160
      %v2225 = vadd.f32 %v1915, %v2163
      %v2226 = vadd.f32 %v1916, %v2168
      %v2227 = vadd.f32 %v1917, %v2171
      %v2228 = vadd.f32 %v1918, %v2176
      %v2229 = vadd.f32 %v1919, %v2179
      %v2230 = vadd.f32 %v1920, %v2184
      %v2231 = vadd.f32 %v1921, %v2187
      %v2232 = vadd.f32 %v1922, %v2192
      %v2233 = vadd.f32 %v1923, %v2195
      %s2234 = scalar_lea.vmem %s1, 24
      %v2235 = vld [vmem:[%s2234] sm:$0xf]
      %v2238 = vunpack.c.l.b16 %v323
      %v2239 = vunpack.c.l.b16 %v324
      %v2240 = vpack.c.b16 %v2238, %v1337
      %v2241 = vpack.c.b16 %v2239, %v2239
      %v2242 = vrot.slane %v2240, 2
      %v2243 = vsel %vm1926, %v1960, %v2242
      %v2244 = vrot.slane %v2241, 2
      %v2245 = vsel %vm1926, %v2242, %v2244
      %v2247 = vsel %vm570, %v2243, 0
      %v2250 = vsel %vm570, %v2245, 0
      %v2253 = vsel %vm625, %v2235, 0
      %2255 = vmatprep.subr.bf16.mxu0 0
      %2256 = vmatpush1.bf16.msra.mxu0 %v2253
      %2257 = vmatprep.subr.bf16.mxu0 0
      %2258 = vmatpush1.bf16.msra.mxu0 0
      %2259 = vmatprep.subr.bf16.mxu0 0
      %2260 = vmatpush1.bf16.msra.mxu0 0
      %2261 = vmatprep.subr.bf16.mxu0 0
      %2262 = vmatpush1.bf16.msra.mxu0 0
      %2263 = vmatprep.subr.bf16.mxu0 0
      %2264 = vmatpush1.bf16.msra.mxu0 0
      %2265 = vmatprep.subr.bf16.mxu0 0
      %2266 = vmatpush1.bf16.msra.mxu0 0
      %2267 = vmatprep.subr.bf16.mxu0 0
      %2268 = vmatpush1.bf16.msra.mxu0 0
      %2269 = vmatprep.subr.bf16.mxu0 0
      %2270 = vmatpush1.bf16.msra.mxu0 0
      %2271 = vmatprep.subr.bf16.mxu0 0
      %2272 = vmatpush1.bf16.msra.mxu0 0
      %2273 = vmatprep.subr.bf16.mxu0 0
      %2274 = vmatpush1.bf16.msra.mxu0 0
      %2275 = vmatprep.subr.bf16.mxu0 0
      %2276 = vmatpush1.bf16.msra.mxu0 0
      %2277 = vmatprep.subr.bf16.mxu0 0
      %2278 = vmatpush1.bf16.msra.mxu0 0
      %2279 = vmatprep.subr.bf16.mxu0 0
      %2280 = vmatpush1.bf16.msra.mxu0 0
      %2281 = vmatprep.subr.bf16.mxu0 0
      %2282 = vmatpush1.bf16.msra.mxu0 0
      %2283 = vmatprep.subr.bf16.mxu0 0
      %2284 = vmatpush1.bf16.msra.mxu0 0
      %2285 = vmatprep.subr.bf16.mxu0 0
      %2286 = vmatpush1.bf16.msra.mxu0 0
      %2287 = vmatprep.mubr.bf16.mxu0 0
      %2288 = vmatmul.mubr.bf16.gmra.mrb[0].mxu0 %v1968
      %v2289 = vpop.f32.mrb[0].mxu0
      %v2290 = vadd.f32 0.0, %v2289
      %v2291 = vpop.f32.mrb[0].mxu0
      %v2292 = vpop.f32.mrb[0].mxu0
      %v2293 = vadd.f32 0.0, %v2292
      %v2294 = vpop.f32.mrb[0].mxu0
      %2295 = vmatprep.mubr.bf16.mxu0 0
      %2296 = vmatmul.mubr.bf16.gmra.mrb[0].mxu0 %v1971
      %v2297 = vpop.f32.mrb[0].mxu0
      %v2298 = vadd.f32 0.0, %v2297
      %v2299 = vpop.f32.mrb[0].mxu0
      %v2300 = vpop.f32.mrb[0].mxu0
      %v2301 = vadd.f32 0.0, %v2300
      %v2302 = vpop.f32.mrb[0].mxu0
      %2303 = vmatprep.mubr.bf16.mxu0 0
      %2304 = vmatmul.mubr.bf16.gmra.mrb[0].mxu0 %v1974
      %v2305 = vpop.f32.mrb[0].mxu0
      %v2306 = vadd.f32 0.0, %v2305
      %v2307 = vpop.f32.mrb[0].mxu0
      %v2308 = vpop.f32.mrb[0].mxu0
      %v2309 = vadd.f32 0.0, %v2308
      %v2310 = vpop.f32.mrb[0].mxu0
      %2311 = vmatprep.mubr.bf16.mxu0 0
      %2312 = vmatmul.mubr.bf16.gmra.mrb[0].mxu0 %v1977
      %v2313 = vpop.f32.mrb[0].mxu0
      %v2314 = vadd.f32 0.0, %v2313
      %v2315 = vpop.f32.mrb[0].mxu0
      %v2316 = vpop.f32.mrb[0].mxu0
      %v2317 = vadd.f32 0.0, %v2316
      %v2318 = vpop.f32.mrb[0].mxu0
      %2319 = vmatprep.mubr.bf16.mxu0 0
      %2320 = vmatmul.mubr.bf16.gmra.mrb[0].mxu0 %v1980
      %v2321 = vpop.f32.mrb[0].mxu0
      %v2322 = vadd.f32 0.0, %v2321
      %v2323 = vpop.f32.mrb[0].mxu0
      %v2324 = vpop.f32.mrb[0].mxu0
      %v2325 = vadd.f32 0.0, %v2324
      %v2326 = vpop.f32.mrb[0].mxu0
      %2327 = vmatprep.mubr.bf16.mxu0 0
      %2328 = vmatmul.mubr.bf16.gmra.mrb[0].mxu0 %v1983
      %v2329 = vpop.f32.mrb[0].mxu0
      %v2330 = vadd.f32 0.0, %v2329
      %v2331 = vpop.f32.mrb[0].mxu0
      %v2332 = vpop.f32.mrb[0].mxu0
      %v2333 = vadd.f32 0.0, %v2332
      %v2334 = vpop.f32.mrb[0].mxu0
      %2335 = vmatprep.mubr.bf16.mxu0 0
      %2336 = vmatmul.mubr.bf16.gmra.mrb[0].mxu0 %v1986
      %v2337 = vpop.f32.mrb[0].mxu0
      %v2338 = vadd.f32 0.0, %v2337
      %v2339 = vpop.f32.mrb[0].mxu0
      %v2340 = vpop.f32.mrb[0].mxu0
      %v2341 = vadd.f32 0.0, %v2340
      %v2342 = vpop.f32.mrb[0].mxu0
      %2343 = vmatprep.mubr.bf16.mxu0 0
      %2344 = vmatmul.mubr.bf16.gmra.mrb[0].mxu0 %v1989
      %v2345 = vpop.f32.mrb[0].mxu0
      %v2346 = vadd.f32 0.0, %v2345
      %v2347 = vpop.f32.mrb[0].mxu0
      %v2348 = vpop.f32.mrb[0].mxu0
      %v2349 = vadd.f32 0.0, %v2348
      %v2350 = vpop.f32.mrb[0].mxu0
      %2351 = vmatprep.mubr.bf16.mxu0 0
      %2352 = vmatmul.mubr.bf16.gmra.mrb[0].mxu0 %v1992
      %v2353 = vpop.f32.mrb[0].mxu0
      %v2354 = vadd.f32 0.0, %v2353
      %v2355 = vpop.f32.mrb[0].mxu0
      %v2356 = vpop.f32.mrb[0].mxu0
      %v2357 = vadd.f32 0.0, %v2356
      %v2358 = vpop.f32.mrb[0].mxu0
      %2359 = vmatprep.mubr.bf16.mxu0 0
      %2360 = vmatmul.mubr.bf16.gmra.mrb[0].mxu0 %v1995
      %v2361 = vpop.f32.mrb[0].mxu0
      %v2362 = vadd.f32 0.0, %v2361
      %v2363 = vpop.f32.mrb[0].mxu0
      %v2364 = vpop.f32.mrb[0].mxu0
      %v2365 = vadd.f32 0.0, %v2364
      %v2366 = vpop.f32.mrb[0].mxu0
      %2367 = vmatprep.mubr.bf16.mxu0 0
      %2368 = vmatmul.mubr.bf16.gmra.mrb[0].mxu0 %v1998
      %v2369 = vpop.f32.mrb[0].mxu0
      %v2370 = vadd.f32 0.0, %v2369
      %v2371 = vpop.f32.mrb[0].mxu0
      %v2372 = vpop.f32.mrb[0].mxu0
      %v2373 = vadd.f32 0.0, %v2372
      %v2374 = vpop.f32.mrb[0].mxu0
      %2375 = vmatprep.mubr.bf16.mxu0 0
      %2376 = vmatmul.mubr.bf16.gmra.mrb[0].mxu0 %v2001
      %v2377 = vpop.f32.mrb[0].mxu0
      %v2378 = vadd.f32 0.0, %v2377
      %v2379 = vpop.f32.mrb[0].mxu0
      %v2380 = vpop.f32.mrb[0].mxu0
      %v2381 = vadd.f32 0.0, %v2380
      %v2382 = vpop.f32.mrb[0].mxu0
      %2383 = vmatprep.mubr.bf16.mxu0 0
      %2384 = vmatmul.mubr.bf16.gmra.mrb[0].mxu0 %v2004
      %v2385 = vpop.f32.mrb[0].mxu0
      %v2386 = vadd.f32 0.0, %v2385
      %v2387 = vpop.f32.mrb[0].mxu0
      %v2388 = vpop.f32.mrb[0].mxu0
      %v2389 = vadd.f32 0.0, %v2388
      %v2390 = vpop.f32.mrb[0].mxu0
      %2391 = vmatprep.mubr.bf16.mxu0 0
      %2392 = vmatmul.mubr.bf16.gmra.mrb[0].mxu0 %v2007
      %v2393 = vpop.f32.mrb[0].mxu0
      %v2394 = vadd.f32 0.0, %v2393
      %v2395 = vpop.f32.mrb[0].mxu0
      %v2396 = vpop.f32.mrb[0].mxu0
      %v2397 = vadd.f32 0.0, %v2396
      %v2398 = vpop.f32.mrb[0].mxu0
      %2399 = vmatprep.mubr.bf16.mxu0 0
      %2400 = vmatmul.mubr.bf16.gmra.mrb[0].mxu0 %v2010
      %v2401 = vpop.f32.mrb[0].mxu0
      %v2402 = vadd.f32 0.0, %v2401
      %v2403 = vpop.f32.mrb[0].mxu0
      %v2404 = vpop.f32.mrb[0].mxu0
      %v2405 = vadd.f32 0.0, %v2404
      %v2406 = vpop.f32.mrb[0].mxu0
      %2407 = vmatprep.mubr.bf16.mxu0 0
      %2408 = vmatmul.mubr.bf16.gmra.mrb[0].mxu0 %v2013
      %v2409 = vpop.f32.mrb[0].mxu0
      %v2410 = vadd.f32 0.0, %v2409
      %v2411 = vpop.f32.mrb[0].mxu0
      %v2412 = vpop.f32.mrb[0].mxu0
      %v2413 = vadd.f32 0.0, %v2412
      %v2414 = vpop.f32.mrb[0].mxu0
      %2415 = vmatprep.mubr.bf16.mxu0 0
      %2416 = vmatmul.mubr.bf16.gmra.mrb[0].mxu0 %v2247
      %v2417 = vpop.f32.mrb[0].mxu0
      %v2418 = vadd.f32 0.0, %v2417
      %v2419 = vpop.f32.mrb[0].mxu0
      %v2420 = vpop.f32.mrb[0].mxu0
      %v2421 = vadd.f32 0.0, %v2420
      %v2422 = vpop.f32.mrb[0].mxu0
      %2423 = vmatprep.mubr.bf16.mxu0 0
      %2424 = vmatmul.mubr.bf16.gmra.mrb[0].mxu0 %v2250
      %v2425 = vpop.f32.mrb[0].mxu0
      %v2426 = vadd.f32 0.0, %v2425
      %v2427 = vpop.f32.mrb[0].mxu0
      %v2428 = vpop.f32.mrb[0].mxu0
      %v2429 = vadd.f32 0.0, %v2428
      %v2430 = vpop.f32.mrb[0].mxu0
      %2431 = vdwg.mxu0
      %v2432 = vadd.f32 %v2198, %v2290
      %v2433 = vadd.f32 %v2199, %v2293
      %v2434 = vadd.f32 %v2200, %v2298
      %v2435 = vadd.f32 %v2201, %v2301
      %v2436 = vadd.f32 %v2202, %v2306
      %v2437 = vadd.f32 %v2203, %v2309
      %v2438 = vadd.f32 %v2204, %v2314
      %v2439 = vadd.f32 %v2205, %v2317
      %v2440 = vadd.f32 %v2206, %v2322
      %v2441 = vadd.f32 %v2207, %v2325
      %v2442 = vadd.f32 %v2208, %v2330
      %v2443 = vadd.f32 %v2209, %v2333
      %v2444 = vadd.f32 %v2210, %v2338
      %v2445 = vadd.f32 %v2211, %v2341
      %v2446 = vadd.f32 %v2212, %v2346
      %v2447 = vadd.f32 %v2213, %v2349
      %v2448 = vadd.f32 %v2214, %v2354
      %v2449 = vadd.f32 %v2215, %v2357
      %v2450 = vadd.f32 %v2216, %v2362
      %v2451 = vadd.f32 %v2217, %v2365
      %v2452 = vadd.f32 %v2218, %v2370
      %v2453 = vadd.f32 %v2219, %v2373
      %v2454 = vadd.f32 %v2220, %v2378
      %v2455 = vadd.f32 %v2221, %v2381
      %v2456 = vadd.f32 %v2222, %v2386
      %v2457 = vadd.f32 %v2223, %v2389
      %v2458 = vadd.f32 %v2224, %v2394
      %v2459 = vadd.f32 %v2225, %v2397
      %v2460 = vadd.f32 %v2226, %v2402
      %v2461 = vadd.f32 %v2227, %v2405
      %v2462 = vadd.f32 %v2228, %v2410
      %v2463 = vadd.f32 %v2229, %v2413
      %v2464 = vadd.f32 %v2230, %v2418
      %v2465 = vadd.f32 %v2231, %v2421
      %v2466 = vadd.f32 %v2232, %v2426
      %v2467 = vadd.f32 %v2233, %v2429
      %s2468 = scalar_lea.vmem %s1, 28
      %v2469 = vld [vmem:[%s2468] sm:$0xf]
      %vm2470 = vsmask.f32 5376
      %v2471 = vrot.slane %v442, 2
      %v2472 = vrot.slane %v438, 3
      %v2473 = vor.u32 %v2471, %v2472
      %v2474 = vrot.slane %v450, 2
      %v2475 = vrot.slane %v446, 3
      %v2476 = vor.u32 %v2474, %v2475
      %v2477 = vsel %vm2470, %v2473, %v2476
      %v2478 = vrot.slane %v458, 2
      %v2479 = vrot.slane %v454, 3
      %v2480 = vor.u32 %v2478, %v2479
      %v2481 = vsel %vm2470, %v2476, %v2480
      %v2482 = vrot.slane %v466, 2
      %v2483 = vrot.slane %v462, 3
      %v2484 = vor.u32 %v2482, %v2483
      %v2485 = vsel %vm2470, %v2480, %v2484
      %v2486 = vrot.slane %v474, 2
      %v2487 = vrot.slane %v470, 3
      %v2488 = vor.u32 %v2486, %v2487
      %v2489 = vsel %vm2470, %v2484, %v2488
      %v2490 = vrot.slane %v482, 2
      %v2491 = vrot.slane %v478, 3
      %v2492 = vor.u32 %v2490, %v2491
      %v2493 = vsel %vm2470, %v2488, %v2492
      %v2494 = vrot.slane %v490, 2
      %v2495 = vrot.slane %v486, 3
      %v2496 = vor.u32 %v2494, %v2495
      %v2497 = vsel %vm2470, %v2492, %v2496
      %v2498 = vrot.slane %v498, 2
      %v2499 = vrot.slane %v494, 3
      %v2500 = vor.u32 %v2498, %v2499
      %v2501 = vsel %vm2470, %v2496, %v2500
      %v2502 = vrot.slane %v506, 2
      %v2503 = vrot.slane %v502, 3
      %v2504 = vor.u32 %v2502, %v2503
      %v2505 = vsel %vm2470, %v2500, %v2504
      %v2506 = vrot.slane %v514, 2
      %v2507 = vrot.slane %v510, 3
      %v2508 = vor.u32 %v2506, %v2507
      %v2509 = vsel %vm2470, %v2504, %v2508
      %v2510 = vrot.slane %v522, 2
      %v2511 = vrot.slane %v518, 3
      %v2512 = vor.u32 %v2510, %v2511
      %v2513 = vsel %vm2470, %v2508, %v2512
      %v2514 = vrot.slane %v530, 2
      %v2515 = vrot.slane %v526, 3
      %v2516 = vor.u32 %v2514, %v2515
      %v2517 = vsel %vm2470, %v2512, %v2516
      %v2518 = vrot.slane %v538, 2
      %v2519 = vrot.slane %v534, 3
      %v2520 = vor.u32 %v2518, %v2519
      %v2521 = vsel %vm2470, %v2516, %v2520
      %v2522 = vrot.slane %v546, 2
      %v2523 = vrot.slane %v542, 3
      %v2524 = vor.u32 %v2522, %v2523
      %v2525 = vsel %vm2470, %v2520, %v2524
      %v2526 = vrot.slane %v554, 2
      %v2527 = vrot.slane %v550, 3
      %v2528 = vor.u32 %v2526, %v2527
      %v2529 = vsel %vm2470, %v2524, %v2528
      %v2530 = vrot.slane %v562, 2
      %v2531 = vrot.slane %v558, 3
      %v2532 = vor.u32 %v2530, %v2531
      %v2533 = vsel %vm2470, %v2528, %v2532
      %v2534 = vrot.slane %v1637, 2
      %v2535 = vrot.slane %v1640, 3
      %v2536 = vor.u32 %v2534, %v2535
      %v2537 = vsel %vm2470, %v2532, %v2536
      %v2539 = vshrl.u32 %v2240, 16
      %v2541 = vrot.slane %v2539, 2
      %v2542 = vshll.u32 %v2240, 16
      %v2544 = vrot.slane %v2542, 3
      %v2545 = vor.u32 %v2541, %v2544
      %v2546 = vsel %vm2470, %v2536, %v2545
      %v2548 = vshrl.u32 %v2241, 16
      %v2550 = vrot.slane %v2548, 2
      %v2551 = vshll.u32 %v2241, 16
      %v2553 = vrot.slane %v2551, 3
      %v2554 = vor.u32 %v2550, %v2553
      %v2555 = vsel %vm2470, %v2545, %v2554
      %v2557 = vsel %vm570, %v2477, 0
      %v2560 = vsel %vm570, %v2481, 0
      %v2563 = vsel %vm570, %v2485, 0
      %v2566 = vsel %vm570, %v2489, 0
      %v2569 = vsel %vm570, %v2493, 0
      %v2572 = vsel %vm570, %v2497, 0
      %v2575 = vsel %vm570, %v2501, 0
      %v2578 = vsel %vm570, %v2505, 0
      %v2581 = vsel %vm570, %v2509, 0
      %v2584 = vsel %vm570, %v2513, 0
      %v2587 = vsel %vm570, %v2517, 0
      %v2590 = vsel %vm570, %v2521, 0
      %v2593 = vsel %vm570, %v2525, 0
      %v2596 = vsel %vm570, %v2529, 0
      %v2599 = vsel %vm570, %v2533, 0
      %v2602 = vsel %vm570, %v2537, 0
      %v2605 = vsel %vm570, %v2546, 0
      %v2608 = vsel %vm570, %v2555, 0
      %v2611 = vsel %vm625, %v2469, 0
      %2613 = vmatprep.subr.bf16.mxu0 0
      %2614 = vmatpush1.bf16.msra.mxu0 %v2611
      %2615 = vmatprep.subr.bf16.mxu0 0
      %2616 = vmatpush1.bf16.msra.mxu0 0
      %2617 = vmatprep.subr.bf16.mxu0 0
      %2618 = vmatpush1.bf16.msra.mxu0 0
      %2619 = vmatprep.subr.bf16.mxu0 0
      %2620 = vmatpush1.bf16.msra.mxu0 0
      %2621 = vmatprep.subr.bf16.mxu0 0
      %2622 = vmatpush1.bf16.msra.mxu0 0
      %2623 = vmatprep.subr.bf16.mxu0 0
      %2624 = vmatpush1.bf16.msra.mxu0 0
      %2625 = vmatprep.subr.bf16.mxu0 0
      %2626 = vmatpush1.bf16.msra.mxu0 0
      %2627 = vmatprep.subr.bf16.mxu0 0
      %2628 = vmatpush1.bf16.msra.mxu0 0
      %2629 = vmatprep.subr.bf16.mxu0 0
      %2630 = vmatpush1.bf16.msra.mxu0 0
      %2631 = vmatprep.subr.bf16.mxu0 0
      %2632 = vmatpush1.bf16.msra.mxu0 0
      %2633 = vmatprep.subr.bf16.mxu0 0
      %2634 = vmatpush1.bf16.msra.mxu0 0
      %2635 = vmatprep.subr.bf16.mxu0 0
      %2636 = vmatpush1.bf16.msra.mxu0 0
      %2637 = vmatprep.subr.bf16.mxu0 0
      %2638 = vmatpush1.bf16.msra.mxu0 0
      %2639 = vmatprep.subr.bf16.mxu0 0
      %2640 = vmatpush1.bf16.msra.mxu0 0
      %2641 = vmatprep.subr.bf16.mxu0 0
      %2642 = vmatpush1.bf16.msra.mxu0 0
      %2643 = vmatprep.subr.bf16.mxu0 0
      %2644 = vmatpush1.bf16.msra.mxu0 0
      %2645 = vmatprep.mubr.bf16.mxu0 0
      %2646 = vmatmul.mubr.bf16.gmra.mrb[0].mxu0 %v2557
      %v2647 = vpop.f32.mrb[0].mxu0
      %v2648 = vadd.f32 0.0, %v2647
      %v2649 = vpop.f32.mrb[0].mxu0
      %v2650 = vpop.f32.mrb[0].mxu0
      %v2651 = vadd.f32 0.0, %v2650
      %v2652 = vpop.f32.mrb[0].mxu0
      %2653 = vmatprep.mubr.bf16.mxu0 0
      %2654 = vmatmul.mubr.bf16.gmra.mrb[0].mxu0 %v2560
      %v2655 = vpop.f32.mrb[0].mxu0
      %v2656 = vadd.f32 0.0, %v2655
      %v2657 = vpop.f32.mrb[0].mxu0
      %v2658 = vpop.f32.mrb[0].mxu0
      %v2659 = vadd.f32 0.0, %v2658
      %v2660 = vpop.f32.mrb[0].mxu0
      %2661 = vmatprep.mubr.bf16.mxu0 0
      %2662 = vmatmul.mubr.bf16.gmra.mrb[0].mxu0 %v2563
      %v2663 = vpop.f32.mrb[0].mxu0
      %v2664 = vadd.f32 0.0, %v2663
      %v2665 = vpop.f32.mrb[0].mxu0
      %v2666 = vpop.f32.mrb[0].mxu0
      %v2667 = vadd.f32 0.0, %v2666
      %v2668 = vpop.f32.mrb[0].mxu0
      %2669 = vmatprep.mubr.bf16.mxu0 0
      %2670 = vmatmul.mubr.bf16.gmra.mrb[0].mxu0 %v2566
      %v2671 = vpop.f32.mrb[0].mxu0
      %v2672 = vadd.f32 0.0, %v2671
      %v2673 = vpop.f32.mrb[0].mxu0
      %v2674 = vpop.f32.mrb[0].mxu0
      %v2675 = vadd.f32 0.0, %v2674
      %v2676 = vpop.f32.mrb[0].mxu0
      %2677 = vmatprep.mubr.bf16.mxu0 0
      %2678 = vmatmul.mubr.bf16.gmra.mrb[0].mxu0 %v2569
      %v2679 = vpop.f32.mrb[0].mxu0
      %v2680 = vadd.f32 0.0, %v2679
      %v2681 = vpop.f32.mrb[0].mxu0
      %v2682 = vpop.f32.mrb[0].mxu0
      %v2683 = vadd.f32 0.0, %v2682
      %v2684 = vpop.f32.mrb[0].mxu0
      %2685 = vmatprep.mubr.bf16.mxu0 0
      %2686 = vmatmul.mubr.bf16.gmra.mrb[0].mxu0 %v2572
      %v2687 = vpop.f32.mrb[0].mxu0
      %v2688 = vadd.f32 0.0, %v2687
      %v2689 = vpop.f32.mrb[0].mxu0
      %v2690 = vpop.f32.mrb[0].mxu0
      %v2691 = vadd.f32 0.0, %v2690
      %v2692 = vpop.f32.mrb[0].mxu0
      %2693 = vmatprep.mubr.bf16.mxu0 0
      %2694 = vmatmul.mubr.bf16.gmra.mrb[0].mxu0 %v2575
      %v2695 = vpop.f32.mrb[0].mxu0
      %v2696 = vadd.f32 0.0, %v2695
      %v2697 = vpop.f32.mrb[0].mxu0
      %v2698 = vpop.f32.mrb[0].mxu0
      %v2699 = vadd.f32 0.0, %v2698
      %v2700 = vpop.f32.mrb[0].mxu0
      %2701 = vmatprep.mubr.bf16.mxu0 0
      %2702 = vmatmul.mubr.bf16.gmra.mrb[0].mxu0 %v2578
      %v2703 = vpop.f32.mrb[0].mxu0
      %v2704 = vadd.f32 0.0, %v2703
      %v2705 = vpop.f32.mrb[0].mxu0
      %v2706 = vpop.f32.mrb[0].mxu0
      %v2707 = vadd.f32 0.0, %v2706
      %v2708 = vpop.f32.mrb[0].mxu0
      %2709 = vmatprep.mubr.bf16.mxu0 0
      %2710 = vmatmul.mubr.bf16.gmra.mrb[0].mxu0 %v2581
      %v2711 = vpop.f32.mrb[0].mxu0
      %v2712 = vadd.f32 0.0, %v2711
      %v2713 = vpop.f32.mrb[0].mxu0
      %v2714 = vpop.f32.mrb[0].mxu0
      %v2715 = vadd.f32 0.0, %v2714
      %v2716 = vpop.f32.mrb[0].mxu0
      %2717 = vmatprep.mubr.bf16.mxu0 0
      %2718 = vmatmul.mubr.bf16.gmra.mrb[0].mxu0 %v2584
      %v2719 = vpop.f32.mrb[0].mxu0
      %v2720 = vadd.f32 0.0, %v2719
      %v2721 = vpop.f32.mrb[0].mxu0
      %v2722 = vpop.f32.mrb[0].mxu0
      %v2723 = vadd.f32 0.0, %v2722
      %v2724 = vpop.f32.mrb[0].mxu0
      %2725 = vmatprep.mubr.bf16.mxu0 0
      %2726 = vmatmul.mubr.bf16.gmra.mrb[0].mxu0 %v2587
      %v2727 = vpop.f32.mrb[0].mxu0
      %v2728 = vadd.f32 0.0, %v2727
      %v2729 = vpop.f32.mrb[0].mxu0
      %v2730 = vpop.f32.mrb[0].mxu0
      %v2731 = vadd.f32 0.0, %v2730
      %v2732 = vpop.f32.mrb[0].mxu0
      %2733 = vmatprep.mubr.bf16.mxu0 0
      %2734 = vmatmul.mubr.bf16.gmra.mrb[0].mxu0 %v2590
      %v2735 = vpop.f32.mrb[0].mxu0
      %v2736 = vadd.f32 0.0, %v2735
      %v2737 = vpop.f32.mrb[0].mxu0
      %v2738 = vpop.f32.mrb[0].mxu0
      %v2739 = vadd.f32 0.0, %v2738
      %v2740 = vpop.f32.mrb[0].mxu0
      %2741 = vmatprep.mubr.bf16.mxu0 0
      %2742 = vmatmul.mubr.bf16.gmra.mrb[0].mxu0 %v2593
      %v2743 = vpop.f32.mrb[0].mxu0
      %v2744 = vadd.f32 0.0, %v2743
      %v2745 = vpop.f32.mrb[0].mxu0
      %v2746 = vpop.f32.mrb[0].mxu0
      %v2747 = vadd.f32 0.0, %v2746
      %v2748 = vpop.f32.mrb[0].mxu0
      %2749 = vmatprep.mubr.bf16.mxu0 0
      %2750 = vmatmul.mubr.bf16.gmra.mrb[0].mxu0 %v2596
      %v2751 = vpop.f32.mrb[0].mxu0
      %v2752 = vadd.f32 0.0, %v2751
      %v2753 = vpop.f32.mrb[0].mxu0
      %v2754 = vpop.f32.mrb[0].mxu0
      %v2755 = vadd.f32 0.0, %v2754
      %v2756 = vpop.f32.mrb[0].mxu0
      %2757 = vmatprep.mubr.bf16.mxu0 0
      %2758 = vmatmul.mubr.bf16.gmra.mrb[0].mxu0 %v2599
      %v2759 = vpop.f32.mrb[0].mxu0
      %v2760 = vadd.f32 0.0, %v2759
      %v2761 = vpop.f32.mrb[0].mxu0
      %v2762 = vpop.f32.mrb[0].mxu0
      %v2763 = vadd.f32 0.0, %v2762
      %v2764 = vpop.f32.mrb[0].mxu0
      %2765 = vmatprep.mubr.bf16.mxu0 0
      %2766 = vmatmul.mubr.bf16.gmra.mrb[0].mxu0 %v2602
      %v2767 = vpop.f32.mrb[0].mxu0
      %v2768 = vadd.f32 0.0, %v2767
      %v2769 = vpop.f32.mrb[0].mxu0
      %v2770 = vpop.f32.mrb[0].mxu0
      %v2771 = vadd.f32 0.0, %v2770
      %v2772 = vpop.f32.mrb[0].mxu0
      %2773 = vmatprep.mubr.bf16.mxu0 0
      %2774 = vmatmul.mubr.bf16.gmra.mrb[0].mxu0 %v2605
      %v2775 = vpop.f32.mrb[0].mxu0
      %v2776 = vadd.f32 0.0, %v2775
      %v2777 = vpop.f32.mrb[0].mxu0
      %v2778 = vpop.f32.mrb[0].mxu0
      %v2779 = vadd.f32 0.0, %v2778
      %v2780 = vpop.f32.mrb[0].mxu0
      %2781 = vmatprep.mubr.bf16.mxu0 0
      %2782 = vmatmul.mubr.bf16.gmra.mrb[0].mxu0 %v2608
      %v2783 = vpop.f32.mrb[0].mxu0
      %v2784 = vadd.f32 0.0, %v2783
      %v2785 = vpop.f32.mrb[0].mxu0
      %v2786 = vpop.f32.mrb[0].mxu0
      %v2787 = vadd.f32 0.0, %v2786
      %v2788 = vpop.f32.mrb[0].mxu0
      %2789 = vdwg.mxu0
      %v2790 = vadd.f32 %v2432, %v2648
      %v2791 = vadd.f32 %v2433, %v2651
      %v2792 = vadd.f32 %v2434, %v2656
      %v2793 = vadd.f32 %v2435, %v2659
      %v2794 = vadd.f32 %v2436, %v2664
      %v2795 = vadd.f32 %v2437, %v2667
      %v2796 = vadd.f32 %v2438, %v2672
      %v2797 = vadd.f32 %v2439, %v2675
      %v2798 = vadd.f32 %v2440, %v2680
      %v2799 = vadd.f32 %v2441, %v2683
      %v2800 = vadd.f32 %v2442, %v2688
      %v2801 = vadd.f32 %v2443, %v2691
      %v2802 = vadd.f32 %v2444, %v2696
      %v2803 = vadd.f32 %v2445, %v2699
      %v2804 = vadd.f32 %v2446, %v2704
      %v2805 = vadd.f32 %v2447, %v2707
      %v2806 = vadd.f32 %v2448, %v2712
      %v2807 = vadd.f32 %v2449, %v2715
      %v2808 = vadd.f32 %v2450, %v2720
      %v2809 = vadd.f32 %v2451, %v2723
      %v2810 = vadd.f32 %v2452, %v2728
      %v2811 = vadd.f32 %v2453, %v2731
      %v2812 = vadd.f32 %v2454, %v2736
      %v2813 = vadd.f32 %v2455, %v2739
      %v2814 = vadd.f32 %v2456, %v2744
      %v2815 = vadd.f32 %v2457, %v2747
      %v2816 = vadd.f32 %v2458, %v2752
      %v2817 = vadd.f32 %v2459, %v2755
      %v2818 = vadd.f32 %v2460, %v2760
      %v2819 = vadd.f32 %v2461, %v2763
      %v2820 = vadd.f32 %v2462, %v2768
      %v2821 = vadd.f32 %v2463, %v2771
      %v2822 = vadd.f32 %v2464, %v2776
      %v2823 = vadd.f32 %v2465, %v2779
      %v2824 = vadd.f32 %v2466, %v2784
      %v2825 = vadd.f32 %v2467, %v2787
      %s2826 = scalar_lea.vmem %s1, 32
      %v2827 = vld [vmem:[%s2826] sm:$0xf]
      %vm2828 = vcmask 1044480
      %v2829 = vrot.slane %v404, 3
      %v2830 = vrot.slane %v405, 3
      %v2831 = vsel %vm2828, %v2829, %v2830
      %v2832 = vrot.slane %v406, 3
      %v2833 = vsel %vm2828, %v2830, %v2832
      %v2834 = vrot.slane %v407, 3
      %v2835 = vsel %vm2828, %v2832, %v2834
      %v2836 = vrot.slane %v408, 3
      %v2837 = vsel %vm2828, %v2834, %v2836
      %v2838 = vrot.slane %v409, 3
      %v2839 = vsel %vm2828, %v2836, %v2838
      %v2840 = vrot.slane %v410, 3
      %v2841 = vsel %vm2828, %v2838, %v2840
      %v2842 = vrot.slane %v411, 3
      %v2843 = vsel %vm2828, %v2840, %v2842
      %v2844 = vrot.slane %v412, 3
      %v2845 = vsel %vm2828, %v2842, %v2844
      %v2846 = vrot.slane %v413, 3
      %v2847 = vsel %vm2828, %v2844, %v2846
      %v2848 = vrot.slane %v414, 3
      %v2849 = vsel %vm2828, %v2846, %v2848
      %v2850 = vrot.slane %v415, 3
      %v2851 = vsel %vm2828, %v2848, %v2850
      %v2852 = vrot.slane %v416, 3
      %v2853 = vsel %vm2828, %v2850, %v2852
      %v2854 = vrot.slane %v417, 3
      %v2855 = vsel %vm2828, %v2852, %v2854
      %v2856 = vrot.slane %v418, 3
      %v2857 = vsel %vm2828, %v2854, %v2856
      %v2858 = vrot.slane %v419, 3
      %v2859 = vsel %vm2828, %v2856, %v2858
      %v2860 = vrot.slane %v1338, 3
      %v2861 = vsel %vm2828, %v2858, %v2860
      %v2862 = vrot.slane %v2240, 3
      %v2863 = vsel %vm2828, %v2860, %v2862
      %v2864 = vrot.slane %v2241, 3
      %v2865 = vsel %vm2828, %v2862, %v2864
      %v2867 = vsel %vm570, %v2831, 0
      %v2870 = vsel %vm570, %v2833, 0
      %v2873 = vsel %vm570, %v2835, 0
      %v2876 = vsel %vm570, %v2837, 0
      %v2879 = vsel %vm570, %v2839, 0
      %v2882 = vsel %vm570, %v2841, 0
      %v2885 = vsel %vm570, %v2843, 0
      %v2888 = vsel %vm570, %v2845, 0
      %v2891 = vsel %vm570, %v2847, 0
      %v2894 = vsel %vm570, %v2849, 0
      %v2897 = vsel %vm570, %v2851, 0
      %v2900 = vsel %vm570, %v2853, 0
      %v2903 = vsel %vm570, %v2855, 0
      %v2906 = vsel %vm570, %v2857, 0
      %v2909 = vsel %vm570, %v2859, 0
      %v2912 = vsel %vm570, %v2861, 0
      %v2915 = vsel %vm570, %v2863, 0
      %v2918 = vsel %vm570, %v2865, 0
      %v2921 = vsel %vm625, %v2827, 0
      %2923 = vmatprep.subr.bf16.mxu0 0
      %2924 = vmatpush1.bf16.msra.mxu0 %v2921
      %2925 = vmatprep.subr.bf16.mxu0 0
      %2926 = vmatpush1.bf16.msra.mxu0 0
      %2927 = vmatprep.subr.bf16.mxu0 0
      %2928 = vmatpush1.bf16.msra.mxu0 0
      %2929 = vmatprep.subr.bf16.mxu0 0
      %2930 = vmatpush1.bf16.msra.mxu0 0
      %2931 = vmatprep.subr.bf16.mxu0 0
      %2932 = vmatpush1.bf16.msra.mxu0 0
      %2933 = vmatprep.subr.bf16.mxu0 0
      %2934 = vmatpush1.bf16.msra.mxu0 0
      %2935 = vmatprep.subr.bf16.mxu0 0
      %2936 = vmatpush1.bf16.msra.mxu0 0
      %2937 = vmatprep.subr.bf16.mxu0 0
      %2938 = vmatpush1.bf16.msra.mxu0 0
      %2939 = vmatprep.subr.bf16.mxu0 0
      %2940 = vmatpush1.bf16.msra.mxu0 0
      %2941 = vmatprep.subr.bf16.mxu0 0
      %2942 = vmatpush1.bf16.msra.mxu0 0
      %2943 = vmatprep.subr.bf16.mxu0 0
      %2944 = vmatpush1.bf16.msra.mxu0 0
      %2945 = vmatprep.subr.bf16.mxu0 0
      %2946 = vmatpush1.bf16.msra.mxu0 0
      %2947 = vmatprep.subr.bf16.mxu0 0
      %2948 = vmatpush1.bf16.msra.mxu0 0
      %2949 = vmatprep.subr.bf16.mxu0 0
      %2950 = vmatpush1.bf16.msra.mxu0 0
      %2951 = vmatprep.subr.bf16.mxu0 0
      %2952 = vmatpush1.bf16.msra.mxu0 0
      %2953 = vmatprep.subr.bf16.mxu0 0
      %2954 = vmatpush1.bf16.msra.mxu0 0
      %2955 = vmatprep.mubr.bf16.mxu0 0
      %2956 = vmatmul.mubr.bf16.gmra.mrb[0].mxu0 %v2867
      %v2957 = vpop.f32.mrb[0].mxu0
      %v2958 = vadd.f32 0.0, %v2957
      %v2959 = vpop.f32.mrb[0].mxu0
      %v2960 = vpop.f32.mrb[0].mxu0
      %v2961 = vadd.f32 0.0, %v2960
      %v2962 = vpop.f32.mrb[0].mxu0
      %2963 = vmatprep.mubr.bf16.mxu0 0
      %2964 = vmatmul.mubr.bf16.gmra.mrb[0].mxu0 %v2870
      %v2965 = vpop.f32.mrb[0].mxu0
      %v2966 = vadd.f32 0.0, %v2965
      %v2967 = vpop.f32.mrb[0].mxu0
      %v2968 = vpop.f32.mrb[0].mxu0
      %v2969 = vadd.f32 0.0, %v2968
      %v2970 = vpop.f32.mrb[0].mxu0
      %2971 = vmatprep.mubr.bf16.mxu0 0
      %2972 = vmatmul.mubr.bf16.gmra.mrb[0].mxu0 %v2873
      %v2973 = vpop.f32.mrb[0].mxu0
      %v2974 = vadd.f32 0.0, %v2973
      %v2975 = vpop.f32.mrb[0].mxu0
      %v2976 = vpop.f32.mrb[0].mxu0
      %v2977 = vadd.f32 0.0, %v2976
      %v2978 = vpop.f32.mrb[0].mxu0
      %2979 = vmatprep.mubr.bf16.mxu0 0
      %2980 = vmatmul.mubr.bf16.gmra.mrb[0].mxu0 %v2876
      %v2981 = vpop.f32.mrb[0].mxu0
      %v2982 = vadd.f32 0.0, %v2981
      %v2983 = vpop.f32.mrb[0].mxu0
      %v2984 = vpop.f32.mrb[0].mxu0
      %v2985 = vadd.f32 0.0, %v2984
      %v2986 = vpop.f32.mrb[0].mxu0
      %2987 = vmatprep.mubr.bf16.mxu0 0
      %2988 = vmatmul.mubr.bf16.gmra.mrb[0].mxu0 %v2879
      %v2989 = vpop.f32.mrb[0].mxu0
      %v2990 = vadd.f32 0.0, %v2989
      %v2991 = vpop.f32.mrb[0].mxu0
      %v2992 = vpop.f32.mrb[0].mxu0
      %v2993 = vadd.f32 0.0, %v2992
      %v2994 = vpop.f32.mrb[0].mxu0
      %2995 = vmatprep.mubr.bf16.mxu0 0
      %2996 = vmatmul.mubr.bf16.gmra.mrb[0].mxu0 %v2882
      %v2997 = vpop.f32.mrb[0].mxu0
      %v2998 = vadd.f32 0.0, %v2997
      %v2999 = vpop.f32.mrb[0].mxu0
      %v3000 = vpop.f32.mrb[0].mxu0
      %v3001 = vadd.f32 0.0, %v3000
      %v3002 = vpop.f32.mrb[0].mxu0
      %3003 = vmatprep.mubr.bf16.mxu0 0
      %3004 = vmatmul.mubr.bf16.gmra.mrb[0].mxu0 %v2885
      %v3005 = vpop.f32.mrb[0].mxu0
      %v3006 = vadd.f32 0.0, %v3005
      %v3007 = vpop.f32.mrb[0].mxu0
      %v3008 = vpop.f32.mrb[0].mxu0
      %v3009 = vadd.f32 0.0, %v3008
      %v3010 = vpop.f32.mrb[0].mxu0
      %3011 = vmatprep.mubr.bf16.mxu0 0
      %3012 = vmatmul.mubr.bf16.gmra.mrb[0].mxu0 %v2888
      %v3013 = vpop.f32.mrb[0].mxu0
      %v3014 = vadd.f32 0.0, %v3013
      %v3015 = vpop.f32.mrb[0].mxu0
      %v3016 = vpop.f32.mrb[0].mxu0
      %v3017 = vadd.f32 0.0, %v3016
      %v3018 = vpop.f32.mrb[0].mxu0
      %3019 = vmatprep.mubr.bf16.mxu0 0
      %3020 = vmatmul.mubr.bf16.gmra.mrb[0].mxu0 %v2891
      %v3021 = vpop.f32.mrb[0].mxu0
      %v3022 = vadd.f32 0.0, %v3021
      %v3023 = vpop.f32.mrb[0].mxu0
      %v3024 = vpop.f32.mrb[0].mxu0
      %v3025 = vadd.f32 0.0, %v3024
      %v3026 = vpop.f32.mrb[0].mxu0
      %3027 = vmatprep.mubr.bf16.mxu0 0
      %3028 = vmatmul.mubr.bf16.gmra.mrb[0].mxu0 %v2894
      %v3029 = vpop.f32.mrb[0].mxu0
      %v3030 = vadd.f32 0.0, %v3029
      %v3031 = vpop.f32.mrb[0].mxu0
      %v3032 = vpop.f32.mrb[0].mxu0
      %v3033 = vadd.f32 0.0, %v3032
      %v3034 = vpop.f32.mrb[0].mxu0
      %3035 = vmatprep.mubr.bf16.mxu0 0
      %3036 = vmatmul.mubr.bf16.gmra.mrb[0].mxu0 %v2897
      %v3037 = vpop.f32.mrb[0].mxu0
      %v3038 = vadd.f32 0.0, %v3037
      %v3039 = vpop.f32.mrb[0].mxu0
      %v3040 = vpop.f32.mrb[0].mxu0
      %v3041 = vadd.f32 0.0, %v3040
      %v3042 = vpop.f32.mrb[0].mxu0
      %3043 = vmatprep.mubr.bf16.mxu0 0
      %3044 = vmatmul.mubr.bf16.gmra.mrb[0].mxu0 %v2900
      %v3045 = vpop.f32.mrb[0].mxu0
      %v3046 = vadd.f32 0.0, %v3045
      %v3047 = vpop.f32.mrb[0].mxu0
      %v3048 = vpop.f32.mrb[0].mxu0
      %v3049 = vadd.f32 0.0, %v3048
      %v3050 = vpop.f32.mrb[0].mxu0
      %3051 = vmatprep.mubr.bf16.mxu0 0
      %3052 = vmatmul.mubr.bf16.gmra.mrb[0].mxu0 %v2903
      %v3053 = vpop.f32.mrb[0].mxu0
      %v3054 = vadd.f32 0.0, %v3053
      %v3055 = vpop.f32.mrb[0].mxu0
      %v3056 = vpop.f32.mrb[0].mxu0
      %v3057 = vadd.f32 0.0, %v3056
      %v3058 = vpop.f32.mrb[0].mxu0
      %3059 = vmatprep.mubr.bf16.mxu0 0
      %3060 = vmatmul.mubr.bf16.gmra.mrb[0].mxu0 %v2906
      %v3061 = vpop.f32.mrb[0].mxu0
      %v3062 = vadd.f32 0.0, %v3061
      %v3063 = vpop.f32.mrb[0].mxu0
      %v3064 = vpop.f32.mrb[0].mxu0
      %v3065 = vadd.f32 0.0, %v3064
      %v3066 = vpop.f32.mrb[0].mxu0
      %3067 = vmatprep.mubr.bf16.mxu0 0
      %3068 = vmatmul.mubr.bf16.gmra.mrb[0].mxu0 %v2909
      %v3069 = vpop.f32.mrb[0].mxu0
      %v3070 = vadd.f32 0.0, %v3069
      %v3071 = vpop.f32.mrb[0].mxu0
      %v3072 = vpop.f32.mrb[0].mxu0
      %v3073 = vadd.f32 0.0, %v3072
      %v3074 = vpop.f32.mrb[0].mxu0
      %3075 = vmatprep.mubr.bf16.mxu0 0
      %3076 = vmatmul.mubr.bf16.gmra.mrb[0].mxu0 %v2912
      %v3077 = vpop.f32.mrb[0].mxu0
      %v3078 = vadd.f32 0.0, %v3077
      %v3079 = vpop.f32.mrb[0].mxu0
      %v3080 = vpop.f32.mrb[0].mxu0
      %v3081 = vadd.f32 0.0, %v3080
      %v3082 = vpop.f32.mrb[0].mxu0
      %3083 = vmatprep.mubr.bf16.mxu0 0
      %3084 = vmatmul.mubr.bf16.gmra.mrb[0].mxu0 %v2915
      %v3085 = vpop.f32.mrb[0].mxu0
      %v3086 = vadd.f32 0.0, %v3085
      %v3087 = vpop.f32.mrb[0].mxu0
      %v3088 = vpop.f32.mrb[0].mxu0
      %v3089 = vadd.f32 0.0, %v3088
      %v3090 = vpop.f32.mrb[0].mxu0
      %3091 = vmatprep.mubr.bf16.mxu0 0
      %3092 = vmatmul.mubr.bf16.gmra.mrb[0].mxu0 %v2918
      %v3093 = vpop.f32.mrb[0].mxu0
      %v3094 = vadd.f32 0.0, %v3093
      %v3095 = vpop.f32.mrb[0].mxu0
      %v3096 = vpop.f32.mrb[0].mxu0
      %v3097 = vadd.f32 0.0, %v3096
      %v3098 = vpop.f32.mrb[0].mxu0
      %3099 = vdwg.mxu0
      %v3100 = vadd.f32 %v2790, %v2958
      %v3101 = vadd.f32 %v2791, %v2961
      %v3102 = vadd.f32 %v2792, %v2966
      %v3103 = vadd.f32 %v2793, %v2969
      %v3104 = vadd.f32 %v2794, %v2974
      %v3105 = vadd.f32 %v2795, %v2977
      %v3106 = vadd.f32 %v2796, %v2982
      %v3107 = vadd.f32 %v2797, %v2985
      %v3108 = vadd.f32 %v2798, %v2990
      %v3109 = vadd.f32 %v2799, %v2993
      %v3110 = vadd.f32 %v2800, %v2998
      %v3111 = vadd.f32 %v2801, %v3001
      %v3112 = vadd.f32 %v2802, %v3006
      %v3113 = vadd.f32 %v2803, %v3009
      %v3114 = vadd.f32 %v2804, %v3014
      %v3115 = vadd.f32 %v2805, %v3017
      %v3116 = vadd.f32 %v2806, %v3022
      %v3117 = vadd.f32 %v2807, %v3025
      %v3118 = vadd.f32 %v2808, %v3030
      %v3119 = vadd.f32 %v2809, %v3033
      %v3120 = vadd.f32 %v2810, %v3038
      %v3121 = vadd.f32 %v2811, %v3041
      %v3122 = vadd.f32 %v2812, %v3046
      %v3123 = vadd.f32 %v2813, %v3049
      %v3124 = vadd.f32 %v2814, %v3054
      %v3125 = vadd.f32 %v2815, %v3057
      %v3126 = vadd.f32 %v2816, %v3062
      %v3127 = vadd.f32 %v2817, %v3065
      %v3128 = vadd.f32 %v2818, %v3070
      %v3129 = vadd.f32 %v2819, %v3073
      %v3130 = vadd.f32 %v2820, %v3078
      %v3131 = vadd.f32 %v2821, %v3081
      %v3132 = vadd.f32 %v2822, %v3086
      %v3133 = vadd.f32 %v2823, %v3089
      %v3134 = vadd.f32 %v2824, %v3094
      %v3135 = vadd.f32 %v2825, %v3097
      %v3136 = vld [vmem:[%s273] sm:$0xf]
      %v3137 = vld [vmem:[%s273 + $0x4] sm:$0xf]
      %v3138 = vld [vmem:[%s273 + $0x8] sm:$0xf]
      %v3139 = vld [vmem:[%s273 + $0xc] sm:$0xf]
      %v3140 = vld [vmem:[%s273 + $0x10] sm:$0xf]
      %v3141 = vld [vmem:[%s273 + $0x14] sm:$0xf]
      %v3142 = vld [vmem:[%s273 + $0x18] sm:$0xf]
      %v3143 = vld [vmem:[%s273 + $0x1c] sm:$0xf]
      %v3144 = vld [vmem:[%s273 + $0x20] sm:$0xf]
      %v3145 = vld [vmem:[%s273 + $0x24] sm:$0xf]
      %v3146 = vld [vmem:[%s273 + $0x28] sm:$0xf]
      %v3147 = vld [vmem:[%s273 + $0x2c] sm:$0xf]
      %v3148 = vld [vmem:[%s273 + $0x30] sm:$0xf]
      %v3149 = vld [vmem:[%s273 + $0x34] sm:$0xf]
      %v3150 = vld [vmem:[%s273 + $0x38] sm:$0xf]
      %v3151 = vld [vmem:[%s273 + $0x3c] sm:$0xf]
      %v3152 = vld [vmem:[%s273 + $0x40] sm:$0xf]
      %v3153 = vld [vmem:[%s273 + $0x44] sm:$0xf]
      %v3154 = vld [vmem:[%s273 + $0x48] sm:$0xf]
      %v3155 = vld [vmem:[%s273 + $0x4c] sm:$0xf]
      %v3156 = vld [vmem:[%s273 + $0x50] sm:$0xf]
      %v3157 = vld [vmem:[%s273 + $0x54] sm:$0xf]
      %v3158 = vld [vmem:[%s273 + $0x58] sm:$0xf]
      %v3159 = vld [vmem:[%s273 + $0x5c] sm:$0xf]
      %v3160 = vld [vmem:[%s273 + $0x60] sm:$0xf]
      %v3161 = vld [vmem:[%s273 + $0x64] sm:$0xf]
      %v3162 = vld [vmem:[%s273 + $0x68] sm:$0xf]
      %v3163 = vld [vmem:[%s273 + $0x6c] sm:$0xf]
      %v3164 = vld [vmem:[%s273 + $0x70] sm:$0xf]
      %v3165 = vld [vmem:[%s273 + $0x74] sm:$0xf]
      %v3166 = vld [vmem:[%s273 + $0x78] sm:$0xf]
      %v3167 = vld [vmem:[%s273 + $0x7c] sm:$0xf]
      %v3168 = vld [vmem:[%s273 + $0x80] sm:$0xf]
      %v3169 = vld [vmem:[%s273 + $0x84] sm:$0xf]
      %v3170 = vld [vmem:[%s273 + $0x88] sm:$0xf]
      %v3171 = vld [vmem:[%s273 + $0x8c] sm:$0xf]
      %v3172 = vld [vmem:[%s4] sm:$0x3]
      %v3209 = vunpack.c.l.b16 %v3136
      %v3210 = vunpack.c.l.b16 %v3137
      %v3211 = vunpack.c.l.b16 %v3138
      %v3212 = vunpack.c.l.b16 %v3139
      %v3213 = vunpack.c.l.b16 %v3140
      %v3214 = vunpack.c.l.b16 %v3141
      %v3215 = vunpack.c.l.b16 %v3142
      %v3216 = vunpack.c.l.b16 %v3143
      %v3217 = vunpack.c.l.b16 %v3144
      %v3218 = vunpack.c.l.b16 %v3145
      %v3219 = vunpack.c.l.b16 %v3146
      %v3220 = vunpack.c.l.b16 %v3147
      %v3221 = vunpack.c.l.b16 %v3148
      %v3222 = vunpack.c.l.b16 %v3149
      %v3223 = vunpack.c.l.b16 %v3150
      %v3224 = vunpack.c.l.b16 %v3151
      %v3225 = vunpack.c.l.b16 %v3152
      %v3226 = vunpack.c.l.b16 %v3153
      %v3227 = vunpack.c.l.b16 %v3154
      %v3228 = vunpack.c.l.b16 %v3155
      %v3229 = vunpack.c.l.b16 %v3156
      %v3230 = vunpack.c.l.b16 %v3157
      %v3231 = vunpack.c.l.b16 %v3158
      %v3232 = vunpack.c.l.b16 %v3159
      %v3233 = vunpack.c.l.b16 %v3160
      %v3234 = vunpack.c.l.b16 %v3161
      %v3235 = vunpack.c.l.b16 %v3162
      %v3236 = vunpack.c.l.b16 %v3163
      %v3237 = vunpack.c.l.b16 %v3164
      %v3238 = vunpack.c.l.b16 %v3165
      %v3239 = vunpack.c.l.b16 %v3166
      %v3240 = vunpack.c.l.b16 %v3167
      %v3241 = vunpack.c.l.b16 %v3168
      %v3242 = vunpack.c.l.b16 %v3169
      %v3243 = vunpack.c.l.b16 %v3170
      %v3244 = vunpack.c.l.b16 %v3171
      %v3245 = vpack.c.b16 %v3210, %v3209
      %v3246 = vpack.c.b16 %v3212, %v3211
      %v3247 = vpack.c.b16 %v3214, %v3213
      %v3248 = vpack.c.b16 %v3216, %v3215
      %v3249 = vpack.c.b16 %v3218, %v3217
      %v3250 = vpack.c.b16 %v3220, %v3219
      %v3251 = vpack.c.b16 %v3222, %v3221
      %v3252 = vpack.c.b16 %v3224, %v3223
      %v3253 = vpack.c.b16 %v3226, %v3225
      %v3254 = vpack.c.b16 %v3228, %v3227
      %v3255 = vpack.c.b16 %v3230, %v3229
      %v3256 = vpack.c.b16 %v3232, %v3231
      %v3257 = vpack.c.b16 %v3234, %v3233
      %v3258 = vpack.c.b16 %v3236, %v3235
      %v3259 = vpack.c.b16 %v3238, %v3237
      %v3260 = vpack.c.b16 %v3240, %v3239
      %v3261 = vpack.c.b16 %v3242, %v3241
      %v3262 = vpack.c.b16 %v3244, %v3243
      %vm3263 = vcmask 31744
      %v3265 = vsel %vm3263, %v3245, 0
      %v3268 = vsel %vm3263, %v3246, 0
      %v3271 = vsel %vm3263, %v3247, 0
      %v3274 = vsel %vm3263, %v3248, 0
      %v3277 = vsel %vm3263, %v3249, 0
      %v3280 = vsel %vm3263, %v3250, 0
      %v3283 = vsel %vm3263, %v3251, 0
      %v3286 = vsel %vm3263, %v3252, 0
      %v3289 = vsel %vm3263, %v3253, 0
      %v3292 = vsel %vm3263, %v3254, 0
      %v3295 = vsel %vm3263, %v3255, 0
      %v3298 = vsel %vm3263, %v3256, 0
      %v3301 = vsel %vm3263, %v3257, 0
      %v3304 = vsel %vm3263, %v3258, 0
      %v3307 = vsel %vm3263, %v3259, 0
      %v3310 = vsel %vm3263, %v3260, 0
      %v3313 = vsel %vm3263, %v3261, 0
      %v3316 = vsel %vm3263, %v3262, 0
      %vm3318 = vcmask 1041408
      %v3320 = vsel %vm3318, %v3172, 0
      %3322 = vmatprep.subr.bf16.mxu0 0
      %3323 = vmatpush1.bf16.msra.mxu0 %v3320
      %3324 = vmatprep.subr.bf16.mxu0 0
      %3325 = vmatpush1.bf16.msra.mxu0 0
      %3326 = vmatprep.subr.bf16.mxu0 0
      %3327 = vmatpush1.bf16.msra.mxu0 0
      %3328 = vmatprep.subr.bf16.mxu0 0
      %3329 = vmatpush1.bf16.msra.mxu0 0
      %3330 = vmatprep.subr.bf16.mxu0 0
      %3331 = vmatpush1.bf16.msra.mxu0 0
      %3332 = vmatprep.subr.bf16.mxu0 0
      %3333 = vmatpush1.bf16.msra.mxu0 0
      %3334 = vmatprep.subr.bf16.mxu0 0
      %3335 = vmatpush1.bf16.msra.mxu0 0
      %3336 = vmatprep.subr.bf16.mxu0 0
      %3337 = vmatpush1.bf16.msra.mxu0 0
      %3338 = vmatprep.subr.bf16.mxu0 0
      %3339 = vmatpush1.bf16.msra.mxu0 0
      %3340 = vmatprep.subr.bf16.mxu0 0
      %3341 = vmatpush1.bf16.msra.mxu0 0
      %3342 = vmatprep.subr.bf16.mxu0 0
      %3343 = vmatpush1.bf16.msra.mxu0 0
      %3344 = vmatprep.subr.bf16.mxu0 0
      %3345 = vmatpush1.bf16.msra.mxu0 0
      %3346 = vmatprep.subr.bf16.mxu0 0
      %3347 = vmatpush1.bf16.msra.mxu0 0
      %3348 = vmatprep.subr.bf16.mxu0 0
      %3349 = vmatpush1.bf16.msra.mxu0 0
      %3350 = vmatprep.subr.bf16.mxu0 0
      %3351 = vmatpush1.bf16.msra.mxu0 0
      %3352 = vmatprep.subr.bf16.mxu0 0
      %3353 = vmatpush1.bf16.msra.mxu0 0
      %3354 = vmatprep.mubr.bf16.mxu0 0
      %3355 = vmatmul.mubr.bf16.gmra.mrb[0].mxu0 %v3265
      %v3356 = vpop.f32.mrb[0].mxu0
      %v3357 = vadd.f32 0.0, %v3356
      %v3358 = vpop.f32.mrb[0].mxu0
      %v3359 = vpop.f32.mrb[0].mxu0
      %v3360 = vadd.f32 0.0, %v3359
      %v3361 = vpop.f32.mrb[0].mxu0
      %3362 = vmatprep.mubr.bf16.mxu0 0
      %3363 = vmatmul.mubr.bf16.gmra.mrb[0].mxu0 %v3268
      %v3364 = vpop.f32.mrb[0].mxu0
      %v3365 = vadd.f32 0.0, %v3364
      %v3366 = vpop.f32.mrb[0].mxu0
      %v3367 = vpop.f32.mrb[0].mxu0
      %v3368 = vadd.f32 0.0, %v3367
      %v3369 = vpop.f32.mrb[0].mxu0
      %3370 = vmatprep.mubr.bf16.mxu0 0
      %3371 = vmatmul.mubr.bf16.gmra.mrb[0].mxu0 %v3271
      %v3372 = vpop.f32.mrb[0].mxu0
      %v3373 = vadd.f32 0.0, %v3372
      %v3374 = vpop.f32.mrb[0].mxu0
      %v3375 = vpop.f32.mrb[0].mxu0
      %v3376 = vadd.f32 0.0, %v3375
      %v3377 = vpop.f32.mrb[0].mxu0
      %3378 = vmatprep.mubr.bf16.mxu0 0
      %3379 = vmatmul.mubr.bf16.gmra.mrb[0].mxu0 %v3274
      %v3380 = vpop.f32.mrb[0].mxu0
      %v3381 = vadd.f32 0.0, %v3380
      %v3382 = vpop.f32.mrb[0].mxu0
      %v3383 = vpop.f32.mrb[0].mxu0
      %v3384 = vadd.f32 0.0, %v3383
      %v3385 = vpop.f32.mrb[0].mxu0
      %3386 = vmatprep.mubr.bf16.mxu0 0
      %3387 = vmatmul.mubr.bf16.gmra.mrb[0].mxu0 %v3277
      %v3388 = vpop.f32.mrb[0].mxu0
      %v3389 = vadd.f32 0.0, %v3388
      %v3390 = vpop.f32.mrb[0].mxu0
      %v3391 = vpop.f32.mrb[0].mxu0
      %v3392 = vadd.f32 0.0, %v3391
      %v3393 = vpop.f32.mrb[0].mxu0
      %3394 = vmatprep.mubr.bf16.mxu0 0
      %3395 = vmatmul.mubr.bf16.gmra.mrb[0].mxu0 %v3280
      %v3396 = vpop.f32.mrb[0].mxu0
      %v3397 = vadd.f32 0.0, %v3396
      %v3398 = vpop.f32.mrb[0].mxu0
      %v3399 = vpop.f32.mrb[0].mxu0
      %v3400 = vadd.f32 0.0, %v3399
      %v3401 = vpop.f32.mrb[0].mxu0
      %3402 = vmatprep.mubr.bf16.mxu0 0
      %3403 = vmatmul.mubr.bf16.gmra.mrb[0].mxu0 %v3283
      %v3404 = vpop.f32.mrb[0].mxu0
      %v3405 = vadd.f32 0.0, %v3404
      %v3406 = vpop.f32.mrb[0].mxu0
      %v3407 = vpop.f32.mrb[0].mxu0
      %v3408 = vadd.f32 0.0, %v3407
      %v3409 = vpop.f32.mrb[0].mxu0
      %3410 = vmatprep.mubr.bf16.mxu0 0
      %3411 = vmatmul.mubr.bf16.gmra.mrb[0].mxu0 %v3286
      %v3412 = vpop.f32.mrb[0].mxu0
      %v3413 = vadd.f32 0.0, %v3412
      %v3414 = vpop.f32.mrb[0].mxu0
      %v3415 = vpop.f32.mrb[0].mxu0
      %v3416 = vadd.f32 0.0, %v3415
      %v3417 = vpop.f32.mrb[0].mxu0
      %3418 = vmatprep.mubr.bf16.mxu0 0
      %3419 = vmatmul.mubr.bf16.gmra.mrb[0].mxu0 %v3289
      %v3420 = vpop.f32.mrb[0].mxu0
      %v3421 = vadd.f32 0.0, %v3420
      %v3422 = vpop.f32.mrb[0].mxu0
      %v3423 = vpop.f32.mrb[0].mxu0
      %v3424 = vadd.f32 0.0, %v3423
      %v3425 = vpop.f32.mrb[0].mxu0
      %3426 = vmatprep.mubr.bf16.mxu0 0
      %3427 = vmatmul.mubr.bf16.gmra.mrb[0].mxu0 %v3292
      %v3428 = vpop.f32.mrb[0].mxu0
      %v3429 = vadd.f32 0.0, %v3428
      %v3430 = vpop.f32.mrb[0].mxu0
      %v3431 = vpop.f32.mrb[0].mxu0
      %v3432 = vadd.f32 0.0, %v3431
      %v3433 = vpop.f32.mrb[0].mxu0
      %3434 = vmatprep.mubr.bf16.mxu0 0
      %3435 = vmatmul.mubr.bf16.gmra.mrb[0].mxu0 %v3295
      %v3436 = vpop.f32.mrb[0].mxu0
      %v3437 = vadd.f32 0.0, %v3436
      %v3438 = vpop.f32.mrb[0].mxu0
      %v3439 = vpop.f32.mrb[0].mxu0
      %v3440 = vadd.f32 0.0, %v3439
      %v3441 = vpop.f32.mrb[0].mxu0
      %3442 = vmatprep.mubr.bf16.mxu0 0
      %3443 = vmatmul.mubr.bf16.gmra.mrb[0].mxu0 %v3298
      %v3444 = vpop.f32.mrb[0].mxu0
      %v3445 = vadd.f32 0.0, %v3444
      %v3446 = vpop.f32.mrb[0].mxu0
      %v3447 = vpop.f32.mrb[0].mxu0
      %v3448 = vadd.f32 0.0, %v3447
      %v3449 = vpop.f32.mrb[0].mxu0
      %3450 = vmatprep.mubr.bf16.mxu0 0
      %3451 = vmatmul.mubr.bf16.gmra.mrb[0].mxu0 %v3301
      %v3452 = vpop.f32.mrb[0].mxu0
      %v3453 = vadd.f32 0.0, %v3452
      %v3454 = vpop.f32.mrb[0].mxu0
      %v3455 = vpop.f32.mrb[0].mxu0
      %v3456 = vadd.f32 0.0, %v3455
      %v3457 = vpop.f32.mrb[0].mxu0
      %3458 = vmatprep.mubr.bf16.mxu0 0
      %3459 = vmatmul.mubr.bf16.gmra.mrb[0].mxu0 %v3304
      %v3460 = vpop.f32.mrb[0].mxu0
      %v3461 = vadd.f32 0.0, %v3460
      %v3462 = vpop.f32.mrb[0].mxu0
      %v3463 = vpop.f32.mrb[0].mxu0
      %v3464 = vadd.f32 0.0, %v3463
      %v3465 = vpop.f32.mrb[0].mxu0
      %3466 = vmatprep.mubr.bf16.mxu0 0
      %3467 = vmatmul.mubr.bf16.gmra.mrb[0].mxu0 %v3307
      %v3468 = vpop.f32.mrb[0].mxu0
      %v3469 = vadd.f32 0.0, %v3468
      %v3470 = vpop.f32.mrb[0].mxu0
      %v3471 = vpop.f32.mrb[0].mxu0
      %v3472 = vadd.f32 0.0, %v3471
      %v3473 = vpop.f32.mrb[0].mxu0
      %3474 = vmatprep.mubr.bf16.mxu0 0
      %3475 = vmatmul.mubr.bf16.gmra.mrb[0].mxu0 %v3310
      %v3476 = vpop.f32.mrb[0].mxu0
      %v3477 = vadd.f32 0.0, %v3476
      %v3478 = vpop.f32.mrb[0].mxu0
      %v3479 = vpop.f32.mrb[0].mxu0
      %v3480 = vadd.f32 0.0, %v3479
      %v3481 = vpop.f32.mrb[0].mxu0
      %3482 = vmatprep.mubr.bf16.mxu0 0
      %3483 = vmatmul.mubr.bf16.gmra.mrb[0].mxu0 %v3313
      %v3484 = vpop.f32.mrb[0].mxu0
      %v3485 = vadd.f32 0.0, %v3484
      %v3486 = vpop.f32.mrb[0].mxu0
      %v3487 = vpop.f32.mrb[0].mxu0
      %v3488 = vadd.f32 0.0, %v3487
      %v3489 = vpop.f32.mrb[0].mxu0
      %3490 = vmatprep.mubr.bf16.mxu0 0
      %3491 = vmatmul.mubr.bf16.gmra.mrb[0].mxu0 %v3316
      %v3492 = vpop.f32.mrb[0].mxu0
      %v3493 = vadd.f32 0.0, %v3492
      %v3494 = vpop.f32.mrb[0].mxu0
      %v3495 = vpop.f32.mrb[0].mxu0
      %v3496 = vadd.f32 0.0, %v3495
      %v3497 = vpop.f32.mrb[0].mxu0
      %3498 = vdwg.mxu0
      %v3499 = vadd.f32 %v3100, %v3357
      %v3500 = vadd.f32 %v3101, %v3360
      %v3501 = vadd.f32 %v3102, %v3365
      %v3502 = vadd.f32 %v3103, %v3368
      %v3503 = vadd.f32 %v3104, %v3373
      %v3504 = vadd.f32 %v3105, %v3376
      %v3505 = vadd.f32 %v3106, %v3381
      %v3506 = vadd.f32 %v3107, %v3384
      %v3507 = vadd.f32 %v3108, %v3389
      %v3508 = vadd.f32 %v3109, %v3392
      %v3509 = vadd.f32 %v3110, %v3397
      %v3510 = vadd.f32 %v3111, %v3400
      %v3511 = vadd.f32 %v3112, %v3405
      %v3512 = vadd.f32 %v3113, %v3408
      %v3513 = vadd.f32 %v3114, %v3413
      %v3514 = vadd.f32 %v3115, %v3416
      %v3515 = vadd.f32 %v3116, %v3421
      %v3516 = vadd.f32 %v3117, %v3424
      %v3517 = vadd.f32 %v3118, %v3429
      %v3518 = vadd.f32 %v3119, %v3432
      %v3519 = vadd.f32 %v3120, %v3437
      %v3520 = vadd.f32 %v3121, %v3440
      %v3521 = vadd.f32 %v3122, %v3445
      %v3522 = vadd.f32 %v3123, %v3448
      %v3523 = vadd.f32 %v3124, %v3453
      %v3524 = vadd.f32 %v3125, %v3456
      %v3525 = vadd.f32 %v3126, %v3461
      %v3526 = vadd.f32 %v3127, %v3464
      %v3527 = vadd.f32 %v3128, %v3469
      %v3528 = vadd.f32 %v3129, %v3472
      %v3529 = vadd.f32 %v3130, %v3477
      %v3530 = vadd.f32 %v3131, %v3480
      %v3531 = vadd.f32 %v3132, %v3485
      %v3532 = vadd.f32 %v3133, %v3488
      %v3533 = vadd.f32 %v3134, %v3493
      %v3534 = vadd.f32 %v3135, %v3496
      %3535 = vst.msk [vmem:[%s278] sm:$0xff] %vm570, %v3499
      %3536 = vst.msk [vmem:[%s278 + $0x8] sm:$0xff] %vm570, %v3500
      %3537 = vst.msk [vmem:[%s278 + $0x10] sm:$0xff] %vm570, %v3501
      %3538 = vst.msk [vmem:[%s278 + $0x18] sm:$0xff] %vm570, %v3502
      %3539 = vst.msk [vmem:[%s278 + $0x20] sm:$0xff] %vm570, %v3503
      %3540 = vst.msk [vmem:[%s278 + $0x28] sm:$0xff] %vm570, %v3504
      %3541 = vst.msk [vmem:[%s278 + $0x30] sm:$0xff] %vm570, %v3505
      %3542 = vst.msk [vmem:[%s278 + $0x38] sm:$0xff] %vm570, %v3506
      %3543 = vst.msk [vmem:[%s278 + $0x40] sm:$0xff] %vm570, %v3507
      %3544 = vst.msk [vmem:[%s278 + $0x48] sm:$0xff] %vm570, %v3508
      %3545 = vst.msk [vmem:[%s278 + $0x50] sm:$0xff] %vm570, %v3509
      %3546 = vst.msk [vmem:[%s278 + $0x58] sm:$0xff] %vm570, %v3510
      %3547 = vst.msk [vmem:[%s278 + $0x60] sm:$0xff] %vm570, %v3511
      %3548 = vst.msk [vmem:[%s278 + $0x68] sm:$0xff] %vm570, %v3512
      %3549 = vst.msk [vmem:[%s278 + $0x70] sm:$0xff] %vm570, %v3513
      %3550 = vst.msk [vmem:[%s278 + $0x78] sm:$0xff] %vm570, %v3514
      %3551 = vst.msk [vmem:[%s278 + $0x80] sm:$0xff] %vm570, %v3515
      %3552 = vst.msk [vmem:[%s278 + $0x88] sm:$0xff] %vm570, %v3516
      %3553 = vst.msk [vmem:[%s278 + $0x90] sm:$0xff] %vm570, %v3517
      %3554 = vst.msk [vmem:[%s278 + $0x98] sm:$0xff] %vm570, %v3518
      %3555 = vst.msk [vmem:[%s278 + $0xa0] sm:$0xff] %vm570, %v3519
      %3556 = vst.msk [vmem:[%s278 + $0xa8] sm:$0xff] %vm570, %v3520
      %3557 = vst.msk [vmem:[%s278 + $0xb0] sm:$0xff] %vm570, %v3521
      %3558 = vst.msk [vmem:[%s278 + $0xb8] sm:$0xff] %vm570, %v3522
      %3559 = vst.msk [vmem:[%s278 + $0xc0] sm:$0xff] %vm570, %v3523
      %3560 = vst.msk [vmem:[%s278 + $0xc8] sm:$0xff] %vm570, %v3524
      %3561 = vst.msk [vmem:[%s278 + $0xd0] sm:$0xff] %vm570, %v3525
      %3562 = vst.msk [vmem:[%s278 + $0xd8] sm:$0xff] %vm570, %v3526
      %3563 = vst.msk [vmem:[%s278 + $0xe0] sm:$0xff] %vm570, %v3527
      %3564 = vst.msk [vmem:[%s278 + $0xe8] sm:$0xff] %vm570, %v3528
      %3565 = vst.msk [vmem:[%s278 + $0xf0] sm:$0xff] %vm570, %v3529
      %3566 = vst.msk [vmem:[%s278 + $0xf8] sm:$0xff] %vm570, %v3530
      %3567 = vst.msk [vmem:[%s278 + $0x100] sm:$0xff] %vm570, %v3531
      %3568 = vst.msk [vmem:[%s278 + $0x108] sm:$0xff] %vm570, %v3532
      %3569 = vst.msk [vmem:[%s278 + $0x110] sm:$0xff] %vm570, %v3533
      %3570 = vst.msk [vmem:[%s278 + $0x118] sm:$0xff] %vm570, %v3534
      %v3571 = vld [vmem:[%s2] sm:$0xff]
      %v3572 = vld [vmem:[%s2 + $0x8] sm:$0xff]
      %v3573 = vld [vmem:[%s2 + $0x10] sm:$0xff]
      %v3574 = vld [vmem:[%s2 + $0x18] sm:$0xff]
      %v3575 = vld [vmem:[%s2 + $0x20] sm:$0xff]
      %v3576 = vld [vmem:[%s2 + $0x28] sm:$0xff]
      %v3577 = vld [vmem:[%s2 + $0x30] sm:$0xff]
      %v3578 = vld [vmem:[%s2 + $0x38] sm:$0xff]
      %v3579 = vld [vmem:[%s2 + $0x40] sm:$0xff]
      %v3580 = vld [vmem:[%s2 + $0x48] sm:$0xff]
      %v3581 = vld [vmem:[%s2 + $0x50] sm:$0xff]
      %v3582 = vld [vmem:[%s2 + $0x58] sm:$0xff]
      %v3583 = vld [vmem:[%s2 + $0x60] sm:$0xff]
      %v3584 = vld [vmem:[%s2 + $0x68] sm:$0xff]
      %v3585 = vld [vmem:[%s2 + $0x70] sm:$0xff]
      %v3586 = vld [vmem:[%s2 + $0x78] sm:$0xff]
      %v3587 = vld [vmem:[%s2 + $0x80] sm:$0xff]
      %v3588 = vld [vmem:[%s2 + $0x88] sm:$0xff]
      %v3589 = vld [vmem:[%s2 + $0x90] sm:$0xff]
      %v3590 = vld [vmem:[%s2 + $0x98] sm:$0xff]
      %v3591 = vld [vmem:[%s2 + $0xa0] sm:$0xff]
      %v3592 = vld [vmem:[%s2 + $0xa8] sm:$0xff]
      %v3593 = vld [vmem:[%s2 + $0xb0] sm:$0xff]
      %v3594 = vld [vmem:[%s2 + $0xb8] sm:$0xff]
      %v3595 = vld [vmem:[%s2 + $0xc0] sm:$0xff]
      %v3596 = vld [vmem:[%s2 + $0xc8] sm:$0xff]
      %v3597 = vld [vmem:[%s2 + $0xd0] sm:$0xff]
      %v3598 = vld [vmem:[%s2 + $0xd8] sm:$0xff]
      %v3599 = vld [vmem:[%s2 + $0xe0] sm:$0xff]
      %v3600 = vld [vmem:[%s2 + $0xe8] sm:$0xff]
      %v3601 = vld [vmem:[%s2 + $0xf0] sm:$0xff]
      %v3602 = vld [vmem:[%s2 + $0xf8] sm:$0xff]
      %v3603 = vld [vmem:[%s2 + $0x100] sm:$0xff]
      %v3604 = vld [vmem:[%s2 + $0x108] sm:$0xff]
      %v3605 = vld [vmem:[%s2 + $0x110] sm:$0xff]
      %v3606 = vld [vmem:[%s2 + $0x118] sm:$0xff]
      %3608 = vset.pattern.permute.xlu0 0
      %3609 = vperm.xlu0 %3608, %v3571
      %v3610 = vpop.permute.xlu0 %3609
      %3613 = vset.pattern.permute.xlu0 0
      %3614 = vperm.xlu0 %3613, %v3572
      %v3615 = vpop.permute.xlu0 %3614
      %3618 = vset.pattern.permute.xlu0 0
      %3619 = vperm.xlu0 %3618, %v3573
      %v3620 = vpop.permute.xlu0 %3619
      %3623 = vset.pattern.permute.xlu0 0
      %3624 = vperm.xlu0 %3623, %v3574
      %v3625 = vpop.permute.xlu0 %3624
      %3628 = vset.pattern.permute.xlu0 0
      %3629 = vperm.xlu0 %3628, %v3575
      %v3630 = vpop.permute.xlu0 %3629
      %3633 = vset.pattern.permute.xlu0 0
      %3634 = vperm.xlu0 %3633, %v3576
      %v3635 = vpop.permute.xlu0 %3634
      %3638 = vset.pattern.permute.xlu0 0
      %3639 = vperm.xlu0 %3638, %v3577
      %v3640 = vpop.permute.xlu0 %3639
      %3643 = vset.pattern.permute.xlu0 0
      %3644 = vperm.xlu0 %3643, %v3578
      %v3645 = vpop.permute.xlu0 %3644
      %3648 = vset.pattern.permute.xlu0 0
      %3649 = vperm.xlu0 %3648, %v3579
      %v3650 = vpop.permute.xlu0 %3649
      %3653 = vset.pattern.permute.xlu0 0
      %3654 = vperm.xlu0 %3653, %v3580
      %v3655 = vpop.permute.xlu0 %3654
      %3658 = vset.pattern.permute.xlu0 0
      %3659 = vperm.xlu0 %3658, %v3581
      %v3660 = vpop.permute.xlu0 %3659
      %3663 = vset.pattern.permute.xlu0 0
      %3664 = vperm.xlu0 %3663, %v3582
      %v3665 = vpop.permute.xlu0 %3664
      %3668 = vset.pattern.permute.xlu0 0
      %3669 = vperm.xlu0 %3668, %v3583
      %v3670 = vpop.permute.xlu0 %3669
      %3673 = vset.pattern.permute.xlu0 0
      %3674 = vperm.xlu0 %3673, %v3584
      %v3675 = vpop.permute.xlu0 %3674
      %3678 = vset.pattern.permute.xlu0 0
      %3679 = vperm.xlu0 %3678, %v3585
      %v3680 = vpop.permute.xlu0 %3679
      %3683 = vset.pattern.permute.xlu0 0
      %3684 = vperm.xlu0 %3683, %v3586
      %v3685 = vpop.permute.xlu0 %3684
      %3688 = vset.pattern.permute.xlu0 0
      %3689 = vperm.xlu0 %3688, %v3587
      %v3690 = vpop.permute.xlu0 %3689
      %3693 = vset.pattern.permute.xlu0 0
      %3694 = vperm.xlu0 %3693, %v3588
      %v3695 = vpop.permute.xlu0 %3694
      %3698 = vset.pattern.permute.xlu0 0
      %3699 = vperm.xlu0 %3698, %v3589
      %v3700 = vpop.permute.xlu0 %3699
      %3703 = vset.pattern.permute.xlu0 0
      %3704 = vperm.xlu0 %3703, %v3590
      %v3705 = vpop.permute.xlu0 %3704
      %3708 = vset.pattern.permute.xlu0 0
      %3709 = vperm.xlu0 %3708, %v3591
      %v3710 = vpop.permute.xlu0 %3709
      %3713 = vset.pattern.permute.xlu0 0
      %3714 = vperm.xlu0 %3713, %v3592
      %v3715 = vpop.permute.xlu0 %3714
      %3718 = vset.pattern.permute.xlu0 0
      %3719 = vperm.xlu0 %3718, %v3593
      %v3720 = vpop.permute.xlu0 %3719
      %3723 = vset.pattern.permute.xlu0 0
      %3724 = vperm.xlu0 %3723, %v3594
      %v3725 = vpop.permute.xlu0 %3724
      %3728 = vset.pattern.permute.xlu0 0
      %3729 = vperm.xlu0 %3728, %v3595
      %v3730 = vpop.permute.xlu0 %3729
      %3733 = vset.pattern.permute.xlu0 0
      %3734 = vperm.xlu0 %3733, %v3596
      %v3735 = vpop.permute.xlu0 %3734
      %3738 = vset.pattern.permute.xlu0 0
      %3739 = vperm.xlu0 %3738, %v3597
      %v3740 = vpop.permute.xlu0 %3739
      %3743 = vset.pattern.permute.xlu0 0
      %3744 = vperm.xlu0 %3743, %v3598
      %v3745 = vpop.permute.xlu0 %3744
      %3748 = vset.pattern.permute.xlu0 0
      %3749 = vperm.xlu0 %3748, %v3599
      %v3750 = vpop.permute.xlu0 %3749
      %3753 = vset.pattern.permute.xlu0 0
      %3754 = vperm.xlu0 %3753, %v3600
      %v3755 = vpop.permute.xlu0 %3754
      %3758 = vset.pattern.permute.xlu0 0
      %3759 = vperm.xlu0 %3758, %v3601
      %v3760 = vpop.permute.xlu0 %3759
      %3763 = vset.pattern.permute.xlu0 0
      %3764 = vperm.xlu0 %3763, %v3602
      %v3765 = vpop.permute.xlu0 %3764
      %3768 = vset.pattern.permute.xlu0 0
      %3769 = vperm.xlu0 %3768, %v3603
      %v3770 = vpop.permute.xlu0 %3769
      %3773 = vset.pattern.permute.xlu0 0
      %3774 = vperm.xlu0 %3773, %v3604
      %v3775 = vpop.permute.xlu0 %3774
      %3778 = vset.pattern.permute.xlu0 0
      %3779 = vperm.xlu0 %3778, %v3605
      %v3780 = vpop.permute.xlu0 %3779
      %3783 = vset.pattern.permute.xlu0 0
      %3784 = vperm.xlu0 %3783, %v3606
      %v3785 = vpop.permute.xlu0 %3784
      %v3787 = vmul.f32 %v3499, %v3610
      %v3788 = vmul.f32 %v3500, %v3615
      %v3789 = vmul.f32 %v3501, %v3620
      %v3790 = vmul.f32 %v3502, %v3625
      %v3791 = vmul.f32 %v3503, %v3630
      %v3792 = vmul.f32 %v3504, %v3635
      %v3793 = vmul.f32 %v3505, %v3640
      %v3794 = vmul.f32 %v3506, %v3645
      %v3795 = vmul.f32 %v3507, %v3650
      %v3796 = vmul.f32 %v3508, %v3655
      %v3797 = vmul.f32 %v3509, %v3660
      %v3798 = vmul.f32 %v3510, %v3665
      %v3799 = vmul.f32 %v3511, %v3670
      %v3800 = vmul.f32 %v3512, %v3675
      %v3801 = vmul.f32 %v3513, %v3680
      %v3802 = vmul.f32 %v3514, %v3685
      %v3803 = vmul.f32 %v3515, %v3690
      %v3804 = vmul.f32 %v3516, %v3695
      %v3805 = vmul.f32 %v3517, %v3700
      %v3806 = vmul.f32 %v3518, %v3705
      %v3807 = vmul.f32 %v3519, %v3710
      %v3808 = vmul.f32 %v3520, %v3715
      %v3809 = vmul.f32 %v3521, %v3720
      %v3810 = vmul.f32 %v3522, %v3725
      %v3811 = vmul.f32 %v3523, %v3730
      %v3812 = vmul.f32 %v3524, %v3735
      %v3813 = vmul.f32 %v3525, %v3740
      %v3814 = vmul.f32 %v3526, %v3745
      %v3815 = vmul.f32 %v3527, %v3750
      %v3816 = vmul.f32 %v3528, %v3755
      %v3817 = vmul.f32 %v3529, %v3760
      %v3818 = vmul.f32 %v3530, %v3765
      %v3819 = vmul.f32 %v3531, %v3770
      %v3820 = vmul.f32 %v3532, %v3775
      %v3821 = vmul.f32 %v3533, %v3780
      %v3822 = vmul.f32 %v3534, %v3785
      %v3823 = vsel %vm570, %v3787, 0.0
      %v3824 = vsel %vm570, %v3788, 0.0
      %v3825 = vadd.f32 %v3823, %v3824
      %v3826 = vsel %vm570, %v3789, 0.0
      %v3827 = vadd.f32 %v3825, %v3826
      %v3828 = vsel %vm570, %v3790, 0.0
      %v3829 = vadd.f32 %v3827, %v3828
      %v3830 = vsel %vm570, %v3791, 0.0
      %v3831 = vadd.f32 %v3829, %v3830
      %v3832 = vsel %vm570, %v3792, 0.0
      %v3833 = vadd.f32 %v3831, %v3832
      %v3834 = vsel %vm570, %v3793, 0.0
      %v3835 = vadd.f32 %v3833, %v3834
      %v3836 = vsel %vm570, %v3794, 0.0
      %v3837 = vadd.f32 %v3835, %v3836
      %v3838 = vsel %vm570, %v3795, 0.0
      %v3839 = vadd.f32 %v3837, %v3838
      %v3840 = vsel %vm570, %v3796, 0.0
      %v3841 = vadd.f32 %v3839, %v3840
      %v3842 = vsel %vm570, %v3797, 0.0
      %v3843 = vadd.f32 %v3841, %v3842
      %v3844 = vsel %vm570, %v3798, 0.0
      %v3845 = vadd.f32 %v3843, %v3844
      %v3846 = vsel %vm570, %v3799, 0.0
      %v3847 = vadd.f32 %v3845, %v3846
      %v3848 = vsel %vm570, %v3800, 0.0
      %v3849 = vadd.f32 %v3847, %v3848
      %v3850 = vsel %vm570, %v3801, 0.0
      %v3851 = vadd.f32 %v3849, %v3850
      %v3852 = vsel %vm570, %v3802, 0.0
      %v3853 = vadd.f32 %v3851, %v3852
      %v3854 = vsel %vm570, %v3803, 0.0
      %v3855 = vadd.f32 %v3853, %v3854
      %v3856 = vsel %vm570, %v3804, 0.0
      %v3857 = vadd.f32 %v3855, %v3856
      %v3858 = vsel %vm570, %v3805, 0.0
      %v3859 = vadd.f32 %v3857, %v3858
      %v3860 = vsel %vm570, %v3806, 0.0
      %v3861 = vadd.f32 %v3859, %v3860
      %v3862 = vsel %vm570, %v3807, 0.0
      %v3863 = vadd.f32 %v3861, %v3862
      %v3864 = vsel %vm570, %v3808, 0.0
      %v3865 = vadd.f32 %v3863, %v3864
      %v3866 = vsel %vm570, %v3809, 0.0
      %v3867 = vadd.f32 %v3865, %v3866
      %v3868 = vsel %vm570, %v3810, 0.0
      %v3869 = vadd.f32 %v3867, %v3868
      %v3870 = vsel %vm570, %v3811, 0.0
      %v3871 = vadd.f32 %v3869, %v3870
      %v3872 = vsel %vm570, %v3812, 0.0
      %v3873 = vadd.f32 %v3871, %v3872
      %v3874 = vsel %vm570, %v3813, 0.0
      %v3875 = vadd.f32 %v3873, %v3874
      %v3876 = vsel %vm570, %v3814, 0.0
      %v3877 = vadd.f32 %v3875, %v3876
      %v3878 = vsel %vm570, %v3815, 0.0
      %v3879 = vadd.f32 %v3877, %v3878
      %v3880 = vsel %vm570, %v3816, 0.0
      %v3881 = vadd.f32 %v3879, %v3880
      %v3882 = vsel %vm570, %v3817, 0.0
      %v3883 = vadd.f32 %v3881, %v3882
      %v3884 = vsel %vm570, %v3818, 0.0
      %v3885 = vadd.f32 %v3883, %v3884
      %v3886 = vsel %vm570, %v3819, 0.0
      %v3887 = vadd.f32 %v3885, %v3886
      %v3888 = vsel %vm570, %v3820, 0.0
      %v3889 = vadd.f32 %v3887, %v3888
      %v3890 = vsel %vm570, %v3821, 0.0
      %v3891 = vadd.f32 %v3889, %v3890
      %v3892 = vsel %vm570, %v3822, 0.0
      %v3893 = vadd.f32 %v3891, %v3892
      %v3894 = vrot.slane %v3893, 4
      %v3895 = vadd.f32 %v3893, %v3894
      %v3896 = vrot.slane %v3895, 2
      %v3897 = vadd.f32 %v3895, %v3896
      %v3898 = vrot.slane %v3897, 1
      %v3899 = vadd.f32 %v3897, %v3898
      %vm3900 = vcmask 57344
      %3901 = vst.msk [vmem:[%s282] sm:$0x1] %vm3900, %v3899
      %v3902 = vmul.f32 %v3787, %v3787
      %v3903 = vmul.f32 %v3788, %v3788
      %v3904 = vmul.f32 %v3789, %v3789
      %v3905 = vmul.f32 %v3790, %v3790
      %v3906 = vmul.f32 %v3791, %v3791
      %v3907 = vmul.f32 %v3792, %v3792
      %v3908 = vmul.f32 %v3793, %v3793
      %v3909 = vmul.f32 %v3794, %v3794
      %v3910 = vmul.f32 %v3795, %v3795
      %v3911 = vmul.f32 %v3796, %v3796
      %v3912 = vmul.f32 %v3797, %v3797
      %v3913 = vmul.f32 %v3798, %v3798
      %v3914 = vmul.f32 %v3799, %v3799
      %v3915 = vmul.f32 %v3800, %v3800
      %v3916 = vmul.f32 %v3801, %v3801
      %v3917 = vmul.f32 %v3802, %v3802
      %v3918 = vmul.f32 %v3803, %v3803
      %v3919 = vmul.f32 %v3804, %v3804
      %v3920 = vmul.f32 %v3805, %v3805
      %v3921 = vmul.f32 %v3806, %v3806
      %v3922 = vmul.f32 %v3807, %v3807
      %v3923 = vmul.f32 %v3808, %v3808
      %v3924 = vmul.f32 %v3809, %v3809
      %v3925 = vmul.f32 %v3810, %v3810
      %v3926 = vmul.f32 %v3811, %v3811
      %v3927 = vmul.f32 %v3812, %v3812
      %v3928 = vmul.f32 %v3813, %v3813
      %v3929 = vmul.f32 %v3814, %v3814
      %v3930 = vmul.f32 %v3815, %v3815
      %v3931 = vmul.f32 %v3816, %v3816
      %v3932 = vmul.f32 %v3817, %v3817
      %v3933 = vmul.f32 %v3818, %v3818
      %v3934 = vmul.f32 %v3819, %v3819
      %v3935 = vmul.f32 %v3820, %v3820
      %v3936 = vmul.f32 %v3821, %v3821
      %v3937 = vmul.f32 %v3822, %v3822
      %v3938 = vsel %vm570, %v3902, 0.0
      %v3939 = vsel %vm570, %v3903, 0.0
      %v3940 = vadd.f32 %v3938, %v3939
      %v3941 = vsel %vm570, %v3904, 0.0
      %v3942 = vadd.f32 %v3940, %v3941
      %v3943 = vsel %vm570, %v3905, 0.0
      %v3944 = vadd.f32 %v3942, %v3943
      %v3945 = vsel %vm570, %v3906, 0.0
      %v3946 = vadd.f32 %v3944, %v3945
      %v3947 = vsel %vm570, %v3907, 0.0
      %v3948 = vadd.f32 %v3946, %v3947
      %v3949 = vsel %vm570, %v3908, 0.0
      %v3950 = vadd.f32 %v3948, %v3949
      %v3951 = vsel %vm570, %v3909, 0.0
      %v3952 = vadd.f32 %v3950, %v3951
      %v3953 = vsel %vm570, %v3910, 0.0
      %v3954 = vadd.f32 %v3952, %v3953
      %v3955 = vsel %vm570, %v3911, 0.0
      %v3956 = vadd.f32 %v3954, %v3955
      %v3957 = vsel %vm570, %v3912, 0.0
      %v3958 = vadd.f32 %v3956, %v3957
      %v3959 = vsel %vm570, %v3913, 0.0
      %v3960 = vadd.f32 %v3958, %v3959
      %v3961 = vsel %vm570, %v3914, 0.0
      %v3962 = vadd.f32 %v3960, %v3961
      %v3963 = vsel %vm570, %v3915, 0.0
      %v3964 = vadd.f32 %v3962, %v3963
      %v3965 = vsel %vm570, %v3916, 0.0
      %v3966 = vadd.f32 %v3964, %v3965
      %v3967 = vsel %vm570, %v3917, 0.0
      %v3968 = vadd.f32 %v3966, %v3967
      %v3969 = vsel %vm570, %v3918, 0.0
      %v3970 = vadd.f32 %v3968, %v3969
      %v3971 = vsel %vm570, %v3919, 0.0
      %v3972 = vadd.f32 %v3970, %v3971
      %v3973 = vsel %vm570, %v3920, 0.0
      %v3974 = vadd.f32 %v3972, %v3973
      %v3975 = vsel %vm570, %v3921, 0.0
      %v3976 = vadd.f32 %v3974, %v3975
      %v3977 = vsel %vm570, %v3922, 0.0
      %v3978 = vadd.f32 %v3976, %v3977
      %v3979 = vsel %vm570, %v3923, 0.0
      %v3980 = vadd.f32 %v3978, %v3979
      %v3981 = vsel %vm570, %v3924, 0.0
      %v3982 = vadd.f32 %v3980, %v3981
      %v3983 = vsel %vm570, %v3925, 0.0
      %v3984 = vadd.f32 %v3982, %v3983
      %v3985 = vsel %vm570, %v3926, 0.0
      %v3986 = vadd.f32 %v3984, %v3985
      %v3987 = vsel %vm570, %v3927, 0.0
      %v3988 = vadd.f32 %v3986, %v3987
      %v3989 = vsel %vm570, %v3928, 0.0
      %v3990 = vadd.f32 %v3988, %v3989
      %v3991 = vsel %vm570, %v3929, 0.0
      %v3992 = vadd.f32 %v3990, %v3991
      %v3993 = vsel %vm570, %v3930, 0.0
      %v3994 = vadd.f32 %v3992, %v3993
      %v3995 = vsel %vm570, %v3931, 0.0
      %v3996 = vadd.f32 %v3994, %v3995
      %v3997 = vsel %vm570, %v3932, 0.0
      %v3998 = vadd.f32 %v3996, %v3997
      %v3999 = vsel %vm570, %v3933, 0.0
      %v4000 = vadd.f32 %v3998, %v3999
      %v4001 = vsel %vm570, %v3934, 0.0
      %v4002 = vadd.f32 %v4000, %v4001
      %v4003 = vsel %vm570, %v3935, 0.0
      %v4004 = vadd.f32 %v4002, %v4003
      %v4005 = vsel %vm570, %v3936, 0.0
      %v4006 = vadd.f32 %v4004, %v4005
      %v4007 = vsel %vm570, %v3937, 0.0
      %v4008 = vadd.f32 %v4006, %v4007
      %v4009 = vrot.slane %v4008, 4
      %v4010 = vadd.f32 %v4008, %v4009
      %v4011 = vrot.slane %v4010, 2
      %v4012 = vadd.f32 %v4010, %v4011
      %v4013 = vrot.slane %v4012, 1
      %v4014 = vadd.f32 %v4012, %v4013
      %4015 = vst.msk [vmem:[%s282 + $0x1] sm:$0x1] %vm3900, %v4014
      %p4016 = scmp.lt.s32.totalorder %s18, 1
      %s4017 = scalar_select %p4016, %s18, 1
      %s4018 = smul.addr %s4017, 36
      %s4019 = smul.addr %s4018, 8
      %s4020 = scalar_lea.vmem %s5, %s4019
      %p4021 = scmp.lt.s32.totalorder %s18, 1
      %s4022 = scalar_select %p4021, %s18, 1
      %s4023 = smul.addr %s4022, 2
      %s4024 = scalar_lea.vmem %s6, %s4023
      // Predicated region
      $region41: #{resblock_forward.6} parent=39 // pred_check
        %p4025 = pneg %p151
      $region42: #{resblock_forward.6} parent=39 // pred_check_branch
        %4027 = sbr.rel (%p4025) target = $region44
      $region43: #{resblock_forward.6} parent=39 // pred_region
        _
      $region44: #{resblock_forward.6} parent=39 // pred_fallthru
        _
      // Predicated region
      $region45: #{resblock_forward.6} parent=39 // pred_check
        %p4028 = pneg %p177
      $region46: #{resblock_forward.6} parent=39 // pred_check_branch
        %4030 = sbr.rel (%p4028) target = $region48
      $region47: #{resblock_forward.6} parent=39 // pred_region
        _
      $region48: #{resblock_forward.6} parent=39 // pred_fallthru
        _
    $region40: #{resblock_forward.6} parent=5 // pred_fallthru
      _
    %p4031 = scmp.le.s32.totalorder 2, %s13
    // Predicated region
    $region49: #{resblock_forward.6} parent=5 // pred_check
      %p4032 = pneg %p4031
    $region50: #{resblock_forward.6} parent=5 // pred_check_branch
      %4034 = sbr.rel (%p4032) target = $region52
    $region51: #{resblock_forward.6} parent=5 // pred_region
      %s4035 = ssub.s32 %s13, 2
      // Predicated region
      $region53: #{resblock_forward.6} parent=51 // pred_check
        %p4036 = pneg %p157
      $region54: #{resblock_forward.6} parent=51 // pred_check_branch
        %4038 = sbr.rel (%p4036) target = $region56
      $region55: #{resblock_forward.6} parent=51 // pred_region
        %p4039 = scmp.lt.s32.totalorder %s19, 1
        %s4040 = scalar_select %p4039, %s19, 1
        %s4041 = smul.addr %s4040, 36
        %s4042 = smul.addr %s4041, 8
        %s4043 = scalar_lea.vmem %s5, %s4042
      $region56: #{resblock_forward.6} parent=51 // pred_fallthru
        _
      // Predicated region
      $region57: #{resblock_forward.6} parent=51 // pred_check
        %p4044 = pneg %p183
      $region58: #{resblock_forward.6} parent=51 // pred_check_branch
        %4046 = sbr.rel (%p4044) target = $region60
      $region59: #{resblock_forward.6} parent=51 // pred_region
        %p4047 = scmp.lt.s32.totalorder %s19, 1
        %s4048 = scalar_select %p4047, %s19, 1
        %s4049 = smul.addr %s4048, 2
        %s4050 = scalar_lea.vmem %s6, %s4049
      $region60: #{resblock_forward.6} parent=51 // pred_fallthru
        _
    $region52: #{resblock_forward.6} parent=5 // pred_fallthru
      _
  $region6: #{resblock_forward.6} parent=0 // loop_footer
    %s17 = sadd.s32 1, %s13
  $region7: #{resblock_forward.6} parent=0 // loop_footer_branch
    %12 = sbr.rel target = $region3
  $region8: #{resblock_forward.6} parent=0 // loop_exit
    _

</llo_original>
